<compile_context>
chip_gen: v7x
topology: tpu7x:2x2x1
jax: 0.10.0
libtpu: 0.0.40
codegen_flags: <defaults>
</compile_context>

<pallas_src>
import jax
import jax.numpy as jnp
from jax import lax
from jax.experimental import pallas as pl
from jax.experimental.pallas import tpu as pltpu


_VMEM_LIMIT = 64 * 1024 * 1024  # raised vs. default scoped limit; usage stays far below.


# --------------------------------------------------------------------------
# tile-size helpers
# --------------------------------------------------------------------------
def _pick_hw_tile(hw, max_tile=2048):
    """Largest HW tile that divides hw and satisfies the 128-lane rule."""
    if hw <= max_tile:
        return hw
    cands = [t for t in range(128, max_tile + 1, 128) if hw % t == 0]
    return max(cands) if cands else hw


def _pick_channel_tile(c, spatial_elems, itemsize, budget=2 << 20):
    """Largest channel tile (multiple of 8, divides c) whose input block fits budget."""
    if c * spatial_elems * itemsize <= budget:
        return c
    divisors = [t for t in range(8, c, 8) if c % t == 0]
    fitting = [t for t in divisors if t * spatial_elems * itemsize <= budget]
    if fitting:
        return max(fitting)
    return min(divisors) if divisors else c


# --------------------------------------------------------------------------
# 1x1 (pointwise) conv, channel-major: out(Cout, HWt) = W(Cout,Cin) @ x(Cin, HWt)
# --------------------------------------------------------------------------
def _conv1x1_kernel(x_ref, w_ref, b_ref, o_ref):
    # x_ref: (1, Cin, T)   w_ref: (Cout, Cin) bf16   b_ref: (Cout, 1) f32
    # o_ref: (1, Cout, T)  -- lane dim is HW tile (>=128 or full) => dense stores
    x = x_ref[0].astype(w_ref.dtype)
    y = jnp.dot(w_ref[...], x, preferred_element_type=jnp.float32) + b_ref[...]
    o_ref[0] = y.astype(o_ref.dtype)


def conv1x1_cm(x_cm, w, bias, out_dtype):
    # x_cm: (b, Cin, HW); w: (Cout, Cin); bias: (Cout,)
    b, cin, hw = x_cm.shape
    cout = w.shape[0]
    t = _pick_hw_tile(hw)
    return pl.pallas_call(
        _conv1x1_kernel,
        out_shape=jax.ShapeDtypeStruct((b, cout, hw), out_dtype),
        grid=(b, hw // t),
        in_specs=[
            pl.BlockSpec((1, cin, t), lambda bi, ti: (bi, 0, ti)),
            pl.BlockSpec((cout, cin), lambda bi, ti: (0, 0)),
            pl.BlockSpec((cout, 1), lambda bi, ti: (0, 0)),
        ],
        out_specs=pl.BlockSpec((1, cout, t), lambda bi, ti: (bi, 0, ti)),
        compiler_params=pltpu.CompilerParams(
            dimension_semantics=("parallel", "parallel"),
            vmem_limit_bytes=_VMEM_LIMIT),
    )(x_cm, w, bias.reshape(cout, 1).astype(jnp.float32))


# --------------------------------------------------------------------------
# depthwise 3x3 conv (padding=1, groups=C), channel-tiled
# --------------------------------------------------------------------------
def _dwconv3x3_kernel(xp_ref, w_ref, b_ref, o_ref):
    # xp_ref: (1, TC, H+2, W+2) bf16   w_ref: (TC, 3, 3) f32   b_ref: (TC, 1) f32
    # o_ref:  (1, TC, H, W) bf16
    x = xp_ref[0].astype(jnp.float32)
    w = w_ref[...]
    H, W = o_ref.shape[2], o_ref.shape[3]
    tc = x.shape[0]
    acc = jnp.zeros((tc, H, W), jnp.float32)
    for ki in range(3):
        for kj in range(3):
            tap = w[:, ki, kj][:, None, None]               # (TC, 1, 1)
            acc = acc + x[:, ki:ki + H, kj:kj + W] * tap
    o_ref[0] = (acc + b_ref[...][:, :, None]).astype(o_ref.dtype)


def dwconv3x3(x_img, w, bias, out_dtype):
    # x_img: (b, C, H, W) bf16; w: (C, 3, 3); bias: (C,)
    b, c, h, ww = x_img.shape
    # TODO(synk): move the halo in-kernel (pltpu.roll + edge masks) once W is
    # guaranteed 128-lane aligned; XLA-side zero pad is kept for robustness at
    # small / unaligned W (the pad now runs on the half-width bf16 tensor).
    xpad = jnp.pad(x_img, ((0, 0), (0, 0), (1, 1), (1, 1)))
    tc = _pick_channel_tile(c, (h + 2) * (ww + 2), xpad.dtype.itemsize)
    return pl.pallas_call(
        _dwconv3x3_kernel,
        out_shape=jax.ShapeDtypeStruct((b, c, h, ww), out_dtype),
        grid=(b, c // tc),
        in_specs=[
            pl.BlockSpec((1, tc, h + 2, ww + 2), lambda bi, ci: (bi, ci, 0, 0)),
            pl.BlockSpec((tc, 3, 3), lambda bi, ci: (ci, 0, 0)),
            pl.BlockSpec((tc, 1), lambda bi, ci: (ci, 0)),
        ],
        out_specs=pl.BlockSpec((1, tc, h, ww), lambda bi, ci: (bi, ci, 0, 0)),
        compiler_params=pltpu.CompilerParams(
            dimension_semantics=("parallel", "parallel"),
            vmem_limit_bytes=_VMEM_LIMIT),
    )(xpad, w.astype(jnp.float32), bias.reshape(c, 1).astype(jnp.float32))


# --------------------------------------------------------------------------
# attention core (all heads batched) + fused project_out 1x1 conv
# --------------------------------------------------------------------------
def _attn_proj_kernel(qkv_ref, t_ref, wp_ref, bp_ref, o_ref):
    # qkv_ref: (1, 3, heads, ch, hw) bf16
    # t_ref:   (heads, 1) f32
    # wp_ref:  (heads, c, ch) bf16  (Wp[:, h*ch:(h+1)*ch] per head)
    # bp_ref:  (c, 1) f32
    # o_ref:   (1, c, hw) f32
    heads = qkv_ref.shape[2]
    c, hw = o_ref.shape[1], o_ref.shape[2]

    q = qkv_ref[0, 0].astype(jnp.float32)                    # (heads, ch, hw)
    k = qkv_ref[0, 1].astype(jnp.float32)

    # F.normalize(dim=-1): x / max(||x||, 1e-12)  ==  x * rsqrt(max(sum(x^2), 1e-24))
    qn = q * lax.rsqrt(jnp.maximum(jnp.sum(q * q, axis=-1, keepdims=True), 1e-24))
    kn = k * lax.rsqrt(jnp.maximum(jnp.sum(k * k, axis=-1, keepdims=True), 1e-24))

    # batched (per-head) Q @ K^T on the MXU, bf16 operands, f32 accumulation
    logits = jnp.einsum("hck,hdk->hcd",
                        qn.astype(jnp.bfloat16), kn.astype(jnp.bfloat16),
                        preferred_element_type=jnp.float32)   # (heads, ch, ch)
    logits = logits * t_ref[...][:, :, None]
    logits = logits - jnp.max(logits, axis=-1, keepdims=True)
    p = jnp.exp(logits)
    p = p * pl.reciprocal(jnp.sum(p, axis=-1, keepdims=True), approx=True)
    p = p.astype(jnp.bfloat16)                                # (heads, ch, ch)

    # Fused project_out:  sum_h Wp_h @ (P_h @ V_h) == sum_h (Wp_h @ P_h) @ V_h
    # -> avoids materializing the (heads, ch, hw) attention output entirely.
    acc = jnp.zeros((c, hw), jnp.float32)
    for hh in range(heads):                                   # static unroll, heads is small
        wp_p = jnp.dot(wp_ref[hh], p[hh],
                       preferred_element_type=jnp.float32)    # (c, ch)
        v_h = qkv_ref[0, 2, hh]                               # (ch, hw) bf16
        acc = acc + jnp.dot(wp_p.astype(jnp.bfloat16), v_h,
                            preferred_element_type=jnp.float32)
    o_ref[0] = acc + bp_ref[...]


def attention_project(qkv5, temperature, wp_heads, b_proj):
    # qkv5: (b, 3, heads, ch, hw) bf16; temperature: (heads, 1);
    # wp_heads: (heads, c, ch) bf16; b_proj: (c, 1)
    b, _, heads, ch, hw = qkv5.shape
    c = wp_heads.shape[1]
    return pl.pallas_call(
        _attn_proj_kernel,
        out_shape=jax.ShapeDtypeStruct((b, c, hw), jnp.float32),
        grid=(b,),
        in_specs=[
            pl.BlockSpec((1, 3, heads, ch, hw), lambda bi: (bi, 0, 0, 0, 0)),
            pl.BlockSpec((heads, 1), lambda bi: (0, 0)),
            pl.BlockSpec((heads, c, ch), lambda bi: (0, 0, 0)),
            pl.BlockSpec((c, 1), lambda bi: (0, 0)),
        ],
        out_specs=pl.BlockSpec((1, c, hw), lambda bi: (bi, 0, 0)),
        compiler_params=pltpu.CompilerParams(
            dimension_semantics=("parallel",),
            vmem_limit_bytes=_VMEM_LIMIT),
    )(qkv5, temperature.astype(jnp.float32), wp_heads, b_proj.astype(jnp.float32))


# --------------------------------------------------------------------------
# full forward pass (thin JAX glue: only metadata reshapes, no transposes)
# --------------------------------------------------------------------------
def attention_forward(x, params, num_heads, compute_dtype=jnp.bfloat16):
    # x: (b, c, h, w) NCHW, matching the PyTorch module
    b, c, h, w = x.shape
    hw = h * w
    ch = c // num_heads

    # qkv 1x1 conv (channel-major, HW in lanes)
    x_cm = x.reshape(b, c, hw)
    qkv_cm = conv1x1_cm(x_cm, params["w_qkv"].astype(compute_dtype),
                        params["b_qkv"], out_dtype=compute_dtype)       # (b, 3c, hw)

    # depthwise 3x3 conv
    qkv_img = qkv_cm.reshape(b, 3 * c, h, w)
    qkv_dw = dwconv3x3(qkv_img, params["w_dw"], params["b_dw"],
                       out_dtype=compute_dtype)                          # (b, 3c, h, w)

    # split q/k/v + head split happen as pure metadata reshape; one fused
    # attention + project_out kernel consumes the whole (3, heads, ch, hw) block.
    qkv5 = qkv_dw.reshape(b, 3, num_heads, ch, hw)
    wp_heads = (params["w_proj"].reshape(c, num_heads, ch)
                .transpose(1, 0, 2).astype(compute_dtype))               # (heads, c, ch)
    y_cm = attention_project(qkv5,
                             params["temperature"].reshape(num_heads, 1),
                             wp_heads,
                             params["b_proj"].reshape(c, 1))             # (b, c, hw) f32
    return y_cm.reshape(b, c, h, w)


# --------------------------------------------------------------------------
# pure-JAX f32 reference (mirrors the PyTorch module) for a loose self-check
# --------------------------------------------------------------------------
def _reference_forward(x, params, num_heads):
    b, c, h, w = x.shape
    hw = h * w
    ch = c // num_heads
    qkv = (jnp.einsum("oc,bchw->bohw", params["w_qkv"], x)
           + params["b_qkv"][None, :, None, None])
    xpad = jnp.pad(qkv, ((0, 0), (0, 0), (1, 1), (1, 1)))
    out = jnp.zeros_like(qkv)
    for ki in range(3):
        for kj in range(3):
            out = out + xpad[:, :, ki:ki + h, kj:kj + w] * \
                params["w_dw"][None, :, ki, kj, None, None]
    qkv_dw = out + params["b_dw"][None, :, None, None]
    q, k, v = jnp.split(qkv_dw, 3, axis=1)
    q = q.reshape(b, num_heads, ch, hw)
    k = k.reshape(b, num_heads, ch, hw)
    v = v.reshape(b, num_heads, ch, hw)
    qn = q / jnp.maximum(jnp.sqrt(jnp.sum(q * q, -1, keepdims=True)), 1e-12)
    kn = k / jnp.maximum(jnp.sqrt(jnp.sum(k * k, -1, keepdims=True)), 1e-12)
    attn = jnp.einsum("bhck,bhdk->bhcd", qn, kn) * \
        params["temperature"][None, :, None, None]
    attn = jax.nn.softmax(attn, axis=-1)
    o = jnp.einsum("bhcd,bhdk->bhck", attn, v).reshape(b, c, hw)
    y = jnp.einsum("oc,bcp->bop", params["w_proj"], o) + params["b_proj"][None, :, None]
    return y.reshape(b, c, h, w)


def init_params(key, dim, num_heads):
    ks = jax.random.split(key, 6)
    s = 0.1
    return {
        "w_qkv": s * jax.random.normal(ks[0], (dim * 3, dim), jnp.float32),   # (Cout, Cin)
        "b_qkv": s * jax.random.normal(ks[1], (dim * 3,), jnp.float32),
        "w_dw": s * jax.random.normal(ks[2], (dim * 3, 3, 3), jnp.float32),
        "b_dw": s * jax.random.normal(ks[3], (dim * 3,), jnp.float32),
        "w_proj": s * jax.random.normal(ks[4], (dim, dim), jnp.float32),      # (Cout, Cin)
        "b_proj": s * jax.random.normal(ks[5], (dim,), jnp.float32),
        "temperature": jnp.ones((num_heads,), jnp.float32),
    }


if __name__ == "__main__":
    dim = 16
    num_heads = 4
    b, h, w = 2, 16, 16   # hw = 256 -> lane-aligned output tiles

    key = jax.random.PRNGKey(0)
    kx, kp = jax.random.split(key)
    x = jax.random.normal(kx, (b, dim, h, w), jnp.float32)
    params = init_params(kp, dim, num_heads)

    fwd = jax.jit(attention_forward, static_argnums=(2,))
    y = fwd(x, params, num_heads)
    jax.block_until_ready(y)
    assert y.shape == (b, dim, h, w)

    # Loose check against the f32 reference (bf16 activations => relaxed tolerance).
    y_ref = _reference_forward(x, params, num_heads)
    rel_err = float(jnp.max(jnp.abs(y - y_ref)) / (jnp.max(jnp.abs(y_ref)) + 1e-8))
    assert rel_err < 0.1, f"mismatch vs reference: rel-max err {rel_err:.4f}"

    print("KERNEL_OK")
</pallas_src>

<mosaic_0001>
module attributes {stable_mosaic.version = 11 : i64} {
  func.func @_conv1x1_kernel(%arg0: i32, %arg1: i32, %arg2: memref<1x16x256xf32, #tpu.memory_space<vmem>>, %arg3: memref<48x16xbf16, #tpu.memory_space<vmem>>, %arg4: memref<48x1xf32, #tpu.memory_space<vmem>>, %arg5: memref<1x48x256xbf16, #tpu.memory_space<vmem>>) attributes {dimension_semantics = [#tpu.dimension_semantics<parallel>, #tpu.dimension_semantics<parallel>], iteration_bounds = array<i64: 2, 1>, scalar_prefetch = 0 : i64, scratch_operands = 0 : i64, tpu.core_type = #tpu.core_type<tc>, window_params = [{transform_indices = @transform_0, window_bounds = array<i64: 1, 16, 256>}, {pipeline_mode = #tpu.pipeline_mode<synchronous>, transform_indices = @transform_1, window_bounds = array<i64: 48, 16>}, {pipeline_mode = #tpu.pipeline_mode<synchronous>, transform_indices = @transform_2, window_bounds = array<i64: 48, 1>}, {transform_indices = @transform_3, window_bounds = array<i64: 1, 48, 256>}]} {
    %c0 = arith.constant 0 : index
    %c0_0 = arith.constant 0 : index
    %c0_1 = arith.constant 0 : index
    %0 = vector.load %arg2[%c0, %c0_0, %c0_1] : memref<1x16x256xf32, #tpu.memory_space<vmem>>, vector<1x16x256xf32>
    %1 = vector.shape_cast %0 : vector<1x16x256xf32> to vector<16x256xf32>
    %2 = arith.truncf %1 : vector<16x256xf32> to vector<16x256xbf16>
    %c0_2 = arith.constant 0 : index
    %c0_3 = arith.constant 0 : index
    %3 = vector.load %arg3[%c0_2, %c0_3] : memref<48x16xbf16, #tpu.memory_space<vmem>>, vector<48x16xbf16>
    %cst = arith.constant dense<0.000000e+00> : vector<48x256xf32>
    %4 = tpu.matmul %3, %2, %cst {dimension_numbers = #tpu.dot_dimension_numbers<[1], [0], [0], [1], [0, 0, 1, 1], [], []>} : vector<48x16xbf16>, vector<16x256xbf16>, vector<48x256xf32> -> vector<48x256xf32>
    %c0_4 = arith.constant 0 : index
    %c0_5 = arith.constant 0 : index
    %5 = vector.load %arg4[%c0_4, %c0_5] : memref<48x1xf32, #tpu.memory_space<vmem>>, vector<48x1xf32>
    %6 = vector.broadcast %5 : vector<48x1xf32> to vector<48x256xf32>
    %7 = arith.addf %4, %6 : vector<48x256xf32>
    %8 = arith.truncf %7 : vector<48x256xf32> to vector<48x256xbf16>
    %c0_6 = arith.constant 0 : index
    %c0_7 = arith.constant 0 : index
    %c0_8 = arith.constant 0 : index
    %9 = vector.load %arg5[%c0_6, %c0_7, %c0_8] : memref<1x48x256xbf16, #tpu.memory_space<vmem>>, vector<1x48x256xbf16>
    %10 = vector.shape_cast %9 : vector<1x48x256xbf16> to vector<48x256xbf16>
    %11 = vector.shape_cast %8 : vector<48x256xbf16> to vector<1x48x256xbf16>
    tpu.vector_store %arg5[%c0_6, %c0_7, %c0_8], %11 {strides = array<i32>} : memref<1x48x256xbf16, #tpu.memory_space<vmem>>, vector<1x48x256xbf16>,
    return
  }
  func.func @transform_0(%arg0: i32, %arg1: i32) -> (i32, i32, i32) {
    %c0_i32 = arith.constant 0 : i32
    %c0_i32_0 = arith.constant 0 : i32
    return %arg0, %c0_i32, %arg1 : i32, i32, i32
  }
  func.func @transform_1(%arg0: i32, %arg1: i32) -> (i32, i32) {
    %c0_i32 = arith.constant 0 : i32
    %c0_i32_0 = arith.constant 0 : i32
    %c0_i32_1 = arith.constant 0 : i32
    return %c0_i32, %c0_i32_0 : i32, i32
  }
  func.func @transform_2(%arg0: i32, %arg1: i32) -> (i32, i32) {
    %c0_i32 = arith.constant 0 : i32
    %c0_i32_0 = arith.constant 0 : i32
    %c0_i32_1 = arith.constant 0 : i32
    return %c0_i32, %c0_i32_0 : i32, i32
  }
  func.func @transform_3(%arg0: i32, %arg1: i32) -> (i32, i32, i32) {
    %c0_i32 = arith.constant 0 : i32
    %c0_i32_0 = arith.constant 0 : i32
    return %arg0, %c0_i32, %arg1 : i32, i32, i32
  }
}

module attributes {stable_mosaic.version = 11 : i64} {
  func.func @_dwconv3x3_kernel(%arg0: i32, %arg1: i32, %arg2: memref<1x48x18x18xbf16, #tpu.memory_space<vmem>>, %arg3: memref<48x3x3xf32, #tpu.memory_space<vmem>>, %arg4: memref<48x1xf32, #tpu.memory_space<vmem>>, %arg5: memref<1x48x16x16xbf16, #tpu.memory_space<vmem>>) attributes {dimension_semantics = [#tpu.dimension_semantics<parallel>, #tpu.dimension_semantics<parallel>], iteration_bounds = array<i64: 2, 1>, scalar_prefetch = 0 : i64, scratch_operands = 0 : i64, tpu.core_type = #tpu.core_type<tc>, window_params = [{transform_indices = @transform_0, window_bounds = array<i64: 1, 48, 18, 18>}, {transform_indices = @transform_1, window_bounds = array<i64: 48, 3, 3>}, {transform_indices = @transform_2, window_bounds = array<i64: 48, 1>}, {transform_indices = @transform_3, window_bounds = array<i64: 1, 48, 16, 16>}]} {
    %c0 = arith.constant 0 : index
    %c0_0 = arith.constant 0 : index
    %c0_1 = arith.constant 0 : index
    %c0_2 = arith.constant 0 : index
    %0 = vector.load %arg2[%c0, %c0_0, %c0_1, %c0_2] : memref<1x48x18x18xbf16, #tpu.memory_space<vmem>>, vector<1x48x18x18xbf16>
    %1 = vector.shape_cast %0 : vector<1x48x18x18xbf16> to vector<48x18x18xbf16>
    %2 = arith.extf %1 : vector<48x18x18xbf16> to vector<48x18x18xf32>
    %c0_3 = arith.constant 0 : index
    %c0_4 = arith.constant 0 : index
    %c0_5 = arith.constant 0 : index
    %3 = vector.load %arg3[%c0_3, %c0_4, %c0_5] : memref<48x3x3xf32, #tpu.memory_space<vmem>>, vector<48x3x3xf32>
    %cst = arith.constant 0.000000e+00 : f32
    %4 = vector.broadcast %cst : f32 to vector<48x16x16xf32>
    %5 = vector.extract_strided_slice %3 {offsets = [0, 0, 0], sizes = [48, 1, 1], strides = [1, 1, 1]} : vector<48x3x3xf32> to vector<48x1x1xf32>
    %6 = vector.shape_cast %5 : vector<48x1x1xf32> to vector<48xf32>
    %7 = vector.shape_cast %6 : vector<48xf32> to vector<48x1x1xf32>
    %8 = vector.extract_strided_slice %2 {offsets = [0, 0, 0], sizes = [48, 16, 16], strides = [1, 1, 1]} : vector<48x18x18xf32> to vector<48x16x16xf32>
    %9 = vector.broadcast %7 : vector<48x1x1xf32> to vector<48x16x16xf32>
    %10 = arith.mulf %8, %9 : vector<48x16x16xf32>
    %11 = arith.addf %4, %10 : vector<48x16x16xf32>
    %12 = vector.extract_strided_slice %3 {offsets = [0, 0, 1], sizes = [48, 1, 1], strides = [1, 1, 1]} : vector<48x3x3xf32> to vector<48x1x1xf32>
    %13 = vector.shape_cast %12 : vector<48x1x1xf32> to vector<48xf32>
    %14 = vector.shape_cast %13 : vector<48xf32> to vector<48x1x1xf32>
    %15 = vector.extract_strided_slice %2 {offsets = [0, 0, 1], sizes = [48, 16, 16], strides = [1, 1, 1]} : vector<48x18x18xf32> to vector<48x16x16xf32>
    %16 = vector.broadcast %14 : vector<48x1x1xf32> to vector<48x16x16xf32>
    %17 = arith.mulf %15, %16 : vector<48x16x16xf32>
    %18 = arith.addf %11, %17 : vector<48x16x16xf32>
    %19 = vector.extract_strided_slice %3 {offsets = [0, 0, 2], sizes = [48, 1, 1], strides = [1, 1, 1]} : vector<48x3x3xf32> to vector<48x1x1xf32>
    %20 = vector.shape_cast %19 : vector<48x1x1xf32> to vector<48xf32>
    %21 = vector.shape_cast %20 : vector<48xf32> to vector<48x1x1xf32>
    %22 = vector.extract_strided_slice %2 {offsets = [0, 0, 2], sizes = [48, 16, 16], strides = [1, 1, 1]} : vector<48x18x18xf32> to vector<48x16x16xf32>
    %23 = vector.broadcast %21 : vector<48x1x1xf32> to vector<48x16x16xf32>
    %24 = arith.mulf %22, %23 : vector<48x16x16xf32>
    %25 = arith.addf %18, %24 : vector<48x16x16xf32>
    %26 = vector.extract_strided_slice %3 {offsets = [0, 1, 0], sizes = [48, 1, 1], strides = [1, 1, 1]} : vector<48x3x3xf32> to vector<48x1x1xf32>
    %27 = vector.shape_cast %26 : vector<48x1x1xf32> to vector<48xf32>
    %28 = vector.shape_cast %27 : vector<48xf32> to vector<48x1x1xf32>
    %29 = vector.extract_strided_slice %2 {offsets = [0, 1, 0], sizes = [48, 16, 16], strides = [1, 1, 1]} : vector<48x18x18xf32> to vector<48x16x16xf32>
    %30 = vector.broadcast %28 : vector<48x1x1xf32> to vector<48x16x16xf32>
    %31 = arith.mulf %29, %30 : vector<48x16x16xf32>
    %32 = arith.addf %25, %31 : vector<48x16x16xf32>
    %33 = vector.extract_strided_slice %3 {offsets = [0, 1, 1], sizes = [48, 1, 1], strides = [1, 1, 1]} : vector<48x3x3xf32> to vector<48x1x1xf32>
    %34 = vector.shape_cast %33 : vector<48x1x1xf32> to vector<48xf32>
    %35 = vector.shape_cast %34 : vector<48xf32> to vector<48x1x1xf32>
    %36 = vector.extract_strided_slice %2 {offsets = [0, 1, 1], sizes = [48, 16, 16], strides = [1, 1, 1]} : vector<48x18x18xf32> to vector<48x16x16xf32>
    %37 = vector.broadcast %35 : vector<48x1x1xf32> to vector<48x16x16xf32>
    %38 = arith.mulf %36, %37 : vector<48x16x16xf32>
    %39 = arith.addf %32, %38 : vector<48x16x16xf32>
    %40 = vector.extract_strided_slice %3 {offsets = [0, 1, 2], sizes = [48, 1, 1], strides = [1, 1, 1]} : vector<48x3x3xf32> to vector<48x1x1xf32>
    %41 = vector.shape_cast %40 : vector<48x1x1xf32> to vector<48xf32>
    %42 = vector.shape_cast %41 : vector<48xf32> to vector<48x1x1xf32>
    %43 = vector.extract_strided_slice %2 {offsets = [0, 1, 2], sizes = [48, 16, 16], strides = [1, 1, 1]} : vector<48x18x18xf32> to vector<48x16x16xf32>
    %44 = vector.broadcast %42 : vector<48x1x1xf32> to vector<48x16x16xf32>
    %45 = arith.mulf %43, %44 : vector<48x16x16xf32>
    %46 = arith.addf %39, %45 : vector<48x16x16xf32>
    %47 = vector.extract_strided_slice %3 {offsets = [0, 2, 0], sizes = [48, 1, 1], strides = [1, 1, 1]} : vector<48x3x3xf32> to vector<48x1x1xf32>
    %48 = vector.shape_cast %47 : vector<48x1x1xf32> to vector<48xf32>
    %49 = vector.shape_cast %48 : vector<48xf32> to vector<48x1x1xf32>
    %50 = vector.extract_strided_slice %2 {offsets = [0, 2, 0], sizes = [48, 16, 16], strides = [1, 1, 1]} : vector<48x18x18xf32> to vector<48x16x16xf32>
    %51 = vector.broadcast %49 : vector<48x1x1xf32> to vector<48x16x16xf32>
    %52 = arith.mulf %50, %51 : vector<48x16x16xf32>
    %53 = arith.addf %46, %52 : vector<48x16x16xf32>
    %54 = vector.extract_strided_slice %3 {offsets = [0, 2, 1], sizes = [48, 1, 1], strides = [1, 1, 1]} : vector<48x3x3xf32> to vector<48x1x1xf32>
    %55 = vector.shape_cast %54 : vector<48x1x1xf32> to vector<48xf32>
    %56 = vector.shape_cast %55 : vector<48xf32> to vector<48x1x1xf32>
    %57 = vector.extract_strided_slice %2 {offsets = [0, 2, 1], sizes = [48, 16, 16], strides = [1, 1, 1]} : vector<48x18x18xf32> to vector<48x16x16xf32>
    %58 = vector.broadcast %56 : vector<48x1x1xf32> to vector<48x16x16xf32>
    %59 = arith.mulf %57, %58 : vector<48x16x16xf32>
    %60 = arith.addf %53, %59 : vector<48x16x16xf32>
    %61 = vector.extract_strided_slice %3 {offsets = [0, 2, 2], sizes = [48, 1, 1], strides = [1, 1, 1]} : vector<48x3x3xf32> to vector<48x1x1xf32>
    %62 = vector.shape_cast %61 : vector<48x1x1xf32> to vector<48xf32>
    %63 = vector.shape_cast %62 : vector<48xf32> to vector<48x1x1xf32>
    %64 = vector.extract_strided_slice %2 {offsets = [0, 2, 2], sizes = [48, 16, 16], strides = [1, 1, 1]} : vector<48x18x18xf32> to vector<48x16x16xf32>
    %65 = vector.broadcast %63 : vector<48x1x1xf32> to vector<48x16x16xf32>
    %66 = arith.mulf %64, %65 : vector<48x16x16xf32>
    %67 = arith.addf %60, %66 : vector<48x16x16xf32>
    %c0_6 = arith.constant 0 : index
    %c0_7 = arith.constant 0 : index
    %68 = vector.load %arg4[%c0_6, %c0_7] : memref<48x1xf32, #tpu.memory_space<vmem>>, vector<48x1xf32>
    %69 = vector.shape_cast %68 : vector<48x1xf32> to vector<48x1x1xf32>
    %70 = vector.broadcast %69 : vector<48x1x1xf32> to vector<48x16x16xf32>
    %71 = arith.addf %67, %70 : vector<48x16x16xf32>
    %72 = arith.truncf %71 : vector<48x16x16xf32> to vector<48x16x16xbf16>
    %c0_8 = arith.constant 0 : index
    %c0_9 = arith.constant 0 : index
    %c0_10 = arith.constant 0 : index
    %c0_11 = arith.constant 0 : index
    %73 = vector.load %arg5[%c0_8, %c0_9, %c0_10, %c0_11] : memref<1x48x16x16xbf16, #tpu.memory_space<vmem>>, vector<1x48x16x16xbf16>
    %74 = vector.shape_cast %73 : vector<1x48x16x16xbf16> to vector<48x16x16xbf16>
    %75 = vector.shape_cast %72 : vector<48x16x16xbf16> to vector<1x48x16x16xbf16>
    tpu.vector_store %arg5[%c0_8, %c0_9, %c0_10, %c0_11], %75 {strides = array<i32>} : memref<1x48x16x16xbf16, #tpu.memory_space<vmem>>, vector<1x48x16x16xbf16>,
    return
  }
  func.func @transform_0(%arg0: i32, %arg1: i32) -> (i32, i32, i32, i32) {
    %c0_i32 = arith.constant 0 : i32
    %c0_i32_0 = arith.constant 0 : i32
    %c0_i32_1 = arith.constant 0 : i32
    return %arg0, %arg1, %c0_i32, %c0_i32_0 : i32, i32, i32, i32
  }
  func.func @transform_1(%arg0: i32, %arg1: i32) -> (i32, i32, i32) {
    %c0_i32 = arith.constant 0 : i32
    %c0_i32_0 = arith.constant 0 : i32
    %c0_i32_1 = arith.constant 0 : i32
    return %arg1, %c0_i32, %c0_i32_0 : i32, i32, i32
  }
  func.func @transform_2(%arg0: i32, %arg1: i32) -> (i32, i32) {
    %c0_i32 = arith.constant 0 : i32
    %c0_i32_0 = arith.constant 0 : i32
    return %arg1, %c0_i32 : i32, i32
  }
  func.func @transform_3(%arg0: i32, %arg1: i32) -> (i32, i32, i32, i32) {
    %c0_i32 = arith.constant 0 : i32
    %c0_i32_0 = arith.constant 0 : i32
    %c0_i32_1 = arith.constant 0 : i32
    return %arg0, %arg1, %c0_i32, %c0_i32_0 : i32, i32, i32, i32
  }
}

module attributes {stable_mosaic.version = 11 : i64} {
  func.func @_attn_proj_kernel(%arg0: i32, %arg1: memref<1x3x4x4x256xbf16, #tpu.memory_space<vmem>>, %arg2: memref<4x1xf32, #tpu.memory_space<vmem>>, %arg3: memref<4x16x4xbf16, #tpu.memory_space<vmem>>, %arg4: memref<16x1xf32, #tpu.memory_space<vmem>>, %arg5: memref<1x16x256xf32, #tpu.memory_space<vmem>>) attributes {dimension_semantics = [#tpu.dimension_semantics<parallel>], iteration_bounds = array<i64: 2>, scalar_prefetch = 0 : i64, scratch_operands = 0 : i64, tpu.core_type = #tpu.core_type<tc>, window_params = [{transform_indices = @transform_0, window_bounds = array<i64: 1, 3, 4, 4, 256>}, {pipeline_mode = #tpu.pipeline_mode<synchronous>, transform_indices = @transform_1, window_bounds = array<i64: 4, 1>}, {pipeline_mode = #tpu.pipeline_mode<synchronous>, transform_indices = @transform_2, window_bounds = array<i64: 4, 16, 4>}, {pipeline_mode = #tpu.pipeline_mode<synchronous>, transform_indices = @transform_3, window_bounds = array<i64: 16, 1>}, {transform_indices = @transform_4, window_bounds = array<i64: 1, 16, 256>}]} {
    %c0 = arith.constant 0 : index
    %c0_0 = arith.constant 0 : index
    %c0_1 = arith.constant 0 : index
    %c0_2 = arith.constant 0 : index
    %c0_3 = arith.constant 0 : index
    %0 = vector.load %arg1[%c0, %c0_0, %c0_1, %c0_2, %c0_3] : memref<1x3x4x4x256xbf16, #tpu.memory_space<vmem>>, vector<1x1x4x4x256xbf16>
    %1 = vector.shape_cast %0 : vector<1x1x4x4x256xbf16> to vector<4x4x256xbf16>
    %2 = arith.extf %1 : vector<4x4x256xbf16> to vector<4x4x256xf32>
    %c0_4 = arith.constant 0 : index
    %c1 = arith.constant 1 : index
    %c0_5 = arith.constant 0 : index
    %c0_6 = arith.constant 0 : index
    %c0_7 = arith.constant 0 : index
    %3 = vector.load %arg1[%c0_4, %c1, %c0_5, %c0_6, %c0_7] : memref<1x3x4x4x256xbf16, #tpu.memory_space<vmem>>, vector<1x1x4x4x256xbf16>
    %4 = vector.shape_cast %3 : vector<1x1x4x4x256xbf16> to vector<4x4x256xbf16>
    %5 = arith.extf %4 : vector<4x4x256xbf16> to vector<4x4x256xf32>
    %6 = arith.mulf %2, %2 : vector<4x4x256xf32>
    %cst = arith.constant dense<0.000000e+00> : vector<4x4xf32>
    %7 = vector.multi_reduction <add>, %6, %cst [2] : vector<4x4x256xf32> to vector<4x4xf32>
    %8 = vector.shape_cast %7 : vector<4x4xf32> to vector<4x4x1xf32>
    %cst_8 = arith.constant 1.000000e-24 : f32
    %9 = vector.broadcast %cst_8 : f32 to vector<4x4x1xf32>
    %10 = arith.maximumf %8, %9 : vector<4x4x1xf32>
    %11 = math.rsqrt %10 : vector<4x4x1xf32>
    %12 = vector.broadcast %11 : vector<4x4x1xf32> to vector<4x4x256xf32>
    %13 = arith.mulf %2, %12 : vector<4x4x256xf32>
    %14 = arith.mulf %5, %5 : vector<4x4x256xf32>
    %cst_9 = arith.constant dense<0.000000e+00> : vector<4x4xf32>
    %15 = vector.multi_reduction <add>, %14, %cst_9 [2] : vector<4x4x256xf32> to vector<4x4xf32>
    %16 = vector.shape_cast %15 : vector<4x4xf32> to vector<4x4x1xf32>
    %cst_10 = arith.constant 1.000000e-24 : f32
    %17 = vector.broadcast %cst_10 : f32 to vector<4x4x1xf32>
    %18 = arith.maximumf %16, %17 : vector<4x4x1xf32>
    %19 = math.rsqrt %18 : vector<4x4x1xf32>
    %20 = vector.broadcast %19 : vector<4x4x1xf32> to vector<4x4x256xf32>
    %21 = arith.mulf %5, %20 : vector<4x4x256xf32>
    %22 = arith.truncf %13 : vector<4x4x256xf32> to vector<4x4x256xbf16>
    %23 = arith.truncf %21 : vector<4x4x256xf32> to vector<4x4x256xbf16>
    "tpu.trace_start"() <{level = 10 : i32, message = "hck,hdk->hcd"}> : () -> ()
    %cst_11 = arith.constant dense<0.000000e+00> : vector<4x4x4xf32>
    %24 = tpu.matmul %22, %23, %cst_11 {dimension_numbers = #tpu.dot_dimension_numbers<[2], [2], [1], [1], [0, 0, 0, 1, 1, 1], [0], [0]>} : vector<4x4x256xbf16>, vector<4x4x256xbf16>, vector<4x4x4xf32> -> vector<4x4x4xf32>
    "tpu.trace_stop"() : () -> ()
    %c0_12 = arith.constant 0 : index
    %c0_13 = arith.constant 0 : index
    %25 = vector.load %arg2[%c0_12, %c0_13] : memref<4x1xf32, #tpu.memory_space<vmem>>, vector<4x1xf32>
    %26 = vector.shape_cast %25 : vector<4x1xf32> to vector<4x1x1xf32>
    %27 = vector.broadcast %26 : vector<4x1x1xf32> to vector<4x4x4xf32>
    %28 = arith.mulf %24, %27 : vector<4x4x4xf32>
    %cst_14 = arith.constant dense<0xFF800000> : vector<4x4xf32>
    %29 = vector.multi_reduction <maximumf>, %28, %cst_14 [2] : vector<4x4x4xf32> to vector<4x4xf32>
    %30 = vector.shape_cast %29 : vector<4x4xf32> to vector<4x4x1xf32>
    %31 = vector.broadcast %30 : vector<4x4x1xf32> to vector<4x4x4xf32>
    %32 = arith.subf %28, %31 : vector<4x4x4xf32>
    %33 = math.exp %32 : vector<4x4x4xf32>
    %cst_15 = arith.constant dense<0.000000e+00> : vector<4x4xf32>
    %34 = vector.multi_reduction <add>, %33, %cst_15 [2] : vector<4x4x4xf32> to vector<4x4xf32>
    %35 = vector.shape_cast %34 : vector<4x4xf32> to vector<4x4x1xf32>
    %36 = tpu.reciprocal %35 {approx = true} : vector<4x4x1xf32> -> vector<4x4x1xf32>
    %37 = vector.broadcast %36 : vector<4x4x1xf32> to vector<4x4x4xf32>
    %38 = arith.mulf %33, %37 : vector<4x4x4xf32>
    %39 = arith.truncf %38 : vector<4x4x4xf32> to vector<4x4x4xbf16>
    %cst_16 = arith.constant 0.000000e+00 : f32
    %40 = vector.broadcast %cst_16 : f32 to vector<16x256xf32>
    %c0_17 = arith.constant 0 : index
    %c0_18 = arith.constant 0 : index
    %c0_19 = arith.constant 0 : index
    %41 = vector.load %arg3[%c0_17, %c0_18, %c0_19] : memref<4x16x4xbf16, #tpu.memory_space<vmem>>, vector<1x16x4xbf16>
    %42 = vector.shape_cast %41 : vector<1x16x4xbf16> to vector<16x4xbf16>
    %43 = vector.extract_strided_slice %39 {offsets = [0, 0, 0], sizes = [1, 4, 4], strides = [1, 1, 1]} : vector<4x4x4xbf16> to vector<1x4x4xbf16>
    %44 = vector.shape_cast %43 : vector<1x4x4xbf16> to vector<4x4xbf16>
    %cst_20 = arith.constant dense<0.000000e+00> : vector<16x4xf32>
    %45 = tpu.matmul %42, %44, %cst_20 {dimension_numbers = #tpu.dot_dimension_numbers<[1], [0], [0], [1], [0, 0, 1, 1], [], []>} : vector<16x4xbf16>, vector<4x4xbf16>, vector<16x4xf32> -> vector<16x4xf32>
    %c0_21 = arith.constant 0 : index
    %c2 = arith.constant 2 : index
    %c0_22 = arith.constant 0 : index
    %c0_23 = arith.constant 0 : index
    %c0_24 = arith.constant 0 : index
    %46 = vector.load %arg1[%c0_21, %c2, %c0_22, %c0_23, %c0_24] : memref<1x3x4x4x256xbf16, #tpu.memory_space<vmem>>, vector<1x1x1x4x256xbf16>
    %47 = vector.shape_cast %46 : vector<1x1x1x4x256xbf16> to vector<4x256xbf16>
    %48 = arith.truncf %45 : vector<16x4xf32> to vector<16x4xbf16>
    %cst_25 = arith.constant dense<0.000000e+00> : vector<16x256xf32>
    %49 = tpu.matmul %48, %47, %cst_25 {dimension_numbers = #tpu.dot_dimension_numbers<[1], [0], [0], [1], [0, 0, 1, 1], [], []>} : vector<16x4xbf16>, vector<4x256xbf16>, vector<16x256xf32> -> vector<16x256xf32>
    %50 = arith.addf %40, %49 : vector<16x256xf32>
    %c1_26 = arith.constant 1 : index
    %c0_27 = arith.constant 0 : index
    %c0_28 = arith.constant 0 : index
    %51 = vector.load %arg3[%c1_26, %c0_27, %c0_28] : memref<4x16x4xbf16, #tpu.memory_space<vmem>>, vector<1x16x4xbf16>
    %52 = vector.shape_cast %51 : vector<1x16x4xbf16> to vector<16x4xbf16>
    %53 = vector.extract_strided_slice %39 {offsets = [1, 0, 0], sizes = [1, 4, 4], strides = [1, 1, 1]} : vector<4x4x4xbf16> to vector<1x4x4xbf16>
    %54 = vector.shape_cast %53 : vector<1x4x4xbf16> to vector<4x4xbf16>
    %cst_29 = arith.constant dense<0.000000e+00> : vector<16x4xf32>
    %55 = tpu.matmul %52, %54, %cst_29 {dimension_numbers = #tpu.dot_dimension_numbers<[1], [0], [0], [1], [0, 0, 1, 1], [], []>} : vector<16x4xbf16>, vector<4x4xbf16>, vector<16x4xf32> -> vector<16x4xf32>
    %c0_30 = arith.constant 0 : index
    %c2_31 = arith.constant 2 : index
    %c1_32 = arith.constant 1 : index
    %c0_33 = arith.constant 0 : index
    %c0_34 = arith.constant 0 : index
    %56 = vector.load %arg1[%c0_30, %c2_31, %c1_32, %c0_33, %c0_34] : memref<1x3x4x4x256xbf16, #tpu.memory_space<vmem>>, vector<1x1x1x4x256xbf16>
    %57 = vector.shape_cast %56 : vector<1x1x1x4x256xbf16> to vector<4x256xbf16>
    %58 = arith.truncf %55 : vector<16x4xf32> to vector<16x4xbf16>
    %cst_35 = arith.constant dense<0.000000e+00> : vector<16x256xf32>
    %59 = tpu.matmul %58, %57, %cst_35 {dimension_numbers = #tpu.dot_dimension_numbers<[1], [0], [0], [1], [0, 0, 1, 1], [], []>} : vector<16x4xbf16>, vector<4x256xbf16>, vector<16x256xf32> -> vector<16x256xf32>
    %60 = arith.addf %50, %59 : vector<16x256xf32>
    %c2_36 = arith.constant 2 : index
    %c0_37 = arith.constant 0 : index
    %c0_38 = arith.constant 0 : index
    %61 = vector.load %arg3[%c2_36, %c0_37, %c0_38] : memref<4x16x4xbf16, #tpu.memory_space<vmem>>, vector<1x16x4xbf16>
    %62 = vector.shape_cast %61 : vector<1x16x4xbf16> to vector<16x4xbf16>
    %63 = vector.extract_strided_slice %39 {offsets = [2, 0, 0], sizes = [1, 4, 4], strides = [1, 1, 1]} : vector<4x4x4xbf16> to vector<1x4x4xbf16>
    %64 = vector.shape_cast %63 : vector<1x4x4xbf16> to vector<4x4xbf16>
    %cst_39 = arith.constant dense<0.000000e+00> : vector<16x4xf32>
    %65 = tpu.matmul %62, %64, %cst_39 {dimension_numbers = #tpu.dot_dimension_numbers<[1], [0], [0], [1], [0, 0, 1, 1], [], []>} : vector<16x4xbf16>, vector<4x4xbf16>, vector<16x4xf32> -> vector<16x4xf32>
    %c0_40 = arith.constant 0 : index
    %c2_41 = arith.constant 2 : index
    %c2_42 = arith.constant 2 : index
    %c0_43 = arith.constant 0 : index
    %c0_44 = arith.constant 0 : index
    %66 = vector.load %arg1[%c0_40, %c2_41, %c2_42, %c0_43, %c0_44] : memref<1x3x4x4x256xbf16, #tpu.memory_space<vmem>>, vector<1x1x1x4x256xbf16>
    %67 = vector.shape_cast %66 : vector<1x1x1x4x256xbf16> to vector<4x256xbf16>
    %68 = arith.truncf %65 : vector<16x4xf32> to vector<16x4xbf16>
    %cst_45 = arith.constant dense<0.000000e+00> : vector<16x256xf32>
    %69 = tpu.matmul %68, %67, %cst_45 {dimension_numbers = #tpu.dot_dimension_numbers<[1], [0], [0], [1], [0, 0, 1, 1], [], []>} : vector<16x4xbf16>, vector<4x256xbf16>, vector<16x256xf32> -> vector<16x256xf32>
    %70 = arith.addf %60, %69 : vector<16x256xf32>
    %c3 = arith.constant 3 : index
    %c0_46 = arith.constant 0 : index
    %c0_47 = arith.constant 0 : index
    %71 = vector.load %arg3[%c3, %c0_46, %c0_47] : memref<4x16x4xbf16, #tpu.memory_space<vmem>>, vector<1x16x4xbf16>
    %72 = vector.shape_cast %71 : vector<1x16x4xbf16> to vector<16x4xbf16>
    %73 = vector.extract_strided_slice %39 {offsets = [3, 0, 0], sizes = [1, 4, 4], strides = [1, 1, 1]} : vector<4x4x4xbf16> to vector<1x4x4xbf16>
    %74 = vector.shape_cast %73 : vector<1x4x4xbf16> to vector<4x4xbf16>
    %cst_48 = arith.constant dense<0.000000e+00> : vector<16x4xf32>
    %75 = tpu.matmul %72, %74, %cst_48 {dimension_numbers = #tpu.dot_dimension_numbers<[1], [0], [0], [1], [0, 0, 1, 1], [], []>} : vector<16x4xbf16>, vector<4x4xbf16>, vector<16x4xf32> -> vector<16x4xf32>
    %c0_49 = arith.constant 0 : index
    %c2_50 = arith.constant 2 : index
    %c3_51 = arith.constant 3 : index
    %c0_52 = arith.constant 0 : index
    %c0_53 = arith.constant 0 : index
    %76 = vector.load %arg1[%c0_49, %c2_50, %c3_51, %c0_52, %c0_53] : memref<1x3x4x4x256xbf16, #tpu.memory_space<vmem>>, vector<1x1x1x4x256xbf16>
    %77 = vector.shape_cast %76 : vector<1x1x1x4x256xbf16> to vector<4x256xbf16>
    %78 = arith.truncf %75 : vector<16x4xf32> to vector<16x4xbf16>
    %cst_54 = arith.constant dense<0.000000e+00> : vector<16x256xf32>
    %79 = tpu.matmul %78, %77, %cst_54 {dimension_numbers = #tpu.dot_dimension_numbers<[1], [0], [0], [1], [0, 0, 1, 1], [], []>} : vector<16x4xbf16>, vector<4x256xbf16>, vector<16x256xf32> -> vector<16x256xf32>
    %80 = arith.addf %70, %79 : vector<16x256xf32>
    %c0_55 = arith.constant 0 : index
    %c0_56 = arith.constant 0 : index
    %81 = vector.load %arg4[%c0_55, %c0_56] : memref<16x1xf32, #tpu.memory_space<vmem>>, vector<16x1xf32>
    %82 = vector.broadcast %81 : vector<16x1xf32> to vector<16x256xf32>
    %83 = arith.addf %80, %82 : vector<16x256xf32>
    %c0_57 = arith.constant 0 : index
    %c0_58 = arith.constant 0 : index
    %c0_59 = arith.constant 0 : index
    %84 = vector.load %arg5[%c0_57, %c0_58, %c0_59] : memref<1x16x256xf32, #tpu.memory_space<vmem>>, vector<1x16x256xf32>
    %85 = vector.shape_cast %84 : vector<1x16x256xf32> to vector<16x256xf32>
    %86 = vector.shape_cast %83 : vector<16x256xf32> to vector<1x16x256xf32>
    tpu.vector_store %arg5[%c0_57, %c0_58, %c0_59], %86 {strides = array<i32>} : memref<1x16x256xf32, #tpu.memory_space<vmem>>, vector<1x16x256xf32>,
    return
  }
  func.func @transform_0(%arg0: i32) -> (i32, i32, i32, i32, i32) {
    %c0_i32 = arith.constant 0 : i32
    %c0_i32_0 = arith.constant 0 : i32
    %c0_i32_1 = arith.constant 0 : i32
    %c0_i32_2 = arith.constant 0 : i32
    %c0_i32_3 = arith.constant 0 : i32
    return %arg0, %c0_i32, %c0_i32_0, %c0_i32_1, %c0_i32_2 : i32, i32, i32, i32, i32
  }
  func.func @transform_1(%arg0: i32) -> (i32, i32) {
    %c0_i32 = arith.constant 0 : i32
    %c0_i32_0 = arith.constant 0 : i32
    %c0_i32_1 = arith.constant 0 : i32
    return %c0_i32, %c0_i32_0 : i32, i32
  }
  func.func @transform_2(%arg0: i32) -> (i32, i32, i32) {
    %c0_i32 = arith.constant 0 : i32
    %c0_i32_0 = arith.constant 0 : i32
    %c0_i32_1 = arith.constant 0 : i32
    %c0_i32_2 = arith.constant 0 : i32
    return %c0_i32, %c0_i32_0, %c0_i32_1 : i32, i32, i32
  }
  func.func @transform_3(%arg0: i32) -> (i32, i32) {
    %c0_i32 = arith.constant 0 : i32
    %c0_i32_0 = arith.constant 0 : i32
    %c0_i32_1 = arith.constant 0 : i32
    return %c0_i32, %c0_i32_0 : i32, i32
  }
  func.func @transform_4(%arg0: i32) -> (i32, i32, i32) {
    %c0_i32 = arith.constant 0 : i32
    %c0_i32_0 = arith.constant 0 : i32
    %c0_i32_1 = arith.constant 0 : i32
    return %arg0, %c0_i32, %c0_i32_0 : i32, i32, i32
  }
}

</mosaic_0001>

<llo_original>
// kernel: attention_forward.3
$region0: #{attention_forward.3}
  #allocation0 [shape = 'u32[]', space=smem, size = 0x4, offset = 0x4, fixed_abs, tag = 'smem constant byte address 0x4 - core index']
  #allocation1 [shape = 'u32[144,128]{1,0:T(1,128)}', space=vmem, size = 0x12000, scoped, tag = 'internal scratch']
  %s0 = inlined_call_operand.hbm [shape: f32[2,16,256], index: 0, kind: input, shape index: {}]
  %s1 = inlined_call_operand.hbm [shape: bf16[48,16], index: 1, kind: input, shape index: {}]
  %s2 = inlined_call_operand.hbm [shape: f32[48,1], index: 2, kind: input, shape index: {}]
  %s3 = inlined_call_operand.hbm [shape: bf16[2,48,256], index: 3, kind: output, shape index: {}]
  %s4 = sld [smem:[#allocation0]]
  $region57: #{attention_forward.3} parent=0
    _
  %s6 = ssub.s32 1, %s4
  %s7 = scalar_select 0, %s6, %s4
  $region1: #{attention_forward.3} parent=0
    #allocation2 [shape = 'u8[32768]{0}', space=vmem, size = 0x8000, scoped, tag = 'input window, operand 0']
    #allocation3 [shape = 's32[2]{0}', space=sflag, size = 0x8, scoped, tag = 'scoped memory for attention_forward.3']
    #allocation4 [shape = 's32[2]{0}', space=sflag, size = 0x8, scoped, tag = 'scoped memory for attention_forward.3']
    #allocation5 [shape = 'u8[12288]{0}', space=vmem, size = 0x3000, scoped, tag = 'input window, operand 1, single buffered']
    #allocation6 [shape = 's32[1]{0}', space=sflag, size = 0x4, scoped, tag = 'scoped memory for attention_forward.3']
    #allocation7 [shape = 'u8[24576]{0}', space=vmem, size = 0x6000, scoped, tag = 'input window, operand 2, single buffered']
    #allocation8 [shape = 'u8[49152]{0}', space=vmem, size = 0xc000, scoped, tag = 'output window, operand 0']
    %8 = vsyncpa [#allocation3], 0
    %s9 = scalar_lea.sflag [#allocation3], 1
    %10 = vsyncpa %s9, 0
    %11 = vsyncpa [#allocation6], 0
    %12 = vsyncpa [#allocation4], 0
    %s13 = scalar_lea.sflag [#allocation4], 1
    %14 = vsyncpa %s13, 0
    loop: start=0, step=1, limit=4
    $region2: #{attention_forward.3} parent=1 // loop_pre_header
      _
    $region3: #{attention_forward.3} parent=1 // loop_header
      %s16 = sphi 0, %s20
      %p17 = scmp.ge.s32.totalorder %s16, 4
      %s23 = sphi 0, %s35
      %s24 = sphi 0, %s31
      %s25 = sphi 0, %s23
      %s26 = sphi 0, %s24
      %s27 = sphi 0, %s25
      %s28 = sphi 0, %s26
      %s40 = sphi 0, %s42
      %s43 = sphi 0, %s40
      %s44 = sphi 0, %s43
      %s60 = sphi 0, %s44
      %s64 = sphi 0, %s64
      %s66 = sphi 0, %s64
      %s67 = sphi 0, %s66
      %s81 = sphi 0, %s67
      %s85 = sphi 0, %s85
      %s87 = sphi 0, %s85
      %s88 = sphi 0, %s87
      %s102 = sphi 0, %s88
      %s110 = sphi 0, %s112
      %s113 = sphi 0, %s110
      %s114 = sphi 0, %s113
      %s130 = sphi 0, %s114
    $region4: #{attention_forward.3} parent=1 // loop_header_branch
      %19 = sbr.rel (%p17) target = $region8
    $region5: #{attention_forward.3} parent=1 // loop_body
      %s21 = ssub.s32 %s16, 1
      %s22 = ssub.s32 %s16, 2
      %s29 = sadd.s32 1, %s24
      %p30 = scmp.ge.s32.totalorder %s29, 1
      %s31 = scalar_select %p30, 0, %s29
      %s32 = sadd.s32 1, %s23
      %s33 = scalar_select %p30, %s32, %s23
      %p34 = scmp.ge.s32.totalorder %s33, 2
      %s35 = scalar_select %p34, 0, %s33
      %s36 = ssub.s32 %s23, %s35
      %s37 = ssub.s32 %s24, %s31
      %s38 = sor.u32 %s36, %s37
      %p39 = scmp.eq.s32.totalorder %s38, 0
      %s41 = sadd.s32 %s40, 1
      %s42 = scalar_select %p39, %s40, %s41
      %p45 = pneg %p39
      %p46 = scmp.eq.s32.totalorder %s16, 1
      %p47 = por %p45, %p46
      %p48 = scmp.ne.s32.totalorder %s40, %s43
      %p49 = scmp.eq.s32.totalorder %s16, 0
      %p50 = por %p48, %p49
      %p51 = scmp.ne.s32.totalorder %s40, %s43
      %p52 = scmp.eq.s32.totalorder %s21, 1
      %p53 = por %p51, %p52
      %p54 = scmp.ne.s32.totalorder %s43, %s44
      %p55 = scmp.eq.s32.totalorder %s21, 0
      %p56 = por %p54, %p55
      %p57 = scmp.ne.s32.totalorder %s43, %s44
      %p58 = scmp.eq.s32.totalorder %s22, 1
      %p59 = por %p57, %p58
      %p61 = scmp.ne.s32.totalorder %s44, %s60
      %p62 = scmp.eq.s32.totalorder %s22, 0
      %p63 = por %p61, %p62
      %s65 = sadd.s32 %s64, 1
      %p68 = scmp.eq.s32.totalorder %s16, 1
      %p69 = scmp.ne.s32.totalorder %s64, %s66
      %p70 = scmp.eq.s32.totalorder %s16, 0
      %p71 = por %p69, %p70
      %p72 = scmp.ne.s32.totalorder %s64, %s66
      %p73 = scmp.eq.s32.totalorder %s21, 1
      %p74 = por %p72, %p73
      %p75 = scmp.ne.s32.totalorder %s66, %s67
      %p76 = scmp.eq.s32.totalorder %s21, 0
      %p77 = por %p75, %p76
      %p78 = scmp.ne.s32.totalorder %s66, %s67
      %p79 = scmp.eq.s32.totalorder %s22, 1
      %p80 = por %p78, %p79
      %p82 = scmp.ne.s32.totalorder %s67, %s81
      %p83 = scmp.eq.s32.totalorder %s22, 0
      %p84 = por %p82, %p83
      %s86 = sadd.s32 %s85, 1
      %p89 = scmp.eq.s32.totalorder %s16, 1
      %p90 = scmp.ne.s32.totalorder %s85, %s87
      %p91 = scmp.eq.s32.totalorder %s16, 0
      %p92 = por %p90, %p91
      %p93 = scmp.ne.s32.totalorder %s85, %s87
      %p94 = scmp.eq.s32.totalorder %s21, 1
      %p95 = por %p93, %p94
      %p96 = scmp.ne.s32.totalorder %s87, %s88
      %p97 = scmp.eq.s32.totalorder %s21, 0
      %p98 = por %p96, %p97
      %p99 = scmp.ne.s32.totalorder %s87, %s88
      %p100 = scmp.eq.s32.totalorder %s22, 1
      %p101 = por %p99, %p100
      %p103 = scmp.ne.s32.totalorder %s88, %s102
      %p104 = scmp.eq.s32.totalorder %s22, 0
      %p105 = por %p103, %p104
      %s106 = ssub.s32 %s23, %s35
      %s107 = ssub.s32 %s24, %s31
      %s108 = sor.u32 %s106, %s107
      %p109 = scmp.eq.s32.totalorder %s108, 0
      %s111 = sadd.s32 %s110, 1
      %s112 = scalar_select %p109, %s110, %s111
      %p115 = pneg %p109
      %p116 = scmp.eq.s32.totalorder %s16, 1
      %p117 = por %p115, %p116
      %p118 = scmp.ne.s32.totalorder %s110, %s113
      %p119 = scmp.eq.s32.totalorder %s16, 0
      %p120 = por %p118, %p119
      %p121 = scmp.ne.s32.totalorder %s110, %s113
      %p122 = scmp.eq.s32.totalorder %s21, 1
      %p123 = por %p121, %p122
      %p124 = scmp.ne.s32.totalorder %s113, %s114
      %p125 = scmp.eq.s32.totalorder %s21, 0
      %p126 = por %p124, %p125
      %p127 = scmp.ne.s32.totalorder %s113, %s114
      %p128 = scmp.eq.s32.totalorder %s22, 1
      %p129 = por %p127, %p128
      %p131 = scmp.ne.s32.totalorder %s114, %s130
      %p132 = scmp.eq.s32.totalorder %s22, 0
      %p133 = por %p131, %p132
      %p134 = scmp.le.s32.totalorder 1, %s16
      %p135 = scmp.lt.s32.totalorder %s16, 3
      %p136 = pnand %p134, %p135
      %p137 = pneg %p136
      // Predicated region
      $region9: #{attention_forward.3} parent=5 // pred_check
        _
      $region10: #{attention_forward.3} parent=5 // pred_check_branch
        %139 = sbr.rel (%p136) target = $region12
      $region11: #{attention_forward.3} parent=5 // pred_region
        %s140 = ssub.s32 %s16, 1
        // Predicated region
        $region13: #{attention_forward.3} parent=11 // pred_check
          %p141 = pneg %p77
        $region14: #{attention_forward.3} parent=11 // pred_check_branch
          %143 = sbr.rel (%p141) target = $region16
        $region15: #{attention_forward.3} parent=11 // pred_region
          %s145 = ssub.s32 384, 384
          %146 = vsyncadd [#allocation6], %s145
          %s147 = sshll.u32 [#allocation5], 4
          %s148 = int_to_ptr.vmem [resolvable:$true] %s147
          %153 = dma.hbm_to_vmem [thread:$0]  %s1, 384, %s148, [#allocation6], 64, 64, 4
        $region16: #{attention_forward.3} parent=11 // pred_fallthru
          _
        // Predicated region
        $region17: #{attention_forward.3} parent=11 // pred_check
          %p154 = pneg %p98
        $region18: #{attention_forward.3} parent=11 // pred_check_branch
          %156 = sbr.rel (%p154) target = $region20
        $region19: #{attention_forward.3} parent=11 // pred_region
          %s158 = ssub.s32 768, 768
          %159 = vsyncadd [#allocation6], %s158
          %s160 = sshll.u32 [#allocation7], 4
          %s161 = int_to_ptr.vmem [resolvable:$true] %s160
          %166 = dma.hbm_to_vmem [thread:$0]  %s2, 768, %s161, [#allocation6], 128, 128, 8
        $region20: #{attention_forward.3} parent=11 // pred_fallthru
          _
      $region12: #{attention_forward.3} parent=5 // pred_fallthru
        _
      %p167 = scmp.lt.s32.totalorder %s16, 2
      // Predicated region
      $region21: #{attention_forward.3} parent=5 // pred_check
        %p168 = pneg %p167
      $region22: #{attention_forward.3} parent=5 // pred_check_branch
        %170 = sbr.rel (%p168) target = $region24
      $region23: #{attention_forward.3} parent=5 // pred_region
        // Predicated region
        $region25: #{attention_forward.3} parent=23 // pred_check
          %p171 = pneg %p50
        $region26: #{attention_forward.3} parent=23 // pred_check_branch
          %173 = sbr.rel (%p171) target = $region28
        $region27: #{attention_forward.3} parent=23 // pred_region
          %s174 = sand.u32 %s40, 1
          %s175 = scalar_lea.sflag [#allocation3], %s174
          %s176 = sand.u32 %s40, 1
          %s177 = smul.addr %s176, 32
          %s178 = scalar_lea.vmem [#allocation2], %s177
          %s179 = smul.u32 2, %s24
          %s181 = ssub.s32 512, 512
          %182 = vsyncadd %s175, %s181
          %s183 = smul.addr %s23, 4
          %s184 = sadd.s32 %s179, %s183
          %s185 = smul.addr %s184, 128
          %s186 = scalar_lea.hbm %s0, %s185
          %s187 = sshll.u32 %s178, 4
          %s188 = int_to_ptr.vmem [resolvable:$true] %s187
          %193 = dma.hbm_to_vmem [thread:$0]  %s186, 512, %s188, %s175, 256, 256, 16
        $region28: #{attention_forward.3} parent=23 // pred_fallthru
          _
      $region24: #{attention_forward.3} parent=5 // pred_fallthru
        _
      %p194 = scmp.le.s32.totalorder 1, %s16
      %p195 = scmp.lt.s32.totalorder %s16, 3
      %p196 = pnand %p194, %p195
      %p197 = pneg %p196
      // Predicated region
      $region29: #{attention_forward.3} parent=5 // pred_check
        _
      $region30: #{attention_forward.3} parent=5 // pred_check_branch
        %199 = sbr.rel (%p196) target = $region32
      $region31: #{attention_forward.3} parent=5 // pred_region
        %s200 = ssub.s32 %s16, 1
        %s201 = sand.u32 %s43, 1
        %s202 = scalar_lea.sflag [#allocation3], %s201
        %s203 = sand.u32 %s43, 1
        %s204 = smul.addr %s203, 32
        %s205 = scalar_lea.vmem [#allocation2], %s204
        // Predicated region
        $region33: #{attention_forward.3} parent=31 // pred_check
          %p206 = pneg %p56
        $region34: #{attention_forward.3} parent=31 // pred_check_branch
          %208 = sbr.rel (%p206) target = $region36
        $region35: #{attention_forward.3} parent=31 // pred_region
          %209 = dma.done %s202, 512
        $region36: #{attention_forward.3} parent=31 // pred_fallthru
          _
        // Predicated region
        $region37: #{attention_forward.3} parent=31 // pred_check
          %p210 = pneg %p77
        $region38: #{attention_forward.3} parent=31 // pred_check_branch
          %212 = sbr.rel (%p210) target = $region40
        $region39: #{attention_forward.3} parent=31 // pred_region
          %213 = dma.done [#allocation6], 384
        $region40: #{attention_forward.3} parent=31 // pred_fallthru
          _
        // Predicated region
        $region41: #{attention_forward.3} parent=31 // pred_check
          %p214 = pneg %p98
        $region42: #{attention_forward.3} parent=31 // pred_check_branch
          %216 = sbr.rel (%p214) target = $region44
        $region43: #{attention_forward.3} parent=31 // pred_region
          %217 = dma.done [#allocation6], 768
        $region44: #{attention_forward.3} parent=31 // pred_fallthru
          _
        %s218 = sand.u32 %s43, 1
        %s219 = scalar_lea.sflag [#allocation3], %s218
        %s220 = sand.u32 %s43, 1
        %s221 = smul.addr %s220, 32
        %s222 = scalar_lea.vmem [#allocation2], %s221
        %p223 = pneg %p56
        %p224 = pneg %p53
        %p225 = pneg %p77
        %p226 = pneg %p74
        %p227 = pneg %p98
        %p228 = pneg %p95
        %p229 = pneg %p126
        %p230 = pneg %p123
        %s231 = sand.u32 %s113, 1
        %s232 = scalar_lea.sflag [#allocation4], %s231
        %s233 = sand.u32 %s113, 1
        %s234 = smul.addr %s233, 48
        %s235 = scalar_lea.vmem [#allocation8], %s234
        %s236 = smul.u32 2, %s26
        %s237 = smul.u32 2, %s26
        %v239 = vld [vmem:[%s205] sm:$0xff]
        %v240 = vld [vmem:[%s205 + $0x8] sm:$0xff]
        %v241 = vld [vmem:[%s205 + $0x10] sm:$0xff]
        %v242 = vld [vmem:[%s205 + $0x18] sm:$0xff]
        %v243 = vpack.c.bf16 %v241, %v239
        %v244 = vpack.c.bf16 %v242, %v240
        %v245 = vld [vmem:[#allocation5] sm:$0xf]
        %v246 = vld [vmem:[#allocation5 + $0x4] sm:$0xf]
        %v247 = vld [vmem:[#allocation5 + $0x8] sm:$0xf]
        %v248 = vld [vmem:[#allocation5 + $0xc] sm:$0xf]
        %v249 = vld [vmem:[#allocation5 + $0x10] sm:$0xf]
        %v250 = vld [vmem:[#allocation5 + $0x14] sm:$0xf]
        %v251 = vld [vmem:[#allocation7] sm:$0xff]
        %v252 = vld [vmem:[#allocation7 + $0x8] sm:$0xff]
        %v253 = vld [vmem:[#allocation7 + $0x10] sm:$0xff]
        %v254 = vld [vmem:[#allocation7 + $0x18] sm:$0xff]
        %v255 = vld [vmem:[#allocation7 + $0x20] sm:$0xff]
        %v256 = vld [vmem:[#allocation7 + $0x28] sm:$0xff]
        %258 = vset.pattern.permute.xlu0 0
        %259 = vperm.xlu0 %258, %v251
        %v260 = vpop.permute.xlu0 %259
        %263 = vset.pattern.permute.xlu0 0
        %264 = vperm.xlu0 %263, %v252
        %v265 = vpop.permute.xlu0 %264
        %268 = vset.pattern.permute.xlu0 0
        %269 = vperm.xlu0 %268, %v253
        %v270 = vpop.permute.xlu0 %269
        %273 = vset.pattern.permute.xlu0 0
        %274 = vperm.xlu0 %273, %v254
        %v275 = vpop.permute.xlu0 %274
        %278 = vset.pattern.permute.xlu0 0
        %279 = vperm.xlu0 %278, %v255
        %v280 = vpop.permute.xlu0 %279
        %283 = vset.pattern.permute.xlu0 0
        %284 = vperm.xlu0 %283, %v256
        %v285 = vpop.permute.xlu0 %284
        %v293 = vunpack.c.l.b16 %v245
        %v294 = vunpack.c.l.b16 %v246
        %v295 = vunpack.c.l.b16 %v247
        %v296 = vunpack.c.l.b16 %v248
        %v297 = vunpack.c.l.b16 %v249
        %v298 = vunpack.c.l.b16 %v250
        %v299 = vpack.c.b16 %v294, %v293
        %v300 = vpack.c.b16 %v296, %v295
        %v301 = vpack.c.b16 %v298, %v297
        %vm302 = vcmask 130048
        %v304 = vsel %vm302, %v299, 0
        %v307 = vsel %vm302, %v300, 0
        %v310 = vsel %vm302, %v301, 0
        %312 = vmatprep.subr.bf16.mxu0 %v244
        %313 = vmatpush1.bf16.msra.mxu0 %v243
        %314 = vmatprep.subr.bf16.mxu0 0
        %315 = vmatpush1.bf16.msra.mxu0 0
        %316 = vmatprep.subr.bf16.mxu0 0
        %317 = vmatpush1.bf16.msra.mxu0 0
        %318 = vmatprep.subr.bf16.mxu0 0
        %319 = vmatpush1.bf16.msra.mxu0 0
        %320 = vmatprep.subr.bf16.mxu0 0
        %321 = vmatpush1.bf16.msra.mxu0 0
        %322 = vmatprep.subr.bf16.mxu0 0
        %323 = vmatpush1.bf16.msra.mxu0 0
        %324 = vmatprep.subr.bf16.mxu0 0
        %325 = vmatpush1.bf16.msra.mxu0 0
        %326 = vmatprep.subr.bf16.mxu0 0
        %327 = vmatpush1.bf16.msra.mxu0 0
        %328 = vmatprep.subr.bf16.mxu0 0
        %329 = vmatpush1.bf16.msra.mxu0 0
        %330 = vmatprep.subr.bf16.mxu0 0
        %331 = vmatpush1.bf16.msra.mxu0 0
        %332 = vmatprep.subr.bf16.mxu0 0
        %333 = vmatpush1.bf16.msra.mxu0 0
        %334 = vmatprep.subr.bf16.mxu0 0
        %335 = vmatpush1.bf16.msra.mxu0 0
        %336 = vmatprep.subr.bf16.mxu0 0
        %337 = vmatpush1.bf16.msra.mxu0 0
        %338 = vmatprep.subr.bf16.mxu0 0
        %339 = vmatpush1.bf16.msra.mxu0 0
        %340 = vmatprep.subr.bf16.mxu0 0
        %341 = vmatpush1.bf16.msra.mxu0 0
        %342 = vmatprep.subr.bf16.mxu0 0
        %343 = vmatpush1.bf16.msra.mxu0 0
        %344 = vmatprep.mubr.bf16.mxu0 0
        %345 = vmatmul.mubr.bf16.gmra.mrb[0].mxu0 %v304
        %v346 = vpop.f32.mrb[0].mxu0
        %v347 = vadd.f32 %v260, %v346
        %v348 = vpop.f32.mrb[0].mxu0
        %v349 = vadd.f32 %v260, %v348
        %v350 = vpop.f32.mrb[0].mxu0
        %v351 = vadd.f32 %v265, %v350
        %v352 = vpop.f32.mrb[0].mxu0
        %v353 = vadd.f32 %v265, %v352
        %354 = vmatprep.mubr.bf16.mxu0 0
        %355 = vmatmul.mubr.bf16.gmra.mrb[0].mxu0 %v307
        %v356 = vpop.f32.mrb[0].mxu0
        %v357 = vadd.f32 %v270, %v356
        %v358 = vpop.f32.mrb[0].mxu0
        %v359 = vadd.f32 %v270, %v358
        %v360 = vpop.f32.mrb[0].mxu0
        %v361 = vadd.f32 %v275, %v360
        %v362 = vpop.f32.mrb[0].mxu0
        %v363 = vadd.f32 %v275, %v362
        %364 = vmatprep.mubr.bf16.mxu0 0
        %365 = vmatmul.mubr.bf16.gmra.mrb[0].mxu0 %v310
        %v366 = vpop.f32.mrb[0].mxu0
        %v367 = vadd.f32 %v280, %v366
        %v368 = vpop.f32.mrb[0].mxu0
        %v369 = vadd.f32 %v280, %v368
        %v370 = vpop.f32.mrb[0].mxu0
        %v371 = vadd.f32 %v285, %v370
        %v372 = vpop.f32.mrb[0].mxu0
        %v373 = vadd.f32 %v285, %v372
        %374 = vdwg.mxu0
        %v375 = vpack.c.bf16 %v351, %v347
        %v376 = vpack.c.bf16 %v353, %v349
        %v377 = vpack.c.bf16 %v361, %v357
        %v378 = vpack.c.bf16 %v363, %v359
        %v379 = vpack.c.bf16 %v371, %v367
        %v380 = vpack.c.bf16 %v373, %v369
        %v387 = vunpack.c.l.b16 %v375
        %v388 = vunpack.c.l.b16 %v376
        %v389 = vunpack.c.h.b16 %v375
        %v390 = vunpack.c.h.b16 %v376
        %v391 = vunpack.c.l.b16 %v377
        %v392 = vunpack.c.l.b16 %v378
        %v393 = vunpack.c.h.b16 %v377
        %v394 = vunpack.c.h.b16 %v378
        %v395 = vunpack.c.l.b16 %v379
        %v396 = vunpack.c.l.b16 %v380
        %v397 = vunpack.c.h.b16 %v379
        %v398 = vunpack.c.h.b16 %v380
        %v399 = vpack.c.b16 %v388, %v387
        %v400 = vpack.c.b16 %v390, %v389
        %v401 = vpack.c.b16 %v392, %v391
        %v402 = vpack.c.b16 %v394, %v393
        %v403 = vpack.c.b16 %v396, %v395
        %v404 = vpack.c.b16 %v398, %v397
        %411 = vst [vmem:[%s235] sm:$0xff] %v399
        %412 = vst [vmem:[%s235 + $0x8] sm:$0xff] %v400
        %413 = vst [vmem:[%s235 + $0x10] sm:$0xff] %v401
        %414 = vst [vmem:[%s235 + $0x18] sm:$0xff] %v402
        %415 = vst [vmem:[%s235 + $0x20] sm:$0xff] %v403
        %416 = vst [vmem:[%s235 + $0x28] sm:$0xff] %v404
        %s417 = sand.u32 %s113, 1
        %s418 = scalar_lea.sflag [#allocation4], %s417
        %s419 = sand.u32 %s113, 1
        %s420 = smul.addr %s419, 48
        %s421 = scalar_lea.vmem [#allocation8], %s420
        // Predicated region
        $region45: #{attention_forward.3} parent=31 // pred_check
          %p422 = pneg %p123
        $region46: #{attention_forward.3} parent=31 // pred_check_branch
          %424 = sbr.rel (%p422) target = $region48
        $region47: #{attention_forward.3} parent=31 // pred_region
          %s425 = smul.u32 2, %s26
          %s427 = ssub.s32 768, 768
          %428 = vsyncadd %s418, %s427
          %s429 = smul.addr %s25, 12
          %s430 = sadd.s32 %s425, %s429
          %s431 = smul.addr %s430, 64
          %s432 = scalar_lea.hbm %s3, %s431
          %s433 = sshll.u32 %s421, 4
          %s434 = int_to_ptr.vmem [resolvable:$true] %s433
          %439 = dma.vmem_to_hbm [thread:$0]  %s434, 768, %s432, %s418, 128, 128, 8
        $region48: #{attention_forward.3} parent=31 // pred_fallthru
          _
      $region32: #{attention_forward.3} parent=5 // pred_fallthru
        _
      %p440 = scmp.le.s32.totalorder 2, %s16
      // Predicated region
      $region49: #{attention_forward.3} parent=5 // pred_check
        %p441 = pneg %p440
      $region50: #{attention_forward.3} parent=5 // pred_check_branch
        %443 = sbr.rel (%p441) target = $region52
      $region51: #{attention_forward.3} parent=5 // pred_region
        %s444 = ssub.s32 %s16, 2
        // Predicated region
        $region53: #{attention_forward.3} parent=51 // pred_check
          %p445 = pneg %p129
        $region54: #{attention_forward.3} parent=51 // pred_check_branch
          %447 = sbr.rel (%p445) target = $region56
        $region55: #{attention_forward.3} parent=51 // pred_region
          %s448 = sand.u32 %s114, 1
          %s449 = scalar_lea.sflag [#allocation4], %s448
          %s450 = sand.u32 %s114, 1
          %s451 = smul.addr %s450, 48
          %s452 = scalar_lea.vmem [#allocation8], %s451
          %453 = dma.done %s449, 768
        $region56: #{attention_forward.3} parent=51 // pred_fallthru
          _
      $region52: #{attention_forward.3} parent=5 // pred_fallthru
        _
    $region6: #{attention_forward.3} parent=1 // loop_footer
      %s20 = sadd.s32 1, %s16
    $region7: #{attention_forward.3} parent=1 // loop_footer_branch
      %15 = sbr.rel target = $region3
    $region8: #{attention_forward.3} parent=1 // loop_exit
      _
    %454 = vsyncpa [#allocation3], 1
    %s455 = scalar_lea.sflag [#allocation3], 1
    %456 = vsyncpa %s455, 1
    %457 = vsyncpa [#allocation6], 1
    %458 = vsyncpa [#allocation4], 1
    %s459 = scalar_lea.sflag [#allocation4], 1
    %460 = vsyncpa %s459, 1

// kernel: attention_forward.5
$region0: #{attention_forward.5}
  #allocation0 [shape = 'u32[]', space=smem, size = 0x4, offset = 0x4, fixed_abs, tag = 'smem constant byte address 0x4 - core index']
  #allocation1 [shape = 'u32[144,128]{1,0:T(1,128)}', space=vmem, size = 0x12000, scoped, tag = 'internal scratch']
  %s0 = inlined_call_operand.hbm [shape: bf16[2,3,4,4,256], index: 0, kind: input, shape index: {}]
  %s1 = inlined_call_operand.hbm [shape: f32[4,1], index: 1, kind: input, shape index: {}]
  %s2 = inlined_call_operand.hbm [shape: bf16[4,16,4], index: 2, kind: input, shape index: {}]
  %s3 = inlined_call_operand.hbm [shape: f32[16,1], index: 3, kind: input, shape index: {}]
  %s4 = inlined_call_operand.hbm [shape: f32[2,16,256], index: 4, kind: output, shape index: {}]
  %s5 = sld [smem:[#allocation0]]
  $region65: #{attention_forward.5} parent=0
    _
  %s7 = ssub.s32 1, %s5
  %s8 = scalar_select 0, %s7, %s5
  $region1: #{attention_forward.5} parent=0
    #allocation2 [shape = 'u8[49152]{0}', space=vmem, size = 0xc000, scoped, tag = 'input window, operand 0']
    #allocation3 [shape = 's32[2]{0}', space=sflag, size = 0x8, scoped, tag = 'scoped memory for attention_forward.5']
    #allocation4 [shape = 's32[2]{0}', space=sflag, size = 0x8, scoped, tag = 'scoped memory for attention_forward.5']
    #allocation5 [shape = 'u8[2048]{0}', space=vmem, size = 0x800, scoped, tag = 'input window, operand 1, single buffered']
    #allocation6 [shape = 's32[1]{0}', space=sflag, size = 0x4, scoped, tag = 'scoped memory for attention_forward.5']
    #allocation7 [shape = 'u8[16384]{0}', space=vmem, size = 0x4000, scoped, tag = 'input window, operand 2, single buffered']
    #allocation8 [shape = 'u8[8192]{0}', space=vmem, size = 0x2000, scoped, tag = 'input window, operand 3, single buffered']
    #allocation9 [shape = 's32[1]{0}', space=sflag, size = 0x4, scoped, tag = 'scoped memory for attention_forward.5']
    #allocation10 [shape = 'u8[32768]{0}', space=vmem, size = 0x8000, scoped, tag = 'output window, operand 0']
    %9 = vsyncpa [#allocation3], 0
    %s10 = scalar_lea.sflag [#allocation3], 1
    %11 = vsyncpa %s10, 0
    %12 = vsyncpa [#allocation6], 0
    %13 = vsyncpa [#allocation9], 0
    %14 = vsyncpa [#allocation4], 0
    %s15 = scalar_lea.sflag [#allocation4], 1
    %16 = vsyncpa %s15, 0
    loop: start=0, step=1, limit=4
    $region2: #{attention_forward.5} parent=1 // loop_pre_header
      _
    $region3: #{attention_forward.5} parent=1 // loop_header
      %s18 = sphi 0, %s22
      %p19 = scmp.ge.s32.totalorder %s18, 4
      %s28 = sphi 0, %s30
      %s31 = sphi 0, %s28
      %s32 = sphi 0, %s31
      %s48 = sphi 0, %s32
      %s52 = sphi 0, %s52
      %s54 = sphi 0, %s52
      %s55 = sphi 0, %s54
      %s69 = sphi 0, %s55
      %s73 = sphi 0, %s73
      %s75 = sphi 0, %s73
      %s76 = sphi 0, %s75
      %s90 = sphi 0, %s76
      %s94 = sphi 0, %s94
      %s96 = sphi 0, %s94
      %s97 = sphi 0, %s96
      %s111 = sphi 0, %s97
      %s117 = sphi 0, %s119
      %s120 = sphi 0, %s117
      %s121 = sphi 0, %s120
      %s137 = sphi 0, %s121
    $region4: #{attention_forward.5} parent=1 // loop_header_branch
      %21 = sbr.rel (%p19) target = $region8
    $region5: #{attention_forward.5} parent=1 // loop_body
      %s23 = ssub.s32 %s18, 1
      %s24 = ssub.s32 %s18, 2
      %s25 = sadd.s32 %s18, 1
      %s26 = ssub.s32 %s18, %s25
      %p27 = scmp.eq.s32.totalorder %s26, 0
      %s29 = sadd.s32 %s28, 1
      %s30 = scalar_select %p27, %s28, %s29
      %p33 = pneg %p27
      %p34 = scmp.eq.s32.totalorder %s18, 1
      %p35 = por %p33, %p34
      %p36 = scmp.ne.s32.totalorder %s28, %s31
      %p37 = scmp.eq.s32.totalorder %s18, 0
      %p38 = por %p36, %p37
      %p39 = scmp.ne.s32.totalorder %s28, %s31
      %p40 = scmp.eq.s32.totalorder %s23, 1
      %p41 = por %p39, %p40
      %p42 = scmp.ne.s32.totalorder %s31, %s32
      %p43 = scmp.eq.s32.totalorder %s23, 0
      %p44 = por %p42, %p43
      %p45 = scmp.ne.s32.totalorder %s31, %s32
      %p46 = scmp.eq.s32.totalorder %s24, 1
      %p47 = por %p45, %p46
      %p49 = scmp.ne.s32.totalorder %s32, %s48
      %p50 = scmp.eq.s32.totalorder %s24, 0
      %p51 = por %p49, %p50
      %s53 = sadd.s32 %s52, 1
      %p56 = scmp.eq.s32.totalorder %s18, 1
      %p57 = scmp.ne.s32.totalorder %s52, %s54
      %p58 = scmp.eq.s32.totalorder %s18, 0
      %p59 = por %p57, %p58
      %p60 = scmp.ne.s32.totalorder %s52, %s54
      %p61 = scmp.eq.s32.totalorder %s23, 1
      %p62 = por %p60, %p61
      %p63 = scmp.ne.s32.totalorder %s54, %s55
      %p64 = scmp.eq.s32.totalorder %s23, 0
      %p65 = por %p63, %p64
      %p66 = scmp.ne.s32.totalorder %s54, %s55
      %p67 = scmp.eq.s32.totalorder %s24, 1
      %p68 = por %p66, %p67
      %p70 = scmp.ne.s32.totalorder %s55, %s69
      %p71 = scmp.eq.s32.totalorder %s24, 0
      %p72 = por %p70, %p71
      %s74 = sadd.s32 %s73, 1
      %p77 = scmp.eq.s32.totalorder %s18, 1
      %p78 = scmp.ne.s32.totalorder %s73, %s75
      %p79 = scmp.eq.s32.totalorder %s18, 0
      %p80 = por %p78, %p79
      %p81 = scmp.ne.s32.totalorder %s73, %s75
      %p82 = scmp.eq.s32.totalorder %s23, 1
      %p83 = por %p81, %p82
      %p84 = scmp.ne.s32.totalorder %s75, %s76
      %p85 = scmp.eq.s32.totalorder %s23, 0
      %p86 = por %p84, %p85
      %p87 = scmp.ne.s32.totalorder %s75, %s76
      %p88 = scmp.eq.s32.totalorder %s24, 1
      %p89 = por %p87, %p88
      %p91 = scmp.ne.s32.totalorder %s76, %s90
      %p92 = scmp.eq.s32.totalorder %s24, 0
      %p93 = por %p91, %p92
      %s95 = sadd.s32 %s94, 1
      %p98 = scmp.eq.s32.totalorder %s18, 1
      %p99 = scmp.ne.s32.totalorder %s94, %s96
      %p100 = scmp.eq.s32.totalorder %s18, 0
      %p101 = por %p99, %p100
      %p102 = scmp.ne.s32.totalorder %s94, %s96
      %p103 = scmp.eq.s32.totalorder %s23, 1
      %p104 = por %p102, %p103
      %p105 = scmp.ne.s32.totalorder %s96, %s97
      %p106 = scmp.eq.s32.totalorder %s23, 0
      %p107 = por %p105, %p106
      %p108 = scmp.ne.s32.totalorder %s96, %s97
      %p109 = scmp.eq.s32.totalorder %s24, 1
      %p110 = por %p108, %p109
      %p112 = scmp.ne.s32.totalorder %s97, %s111
      %p113 = scmp.eq.s32.totalorder %s24, 0
      %p114 = por %p112, %p113
      %s115 = ssub.s32 %s18, %s25
      %p116 = scmp.eq.s32.totalorder %s115, 0
      %s118 = sadd.s32 %s117, 1
      %s119 = scalar_select %p116, %s117, %s118
      %p122 = pneg %p116
      %p123 = scmp.eq.s32.totalorder %s18, 1
      %p124 = por %p122, %p123
      %p125 = scmp.ne.s32.totalorder %s117, %s120
      %p126 = scmp.eq.s32.totalorder %s18, 0
      %p127 = por %p125, %p126
      %p128 = scmp.ne.s32.totalorder %s117, %s120
      %p129 = scmp.eq.s32.totalorder %s23, 1
      %p130 = por %p128, %p129
      %p131 = scmp.ne.s32.totalorder %s120, %s121
      %p132 = scmp.eq.s32.totalorder %s23, 0
      %p133 = por %p131, %p132
      %p134 = scmp.ne.s32.totalorder %s120, %s121
      %p135 = scmp.eq.s32.totalorder %s24, 1
      %p136 = por %p134, %p135
      %p138 = scmp.ne.s32.totalorder %s121, %s137
      %p139 = scmp.eq.s32.totalorder %s24, 0
      %p140 = por %p138, %p139
      %p141 = scmp.le.s32.totalorder 1, %s18
      %p142 = scmp.lt.s32.totalorder %s18, 3
      %p143 = pnand %p141, %p142
      %p144 = pneg %p143
      // Predicated region
      $region9: #{attention_forward.5} parent=5 // pred_check
        _
      $region10: #{attention_forward.5} parent=5 // pred_check_branch
        %146 = sbr.rel (%p143) target = $region12
      $region11: #{attention_forward.5} parent=5 // pred_region
        %s147 = ssub.s32 %s18, 1
        // Predicated region
        $region13: #{attention_forward.5} parent=11 // pred_check
          %p148 = pneg %p65
        $region14: #{attention_forward.5} parent=11 // pred_check_branch
          %150 = sbr.rel (%p148) target = $region16
        $region15: #{attention_forward.5} parent=11 // pred_region
          %s152 = ssub.s32 64, 64
          %153 = vsyncadd [#allocation6], %s152
          %s155 = sshll.u32 [#allocation5], 4
          %s156 = int_to_ptr.vmem [resolvable:$true] %s155
          %158 = dma.hbm_to_vmem [thread:$0]  %s1, 64, %s156, [#allocation6]
        $region16: #{attention_forward.5} parent=11 // pred_fallthru
          _
        // Predicated region
        $region17: #{attention_forward.5} parent=11 // pred_check
          %p159 = pneg %p86
        $region18: #{attention_forward.5} parent=11 // pred_check_branch
          %161 = sbr.rel (%p159) target = $region20
        $region19: #{attention_forward.5} parent=11 // pred_region
          %s163 = ssub.s32 512, 512
          %164 = vsyncadd [#allocation6], %s163
          %s165 = sshll.u32 [#allocation7], 4
          %s166 = int_to_ptr.vmem [resolvable:$true] %s165
          %171 = dma.hbm_to_vmem [thread:$0]  %s2, 512, %s166, [#allocation6], 64, 64, 4
        $region20: #{attention_forward.5} parent=11 // pred_fallthru
          _
        // Predicated region
        $region21: #{attention_forward.5} parent=11 // pred_check
          %p172 = pneg %p107
        $region22: #{attention_forward.5} parent=11 // pred_check_branch
          %174 = sbr.rel (%p172) target = $region24
        $region23: #{attention_forward.5} parent=11 // pred_region
          %s176 = ssub.s32 256, 256
          %177 = vsyncadd [#allocation9], %s176
          %s178 = sshll.u32 [#allocation8], 4
          %s179 = int_to_ptr.vmem [resolvable:$true] %s178
          %184 = dma.hbm_to_vmem [thread:$0]  %s3, 256, %s179, [#allocation9], 128, 128, 8
        $region24: #{attention_forward.5} parent=11 // pred_fallthru
          _
      $region12: #{attention_forward.5} parent=5 // pred_fallthru
        _
      %p185 = scmp.lt.s32.totalorder %s18, 2
      // Predicated region
      $region25: #{attention_forward.5} parent=5 // pred_check
        %p186 = pneg %p185
      $region26: #{attention_forward.5} parent=5 // pred_check_branch
        %188 = sbr.rel (%p186) target = $region28
      $region27: #{attention_forward.5} parent=5 // pred_region
        // Predicated region
        $region29: #{attention_forward.5} parent=27 // pred_check
          %p189 = pneg %p38
        $region30: #{attention_forward.5} parent=27 // pred_check_branch
          %191 = sbr.rel (%p189) target = $region32
        $region31: #{attention_forward.5} parent=27 // pred_region
          %s192 = sand.u32 %s28, 1
          %s193 = scalar_lea.sflag [#allocation3], %s192
          %s194 = sand.u32 %s28, 1
          %s195 = smul.addr %s194, 48
          %s196 = scalar_lea.vmem [#allocation2], %s195
          %s198 = ssub.s32 768, 768
          %199 = vsyncadd %s193, %s198
          %s200 = smul.addr %s18, 24
          %s201 = smul.addr %s200, 32
          %s202 = scalar_lea.hbm %s0, %s201
          %s203 = sshll.u32 %s196, 4
          %s204 = int_to_ptr.vmem [resolvable:$true] %s203
          %209 = dma.hbm_to_vmem [thread:$0]  %s202, 768, %s204, %s193, 64, 64, 4
        $region32: #{attention_forward.5} parent=27 // pred_fallthru
          _
      $region28: #{attention_forward.5} parent=5 // pred_fallthru
        _
      %p210 = scmp.le.s32.totalorder 1, %s18
      %p211 = scmp.lt.s32.totalorder %s18, 3
      %p212 = pnand %p210, %p211
      %p213 = pneg %p212
      // Predicated region
      $region33: #{attention_forward.5} parent=5 // pred_check
        _
      $region34: #{attention_forward.5} parent=5 // pred_check_branch
        %215 = sbr.rel (%p212) target = $region36
      $region35: #{attention_forward.5} parent=5 // pred_region
        %s216 = ssub.s32 %s18, 1
        %s217 = sand.u32 %s31, 1
        %s218 = scalar_lea.sflag [#allocation3], %s217
        %s219 = sand.u32 %s31, 1
        %s220 = smul.addr %s219, 48
        %s221 = scalar_lea.vmem [#allocation2], %s220
        // Predicated region
        $region37: #{attention_forward.5} parent=35 // pred_check
          %p222 = pneg %p44
        $region38: #{attention_forward.5} parent=35 // pred_check_branch
          %224 = sbr.rel (%p222) target = $region40
        $region39: #{attention_forward.5} parent=35 // pred_region
          %225 = dma.done %s218, 768
        $region40: #{attention_forward.5} parent=35 // pred_fallthru
          _
        // Predicated region
        $region41: #{attention_forward.5} parent=35 // pred_check
          %p226 = pneg %p65
        $region42: #{attention_forward.5} parent=35 // pred_check_branch
          %228 = sbr.rel (%p226) target = $region44
        $region43: #{attention_forward.5} parent=35 // pred_region
          %229 = dma.done [#allocation6], 64
        $region44: #{attention_forward.5} parent=35 // pred_fallthru
          _
        // Predicated region
        $region45: #{attention_forward.5} parent=35 // pred_check
          %p230 = pneg %p86
        $region46: #{attention_forward.5} parent=35 // pred_check_branch
          %232 = sbr.rel (%p230) target = $region48
        $region47: #{attention_forward.5} parent=35 // pred_region
          %233 = dma.done [#allocation6], 512
        $region48: #{attention_forward.5} parent=35 // pred_fallthru
          _
        // Predicated region
        $region49: #{attention_forward.5} parent=35 // pred_check
          %p234 = pneg %p107
        $region50: #{attention_forward.5} parent=35 // pred_check_branch
          %236 = sbr.rel (%p234) target = $region52
        $region51: #{attention_forward.5} parent=35 // pred_region
          %237 = dma.done [#allocation9], 256
        $region52: #{attention_forward.5} parent=35 // pred_fallthru
          _
        %s238 = sand.u32 %s31, 1
        %s239 = scalar_lea.sflag [#allocation3], %s238
        %s240 = sand.u32 %s31, 1
        %s241 = smul.addr %s240, 48
        %s242 = scalar_lea.vmem [#allocation2], %s241
        %p243 = pneg %p44
        %p244 = pneg %p41
        %p245 = pneg %p65
        %p246 = pneg %p62
        %p247 = pneg %p86
        %p248 = pneg %p83
        %p249 = pneg %p107
        %p250 = pneg %p104
        %p251 = pneg %p133
        %p252 = pneg %p130
        %s253 = sand.u32 %s120, 1
        %s254 = scalar_lea.sflag [#allocation4], %s253
        %s255 = sand.u32 %s120, 1
        %s256 = smul.addr %s255, 32
        %s257 = scalar_lea.vmem [#allocation10], %s256
        %v259 = vld [vmem:[%s221] sm:$0xf]
        %v260 = vld [vmem:[%s221 + $0x4] sm:$0xf]
        %v261 = vld [vmem:[%s221 + $0x8] sm:$0xf]
        %v262 = vld [vmem:[%s221 + $0xc] sm:$0xf]
        %v263 = vunpack.c.l.bf16 %v259
        %v264 = vunpack.c.l.bf16 %v260
        %v265 = vunpack.c.l.bf16 %v261
        %v266 = vunpack.c.l.bf16 %v262
        %s267 = scalar_lea.vmem %s221, 16 [#allocation2]
        %v268 = vld [vmem:[%s267] sm:$0xf]
        %v269 = vld [vmem:[%s267 + $0x4] sm:$0xf]
        %v270 = vld [vmem:[%s267 + $0x8] sm:$0xf]
        %v271 = vld [vmem:[%s267 + $0xc] sm:$0xf]
        %v272 = vunpack.c.l.bf16 %v268
        %v273 = vunpack.c.l.bf16 %v269
        %v274 = vunpack.c.l.bf16 %v270
        %v275 = vunpack.c.l.bf16 %v271
        %v276 = vmul.f32 %v263, %v263
        %v277 = vmul.f32 %v264, %v264
        %v278 = vmul.f32 %v265, %v265
        %v279 = vmul.f32 %v266, %v266
        %v284 = vcombine.high %v276, %v276
        %v285 = vcombine.high %v277, %v277
        %v286 = vcombine.high %v278, %v278
        %v287 = vcombine.high %v279, %v279
        %vm292 = vcmask 1043456
        %v293 = vsel %vm292, %v276, 0.0
        %v294 = vsel %vm292, %v284, 0.0
        %v295 = vadd.f32 %v293, %v294
        %296 = vadd.xlane.f32.xlu0 %v295
        %v297 = vpop.xlane.xlu0 %296
        %v298 = vsel %vm292, %v277, 0.0
        %v299 = vsel %vm292, %v285, 0.0
        %v300 = vadd.f32 %v298, %v299
        %301 = vadd.xlane.f32.xlu0 %v300
        %v302 = vpop.xlane.xlu0 %301
        %v303 = vsel %vm292, %v278, 0.0
        %v304 = vsel %vm292, %v286, 0.0
        %v305 = vadd.f32 %v303, %v304
        %306 = vadd.xlane.f32.xlu0 %v305
        %v307 = vpop.xlane.xlu0 %306
        %v308 = vsel %vm292, %v279, 0.0
        %v309 = vsel %vm292, %v287, 0.0
        %v310 = vadd.f32 %v308, %v309
        %311 = vadd.xlane.f32.xlu0 %v310
        %v312 = vpop.xlane.xlu0 %311
        %v313 = vmax.f32 %v297, 1e-24
        %v314 = vmax.f32 %v302, 1e-24
        %v315 = vmax.f32 %v307, 1e-24
        %v316 = vmax.f32 %v312, 1e-24
        %v317 = vrsqrt.pop %v313
        %v318 = vrsqrt.pop %v314
        %v319 = vrsqrt.pop %v315
        %v320 = vrsqrt.pop %v316
        %v326 = vunpack.c.l.s4 839922192
        %v327 = vunpack.c.0.s8 %v326
        %v328 = vlaneseq
        %v329 = vshrl.u32 %v328, 7
        %v330 = vsub.s32 %v327, %v329
        %v331 = vrot.slane %v317, %v330
        %v333 = vunpack.c.l.s4 839922192
        %v334 = vunpack.c.0.s8 %v333
        %v335 = vlaneseq
        %v336 = vshrl.u32 %v335, 7
        %v337 = vsub.s32 %v334, %v336
        %v338 = vrot.slane %v318, %v337
        %v340 = vunpack.c.l.s4 839922192
        %v341 = vunpack.c.0.s8 %v340
        %v342 = vlaneseq
        %v343 = vshrl.u32 %v342, 7
        %v344 = vsub.s32 %v341, %v343
        %v345 = vrot.slane %v319, %v344
        %v347 = vunpack.c.l.s4 839922192
        %v348 = vunpack.c.0.s8 %v347
        %v349 = vlaneseq
        %v350 = vshrl.u32 %v349, 7
        %v351 = vsub.s32 %v348, %v350
        %v352 = vrot.slane %v320, %v351
        %v357 = vmul.f32 %v263, %v331
        %v358 = vmul.f32 %v264, %v338
        %v359 = vmul.f32 %v265, %v345
        %v360 = vmul.f32 %v266, %v352
        %v361 = vmul.f32 %v272, %v272
        %v362 = vmul.f32 %v273, %v273
        %v363 = vmul.f32 %v274, %v274
        %v364 = vmul.f32 %v275, %v275
        %v369 = vcombine.high %v361, %v361
        %v370 = vcombine.high %v362, %v362
        %v371 = vcombine.high %v363, %v363
        %v372 = vcombine.high %v364, %v364
        %v377 = vsel %vm292, %v361, 0.0
        %v378 = vsel %vm292, %v369, 0.0
        %v379 = vadd.f32 %v377, %v378
        %380 = vadd.xlane.f32.xlu0 %v379
        %v381 = vpop.xlane.xlu0 %380
        %v382 = vsel %vm292, %v362, 0.0
        %v383 = vsel %vm292, %v370, 0.0
        %v384 = vadd.f32 %v382, %v383
        %385 = vadd.xlane.f32.xlu0 %v384
        %v386 = vpop.xlane.xlu0 %385
        %v387 = vsel %vm292, %v363, 0.0
        %v388 = vsel %vm292, %v371, 0.0
        %v389 = vadd.f32 %v387, %v388
        %390 = vadd.xlane.f32.xlu0 %v389
        %v391 = vpop.xlane.xlu0 %390
        %v392 = vsel %vm292, %v364, 0.0
        %v393 = vsel %vm292, %v372, 0.0
        %v394 = vadd.f32 %v392, %v393
        %395 = vadd.xlane.f32.xlu0 %v394
        %v396 = vpop.xlane.xlu0 %395
        %v397 = vmax.f32 %v381, 1e-24
        %v398 = vmax.f32 %v386, 1e-24
        %v399 = vmax.f32 %v391, 1e-24
        %v400 = vmax.f32 %v396, 1e-24
        %v401 = vrsqrt.pop %v397
        %v402 = vrsqrt.pop %v398
        %v403 = vrsqrt.pop %v399
        %v404 = vrsqrt.pop %v400
        %v410 = vunpack.c.l.s4 839922192
        %v411 = vunpack.c.0.s8 %v410
        %v412 = vlaneseq
        %v413 = vshrl.u32 %v412, 7
        %v414 = vsub.s32 %v411, %v413
        %v415 = vrot.slane %v401, %v414
        %v417 = vunpack.c.l.s4 839922192
        %v418 = vunpack.c.0.s8 %v417
        %v419 = vlaneseq
        %v420 = vshrl.u32 %v419, 7
        %v421 = vsub.s32 %v418, %v420
        %v422 = vrot.slane %v402, %v421
        %v424 = vunpack.c.l.s4 839922192
        %v425 = vunpack.c.0.s8 %v424
        %v426 = vlaneseq
        %v427 = vshrl.u32 %v426, 7
        %v428 = vsub.s32 %v425, %v427
        %v429 = vrot.slane %v403, %v428
        %v431 = vunpack.c.l.s4 839922192
        %v432 = vunpack.c.0.s8 %v431
        %v433 = vlaneseq
        %v434 = vshrl.u32 %v433, 7
        %v435 = vsub.s32 %v432, %v434
        %v436 = vrot.slane %v404, %v435
        %v441 = vmul.f32 %v272, %v415
        %v442 = vmul.f32 %v273, %v422
        %v443 = vmul.f32 %v274, %v429
        %v444 = vmul.f32 %v275, %v436
        %v449 = vcombine.high %v357, %v357
        %v450 = vcombine.high %v358, %v358
        %v451 = vcombine.high %v359, %v359
        %v452 = vcombine.high %v360, %v360
        %v457 = vpack.c.bf16 %v357, %v357
        %v458 = vpack.c.bf16 %v449, %v449
        %v459 = vpack.c.bf16 %v358, %v358
        %v460 = vpack.c.bf16 %v450, %v450
        %v461 = vpack.c.bf16 %v359, %v359
        %v462 = vpack.c.bf16 %v451, %v451
        %v463 = vpack.c.bf16 %v360, %v360
        %v464 = vpack.c.bf16 %v452, %v452
        %v469 = vcombine.high %v441, %v441
        %v470 = vcombine.high %v442, %v442
        %v471 = vcombine.high %v443, %v443
        %v472 = vcombine.high %v444, %v444
        %v477 = vpack.c.bf16 %v441, %v441
        %v478 = vpack.c.bf16 %v469, %v469
        %v479 = vpack.c.bf16 %v442, %v442
        %v480 = vpack.c.bf16 %v470, %v470
        %v481 = vpack.c.bf16 %v443, %v443
        %v482 = vpack.c.bf16 %v471, %v471
        %v483 = vpack.c.bf16 %v444, %v444
        %v484 = vpack.c.bf16 %v472, %v472
        %485 = vmatprep.subr.bf16.mxu0 %v478
        %486 = vmatpush1.bf16.xpose.msra.mxu0 %v477
        %487 = vmatprep.subr.bf16.mxu0 0
        %488 = vmatpush1.bf16.xpose.msra.mxu0 0
        %489 = vmatprep.subr.bf16.mxu0 0
        %490 = vmatpush1.bf16.xpose.msra.mxu0 0
        %491 = vmatprep.subr.bf16.mxu0 0
        %492 = vmatpush1.bf16.xpose.msra.mxu0 0
        %493 = vmatprep.subr.bf16.mxu0 0
        %494 = vmatpush1.bf16.xpose.msra.mxu0 0
        %495 = vmatprep.subr.bf16.mxu0 0
        %496 = vmatpush1.bf16.xpose.msra.mxu0 0
        %497 = vmatprep.subr.bf16.mxu0 0
        %498 = vmatpush1.bf16.xpose.msra.mxu0 0
        %499 = vmatprep.subr.bf16.mxu0 0
        %500 = vmatpush1.bf16.xpose.msra.mxu0 0
        %501 = vmatprep.subr.bf16.mxu0 0
        %502 = vmatpush1.bf16.xpose.msra.mxu0 0
        %503 = vmatprep.subr.bf16.mxu0 0
        %504 = vmatpush1.bf16.xpose.msra.mxu0 0
        %505 = vmatprep.subr.bf16.mxu0 0
        %506 = vmatpush1.bf16.xpose.msra.mxu0 0
        %507 = vmatprep.subr.bf16.mxu0 0
        %508 = vmatpush1.bf16.xpose.msra.mxu0 0
        %509 = vmatprep.subr.bf16.mxu0 0
        %510 = vmatpush1.bf16.xpose.msra.mxu0 0
        %511 = vmatprep.subr.bf16.mxu0 0
        %512 = vmatpush1.bf16.xpose.msra.mxu0 0
        %513 = vmatprep.subr.bf16.mxu0 0
        %514 = vmatpush1.bf16.xpose.msra.mxu0 0
        %515 = vmatprep.subr.bf16.mxu0 0
        %516 = vmatpush1.bf16.xpose.msra.mxu0 0
        %517 = vmatprep.mubr.bf16.mxu0 %v458
        %518 = vmatmul.mubr.bf16.gmra.mrb[0].mxu0 %v457
        %v519 = vpop.f32.mrb[0].mxu0
        %v520 = vadd.f32 0.0, %v519
        %v521 = vpop.f32.mrb[0].mxu0
        %v522 = vpop.f32.mrb[0].mxu0
        %v523 = vpop.f32.mrb[0].mxu0
        %524 = vdwg.mxu0
        %525 = vmatprep.subr.bf16.mxu0 %v480
        %526 = vmatpush1.bf16.xpose.msra.mxu0 %v479
        %527 = vmatprep.subr.bf16.mxu0 0
        %528 = vmatpush1.bf16.xpose.msra.mxu0 0
        %529 = vmatprep.subr.bf16.mxu0 0
        %530 = vmatpush1.bf16.xpose.msra.mxu0 0
        %531 = vmatprep.subr.bf16.mxu0 0
        %532 = vmatpush1.bf16.xpose.msra.mxu0 0
        %533 = vmatprep.subr.bf16.mxu0 0
        %534 = vmatpush1.bf16.xpose.msra.mxu0 0
        %535 = vmatprep.subr.bf16.mxu0 0
        %536 = vmatpush1.bf16.xpose.msra.mxu0 0
        %537 = vmatprep.subr.bf16.mxu0 0
        %538 = vmatpush1.bf16.xpose.msra.mxu0 0
        %539 = vmatprep.subr.bf16.mxu0 0
        %540 = vmatpush1.bf16.xpose.msra.mxu0 0
        %541 = vmatprep.subr.bf16.mxu0 0
        %542 = vmatpush1.bf16.xpose.msra.mxu0 0
        %543 = vmatprep.subr.bf16.mxu0 0
        %544 = vmatpush1.bf16.xpose.msra.mxu0 0
        %545 = vmatprep.subr.bf16.mxu0 0
        %546 = vmatpush1.bf16.xpose.msra.mxu0 0
        %547 = vmatprep.subr.bf16.mxu0 0
        %548 = vmatpush1.bf16.xpose.msra.mxu0 0
        %549 = vmatprep.subr.bf16.mxu0 0
        %550 = vmatpush1.bf16.xpose.msra.mxu0 0
        %551 = vmatprep.subr.bf16.mxu0 0
        %552 = vmatpush1.bf16.xpose.msra.mxu0 0
        %553 = vmatprep.subr.bf16.mxu0 0
        %554 = vmatpush1.bf16.xpose.msra.mxu0 0
        %555 = vmatprep.subr.bf16.mxu0 0
        %556 = vmatpush1.bf16.xpose.msra.mxu0 0
        %557 = vmatprep.mubr.bf16.mxu0 %v460
        %558 = vmatmul.mubr.bf16.gmra.mrb[0].mxu0 %v459
        %v559 = vpop.f32.mrb[0].mxu0
        %v560 = vadd.f32 0.0, %v559
        %v561 = vpop.f32.mrb[0].mxu0
        %v562 = vpop.f32.mrb[0].mxu0
        %v563 = vpop.f32.mrb[0].mxu0
        %564 = vdwg.mxu0
        %565 = vmatprep.subr.bf16.mxu0 %v482
        %566 = vmatpush1.bf16.xpose.msra.mxu0 %v481
        %567 = vmatprep.subr.bf16.mxu0 0
        %568 = vmatpush1.bf16.xpose.msra.mxu0 0
        %569 = vmatprep.subr.bf16.mxu0 0
        %570 = vmatpush1.bf16.xpose.msra.mxu0 0
        %571 = vmatprep.subr.bf16.mxu0 0
        %572 = vmatpush1.bf16.xpose.msra.mxu0 0
        %573 = vmatprep.subr.bf16.mxu0 0
        %574 = vmatpush1.bf16.xpose.msra.mxu0 0
        %575 = vmatprep.subr.bf16.mxu0 0
        %576 = vmatpush1.bf16.xpose.msra.mxu0 0
        %577 = vmatprep.subr.bf16.mxu0 0
        %578 = vmatpush1.bf16.xpose.msra.mxu0 0
        %579 = vmatprep.subr.bf16.mxu0 0
        %580 = vmatpush1.bf16.xpose.msra.mxu0 0
        %581 = vmatprep.subr.bf16.mxu0 0
        %582 = vmatpush1.bf16.xpose.msra.mxu0 0
        %583 = vmatprep.subr.bf16.mxu0 0
        %584 = vmatpush1.bf16.xpose.msra.mxu0 0
        %585 = vmatprep.subr.bf16.mxu0 0
        %586 = vmatpush1.bf16.xpose.msra.mxu0 0
        %587 = vmatprep.subr.bf16.mxu0 0
        %588 = vmatpush1.bf16.xpose.msra.mxu0 0
        %589 = vmatprep.subr.bf16.mxu0 0
        %590 = vmatpush1.bf16.xpose.msra.mxu0 0
        %591 = vmatprep.subr.bf16.mxu0 0
        %592 = vmatpush1.bf16.xpose.msra.mxu0 0
        %593 = vmatprep.subr.bf16.mxu0 0
        %594 = vmatpush1.bf16.xpose.msra.mxu0 0
        %595 = vmatprep.subr.bf16.mxu0 0
        %596 = vmatpush1.bf16.xpose.msra.mxu0 0
        %597 = vmatprep.mubr.bf16.mxu0 %v462
        %598 = vmatmul.mubr.bf16.gmra.mrb[0].mxu0 %v461
        %v599 = vpop.f32.mrb[0].mxu0
        %v600 = vadd.f32 0.0, %v599
        %v601 = vpop.f32.mrb[0].mxu0
        %v602 = vpop.f32.mrb[0].mxu0
        %v603 = vpop.f32.mrb[0].mxu0
        %604 = vdwg.mxu0
        %605 = vmatprep.subr.bf16.mxu0 %v484
        %606 = vmatpush1.bf16.xpose.msra.mxu0 %v483
        %607 = vmatprep.subr.bf16.mxu0 0
        %608 = vmatpush1.bf16.xpose.msra.mxu0 0
        %609 = vmatprep.subr.bf16.mxu0 0
        %610 = vmatpush1.bf16.xpose.msra.mxu0 0
        %611 = vmatprep.subr.bf16.mxu0 0
        %612 = vmatpush1.bf16.xpose.msra.mxu0 0
        %613 = vmatprep.subr.bf16.mxu0 0
        %614 = vmatpush1.bf16.xpose.msra.mxu0 0
        %615 = vmatprep.subr.bf16.mxu0 0
        %616 = vmatpush1.bf16.xpose.msra.mxu0 0
        %617 = vmatprep.subr.bf16.mxu0 0
        %618 = vmatpush1.bf16.xpose.msra.mxu0 0
        %619 = vmatprep.subr.bf16.mxu0 0
        %620 = vmatpush1.bf16.xpose.msra.mxu0 0
        %621 = vmatprep.subr.bf16.mxu0 0
        %622 = vmatpush1.bf16.xpose.msra.mxu0 0
        %623 = vmatprep.subr.bf16.mxu0 0
        %624 = vmatpush1.bf16.xpose.msra.mxu0 0
        %625 = vmatprep.subr.bf16.mxu0 0
        %626 = vmatpush1.bf16.xpose.msra.mxu0 0
        %627 = vmatprep.subr.bf16.mxu0 0
        %628 = vmatpush1.bf16.xpose.msra.mxu0 0
        %629 = vmatprep.subr.bf16.mxu0 0
        %630 = vmatpush1.bf16.xpose.msra.mxu0 0
        %631 = vmatprep.subr.bf16.mxu0 0
        %632 = vmatpush1.bf16.xpose.msra.mxu0 0
        %633 = vmatprep.subr.bf16.mxu0 0
        %634 = vmatpush1.bf16.xpose.msra.mxu0 0
        %635 = vmatprep.subr.bf16.mxu0 0
        %636 = vmatpush1.bf16.xpose.msra.mxu0 0
        %637 = vmatprep.mubr.bf16.mxu0 %v464
        %638 = vmatmul.mubr.bf16.gmra.mrb[0].mxu0 %v463
        %v639 = vpop.f32.mrb[0].mxu0
        %v640 = vadd.f32 0.0, %v639
        %v641 = vpop.f32.mrb[0].mxu0
        %v642 = vpop.f32.mrb[0].mxu0
        %v643 = vpop.f32.mrb[0].mxu0
        %644 = vdwg.mxu0
        %v645 = vld [vmem:[#allocation5] sm:$0xf]
        %v648 = vunpack.c.l.s4 1966171168
        %v649 = vunpack.c.0.s8 %v648
        %v650 = vlaneseq
        %v651 = vshrl.u32 %v650, 7
        %v652 = vsub.s32 %v649, %v651
        %v653 = vrot.slane %v645, %v652
        %v654 = vcombine.high %v653, %v653
        %v656 = vunpack.c.l.s4 1966171168
        %v657 = vunpack.c.0.s8 %v656
        %v658 = vlaneseq
        %v659 = vshrl.u32 %v658, 7
        %v660 = vsub.s32 %v657, %v659
        %v661 = vrot.slane %v653, %v660
        %v663 = vunpack.c.l.s4 1966171168
        %v664 = vunpack.c.0.s8 %v663
        %v665 = vlaneseq
        %v666 = vshrl.u32 %v665, 7
        %v667 = vsub.s32 %v664, %v666
        %v668 = vrot.slane %v654, %v667
        %v669 = vcombine.high %v661, %v661
        %v670 = vcombine.high %v668, %v668
        %v671 = vlaneseq
        %v672 = vshrl.u32 %v671, 7
        %v673 = vsub.s32 0, %v672
        %v674 = vrot.slane %v661, %v673
        %v675 = vlaneseq
        %v676 = vshrl.u32 %v675, 7
        %v677 = vsub.s32 0, %v676
        %v678 = vrot.slane %v668, %v677
        %v679 = vlaneseq
        %v680 = vshrl.u32 %v679, 7
        %v681 = vsub.s32 0, %v680
        %v682 = vrot.slane %v669, %v681
        %v683 = vlaneseq
        %v684 = vshrl.u32 %v683, 7
        %v685 = vsub.s32 0, %v684
        %v686 = vrot.slane %v670, %v685
        %687 = vset.pattern.permute.xlu0 0
        %688 = vperm.xlu0 %687, %v674
        %v689 = vpop.permute.xlu0 %688
        %691 = vset.pattern.permute.xlu0 0
        %692 = vperm.xlu0 %691, %v678
        %v693 = vpop.permute.xlu0 %692
        %695 = vset.pattern.permute.xlu0 0
        %696 = vperm.xlu0 %695, %v682
        %v697 = vpop.permute.xlu0 %696
        %699 = vset.pattern.permute.xlu0 0
        %700 = vperm.xlu0 %699, %v686
        %v701 = vpop.permute.xlu0 %700
        %v703 = vmul.f32 %v520, %v689
        %v704 = vmul.f32 %v560, %v693
        %v705 = vmul.f32 %v600, %v697
        %v706 = vmul.f32 %v640, %v701
        %vm707 = vcmask 27648
        %v708 = vsel %vm707, %v703, -inf
        %709 = vmax.xlane.f32.xlu0 %v708
        %v710 = vpop.xlane.xlu0 %709
        %v711 = vsel %vm707, %v704, -inf
        %712 = vmax.xlane.f32.xlu0 %v711
        %v713 = vpop.xlane.xlu0 %712
        %v714 = vsel %vm707, %v705, -inf
        %715 = vmax.xlane.f32.xlu0 %v714
        %v716 = vpop.xlane.xlu0 %715
        %v717 = vsel %vm707, %v706, -inf
        %718 = vmax.xlane.f32.xlu0 %v717
        %v719 = vpop.xlane.xlu0 %718
        %v720 = vsub.f32 %v703, %v710
        %v721 = vsub.f32 %v704, %v713
        %v722 = vsub.f32 %v705, %v716
        %v723 = vsub.f32 %v706, %v719
        %v724 = vmul.f32 %v720, 1.442695
        %v725 = vpow.pop %v724
        %v726 = vmul.f32 %v721, 1.442695
        %v727 = vpow.pop %v726
        %v728 = vmul.f32 %v722, 1.442695
        %v729 = vpow.pop %v728
        %v730 = vmul.f32 %v723, 1.442695
        %v731 = vpow.pop %v730
        %v732 = vsel %vm707, %v725, 0.0
        %733 = vadd.xlane.f32.xlu0 %v732
        %v734 = vpop.xlane.xlu0 %733
        %v735 = vsel %vm707, %v727, 0.0
        %736 = vadd.xlane.f32.xlu0 %v735
        %v737 = vpop.xlane.xlu0 %736
        %v738 = vsel %vm707, %v729, 0.0
        %739 = vadd.xlane.f32.xlu0 %v738
        %v740 = vpop.xlane.xlu0 %739
        %v741 = vsel %vm707, %v731, 0.0
        %742 = vadd.xlane.f32.xlu0 %v741
        %v743 = vpop.xlane.xlu0 %742
        %v744 = vrcp.pop %v734
        %v745 = vrcp.pop %v737
        %v746 = vrcp.pop %v740
        %v747 = vrcp.pop %v743
        %v748 = vmul.f32 %v725, %v744
        %v749 = vmul.f32 %v727, %v745
        %v750 = vmul.f32 %v729, %v746
        %v751 = vmul.f32 %v731, %v747
        %v752 = vpack.c.bf16 %v748, %v748
        %v753 = vpack.c.bf16 %v749, %v749
        %v754 = vpack.c.bf16 %v750, %v750
        %v755 = vpack.c.bf16 %v751, %v751
        %v756 = vld [vmem:[#allocation7] sm:$0xf]
        %v757 = vld [vmem:[#allocation7 + $0x4] sm:$0xf]
        %v760 = vunpack.c.l.b16 %v756
        %v761 = vunpack.c.l.b16 %v757
        %v762 = vpack.c.b16 %v761, %v760
        %vm763 = vcmask 31744
        %v765 = vsel %vm763, %v762, 0
        %vm767 = vcmask 1041408
        %v769 = vsel %vm767, %v752, 0
        %771 = vmatprep.subr.bf16.mxu0 0
        %772 = vmatpush1.bf16.msra.mxu0 %v769
        %773 = vmatprep.subr.bf16.mxu0 0
        %774 = vmatpush1.bf16.msra.mxu0 0
        %775 = vmatprep.subr.bf16.mxu0 0
        %776 = vmatpush1.bf16.msra.mxu0 0
        %777 = vmatprep.subr.bf16.mxu0 0
        %778 = vmatpush1.bf16.msra.mxu0 0
        %779 = vmatprep.subr.bf16.mxu0 0
        %780 = vmatpush1.bf16.msra.mxu0 0
        %781 = vmatprep.subr.bf16.mxu0 0
        %782 = vmatpush1.bf16.msra.mxu0 0
        %783 = vmatprep.subr.bf16.mxu0 0
        %784 = vmatpush1.bf16.msra.mxu0 0
        %785 = vmatprep.subr.bf16.mxu0 0
        %786 = vmatpush1.bf16.msra.mxu0 0
        %787 = vmatprep.subr.bf16.mxu0 0
        %788 = vmatpush1.bf16.msra.mxu0 0
        %789 = vmatprep.subr.bf16.mxu0 0
        %790 = vmatpush1.bf16.msra.mxu0 0
        %791 = vmatprep.subr.bf16.mxu0 0
        %792 = vmatpush1.bf16.msra.mxu0 0
        %793 = vmatprep.subr.bf16.mxu0 0
        %794 = vmatpush1.bf16.msra.mxu0 0
        %795 = vmatprep.subr.bf16.mxu0 0
        %796 = vmatpush1.bf16.msra.mxu0 0
        %797 = vmatprep.subr.bf16.mxu0 0
        %798 = vmatpush1.bf16.msra.mxu0 0
        %799 = vmatprep.subr.bf16.mxu0 0
        %800 = vmatpush1.bf16.msra.mxu0 0
        %801 = vmatprep.subr.bf16.mxu0 0
        %802 = vmatpush1.bf16.msra.mxu0 0
        %803 = vmatprep.mubr.bf16.mxu0 0
        %804 = vmatmul.mubr.bf16.gmra.mrb[0].mxu0 %v765
        %v805 = vpop.f32.mrb[0].mxu0
        %v806 = vadd.f32 0.0, %v805
        %v807 = vpop.f32.mrb[0].mxu0
        %v808 = vpop.f32.mrb[0].mxu0
        %v809 = vadd.f32 0.0, %v808
        %v810 = vpop.f32.mrb[0].mxu0
        %811 = vdwg.mxu0
        %s812 = scalar_lea.vmem %s221, 32 [#allocation2]
        %v813 = vld [vmem:[%s812] sm:$0xf]
        %v814 = vpack.c.bf16 %v809, %v806
        %s815 = scalar_lea.vmem [#allocation7], 8
        %v816 = vld [vmem:[%s815] sm:$0xf]
        %v817 = vld [vmem:[%s815 + $0x4] sm:$0xf]
        %v820 = vunpack.c.l.b16 %v816
        %v821 = vunpack.c.l.b16 %v817
        %v822 = vpack.c.b16 %v821, %v820
        %v824 = vsel %vm763, %v822, 0
        %v827 = vsel %vm767, %v753, 0
        %829 = vmatprep.subr.bf16.mxu0 0
        %830 = vmatpush1.bf16.msra.mxu0 %v827
        %831 = vmatprep.subr.bf16.mxu0 0
        %832 = vmatpush1.bf16.msra.mxu0 0
        %833 = vmatprep.subr.bf16.mxu0 0
        %834 = vmatpush1.bf16.msra.mxu0 0
        %835 = vmatprep.subr.bf16.mxu0 0
        %836 = vmatpush1.bf16.msra.mxu0 0
        %837 = vmatprep.subr.bf16.mxu0 0
        %838 = vmatpush1.bf16.msra.mxu0 0
        %839 = vmatprep.subr.bf16.mxu0 0
        %840 = vmatpush1.bf16.msra.mxu0 0
        %841 = vmatprep.subr.bf16.mxu0 0
        %842 = vmatpush1.bf16.msra.mxu0 0
        %843 = vmatprep.subr.bf16.mxu0 0
        %844 = vmatpush1.bf16.msra.mxu0 0
        %845 = vmatprep.subr.bf16.mxu0 0
        %846 = vmatpush1.bf16.msra.mxu0 0
        %847 = vmatprep.subr.bf16.mxu0 0
        %848 = vmatpush1.bf16.msra.mxu0 0
        %849 = vmatprep.subr.bf16.mxu0 0
        %850 = vmatpush1.bf16.msra.mxu0 0
        %851 = vmatprep.subr.bf16.mxu0 0
        %852 = vmatpush1.bf16.msra.mxu0 0
        %853 = vmatprep.subr.bf16.mxu0 0
        %854 = vmatpush1.bf16.msra.mxu0 0
        %855 = vmatprep.subr.bf16.mxu0 0
        %856 = vmatpush1.bf16.msra.mxu0 0
        %857 = vmatprep.subr.bf16.mxu0 0
        %858 = vmatpush1.bf16.msra.mxu0 0
        %859 = vmatprep.subr.bf16.mxu0 0
        %860 = vmatpush1.bf16.msra.mxu0 0
        %861 = vmatprep.mubr.bf16.mxu0 0
        %862 = vmatmul.mubr.bf16.gmra.mrb[0].mxu0 %v824
        %v863 = vpop.f32.mrb[0].mxu0
        %v864 = vadd.f32 0.0, %v863
        %v865 = vpop.f32.mrb[0].mxu0
        %v866 = vpop.f32.mrb[0].mxu0
        %v867 = vadd.f32 0.0, %v866
        %v868 = vpop.f32.mrb[0].mxu0
        %869 = vdwg.mxu0
        %s870 = scalar_lea.vmem %s221, 36 [#allocation2]
        %v871 = vld [vmem:[%s870] sm:$0xf]
        %v872 = vpack.c.bf16 %v867, %v864
        %v875 = vunpack.c.l.s4 1983009808
        %v876 = vunpack.c.0.s8 %v875
        %v877 = vlaneseq
        %v878 = vshrl.u32 %v877, 7
        %v879 = vsub.s32 %v876, %v878
        %v880 = vrot.slane %v871, %v879
        %v881 = vcombine.high %v880, %v880
        %v883 = vsel %vm763, %v872, 0
        %v886 = vsel %vm767, %v880, 0
        %v889 = vsel %vm767, %v881, 0
        %891 = vmatprep.subr.bf16.mxu0 %v889
        %892 = vmatpush1.bf16.msra.mxu0 %v886
        %893 = vmatprep.subr.bf16.mxu0 0
        %894 = vmatpush1.bf16.msra.mxu0 0
        %895 = vmatprep.subr.bf16.mxu0 0
        %896 = vmatpush1.bf16.msra.mxu0 0
        %897 = vmatprep.subr.bf16.mxu0 0
        %898 = vmatpush1.bf16.msra.mxu0 0
        %899 = vmatprep.subr.bf16.mxu0 0
        %900 = vmatpush1.bf16.msra.mxu0 0
        %901 = vmatprep.subr.bf16.mxu0 0
        %902 = vmatpush1.bf16.msra.mxu0 0
        %903 = vmatprep.subr.bf16.mxu0 0
        %904 = vmatpush1.bf16.msra.mxu0 0
        %905 = vmatprep.subr.bf16.mxu0 0
        %906 = vmatpush1.bf16.msra.mxu0 0
        %907 = vmatprep.subr.bf16.mxu0 0
        %908 = vmatpush1.bf16.msra.mxu0 0
        %909 = vmatprep.subr.bf16.mxu0 0
        %910 = vmatpush1.bf16.msra.mxu0 0
        %911 = vmatprep.subr.bf16.mxu0 0
        %912 = vmatpush1.bf16.msra.mxu0 0
        %913 = vmatprep.subr.bf16.mxu0 0
        %914 = vmatpush1.bf16.msra.mxu0 0
        %915 = vmatprep.subr.bf16.mxu0 0
        %916 = vmatpush1.bf16.msra.mxu0 0
        %917 = vmatprep.subr.bf16.mxu0 0
        %918 = vmatpush1.bf16.msra.mxu0 0
        %919 = vmatprep.subr.bf16.mxu0 0
        %920 = vmatpush1.bf16.msra.mxu0 0
        %921 = vmatprep.subr.bf16.mxu0 0
        %922 = vmatpush1.bf16.msra.mxu0 0
        %923 = vmatprep.mubr.bf16.mxu0 0
        %924 = vmatmul.mubr.bf16.gmra.mrb[0].mxu0 %v883
        %v925 = vpop.f32.mrb[0].mxu0
        %v926 = vadd.f32 0.0, %v925
        %v927 = vpop.f32.mrb[0].mxu0
        %v928 = vadd.f32 0.0, %v927
        %v929 = vpop.f32.mrb[0].mxu0
        %v930 = vadd.f32 0.0, %v929
        %v931 = vpop.f32.mrb[0].mxu0
        %v932 = vadd.f32 0.0, %v931
        %933 = vdwg.mxu0
        %v936 = vunpack.c.l.s4 1983009808
        %v937 = vunpack.c.0.s8 %v936
        %v938 = vlaneseq
        %v939 = vshrl.u32 %v938, 7
        %v940 = vsub.s32 %v937, %v939
        %v941 = vrot.slane %v813, %v940
        %v942 = vcombine.high %v941, %v941
        %v944 = vsel %vm763, %v814, 0
        %v947 = vsel %vm767, %v941, 0
        %v950 = vsel %vm767, %v942, 0
        %952 = vmatprep.subr.bf16.mxu0 %v950
        %953 = vmatpush1.bf16.msra.mxu0 %v947
        %954 = vmatprep.subr.bf16.mxu0 0
        %955 = vmatpush1.bf16.msra.mxu0 0
        %956 = vmatprep.subr.bf16.mxu0 0
        %957 = vmatpush1.bf16.msra.mxu0 0
        %958 = vmatprep.subr.bf16.mxu0 0
        %959 = vmatpush1.bf16.msra.mxu0 0
        %960 = vmatprep.subr.bf16.mxu0 0
        %961 = vmatpush1.bf16.msra.mxu0 0
        %962 = vmatprep.subr.bf16.mxu0 0
        %963 = vmatpush1.bf16.msra.mxu0 0
        %964 = vmatprep.subr.bf16.mxu0 0
        %965 = vmatpush1.bf16.msra.mxu0 0
        %966 = vmatprep.subr.bf16.mxu0 0
        %967 = vmatpush1.bf16.msra.mxu0 0
        %968 = vmatprep.subr.bf16.mxu0 0
        %969 = vmatpush1.bf16.msra.mxu0 0
        %970 = vmatprep.subr.bf16.mxu0 0
        %971 = vmatpush1.bf16.msra.mxu0 0
        %972 = vmatprep.subr.bf16.mxu0 0
        %973 = vmatpush1.bf16.msra.mxu0 0
        %974 = vmatprep.subr.bf16.mxu0 0
        %975 = vmatpush1.bf16.msra.mxu0 0
        %976 = vmatprep.subr.bf16.mxu0 0
        %977 = vmatpush1.bf16.msra.mxu0 0
        %978 = vmatprep.subr.bf16.mxu0 0
        %979 = vmatpush1.bf16.msra.mxu0 0
        %980 = vmatprep.subr.bf16.mxu0 0
        %981 = vmatpush1.bf16.msra.mxu0 0
        %982 = vmatprep.subr.bf16.mxu0 0
        %983 = vmatpush1.bf16.msra.mxu0 0
        %984 = vmatprep.mubr.bf16.mxu0 0
        %985 = vmatmul.mubr.bf16.gmra.mrb[0].mxu0 %v944
        %v986 = vpop.f32.mrb[0].mxu0
        %v987 = vadd.f32 %v926, %v986
        %v988 = vpop.f32.mrb[0].mxu0
        %v989 = vadd.f32 %v928, %v988
        %v990 = vpop.f32.mrb[0].mxu0
        %v991 = vadd.f32 %v930, %v990
        %v992 = vpop.f32.mrb[0].mxu0
        %v993 = vadd.f32 %v932, %v992
        %994 = vdwg.mxu0
        %s995 = scalar_lea.vmem [#allocation7], 16
        %v996 = vld [vmem:[%s995] sm:$0xf]
        %v997 = vld [vmem:[%s995 + $0x4] sm:$0xf]
        %v1000 = vunpack.c.l.b16 %v996
        %v1001 = vunpack.c.l.b16 %v997
        %v1002 = vpack.c.b16 %v1001, %v1000
        %v1004 = vsel %vm763, %v1002, 0
        %v1007 = vsel %vm767, %v754, 0
        %1009 = vmatprep.subr.bf16.mxu0 0
        %1010 = vmatpush1.bf16.msra.mxu0 %v1007
        %1011 = vmatprep.subr.bf16.mxu0 0
        %1012 = vmatpush1.bf16.msra.mxu0 0
        %1013 = vmatprep.subr.bf16.mxu0 0
        %1014 = vmatpush1.bf16.msra.mxu0 0
        %1015 = vmatprep.subr.bf16.mxu0 0
        %1016 = vmatpush1.bf16.msra.mxu0 0
        %1017 = vmatprep.subr.bf16.mxu0 0
        %1018 = vmatpush1.bf16.msra.mxu0 0
        %1019 = vmatprep.subr.bf16.mxu0 0
        %1020 = vmatpush1.bf16.msra.mxu0 0
        %1021 = vmatprep.subr.bf16.mxu0 0
        %1022 = vmatpush1.bf16.msra.mxu0 0
        %1023 = vmatprep.subr.bf16.mxu0 0
        %1024 = vmatpush1.bf16.msra.mxu0 0
        %1025 = vmatprep.subr.bf16.mxu0 0
        %1026 = vmatpush1.bf16.msra.mxu0 0
        %1027 = vmatprep.subr.bf16.mxu0 0
        %1028 = vmatpush1.bf16.msra.mxu0 0
        %1029 = vmatprep.subr.bf16.mxu0 0
        %1030 = vmatpush1.bf16.msra.mxu0 0
        %1031 = vmatprep.subr.bf16.mxu0 0
        %1032 = vmatpush1.bf16.msra.mxu0 0
        %1033 = vmatprep.subr.bf16.mxu0 0
        %1034 = vmatpush1.bf16.msra.mxu0 0
        %1035 = vmatprep.subr.bf16.mxu0 0
        %1036 = vmatpush1.bf16.msra.mxu0 0
        %1037 = vmatprep.subr.bf16.mxu0 0
        %1038 = vmatpush1.bf16.msra.mxu0 0
        %1039 = vmatprep.subr.bf16.mxu0 0
        %1040 = vmatpush1.bf16.msra.mxu0 0
        %1041 = vmatprep.mubr.bf16.mxu0 0
        %1042 = vmatmul.mubr.bf16.gmra.mrb[0].mxu0 %v1004
        %v1043 = vpop.f32.mrb[0].mxu0
        %v1044 = vadd.f32 0.0, %v1043
        %v1045 = vpop.f32.mrb[0].mxu0
        %v1046 = vpop.f32.mrb[0].mxu0
        %v1047 = vadd.f32 0.0, %v1046
        %v1048 = vpop.f32.mrb[0].mxu0
        %1049 = vdwg.mxu0
        %s1050 = scalar_lea.vmem %s221, 40 [#allocation2]
        %v1051 = vld [vmem:[%s1050] sm:$0xf]
        %v1052 = vpack.c.bf16 %v1047, %v1044
        %v1055 = vunpack.c.l.s4 1983009808
        %v1056 = vunpack.c.0.s8 %v1055
        %v1057 = vlaneseq
        %v1058 = vshrl.u32 %v1057, 7
        %v1059 = vsub.s32 %v1056, %v1058
        %v1060 = vrot.slane %v1051, %v1059
        %v1061 = vcombine.high %v1060, %v1060
        %v1063 = vsel %vm763, %v1052, 0
        %v1066 = vsel %vm767, %v1060, 0
        %v1069 = vsel %vm767, %v1061, 0
        %1071 = vmatprep.subr.bf16.mxu0 %v1069
        %1072 = vmatpush1.bf16.msra.mxu0 %v1066
        %1073 = vmatprep.subr.bf16.mxu0 0
        %1074 = vmatpush1.bf16.msra.mxu0 0
        %1075 = vmatprep.subr.bf16.mxu0 0
        %1076 = vmatpush1.bf16.msra.mxu0 0
        %1077 = vmatprep.subr.bf16.mxu0 0
        %1078 = vmatpush1.bf16.msra.mxu0 0
        %1079 = vmatprep.subr.bf16.mxu0 0
        %1080 = vmatpush1.bf16.msra.mxu0 0
        %1081 = vmatprep.subr.bf16.mxu0 0
        %1082 = vmatpush1.bf16.msra.mxu0 0
        %1083 = vmatprep.subr.bf16.mxu0 0
        %1084 = vmatpush1.bf16.msra.mxu0 0
        %1085 = vmatprep.subr.bf16.mxu0 0
        %1086 = vmatpush1.bf16.msra.mxu0 0
        %1087 = vmatprep.subr.bf16.mxu0 0
        %1088 = vmatpush1.bf16.msra.mxu0 0
        %1089 = vmatprep.subr.bf16.mxu0 0
        %1090 = vmatpush1.bf16.msra.mxu0 0
        %1091 = vmatprep.subr.bf16.mxu0 0
        %1092 = vmatpush1.bf16.msra.mxu0 0
        %1093 = vmatprep.subr.bf16.mxu0 0
        %1094 = vmatpush1.bf16.msra.mxu0 0
        %1095 = vmatprep.subr.bf16.mxu0 0
        %1096 = vmatpush1.bf16.msra.mxu0 0
        %1097 = vmatprep.subr.bf16.mxu0 0
        %1098 = vmatpush1.bf16.msra.mxu0 0
        %1099 = vmatprep.subr.bf16.mxu0 0
        %1100 = vmatpush1.bf16.msra.mxu0 0
        %1101 = vmatprep.subr.bf16.mxu0 0
        %1102 = vmatpush1.bf16.msra.mxu0 0
        %1103 = vmatprep.mubr.bf16.mxu0 0
        %1104 = vmatmul.mubr.bf16.gmra.mrb[0].mxu0 %v1063
        %v1105 = vpop.f32.mrb[0].mxu0
        %v1106 = vadd.f32 0.0, %v1105
        %v1107 = vpop.f32.mrb[0].mxu0
        %v1108 = vadd.f32 0.0, %v1107
        %v1109 = vpop.f32.mrb[0].mxu0
        %v1110 = vadd.f32 0.0, %v1109
        %v1111 = vpop.f32.mrb[0].mxu0
        %v1112 = vadd.f32 0.0, %v1111
        %1113 = vdwg.mxu0
        %v1114 = vadd.f32 %v987, %v1106
        %v1115 = vadd.f32 %v989, %v1108
        %v1116 = vadd.f32 %v991, %v1110
        %v1117 = vadd.f32 %v993, %v1112
        %s1118 = scalar_lea.vmem [#allocation7], 24
        %v1119 = vld [vmem:[%s1118] sm:$0xf]
        %v1120 = vld [vmem:[%s1118 + $0x4] sm:$0xf]
        %v1123 = vunpack.c.l.b16 %v1119
        %v1124 = vunpack.c.l.b16 %v1120
        %v1125 = vpack.c.b16 %v1124, %v1123
        %v1127 = vsel %vm763, %v1125, 0
        %v1130 = vsel %vm767, %v755, 0
        %1132 = vmatprep.subr.bf16.mxu0 0
        %1133 = vmatpush1.bf16.msra.mxu0 %v1130
        %1134 = vmatprep.subr.bf16.mxu0 0
        %1135 = vmatpush1.bf16.msra.mxu0 0
        %1136 = vmatprep.subr.bf16.mxu0 0
        %1137 = vmatpush1.bf16.msra.mxu0 0
        %1138 = vmatprep.subr.bf16.mxu0 0
        %1139 = vmatpush1.bf16.msra.mxu0 0
        %1140 = vmatprep.subr.bf16.mxu0 0
        %1141 = vmatpush1.bf16.msra.mxu0 0
        %1142 = vmatprep.subr.bf16.mxu0 0
        %1143 = vmatpush1.bf16.msra.mxu0 0
        %1144 = vmatprep.subr.bf16.mxu0 0
        %1145 = vmatpush1.bf16.msra.mxu0 0
        %1146 = vmatprep.subr.bf16.mxu0 0
        %1147 = vmatpush1.bf16.msra.mxu0 0
        %1148 = vmatprep.subr.bf16.mxu0 0
        %1149 = vmatpush1.bf16.msra.mxu0 0
        %1150 = vmatprep.subr.bf16.mxu0 0
        %1151 = vmatpush1.bf16.msra.mxu0 0
        %1152 = vmatprep.subr.bf16.mxu0 0
        %1153 = vmatpush1.bf16.msra.mxu0 0
        %1154 = vmatprep.subr.bf16.mxu0 0
        %1155 = vmatpush1.bf16.msra.mxu0 0
        %1156 = vmatprep.subr.bf16.mxu0 0
        %1157 = vmatpush1.bf16.msra.mxu0 0
        %1158 = vmatprep.subr.bf16.mxu0 0
        %1159 = vmatpush1.bf16.msra.mxu0 0
        %1160 = vmatprep.subr.bf16.mxu0 0
        %1161 = vmatpush1.bf16.msra.mxu0 0
        %1162 = vmatprep.subr.bf16.mxu0 0
        %1163 = vmatpush1.bf16.msra.mxu0 0
        %1164 = vmatprep.mubr.bf16.mxu0 0
        %1165 = vmatmul.mubr.bf16.gmra.mrb[0].mxu0 %v1127
        %v1166 = vpop.f32.mrb[0].mxu0
        %v1167 = vadd.f32 0.0, %v1166
        %v1168 = vpop.f32.mrb[0].mxu0
        %v1169 = vpop.f32.mrb[0].mxu0
        %v1170 = vadd.f32 0.0, %v1169
        %v1171 = vpop.f32.mrb[0].mxu0
        %1172 = vdwg.mxu0
        %s1173 = scalar_lea.vmem %s221, 44 [#allocation2]
        %v1174 = vld [vmem:[%s1173] sm:$0xf]
        %v1175 = vpack.c.bf16 %v1170, %v1167
        %v1178 = vunpack.c.l.s4 1983009808
        %v1179 = vunpack.c.0.s8 %v1178
        %v1180 = vlaneseq
        %v1181 = vshrl.u32 %v1180, 7
        %v1182 = vsub.s32 %v1179, %v1181
        %v1183 = vrot.slane %v1174, %v1182
        %v1184 = vcombine.high %v1183, %v1183
        %v1186 = vsel %vm763, %v1175, 0
        %v1189 = vsel %vm767, %v1183, 0
        %v1192 = vsel %vm767, %v1184, 0
        %1194 = vmatprep.subr.bf16.mxu0 %v1192
        %1195 = vmatpush1.bf16.msra.mxu0 %v1189
        %1196 = vmatprep.subr.bf16.mxu0 0
        %1197 = vmatpush1.bf16.msra.mxu0 0
        %1198 = vmatprep.subr.bf16.mxu0 0
        %1199 = vmatpush1.bf16.msra.mxu0 0
        %1200 = vmatprep.subr.bf16.mxu0 0
        %1201 = vmatpush1.bf16.msra.mxu0 0
        %1202 = vmatprep.subr.bf16.mxu0 0
        %1203 = vmatpush1.bf16.msra.mxu0 0
        %1204 = vmatprep.subr.bf16.mxu0 0
        %1205 = vmatpush1.bf16.msra.mxu0 0
        %1206 = vmatprep.subr.bf16.mxu0 0
        %1207 = vmatpush1.bf16.msra.mxu0 0
        %1208 = vmatprep.subr.bf16.mxu0 0
        %1209 = vmatpush1.bf16.msra.mxu0 0
        %1210 = vmatprep.subr.bf16.mxu0 0
        %1211 = vmatpush1.bf16.msra.mxu0 0
        %1212 = vmatprep.subr.bf16.mxu0 0
        %1213 = vmatpush1.bf16.msra.mxu0 0
        %1214 = vmatprep.subr.bf16.mxu0 0
        %1215 = vmatpush1.bf16.msra.mxu0 0
        %1216 = vmatprep.subr.bf16.mxu0 0
        %1217 = vmatpush1.bf16.msra.mxu0 0
        %1218 = vmatprep.subr.bf16.mxu0 0
        %1219 = vmatpush1.bf16.msra.mxu0 0
        %1220 = vmatprep.subr.bf16.mxu0 0
        %1221 = vmatpush1.bf16.msra.mxu0 0
        %1222 = vmatprep.subr.bf16.mxu0 0
        %1223 = vmatpush1.bf16.msra.mxu0 0
        %1224 = vmatprep.subr.bf16.mxu0 0
        %1225 = vmatpush1.bf16.msra.mxu0 0
        %1226 = vmatprep.mubr.bf16.mxu0 0
        %1227 = vmatmul.mubr.bf16.gmra.mrb[0].mxu0 %v1186
        %v1228 = vpop.f32.mrb[0].mxu0
        %v1229 = vadd.f32 0.0, %v1228
        %v1230 = vpop.f32.mrb[0].mxu0
        %v1231 = vadd.f32 0.0, %v1230
        %v1232 = vpop.f32.mrb[0].mxu0
        %v1233 = vadd.f32 0.0, %v1232
        %v1234 = vpop.f32.mrb[0].mxu0
        %v1235 = vadd.f32 0.0, %v1234
        %1236 = vdwg.mxu0
        %v1237 = vadd.f32 %v1114, %v1229
        %v1238 = vadd.f32 %v1115, %v1231
        %v1239 = vadd.f32 %v1116, %v1233
        %v1240 = vadd.f32 %v1117, %v1235
        %v1241 = vld [vmem:[#allocation8] sm:$0xff]
        %v1242 = vld [vmem:[#allocation8 + $0x8] sm:$0xff]
        %1244 = vset.pattern.permute.xlu0 0
        %1245 = vperm.xlu0 %1244, %v1241
        %v1246 = vpop.permute.xlu0 %1245
        %1249 = vset.pattern.permute.xlu0 0
        %1250 = vperm.xlu0 %1249, %v1242
        %v1251 = vpop.permute.xlu0 %1250
        %v1253 = vadd.f32 %v1237, %v1246
        %v1254 = vadd.f32 %v1238, %v1246
        %v1255 = vadd.f32 %v1239, %v1251
        %v1256 = vadd.f32 %v1240, %v1251
        %1257 = vst [vmem:[%s257] sm:$0xff] %v1253
        %1258 = vst [vmem:[%s257 + $0x8] sm:$0xff] %v1254
        %1259 = vst [vmem:[%s257 + $0x10] sm:$0xff] %v1255
        %1260 = vst [vmem:[%s257 + $0x18] sm:$0xff] %v1256
        %s1261 = sand.u32 %s120, 1
        %s1262 = scalar_lea.sflag [#allocation4], %s1261
        %s1263 = sand.u32 %s120, 1
        %s1264 = smul.addr %s1263, 32
        %s1265 = scalar_lea.vmem [#allocation10], %s1264
        // Predicated region
        $region53: #{attention_forward.5} parent=35 // pred_check
          %p1266 = pneg %p130
        $region54: #{attention_forward.5} parent=35 // pred_check_branch
          %1268 = sbr.rel (%p1266) target = $region56
        $region55: #{attention_forward.5} parent=35 // pred_region
          %s1270 = ssub.s32 512, 512
          %1271 = vsyncadd %s1262, %s1270
          %s1272 = smul.addr %s23, 4
          %s1273 = smul.addr %s1272, 128
          %s1274 = scalar_lea.hbm %s4, %s1273
          %s1275 = sshll.u32 %s1265, 4
          %s1276 = int_to_ptr.vmem [resolvable:$true] %s1275
          %1281 = dma.vmem_to_hbm [thread:$0]  %s1276, 512, %s1274, %s1262, 256, 256, 16
        $region56: #{attention_forward.5} parent=35 // pred_fallthru
          _
      $region36: #{attention_forward.5} parent=5 // pred_fallthru
        _
      %p1282 = scmp.le.s32.totalorder 2, %s18
      // Predicated region
      $region57: #{attention_forward.5} parent=5 // pred_check
        %p1283 = pneg %p1282
      $region58: #{attention_forward.5} parent=5 // pred_check_branch
        %1285 = sbr.rel (%p1283) target = $region60
      $region59: #{attention_forward.5} parent=5 // pred_region
        %s1286 = ssub.s32 %s18, 2
        // Predicated region
        $region61: #{attention_forward.5} parent=59 // pred_check
          %p1287 = pneg %p136
        $region62: #{attention_forward.5} parent=59 // pred_check_branch
          %1289 = sbr.rel (%p1287) target = $region64
        $region63: #{attention_forward.5} parent=59 // pred_region
          %s1290 = sand.u32 %s121, 1
          %s1291 = scalar_lea.sflag [#allocation4], %s1290
          %s1292 = sand.u32 %s121, 1
          %s1293 = smul.addr %s1292, 32
          %s1294 = scalar_lea.vmem [#allocation10], %s1293
          %1295 = dma.done %s1291, 512
        $region64: #{attention_forward.5} parent=59 // pred_fallthru
          _
      $region60: #{attention_forward.5} parent=5 // pred_fallthru
        _
    $region6: #{attention_forward.5} parent=1 // loop_footer
      %s22 = sadd.s32 1, %s18
    $region7: #{attention_forward.5} parent=1 // loop_footer_branch
      %17 = sbr.rel target = $region3
    $region8: #{attention_forward.5} parent=1 // loop_exit
      _
    %1296 = vsyncpa [#allocation3], 1
    %s1297 = scalar_lea.sflag [#allocation3], 1
    %1298 = vsyncpa %s1297, 1
    %1299 = vsyncpa [#allocation6], 1
    %1300 = vsyncpa [#allocation9], 1
    %1301 = vsyncpa [#allocation4], 1
    %s1302 = scalar_lea.sflag [#allocation4], 1
    %1303 = vsyncpa %s1302, 1

// kernel: attention_forward.4
$region0: #{attention_forward.4}
  #allocation0 [shape = 'u32[]', space=smem, size = 0x4, offset = 0x4, fixed_abs, tag = 'smem constant byte address 0x4 - core index']
  #allocation1 [shape = 'u32[144,128]{1,0:T(1,128)}', space=vmem, size = 0x12000, scoped, tag = 'internal scratch']
  %s0 = inlined_call_operand.hbm [shape: bf16[2,48,18,18], index: 0, kind: input, shape index: {}]
  %s1 = inlined_call_operand.hbm [shape: f32[48,3,3], index: 1, kind: input, shape index: {}]
  %s2 = inlined_call_operand.hbm [shape: f32[48,1], index: 2, kind: input, shape index: {}]
  %s3 = inlined_call_operand.hbm [shape: bf16[2,48,16,16], index: 3, kind: output, shape index: {}]
  %s4 = sld [smem:[#allocation0]]
  $region57: #{attention_forward.4} parent=0
    _
  %s6 = ssub.s32 1, %s4
  %s7 = scalar_select 0, %s6, %s4
  $region1: #{attention_forward.4} parent=0
    #allocation2 [shape = 'u8[589824]{0}', space=vmem, size = 0x90000, scoped, tag = 'input window, operand 0']
    #allocation3 [shape = 's32[2]{0}', space=sflag, size = 0x8, scoped, tag = 'scoped memory for attention_forward.4']
    #allocation4 [shape = 's32[2]{0}', space=sflag, size = 0x8, scoped, tag = 'scoped memory for attention_forward.4']
    #allocation5 [shape = 'u8[98304]{0}', space=vmem, size = 0x18000, scoped, tag = 'input window, operand 1, single buffered']
    #allocation6 [shape = 's32[1]{0}', space=sflag, size = 0x4, scoped, tag = 'scoped memory for attention_forward.4']
    #allocation7 [shape = 'u8[24576]{0}', space=vmem, size = 0x6000, scoped, tag = 'input window, operand 2, single buffered']
    #allocation8 [shape = 'u8[393216]{0}', space=vmem, size = 0x60000, scoped, tag = 'output window, operand 0']
    %8 = vsyncpa [#allocation3], 0
    %s9 = scalar_lea.sflag [#allocation3], 1
    %10 = vsyncpa %s9, 0
    %11 = vsyncpa [#allocation6], 0
    %12 = vsyncpa [#allocation4], 0
    %s13 = scalar_lea.sflag [#allocation4], 1
    %14 = vsyncpa %s13, 0
    loop: start=0, step=1, limit=4
    $region2: #{attention_forward.4} parent=1 // loop_pre_header
      _
    $region3: #{attention_forward.4} parent=1 // loop_header
      %s16 = sphi 0, %s20
      %p17 = scmp.ge.s32.totalorder %s16, 4
      %s23 = sphi 0, %s35
      %s24 = sphi 0, %s31
      %s25 = sphi 0, %s23
      %s26 = sphi 0, %s24
      %s27 = sphi 0, %s25
      %s28 = sphi 0, %s26
      %s40 = sphi 0, %s42
      %s43 = sphi 0, %s40
      %s44 = sphi 0, %s43
      %s60 = sphi 0, %s44
      %s66 = sphi 0, %s68
      %s69 = sphi 0, %s66
      %s70 = sphi 0, %s69
      %s86 = sphi 0, %s70
      %s92 = sphi 0, %s94
      %s95 = sphi 0, %s92
      %s96 = sphi 0, %s95
      %s112 = sphi 0, %s96
      %s120 = sphi 0, %s122
      %s123 = sphi 0, %s120
      %s124 = sphi 0, %s123
      %s140 = sphi 0, %s124
    $region4: #{attention_forward.4} parent=1 // loop_header_branch
      %19 = sbr.rel (%p17) target = $region8
    $region5: #{attention_forward.4} parent=1 // loop_body
      %s21 = ssub.s32 %s16, 1
      %s22 = ssub.s32 %s16, 2
      %s29 = sadd.s32 1, %s24
      %p30 = scmp.ge.s32.totalorder %s29, 1
      %s31 = scalar_select %p30, 0, %s29
      %s32 = sadd.s32 1, %s23
      %s33 = scalar_select %p30, %s32, %s23
      %p34 = scmp.ge.s32.totalorder %s33, 2
      %s35 = scalar_select %p34, 0, %s33
      %s36 = ssub.s32 %s23, %s35
      %s37 = ssub.s32 %s24, %s31
      %s38 = sor.u32 %s36, %s37
      %p39 = scmp.eq.s32.totalorder %s38, 0
      %s41 = sadd.s32 %s40, 1
      %s42 = scalar_select %p39, %s40, %s41
      %p45 = pneg %p39
      %p46 = scmp.eq.s32.totalorder %s16, 1
      %p47 = por %p45, %p46
      %p48 = scmp.ne.s32.totalorder %s40, %s43
      %p49 = scmp.eq.s32.totalorder %s16, 0
      %p50 = por %p48, %p49
      %p51 = scmp.ne.s32.totalorder %s40, %s43
      %p52 = scmp.eq.s32.totalorder %s21, 1
      %p53 = por %p51, %p52
      %p54 = scmp.ne.s32.totalorder %s43, %s44
      %p55 = scmp.eq.s32.totalorder %s21, 0
      %p56 = por %p54, %p55
      %p57 = scmp.ne.s32.totalorder %s43, %s44
      %p58 = scmp.eq.s32.totalorder %s22, 1
      %p59 = por %p57, %p58
      %p61 = scmp.ne.s32.totalorder %s44, %s60
      %p62 = scmp.eq.s32.totalorder %s22, 0
      %p63 = por %p61, %p62
      %s64 = ssub.s32 %s24, %s31
      %p65 = scmp.eq.s32.totalorder %s64, 0
      %s67 = sadd.s32 %s66, 1
      %s68 = scalar_select %p65, %s66, %s67
      %p71 = pneg %p65
      %p72 = scmp.eq.s32.totalorder %s16, 1
      %p73 = por %p71, %p72
      %p74 = scmp.ne.s32.totalorder %s66, %s69
      %p75 = scmp.eq.s32.totalorder %s16, 0
      %p76 = por %p74, %p75
      %p77 = scmp.ne.s32.totalorder %s66, %s69
      %p78 = scmp.eq.s32.totalorder %s21, 1
      %p79 = por %p77, %p78
      %p80 = scmp.ne.s32.totalorder %s69, %s70
      %p81 = scmp.eq.s32.totalorder %s21, 0
      %p82 = por %p80, %p81
      %p83 = scmp.ne.s32.totalorder %s69, %s70
      %p84 = scmp.eq.s32.totalorder %s22, 1
      %p85 = por %p83, %p84
      %p87 = scmp.ne.s32.totalorder %s70, %s86
      %p88 = scmp.eq.s32.totalorder %s22, 0
      %p89 = por %p87, %p88
      %s90 = ssub.s32 %s24, %s31
      %p91 = scmp.eq.s32.totalorder %s90, 0
      %s93 = sadd.s32 %s92, 1
      %s94 = scalar_select %p91, %s92, %s93
      %p97 = pneg %p91
      %p98 = scmp.eq.s32.totalorder %s16, 1
      %p99 = por %p97, %p98
      %p100 = scmp.ne.s32.totalorder %s92, %s95
      %p101 = scmp.eq.s32.totalorder %s16, 0
      %p102 = por %p100, %p101
      %p103 = scmp.ne.s32.totalorder %s92, %s95
      %p104 = scmp.eq.s32.totalorder %s21, 1
      %p105 = por %p103, %p104
      %p106 = scmp.ne.s32.totalorder %s95, %s96
      %p107 = scmp.eq.s32.totalorder %s21, 0
      %p108 = por %p106, %p107
      %p109 = scmp.ne.s32.totalorder %s95, %s96
      %p110 = scmp.eq.s32.totalorder %s22, 1
      %p111 = por %p109, %p110
      %p113 = scmp.ne.s32.totalorder %s96, %s112
      %p114 = scmp.eq.s32.totalorder %s22, 0
      %p115 = por %p113, %p114
      %s116 = ssub.s32 %s23, %s35
      %s117 = ssub.s32 %s24, %s31
      %s118 = sor.u32 %s116, %s117
      %p119 = scmp.eq.s32.totalorder %s118, 0
      %s121 = sadd.s32 %s120, 1
      %s122 = scalar_select %p119, %s120, %s121
      %p125 = pneg %p119
      %p126 = scmp.eq.s32.totalorder %s16, 1
      %p127 = por %p125, %p126
      %p128 = scmp.ne.s32.totalorder %s120, %s123
      %p129 = scmp.eq.s32.totalorder %s16, 0
      %p130 = por %p128, %p129
      %p131 = scmp.ne.s32.totalorder %s120, %s123
      %p132 = scmp.eq.s32.totalorder %s21, 1
      %p133 = por %p131, %p132
      %p134 = scmp.ne.s32.totalorder %s123, %s124
      %p135 = scmp.eq.s32.totalorder %s21, 0
      %p136 = por %p134, %p135
      %p137 = scmp.ne.s32.totalorder %s123, %s124
      %p138 = scmp.eq.s32.totalorder %s22, 1
      %p139 = por %p137, %p138
      %p141 = scmp.ne.s32.totalorder %s124, %s140
      %p142 = scmp.eq.s32.totalorder %s22, 0
      %p143 = por %p141, %p142
      %p144 = scmp.le.s32.totalorder 1, %s16
      %p145 = scmp.lt.s32.totalorder %s16, 3
      %p146 = pnand %p144, %p145
      %p147 = pneg %p146
      // Predicated region
      $region9: #{attention_forward.4} parent=5 // pred_check
        _
      $region10: #{attention_forward.4} parent=5 // pred_check_branch
        %149 = sbr.rel (%p146) target = $region12
      $region11: #{attention_forward.4} parent=5 // pred_region
        %s150 = ssub.s32 %s16, 1
        // Predicated region
        $region13: #{attention_forward.4} parent=11 // pred_check
          %p151 = pneg %p82
        $region14: #{attention_forward.4} parent=11 // pred_check_branch
          %153 = sbr.rel (%p151) target = $region16
        $region15: #{attention_forward.4} parent=11 // pred_region
          %s154 = smul.u32 48, %s26
          %s156 = ssub.s32 3072, 3072
          %157 = vsyncadd [#allocation6], %s156
          %s158 = smul.addr %s154, 64
          %s159 = scalar_lea.hbm %s1, %s158
          %s160 = sshll.u32 [#allocation5], 4
          %s161 = int_to_ptr.vmem [resolvable:$true] %s160
          %166 = dma.hbm_to_vmem [thread:$0]  %s159, 3072, %s161, [#allocation6], 64, 64, 4
        $region16: #{attention_forward.4} parent=11 // pred_fallthru
          _
        // Predicated region
        $region17: #{attention_forward.4} parent=11 // pred_check
          %p167 = pneg %p108
        $region18: #{attention_forward.4} parent=11 // pred_check_branch
          %169 = sbr.rel (%p167) target = $region20
        $region19: #{attention_forward.4} parent=11 // pred_region
          %s170 = smul.u32 6, %s26
          %s172 = ssub.s32 768, 768
          %173 = vsyncadd [#allocation6], %s172
          %s174 = smul.addr %s170, 128
          %s175 = scalar_lea.hbm %s2, %s174
          %s176 = sshll.u32 [#allocation7], 4
          %s177 = int_to_ptr.vmem [resolvable:$true] %s176
          %182 = dma.hbm_to_vmem [thread:$0]  %s175, 768, %s177, [#allocation6], 128, 128, 8
        $region20: #{attention_forward.4} parent=11 // pred_fallthru
          _
      $region12: #{attention_forward.4} parent=5 // pred_fallthru
        _
      %p183 = scmp.lt.s32.totalorder %s16, 2
      // Predicated region
      $region21: #{attention_forward.4} parent=5 // pred_check
        %p184 = pneg %p183
      $region22: #{attention_forward.4} parent=5 // pred_check_branch
        %186 = sbr.rel (%p184) target = $region24
      $region23: #{attention_forward.4} parent=5 // pred_region
        // Predicated region
        $region25: #{attention_forward.4} parent=23 // pred_check
          %p187 = pneg %p50
        $region26: #{attention_forward.4} parent=23 // pred_check_branch
          %189 = sbr.rel (%p187) target = $region28
        $region27: #{attention_forward.4} parent=23 // pred_region
          %s190 = sand.u32 %s40, 1
          %s191 = scalar_lea.sflag [#allocation3], %s190
          %s192 = sand.u32 %s40, 1
          %s193 = smul.addr %s192, 576
          %s194 = scalar_lea.vmem [#allocation2], %s193
          %s195 = smul.u32 48, %s24
          %s197 = ssub.s32 9216, 9216
          %198 = vsyncadd %s191, %s197
          %s199 = smul.addr %s195, 3
          %s200 = smul.addr %s23, 144
          %s201 = sadd.s32 %s199, %s200
          %s202 = smul.addr %s201, 64
          %s203 = scalar_lea.hbm %s0, %s202
          %s204 = sshll.u32 %s194, 4
          %s205 = int_to_ptr.vmem [resolvable:$true] %s204
          %210 = dma.hbm_to_vmem [thread:$0]  %s203, 9216, %s205, %s191, 64, 64, 4
        $region28: #{attention_forward.4} parent=23 // pred_fallthru
          _
      $region24: #{attention_forward.4} parent=5 // pred_fallthru
        _
      %p211 = scmp.le.s32.totalorder 1, %s16
      %p212 = scmp.lt.s32.totalorder %s16, 3
      %p213 = pnand %p211, %p212
      %p214 = pneg %p213
      // Predicated region
      $region29: #{attention_forward.4} parent=5 // pred_check
        _
      $region30: #{attention_forward.4} parent=5 // pred_check_branch
        %216 = sbr.rel (%p213) target = $region32
      $region31: #{attention_forward.4} parent=5 // pred_region
        %s217 = ssub.s32 %s16, 1
        %s218 = sand.u32 %s43, 1
        %s219 = scalar_lea.sflag [#allocation3], %s218
        %s220 = sand.u32 %s43, 1
        %s221 = smul.addr %s220, 576
        %s222 = scalar_lea.vmem [#allocation2], %s221
        // Predicated region
        $region33: #{attention_forward.4} parent=31 // pred_check
          %p223 = pneg %p56
        $region34: #{attention_forward.4} parent=31 // pred_check_branch
          %225 = sbr.rel (%p223) target = $region36
        $region35: #{attention_forward.4} parent=31 // pred_region
          %226 = dma.done %s219, 9216
        $region36: #{attention_forward.4} parent=31 // pred_fallthru
          _
        // Predicated region
        $region37: #{attention_forward.4} parent=31 // pred_check
          %p227 = pneg %p82
        $region38: #{attention_forward.4} parent=31 // pred_check_branch
          %229 = sbr.rel (%p227) target = $region40
        $region39: #{attention_forward.4} parent=31 // pred_region
          %230 = dma.done [#allocation6], 3072
        $region40: #{attention_forward.4} parent=31 // pred_fallthru
          _
        // Predicated region
        $region41: #{attention_forward.4} parent=31 // pred_check
          %p231 = pneg %p108
        $region42: #{attention_forward.4} parent=31 // pred_check_branch
          %233 = sbr.rel (%p231) target = $region44
        $region43: #{attention_forward.4} parent=31 // pred_region
          %234 = dma.done [#allocation6], 768
        $region44: #{attention_forward.4} parent=31 // pred_fallthru
          _
        %s235 = sand.u32 %s43, 1
        %s236 = scalar_lea.sflag [#allocation3], %s235
        %s237 = sand.u32 %s43, 1
        %s238 = smul.addr %s237, 576
        %s239 = scalar_lea.vmem [#allocation2], %s238
        %p240 = pneg %p56
        %p241 = pneg %p53
        %p242 = pneg %p82
        %p243 = pneg %p79
        %p244 = pneg %p108
        %p245 = pneg %p105
        %p246 = pneg %p136
        %p247 = pneg %p133
        %s248 = sand.u32 %s123, 1
        %s249 = scalar_lea.sflag [#allocation4], %s248
        %s250 = sand.u32 %s123, 1
        %s251 = smul.addr %s250, 384
        %s252 = scalar_lea.vmem [#allocation8], %s251
        %s253 = smul.u32 48, %s26
        %s254 = smul.u32 48, %s26
        %s255 = smul.u32 6, %s26
        %s256 = smul.u32 48, %s26
        %v257 = vld [vmem:[%s222] sm:$0xf]
        %v258 = vld [vmem:[%s222 + $0x4] sm:$0xf]
        %v259 = vld [vmem:[%s222 + $0x8] sm:$0x1]
        %v260 = vld [vmem:[%s222 + $0xc] sm:$0xf]
        %v261 = vld [vmem:[%s222 + $0x10] sm:$0xf]
        %v262 = vld [vmem:[%s222 + $0x14] sm:$0x1]
        %v263 = vld [vmem:[%s222 + $0x18] sm:$0xf]
        %v264 = vld [vmem:[%s222 + $0x1c] sm:$0xf]
        %v265 = vld [vmem:[%s222 + $0x20] sm:$0x1]
        %v266 = vld [vmem:[%s222 + $0x24] sm:$0xf]
        %v267 = vld [vmem:[%s222 + $0x28] sm:$0xf]
        %v268 = vld [vmem:[%s222 + $0x2c] sm:$0x1]
        %v269 = vld [vmem:[%s222 + $0x30] sm:$0xf]
        %v270 = vld [vmem:[%s222 + $0x34] sm:$0xf]
        %v271 = vld [vmem:[%s222 + $0x38] sm:$0x1]
        %v272 = vld [vmem:[%s222 + $0x3c] sm:$0xf]
        %v273 = vld [vmem:[%s222 + $0x40] sm:$0xf]
        %v274 = vld [vmem:[%s222 + $0x44] sm:$0x1]
        %v275 = vld [vmem:[%s222 + $0x48] sm:$0xf]
        %v276 = vld [vmem:[%s222 + $0x4c] sm:$0xf]
        %v277 = vld [vmem:[%s222 + $0x50] sm:$0x1]
        %v278 = vld [vmem:[%s222 + $0x54] sm:$0xf]
        %v279 = vld [vmem:[%s222 + $0x58] sm:$0xf]
        %v280 = vld [vmem:[%s222 + $0x5c] sm:$0x1]
        %v281 = vld [vmem:[%s222 + $0x60] sm:$0xf]
        %v282 = vld [vmem:[%s222 + $0x64] sm:$0xf]
        %v283 = vld [vmem:[%s222 + $0x68] sm:$0x1]
        %v284 = vld [vmem:[%s222 + $0x6c] sm:$0xf]
        %v285 = vld [vmem:[%s222 + $0x70] sm:$0xf]
        %v286 = vld [vmem:[%s222 + $0x74] sm:$0x1]
        %v287 = vld [vmem:[%s222 + $0x78] sm:$0xf]
        %v288 = vld [vmem:[%s222 + $0x7c] sm:$0xf]
        %v289 = vld [vmem:[%s222 + $0x80] sm:$0x1]
        %v290 = vld [vmem:[%s222 + $0x84] sm:$0xf]
        %v291 = vld [vmem:[%s222 + $0x88] sm:$0xf]
        %v292 = vld [vmem:[%s222 + $0x8c] sm:$0x1]
        %v293 = vld [vmem:[%s222 + $0x90] sm:$0xf]
        %v294 = vld [vmem:[%s222 + $0x94] sm:$0xf]
        %v295 = vld [vmem:[%s222 + $0x98] sm:$0x1]
        %v296 = vld [vmem:[%s222 + $0x9c] sm:$0xf]
        %v297 = vld [vmem:[%s222 + $0xa0] sm:$0xf]
        %v298 = vld [vmem:[%s222 + $0xa4] sm:$0x1]
        %v299 = vld [vmem:[%s222 + $0xa8] sm:$0xf]
        %v300 = vld [vmem:[%s222 + $0xac] sm:$0xf]
        %v301 = vld [vmem:[%s222 + $0xb0] sm:$0x1]
        %v302 = vld [vmem:[%s222 + $0xb4] sm:$0xf]
        %v303 = vld [vmem:[%s222 + $0xb8] sm:$0xf]
        %v304 = vld [vmem:[%s222 + $0xbc] sm:$0x1]
        %v305 = vld [vmem:[%s222 + $0xc0] sm:$0xf]
        %v306 = vld [vmem:[%s222 + $0xc4] sm:$0xf]
        %v307 = vld [vmem:[%s222 + $0xc8] sm:$0x1]
        %v308 = vld [vmem:[%s222 + $0xcc] sm:$0xf]
        %v309 = vld [vmem:[%s222 + $0xd0] sm:$0xf]
        %v310 = vld [vmem:[%s222 + $0xd4] sm:$0x1]
        %v311 = vld [vmem:[%s222 + $0xd8] sm:$0xf]
        %v312 = vld [vmem:[%s222 + $0xdc] sm:$0xf]
        %v313 = vld [vmem:[%s222 + $0xe0] sm:$0x1]
        %v314 = vld [vmem:[%s222 + $0xe4] sm:$0xf]
        %v315 = vld [vmem:[%s222 + $0xe8] sm:$0xf]
        %v316 = vld [vmem:[%s222 + $0xec] sm:$0x1]
        %v317 = vld [vmem:[%s222 + $0xf0] sm:$0xf]
        %v318 = vld [vmem:[%s222 + $0xf4] sm:$0xf]
        %v319 = vld [vmem:[%s222 + $0xf8] sm:$0x1]
        %v320 = vld [vmem:[%s222 + $0xfc] sm:$0xf]
        %v321 = vld [vmem:[%s222 + $0x100] sm:$0xf]
        %v322 = vld [vmem:[%s222 + $0x104] sm:$0x1]
        %v323 = vld [vmem:[%s222 + $0x108] sm:$0xf]
        %v324 = vld [vmem:[%s222 + $0x10c] sm:$0xf]
        %v325 = vld [vmem:[%s222 + $0x110] sm:$0x1]
        %v326 = vld [vmem:[%s222 + $0x114] sm:$0xf]
        %v327 = vld [vmem:[%s222 + $0x118] sm:$0xf]
        %v328 = vld [vmem:[%s222 + $0x11c] sm:$0x1]
        %v329 = vld [vmem:[%s222 + $0x120] sm:$0xf]
        %v330 = vld [vmem:[%s222 + $0x124] sm:$0xf]
        %v331 = vld [vmem:[%s222 + $0x128] sm:$0x1]
        %v332 = vld [vmem:[%s222 + $0x12c] sm:$0xf]
        %v333 = vld [vmem:[%s222 + $0x130] sm:$0xf]
        %v334 = vld [vmem:[%s222 + $0x134] sm:$0x1]
        %v335 = vld [vmem:[%s222 + $0x138] sm:$0xf]
        %v336 = vld [vmem:[%s222 + $0x13c] sm:$0xf]
        %v337 = vld [vmem:[%s222 + $0x140] sm:$0x1]
        %v338 = vld [vmem:[%s222 + $0x144] sm:$0xf]
        %v339 = vld [vmem:[%s222 + $0x148] sm:$0xf]
        %v340 = vld [vmem:[%s222 + $0x14c] sm:$0x1]
        %v341 = vld [vmem:[%s222 + $0x150] sm:$0xf]
        %v342 = vld [vmem:[%s222 + $0x154] sm:$0xf]
        %v343 = vld [vmem:[%s222 + $0x158] sm:$0x1]
        %v344 = vld [vmem:[%s222 + $0x15c] sm:$0xf]
        %v345 = vld [vmem:[%s222 + $0x160] sm:$0xf]
        %v346 = vld [vmem:[%s222 + $0x164] sm:$0x1]
        %v347 = vld [vmem:[%s222 + $0x168] sm:$0xf]
        %v348 = vld [vmem:[%s222 + $0x16c] sm:$0xf]
        %v349 = vld [vmem:[%s222 + $0x170] sm:$0x1]
        %v350 = vld [vmem:[%s222 + $0x174] sm:$0xf]
        %v351 = vld [vmem:[%s222 + $0x178] sm:$0xf]
        %v352 = vld [vmem:[%s222 + $0x17c] sm:$0x1]
        %v353 = vld [vmem:[%s222 + $0x180] sm:$0xf]
        %v354 = vld [vmem:[%s222 + $0x184] sm:$0xf]
        %v355 = vld [vmem:[%s222 + $0x188] sm:$0x1]
        %v356 = vld [vmem:[%s222 + $0x18c] sm:$0xf]
        %v357 = vld [vmem:[%s222 + $0x190] sm:$0xf]
        %v358 = vld [vmem:[%s222 + $0x194] sm:$0x1]
        %v359 = vld [vmem:[%s222 + $0x198] sm:$0xf]
        %v360 = vld [vmem:[%s222 + $0x19c] sm:$0xf]
        %v361 = vld [vmem:[%s222 + $0x1a0] sm:$0x1]
        %v362 = vld [vmem:[%s222 + $0x1a4] sm:$0xf]
        %v363 = vld [vmem:[%s222 + $0x1a8] sm:$0xf]
        %v364 = vld [vmem:[%s222 + $0x1ac] sm:$0x1]
        %v365 = vld [vmem:[%s222 + $0x1b0] sm:$0xf]
        %v366 = vld [vmem:[%s222 + $0x1b4] sm:$0xf]
        %v367 = vld [vmem:[%s222 + $0x1b8] sm:$0x1]
        %v368 = vld [vmem:[%s222 + $0x1bc] sm:$0xf]
        %v369 = vld [vmem:[%s222 + $0x1c0] sm:$0xf]
        %v370 = vld [vmem:[%s222 + $0x1c4] sm:$0x1]
        %v371 = vld [vmem:[%s222 + $0x1c8] sm:$0xf]
        %v372 = vld [vmem:[%s222 + $0x1cc] sm:$0xf]
        %v373 = vld [vmem:[%s222 + $0x1d0] sm:$0x1]
        %v374 = vld [vmem:[%s222 + $0x1d4] sm:$0xf]
        %v375 = vld [vmem:[%s222 + $0x1d8] sm:$0xf]
        %v376 = vld [vmem:[%s222 + $0x1dc] sm:$0x1]
        %v377 = vld [vmem:[%s222 + $0x1e0] sm:$0xf]
        %v378 = vld [vmem:[%s222 + $0x1e4] sm:$0xf]
        %v379 = vld [vmem:[%s222 + $0x1e8] sm:$0x1]
        %v380 = vld [vmem:[%s222 + $0x1ec] sm:$0xf]
        %v381 = vld [vmem:[%s222 + $0x1f0] sm:$0xf]
        %v382 = vld [vmem:[%s222 + $0x1f4] sm:$0x1]
        %v383 = vld [vmem:[%s222 + $0x1f8] sm:$0xf]
        %v384 = vld [vmem:[%s222 + $0x1fc] sm:$0xf]
        %v385 = vld [vmem:[%s222 + $0x200] sm:$0x1]
        %v386 = vld [vmem:[%s222 + $0x204] sm:$0xf]
        %v387 = vld [vmem:[%s222 + $0x208] sm:$0xf]
        %v388 = vld [vmem:[%s222 + $0x20c] sm:$0x1]
        %v389 = vld [vmem:[%s222 + $0x210] sm:$0xf]
        %v390 = vld [vmem:[%s222 + $0x214] sm:$0xf]
        %v391 = vld [vmem:[%s222 + $0x218] sm:$0x1]
        %v392 = vld [vmem:[%s222 + $0x21c] sm:$0xf]
        %v393 = vld [vmem:[%s222 + $0x220] sm:$0xf]
        %v394 = vld [vmem:[%s222 + $0x224] sm:$0x1]
        %v395 = vld [vmem:[%s222 + $0x228] sm:$0xf]
        %v396 = vld [vmem:[%s222 + $0x22c] sm:$0xf]
        %v397 = vld [vmem:[%s222 + $0x230] sm:$0x1]
        %v398 = vld [vmem:[%s222 + $0x234] sm:$0xf]
        %v399 = vld [vmem:[%s222 + $0x238] sm:$0xf]
        %v400 = vld [vmem:[%s222 + $0x23c] sm:$0x1]
        %v401 = vunpack.c.l.bf16 %v257
        %v402 = vunpack.c.l.bf16 %v258
        %v403 = vunpack.c.l.bf16 %v259
        %v404 = vunpack.c.l.bf16 %v260
        %v405 = vunpack.c.l.bf16 %v261
        %v406 = vunpack.c.l.bf16 %v262
        %v407 = vunpack.c.l.bf16 %v263
        %v408 = vunpack.c.l.bf16 %v264
        %v409 = vunpack.c.l.bf16 %v265
        %v410 = vunpack.c.l.bf16 %v266
        %v411 = vunpack.c.l.bf16 %v267
        %v412 = vunpack.c.l.bf16 %v268
        %v413 = vunpack.c.l.bf16 %v269
        %v414 = vunpack.c.l.bf16 %v270
        %v415 = vunpack.c.l.bf16 %v271
        %v416 = vunpack.c.l.bf16 %v272
        %v417 = vunpack.c.l.bf16 %v273
        %v418 = vunpack.c.l.bf16 %v274
        %v419 = vunpack.c.l.bf16 %v275
        %v420 = vunpack.c.l.bf16 %v276
        %v421 = vunpack.c.l.bf16 %v277
        %v422 = vunpack.c.l.bf16 %v278
        %v423 = vunpack.c.l.bf16 %v279
        %v424 = vunpack.c.l.bf16 %v280
        %v425 = vunpack.c.l.bf16 %v281
        %v426 = vunpack.c.l.bf16 %v282
        %v427 = vunpack.c.l.bf16 %v283
        %v428 = vunpack.c.l.bf16 %v284
        %v429 = vunpack.c.l.bf16 %v285
        %v430 = vunpack.c.l.bf16 %v286
        %v431 = vunpack.c.l.bf16 %v287
        %v432 = vunpack.c.l.bf16 %v288
        %v433 = vunpack.c.l.bf16 %v289
        %v434 = vunpack.c.l.bf16 %v290
        %v435 = vunpack.c.l.bf16 %v291
        %v436 = vunpack.c.l.bf16 %v292
        %v437 = vunpack.c.l.bf16 %v293
        %v438 = vunpack.c.l.bf16 %v294
        %v439 = vunpack.c.l.bf16 %v295
        %v440 = vunpack.c.l.bf16 %v296
        %v441 = vunpack.c.l.bf16 %v297
        %v442 = vunpack.c.l.bf16 %v298
        %v443 = vunpack.c.l.bf16 %v299
        %v444 = vunpack.c.l.bf16 %v300
        %v445 = vunpack.c.l.bf16 %v301
        %v446 = vunpack.c.l.bf16 %v302
        %v447 = vunpack.c.l.bf16 %v303
        %v448 = vunpack.c.l.bf16 %v304
        %v449 = vunpack.c.l.bf16 %v305
        %v450 = vunpack.c.l.bf16 %v306
        %v451 = vunpack.c.l.bf16 %v307
        %v452 = vunpack.c.l.bf16 %v308
        %v453 = vunpack.c.l.bf16 %v309
        %v454 = vunpack.c.l.bf16 %v310
        %v455 = vunpack.c.l.bf16 %v311
        %v456 = vunpack.c.l.bf16 %v312
        %v457 = vunpack.c.l.bf16 %v313
        %v458 = vunpack.c.l.bf16 %v314
        %v459 = vunpack.c.l.bf16 %v315
        %v460 = vunpack.c.l.bf16 %v316
        %v461 = vunpack.c.l.bf16 %v317
        %v462 = vunpack.c.l.bf16 %v318
        %v463 = vunpack.c.l.bf16 %v319
        %v464 = vunpack.c.l.bf16 %v320
        %v465 = vunpack.c.l.bf16 %v321
        %v466 = vunpack.c.l.bf16 %v322
        %v467 = vunpack.c.l.bf16 %v323
        %v468 = vunpack.c.l.bf16 %v324
        %v469 = vunpack.c.l.bf16 %v325
        %v470 = vunpack.c.l.bf16 %v326
        %v471 = vunpack.c.l.bf16 %v327
        %v472 = vunpack.c.l.bf16 %v328
        %v473 = vunpack.c.l.bf16 %v329
        %v474 = vunpack.c.l.bf16 %v330
        %v475 = vunpack.c.l.bf16 %v331
        %v476 = vunpack.c.l.bf16 %v332
        %v477 = vunpack.c.l.bf16 %v333
        %v478 = vunpack.c.l.bf16 %v334
        %v479 = vunpack.c.l.bf16 %v335
        %v480 = vunpack.c.l.bf16 %v336
        %v481 = vunpack.c.l.bf16 %v337
        %v482 = vunpack.c.l.bf16 %v338
        %v483 = vunpack.c.l.bf16 %v339
        %v484 = vunpack.c.l.bf16 %v340
        %v485 = vunpack.c.l.bf16 %v341
        %v486 = vunpack.c.l.bf16 %v342
        %v487 = vunpack.c.l.bf16 %v343
        %v488 = vunpack.c.l.bf16 %v344
        %v489 = vunpack.c.l.bf16 %v345
        %v490 = vunpack.c.l.bf16 %v346
        %v491 = vunpack.c.l.bf16 %v347
        %v492 = vunpack.c.l.bf16 %v348
        %v493 = vunpack.c.l.bf16 %v349
        %v494 = vunpack.c.l.bf16 %v350
        %v495 = vunpack.c.l.bf16 %v351
        %v496 = vunpack.c.l.bf16 %v352
        %v497 = vunpack.c.l.bf16 %v353
        %v498 = vunpack.c.l.bf16 %v354
        %v499 = vunpack.c.l.bf16 %v355
        %v500 = vunpack.c.l.bf16 %v356
        %v501 = vunpack.c.l.bf16 %v357
        %v502 = vunpack.c.l.bf16 %v358
        %v503 = vunpack.c.l.bf16 %v359
        %v504 = vunpack.c.l.bf16 %v360
        %v505 = vunpack.c.l.bf16 %v361
        %v506 = vunpack.c.l.bf16 %v362
        %v507 = vunpack.c.l.bf16 %v363
        %v508 = vunpack.c.l.bf16 %v364
        %v509 = vunpack.c.l.bf16 %v365
        %v510 = vunpack.c.l.bf16 %v366
        %v511 = vunpack.c.l.bf16 %v367
        %v512 = vunpack.c.l.bf16 %v368
        %v513 = vunpack.c.l.bf16 %v369
        %v514 = vunpack.c.l.bf16 %v370
        %v515 = vunpack.c.l.bf16 %v371
        %v516 = vunpack.c.l.bf16 %v372
        %v517 = vunpack.c.l.bf16 %v373
        %v518 = vunpack.c.l.bf16 %v374
        %v519 = vunpack.c.l.bf16 %v375
        %v520 = vunpack.c.l.bf16 %v376
        %v521 = vunpack.c.l.bf16 %v377
        %v522 = vunpack.c.l.bf16 %v378
        %v523 = vunpack.c.l.bf16 %v379
        %v524 = vunpack.c.l.bf16 %v380
        %v525 = vunpack.c.l.bf16 %v381
        %v526 = vunpack.c.l.bf16 %v382
        %v527 = vunpack.c.l.bf16 %v383
        %v528 = vunpack.c.l.bf16 %v384
        %v529 = vunpack.c.l.bf16 %v385
        %v530 = vunpack.c.l.bf16 %v386
        %v531 = vunpack.c.l.bf16 %v387
        %v532 = vunpack.c.l.bf16 %v388
        %v533 = vunpack.c.l.bf16 %v389
        %v534 = vunpack.c.l.bf16 %v390
        %v535 = vunpack.c.l.bf16 %v391
        %v536 = vunpack.c.l.bf16 %v392
        %v537 = vunpack.c.l.bf16 %v393
        %v538 = vunpack.c.l.bf16 %v394
        %v539 = vunpack.c.l.bf16 %v395
        %v540 = vunpack.c.l.bf16 %v396
        %v541 = vunpack.c.l.bf16 %v397
        %v542 = vunpack.c.l.bf16 %v398
        %v543 = vunpack.c.l.bf16 %v399
        %v544 = vunpack.c.l.bf16 %v400
        %v545 = vld [vmem:[#allocation5] sm:$0x7]
        %v546 = vld [vmem:[#allocation5 + $0x4] sm:$0x7]
        %v547 = vld [vmem:[#allocation5 + $0x8] sm:$0x7]
        %v548 = vld [vmem:[#allocation5 + $0xc] sm:$0x7]
        %v549 = vld [vmem:[#allocation5 + $0x10] sm:$0x7]
        %v550 = vld [vmem:[#allocation5 + $0x14] sm:$0x7]
        %v551 = vld [vmem:[#allocation5 + $0x18] sm:$0x7]
        %v552 = vld [vmem:[#allocation5 + $0x1c] sm:$0x7]
        %v553 = vld [vmem:[#allocation5 + $0x20] sm:$0x7]
        %v554 = vld [vmem:[#allocation5 + $0x24] sm:$0x7]
        %v555 = vld [vmem:[#allocation5 + $0x28] sm:$0x7]
        %v556 = vld [vmem:[#allocation5 + $0x2c] sm:$0x7]
        %v557 = vld [vmem:[#allocation5 + $0x30] sm:$0x7]
        %v558 = vld [vmem:[#allocation5 + $0x34] sm:$0x7]
        %v559 = vld [vmem:[#allocation5 + $0x38] sm:$0x7]
        %v560 = vld [vmem:[#allocation5 + $0x3c] sm:$0x7]
        %v561 = vld [vmem:[#allocation5 + $0x40] sm:$0x7]
        %v562 = vld [vmem:[#allocation5 + $0x44] sm:$0x7]
        %v563 = vld [vmem:[#allocation5 + $0x48] sm:$0x7]
        %v564 = vld [vmem:[#allocation5 + $0x4c] sm:$0x7]
        %v565 = vld [vmem:[#allocation5 + $0x50] sm:$0x7]
        %v566 = vld [vmem:[#allocation5 + $0x54] sm:$0x7]
        %v567 = vld [vmem:[#allocation5 + $0x58] sm:$0x7]
        %v568 = vld [vmem:[#allocation5 + $0x5c] sm:$0x7]
        %v569 = vld [vmem:[#allocation5 + $0x60] sm:$0x7]
        %v570 = vld [vmem:[#allocation5 + $0x64] sm:$0x7]
        %v571 = vld [vmem:[#allocation5 + $0x68] sm:$0x7]
        %v572 = vld [vmem:[#allocation5 + $0x6c] sm:$0x7]
        %v573 = vld [vmem:[#allocation5 + $0x70] sm:$0x7]
        %v574 = vld [vmem:[#allocation5 + $0x74] sm:$0x7]
        %v575 = vld [vmem:[#allocation5 + $0x78] sm:$0x7]
        %v576 = vld [vmem:[#allocation5 + $0x7c] sm:$0x7]
        %v577 = vld [vmem:[#allocation5 + $0x80] sm:$0x7]
        %v578 = vld [vmem:[#allocation5 + $0x84] sm:$0x7]
        %v579 = vld [vmem:[#allocation5 + $0x88] sm:$0x7]
        %v580 = vld [vmem:[#allocation5 + $0x8c] sm:$0x7]
        %v581 = vld [vmem:[#allocation5 + $0x90] sm:$0x7]
        %v582 = vld [vmem:[#allocation5 + $0x94] sm:$0x7]
        %v583 = vld [vmem:[#allocation5 + $0x98] sm:$0x7]
        %v584 = vld [vmem:[#allocation5 + $0x9c] sm:$0x7]
        %v585 = vld [vmem:[#allocation5 + $0xa0] sm:$0x7]
        %v586 = vld [vmem:[#allocation5 + $0xa4] sm:$0x7]
        %v587 = vld [vmem:[#allocation5 + $0xa8] sm:$0x7]
        %v588 = vld [vmem:[#allocation5 + $0xac] sm:$0x7]
        %v589 = vld [vmem:[#allocation5 + $0xb0] sm:$0x7]
        %v590 = vld [vmem:[#allocation5 + $0xb4] sm:$0x7]
        %v591 = vld [vmem:[#allocation5 + $0xb8] sm:$0x7]
        %v592 = vld [vmem:[#allocation5 + $0xbc] sm:$0x7]
        %s594 = vtos %v545
        %v595 = vstv %s594
        %s598 = vtos %v546
        %v599 = vstv %s598
        %s602 = vtos %v547
        %v603 = vstv %s602
        %s606 = vtos %v548
        %v607 = vstv %s606
        %s610 = vtos %v549
        %v611 = vstv %s610
        %s614 = vtos %v550
        %v615 = vstv %s614
        %s618 = vtos %v551
        %v619 = vstv %s618
        %s622 = vtos %v552
        %v623 = vstv %s622
        %s626 = vtos %v553
        %v627 = vstv %s626
        %s630 = vtos %v554
        %v631 = vstv %s630
        %s634 = vtos %v555
        %v635 = vstv %s634
        %s638 = vtos %v556
        %v639 = vstv %s638
        %s642 = vtos %v557
        %v643 = vstv %s642
        %s646 = vtos %v558
        %v647 = vstv %s646
        %s650 = vtos %v559
        %v651 = vstv %s650
        %s654 = vtos %v560
        %v655 = vstv %s654
        %s658 = vtos %v561
        %v659 = vstv %s658
        %s662 = vtos %v562
        %v663 = vstv %s662
        %s666 = vtos %v563
        %v667 = vstv %s666
        %s670 = vtos %v564
        %v671 = vstv %s670
        %s674 = vtos %v565
        %v675 = vstv %s674
        %s678 = vtos %v566
        %v679 = vstv %s678
        %s682 = vtos %v567
        %v683 = vstv %s682
        %s686 = vtos %v568
        %v687 = vstv %s686
        %s690 = vtos %v569
        %v691 = vstv %s690
        %s694 = vtos %v570
        %v695 = vstv %s694
        %s698 = vtos %v571
        %v699 = vstv %s698
        %s702 = vtos %v572
        %v703 = vstv %s702
        %s706 = vtos %v573
        %v707 = vstv %s706
        %s710 = vtos %v574
        %v711 = vstv %s710
        %s714 = vtos %v575
        %v715 = vstv %s714
        %s718 = vtos %v576
        %v719 = vstv %s718
        %s722 = vtos %v577
        %v723 = vstv %s722
        %s726 = vtos %v578
        %v727 = vstv %s726
        %s730 = vtos %v579
        %v731 = vstv %s730
        %s734 = vtos %v580
        %v735 = vstv %s734
        %s738 = vtos %v581
        %v739 = vstv %s738
        %s742 = vtos %v582
        %v743 = vstv %s742
        %s746 = vtos %v583
        %v747 = vstv %s746
        %s750 = vtos %v584
        %v751 = vstv %s750
        %s754 = vtos %v585
        %v755 = vstv %s754
        %s758 = vtos %v586
        %v759 = vstv %s758
        %s762 = vtos %v587
        %v763 = vstv %s762
        %s766 = vtos %v588
        %v767 = vstv %s766
        %s770 = vtos %v589
        %v771 = vstv %s770
        %s774 = vtos %v590
        %v775 = vstv %s774
        %s778 = vtos %v591
        %v779 = vstv %s778
        %s782 = vtos %v592
        %v783 = vstv %s782
        %v785 = vmul.f32 %v401, %v595
        %v786 = vmul.f32 %v402, %v595
        %v787 = vmul.f32 %v404, %v599
        %v788 = vmul.f32 %v405, %v599
        %v789 = vmul.f32 %v407, %v603
        %v790 = vmul.f32 %v408, %v603
        %v791 = vmul.f32 %v410, %v607
        %v792 = vmul.f32 %v411, %v607
        %v793 = vmul.f32 %v413, %v611
        %v794 = vmul.f32 %v414, %v611
        %v795 = vmul.f32 %v416, %v615
        %v796 = vmul.f32 %v417, %v615
        %v797 = vmul.f32 %v419, %v619
        %v798 = vmul.f32 %v420, %v619
        %v799 = vmul.f32 %v422, %v623
        %v800 = vmul.f32 %v423, %v623
        %v801 = vmul.f32 %v425, %v627
        %v802 = vmul.f32 %v426, %v627
        %v803 = vmul.f32 %v428, %v631
        %v804 = vmul.f32 %v429, %v631
        %v805 = vmul.f32 %v431, %v635
        %v806 = vmul.f32 %v432, %v635
        %v807 = vmul.f32 %v434, %v639
        %v808 = vmul.f32 %v435, %v639
        %v809 = vmul.f32 %v437, %v643
        %v810 = vmul.f32 %v438, %v643
        %v811 = vmul.f32 %v440, %v647
        %v812 = vmul.f32 %v441, %v647
        %v813 = vmul.f32 %v443, %v651
        %v814 = vmul.f32 %v444, %v651
        %v815 = vmul.f32 %v446, %v655
        %v816 = vmul.f32 %v447, %v655
        %v817 = vmul.f32 %v449, %v659
        %v818 = vmul.f32 %v450, %v659
        %v819 = vmul.f32 %v452, %v663
        %v820 = vmul.f32 %v453, %v663
        %v821 = vmul.f32 %v455, %v667
        %v822 = vmul.f32 %v456, %v667
        %v823 = vmul.f32 %v458, %v671
        %v824 = vmul.f32 %v459, %v671
        %v825 = vmul.f32 %v461, %v675
        %v826 = vmul.f32 %v462, %v675
        %v827 = vmul.f32 %v464, %v679
        %v828 = vmul.f32 %v465, %v679
        %v829 = vmul.f32 %v467, %v683
        %v830 = vmul.f32 %v468, %v683
        %v831 = vmul.f32 %v470, %v687
        %v832 = vmul.f32 %v471, %v687
        %v833 = vmul.f32 %v473, %v691
        %v834 = vmul.f32 %v474, %v691
        %v835 = vmul.f32 %v476, %v695
        %v836 = vmul.f32 %v477, %v695
        %v837 = vmul.f32 %v479, %v699
        %v838 = vmul.f32 %v480, %v699
        %v839 = vmul.f32 %v482, %v703
        %v840 = vmul.f32 %v483, %v703
        %v841 = vmul.f32 %v485, %v707
        %v842 = vmul.f32 %v486, %v707
        %v843 = vmul.f32 %v488, %v711
        %v844 = vmul.f32 %v489, %v711
        %v845 = vmul.f32 %v491, %v715
        %v846 = vmul.f32 %v492, %v715
        %v847 = vmul.f32 %v494, %v719
        %v848 = vmul.f32 %v495, %v719
        %v849 = vmul.f32 %v497, %v723
        %v850 = vmul.f32 %v498, %v723
        %v851 = vmul.f32 %v500, %v727
        %v852 = vmul.f32 %v501, %v727
        %v853 = vmul.f32 %v503, %v731
        %v854 = vmul.f32 %v504, %v731
        %v855 = vmul.f32 %v506, %v735
        %v856 = vmul.f32 %v507, %v735
        %v857 = vmul.f32 %v509, %v739
        %v858 = vmul.f32 %v510, %v739
        %v859 = vmul.f32 %v512, %v743
        %v860 = vmul.f32 %v513, %v743
        %v861 = vmul.f32 %v515, %v747
        %v862 = vmul.f32 %v516, %v747
        %v863 = vmul.f32 %v518, %v751
        %v864 = vmul.f32 %v519, %v751
        %v865 = vmul.f32 %v521, %v755
        %v866 = vmul.f32 %v522, %v755
        %v867 = vmul.f32 %v524, %v759
        %v868 = vmul.f32 %v525, %v759
        %v869 = vmul.f32 %v527, %v763
        %v870 = vmul.f32 %v528, %v763
        %v871 = vmul.f32 %v530, %v767
        %v872 = vmul.f32 %v531, %v767
        %v873 = vmul.f32 %v533, %v771
        %v874 = vmul.f32 %v534, %v771
        %v875 = vmul.f32 %v536, %v775
        %v876 = vmul.f32 %v537, %v775
        %v877 = vmul.f32 %v539, %v779
        %v878 = vmul.f32 %v540, %v779
        %v879 = vmul.f32 %v542, %v783
        %v880 = vmul.f32 %v543, %v783
        %v881 = vadd.f32 %v785, 0.0
        %v882 = vadd.f32 %v786, 0.0
        %v883 = vadd.f32 %v787, 0.0
        %v884 = vadd.f32 %v788, 0.0
        %v885 = vadd.f32 %v789, 0.0
        %v886 = vadd.f32 %v790, 0.0
        %v887 = vadd.f32 %v791, 0.0
        %v888 = vadd.f32 %v792, 0.0
        %v889 = vadd.f32 %v793, 0.0
        %v890 = vadd.f32 %v794, 0.0
        %v891 = vadd.f32 %v795, 0.0
        %v892 = vadd.f32 %v796, 0.0
        %v893 = vadd.f32 %v797, 0.0
        %v894 = vadd.f32 %v798, 0.0
        %v895 = vadd.f32 %v799, 0.0
        %v896 = vadd.f32 %v800, 0.0
        %v897 = vadd.f32 %v801, 0.0
        %v898 = vadd.f32 %v802, 0.0
        %v899 = vadd.f32 %v803, 0.0
        %v900 = vadd.f32 %v804, 0.0
        %v901 = vadd.f32 %v805, 0.0
        %v902 = vadd.f32 %v806, 0.0
        %v903 = vadd.f32 %v807, 0.0
        %v904 = vadd.f32 %v808, 0.0
        %v905 = vadd.f32 %v809, 0.0
        %v906 = vadd.f32 %v810, 0.0
        %v907 = vadd.f32 %v811, 0.0
        %v908 = vadd.f32 %v812, 0.0
        %v909 = vadd.f32 %v813, 0.0
        %v910 = vadd.f32 %v814, 0.0
        %v911 = vadd.f32 %v815, 0.0
        %v912 = vadd.f32 %v816, 0.0
        %v913 = vadd.f32 %v817, 0.0
        %v914 = vadd.f32 %v818, 0.0
        %v915 = vadd.f32 %v819, 0.0
        %v916 = vadd.f32 %v820, 0.0
        %v917 = vadd.f32 %v821, 0.0
        %v918 = vadd.f32 %v822, 0.0
        %v919 = vadd.f32 %v823, 0.0
        %v920 = vadd.f32 %v824, 0.0
        %v921 = vadd.f32 %v825, 0.0
        %v922 = vadd.f32 %v826, 0.0
        %v923 = vadd.f32 %v827, 0.0
        %v924 = vadd.f32 %v828, 0.0
        %v925 = vadd.f32 %v829, 0.0
        %v926 = vadd.f32 %v830, 0.0
        %v927 = vadd.f32 %v831, 0.0
        %v928 = vadd.f32 %v832, 0.0
        %v929 = vadd.f32 %v833, 0.0
        %v930 = vadd.f32 %v834, 0.0
        %v931 = vadd.f32 %v835, 0.0
        %v932 = vadd.f32 %v836, 0.0
        %v933 = vadd.f32 %v837, 0.0
        %v934 = vadd.f32 %v838, 0.0
        %v935 = vadd.f32 %v839, 0.0
        %v936 = vadd.f32 %v840, 0.0
        %v937 = vadd.f32 %v841, 0.0
        %v938 = vadd.f32 %v842, 0.0
        %v939 = vadd.f32 %v843, 0.0
        %v940 = vadd.f32 %v844, 0.0
        %v941 = vadd.f32 %v845, 0.0
        %v942 = vadd.f32 %v846, 0.0
        %v943 = vadd.f32 %v847, 0.0
        %v944 = vadd.f32 %v848, 0.0
        %v945 = vadd.f32 %v849, 0.0
        %v946 = vadd.f32 %v850, 0.0
        %v947 = vadd.f32 %v851, 0.0
        %v948 = vadd.f32 %v852, 0.0
        %v949 = vadd.f32 %v853, 0.0
        %v950 = vadd.f32 %v854, 0.0
        %v951 = vadd.f32 %v855, 0.0
        %v952 = vadd.f32 %v856, 0.0
        %v953 = vadd.f32 %v857, 0.0
        %v954 = vadd.f32 %v858, 0.0
        %v955 = vadd.f32 %v859, 0.0
        %v956 = vadd.f32 %v860, 0.0
        %v957 = vadd.f32 %v861, 0.0
        %v958 = vadd.f32 %v862, 0.0
        %v959 = vadd.f32 %v863, 0.0
        %v960 = vadd.f32 %v864, 0.0
        %v961 = vadd.f32 %v865, 0.0
        %v962 = vadd.f32 %v866, 0.0
        %v963 = vadd.f32 %v867, 0.0
        %v964 = vadd.f32 %v868, 0.0
        %v965 = vadd.f32 %v869, 0.0
        %v966 = vadd.f32 %v870, 0.0
        %v967 = vadd.f32 %v871, 0.0
        %v968 = vadd.f32 %v872, 0.0
        %v969 = vadd.f32 %v873, 0.0
        %v970 = vadd.f32 %v874, 0.0
        %v971 = vadd.f32 %v875, 0.0
        %v972 = vadd.f32 %v876, 0.0
        %v973 = vadd.f32 %v877, 0.0
        %v974 = vadd.f32 %v878, 0.0
        %v975 = vadd.f32 %v879, 0.0
        %v976 = vadd.f32 %v880, 0.0
        %977 = vrot.lane.b32.xlu0 %v545, 127
        %v978 = vpop.permute.xlu0 %977
        %979 = vrot.lane.b32.xlu0 %v546, 127
        %v980 = vpop.permute.xlu0 %979
        %981 = vrot.lane.b32.xlu0 %v547, 127
        %v982 = vpop.permute.xlu0 %981
        %983 = vrot.lane.b32.xlu0 %v548, 127
        %v984 = vpop.permute.xlu0 %983
        %985 = vrot.lane.b32.xlu0 %v549, 127
        %v986 = vpop.permute.xlu0 %985
        %987 = vrot.lane.b32.xlu0 %v550, 127
        %v988 = vpop.permute.xlu0 %987
        %989 = vrot.lane.b32.xlu0 %v551, 127
        %v990 = vpop.permute.xlu0 %989
        %991 = vrot.lane.b32.xlu0 %v552, 127
        %v992 = vpop.permute.xlu0 %991
        %993 = vrot.lane.b32.xlu0 %v553, 127
        %v994 = vpop.permute.xlu0 %993
        %995 = vrot.lane.b32.xlu0 %v554, 127
        %v996 = vpop.permute.xlu0 %995
        %997 = vrot.lane.b32.xlu0 %v555, 127
        %v998 = vpop.permute.xlu0 %997
        %999 = vrot.lane.b32.xlu0 %v556, 127
        %v1000 = vpop.permute.xlu0 %999
        %1001 = vrot.lane.b32.xlu0 %v557, 127
        %v1002 = vpop.permute.xlu0 %1001
        %1003 = vrot.lane.b32.xlu0 %v558, 127
        %v1004 = vpop.permute.xlu0 %1003
        %1005 = vrot.lane.b32.xlu0 %v559, 127
        %v1006 = vpop.permute.xlu0 %1005
        %1007 = vrot.lane.b32.xlu0 %v560, 127
        %v1008 = vpop.permute.xlu0 %1007
        %1009 = vrot.lane.b32.xlu0 %v561, 127
        %v1010 = vpop.permute.xlu0 %1009
        %1011 = vrot.lane.b32.xlu0 %v562, 127
        %v1012 = vpop.permute.xlu0 %1011
        %1013 = vrot.lane.b32.xlu0 %v563, 127
        %v1014 = vpop.permute.xlu0 %1013
        %1015 = vrot.lane.b32.xlu0 %v564, 127
        %v1016 = vpop.permute.xlu0 %1015
        %1017 = vrot.lane.b32.xlu0 %v565, 127
        %v1018 = vpop.permute.xlu0 %1017
        %1019 = vrot.lane.b32.xlu0 %v566, 127
        %v1020 = vpop.permute.xlu0 %1019
        %1021 = vrot.lane.b32.xlu0 %v567, 127
        %v1022 = vpop.permute.xlu0 %1021
        %1023 = vrot.lane.b32.xlu0 %v568, 127
        %v1024 = vpop.permute.xlu0 %1023
        %1025 = vrot.lane.b32.xlu0 %v569, 127
        %v1026 = vpop.permute.xlu0 %1025
        %1027 = vrot.lane.b32.xlu0 %v570, 127
        %v1028 = vpop.permute.xlu0 %1027
        %1029 = vrot.lane.b32.xlu0 %v571, 127
        %v1030 = vpop.permute.xlu0 %1029
        %1031 = vrot.lane.b32.xlu0 %v572, 127
        %v1032 = vpop.permute.xlu0 %1031
        %1033 = vrot.lane.b32.xlu0 %v573, 127
        %v1034 = vpop.permute.xlu0 %1033
        %1035 = vrot.lane.b32.xlu0 %v574, 127
        %v1036 = vpop.permute.xlu0 %1035
        %1037 = vrot.lane.b32.xlu0 %v575, 127
        %v1038 = vpop.permute.xlu0 %1037
        %1039 = vrot.lane.b32.xlu0 %v576, 127
        %v1040 = vpop.permute.xlu0 %1039
        %1041 = vrot.lane.b32.xlu0 %v577, 127
        %v1042 = vpop.permute.xlu0 %1041
        %1043 = vrot.lane.b32.xlu0 %v578, 127
        %v1044 = vpop.permute.xlu0 %1043
        %1045 = vrot.lane.b32.xlu0 %v579, 127
        %v1046 = vpop.permute.xlu0 %1045
        %1047 = vrot.lane.b32.xlu0 %v580, 127
        %v1048 = vpop.permute.xlu0 %1047
        %1049 = vrot.lane.b32.xlu0 %v581, 127
        %v1050 = vpop.permute.xlu0 %1049
        %1051 = vrot.lane.b32.xlu0 %v582, 127
        %v1052 = vpop.permute.xlu0 %1051
        %1053 = vrot.lane.b32.xlu0 %v583, 127
        %v1054 = vpop.permute.xlu0 %1053
        %1055 = vrot.lane.b32.xlu0 %v584, 127
        %v1056 = vpop.permute.xlu0 %1055
        %1057 = vrot.lane.b32.xlu0 %v585, 127
        %v1058 = vpop.permute.xlu0 %1057
        %1059 = vrot.lane.b32.xlu0 %v586, 127
        %v1060 = vpop.permute.xlu0 %1059
        %1061 = vrot.lane.b32.xlu0 %v587, 127
        %v1062 = vpop.permute.xlu0 %1061
        %1063 = vrot.lane.b32.xlu0 %v588, 127
        %v1064 = vpop.permute.xlu0 %1063
        %1065 = vrot.lane.b32.xlu0 %v589, 127
        %v1066 = vpop.permute.xlu0 %1065
        %1067 = vrot.lane.b32.xlu0 %v590, 127
        %v1068 = vpop.permute.xlu0 %1067
        %1069 = vrot.lane.b32.xlu0 %v591, 127
        %v1070 = vpop.permute.xlu0 %1069
        %1071 = vrot.lane.b32.xlu0 %v592, 127
        %v1072 = vpop.permute.xlu0 %1071
        %s1073 = vtos %v978
        %v1074 = vstv %s1073
        %s1076 = vtos %v980
        %v1077 = vstv %s1076
        %s1079 = vtos %v982
        %v1080 = vstv %s1079
        %s1082 = vtos %v984
        %v1083 = vstv %s1082
        %s1085 = vtos %v986
        %v1086 = vstv %s1085
        %s1088 = vtos %v988
        %v1089 = vstv %s1088
        %s1091 = vtos %v990
        %v1092 = vstv %s1091
        %s1094 = vtos %v992
        %v1095 = vstv %s1094
        %s1097 = vtos %v994
        %v1098 = vstv %s1097
        %s1100 = vtos %v996
        %v1101 = vstv %s1100
        %s1103 = vtos %v998
        %v1104 = vstv %s1103
        %s1106 = vtos %v1000
        %v1107 = vstv %s1106
        %s1109 = vtos %v1002
        %v1110 = vstv %s1109
        %s1112 = vtos %v1004
        %v1113 = vstv %s1112
        %s1115 = vtos %v1006
        %v1116 = vstv %s1115
        %s1118 = vtos %v1008
        %v1119 = vstv %s1118
        %s1121 = vtos %v1010
        %v1122 = vstv %s1121
        %s1124 = vtos %v1012
        %v1125 = vstv %s1124
        %s1127 = vtos %v1014
        %v1128 = vstv %s1127
        %s1130 = vtos %v1016
        %v1131 = vstv %s1130
        %s1133 = vtos %v1018
        %v1134 = vstv %s1133
        %s1136 = vtos %v1020
        %v1137 = vstv %s1136
        %s1139 = vtos %v1022
        %v1140 = vstv %s1139
        %s1142 = vtos %v1024
        %v1143 = vstv %s1142
        %s1145 = vtos %v1026
        %v1146 = vstv %s1145
        %s1148 = vtos %v1028
        %v1149 = vstv %s1148
        %s1151 = vtos %v1030
        %v1152 = vstv %s1151
        %s1154 = vtos %v1032
        %v1155 = vstv %s1154
        %s1157 = vtos %v1034
        %v1158 = vstv %s1157
        %s1160 = vtos %v1036
        %v1161 = vstv %s1160
        %s1163 = vtos %v1038
        %v1164 = vstv %s1163
        %s1166 = vtos %v1040
        %v1167 = vstv %s1166
        %s1169 = vtos %v1042
        %v1170 = vstv %s1169
        %s1172 = vtos %v1044
        %v1173 = vstv %s1172
        %s1175 = vtos %v1046
        %v1176 = vstv %s1175
        %s1178 = vtos %v1048
        %v1179 = vstv %s1178
        %s1181 = vtos %v1050
        %v1182 = vstv %s1181
        %s1184 = vtos %v1052
        %v1185 = vstv %s1184
        %s1187 = vtos %v1054
        %v1188 = vstv %s1187
        %s1190 = vtos %v1056
        %v1191 = vstv %s1190
        %s1193 = vtos %v1058
        %v1194 = vstv %s1193
        %s1196 = vtos %v1060
        %v1197 = vstv %s1196
        %s1199 = vtos %v1062
        %v1200 = vstv %s1199
        %s1202 = vtos %v1064
        %v1203 = vstv %s1202
        %s1205 = vtos %v1066
        %v1206 = vstv %s1205
        %s1208 = vtos %v1068
        %v1209 = vstv %s1208
        %s1211 = vtos %v1070
        %v1212 = vstv %s1211
        %s1214 = vtos %v1072
        %v1215 = vstv %s1214
        %v1217 = vmul.f32 %v401, %v1074
        %v1218 = vmul.f32 %v402, %v1074
        %v1219 = vmul.f32 %v404, %v1077
        %v1220 = vmul.f32 %v405, %v1077
        %v1221 = vmul.f32 %v407, %v1080
        %v1222 = vmul.f32 %v408, %v1080
        %v1223 = vmul.f32 %v410, %v1083
        %v1224 = vmul.f32 %v411, %v1083
        %v1225 = vmul.f32 %v413, %v1086
        %v1226 = vmul.f32 %v414, %v1086
        %v1227 = vmul.f32 %v416, %v1089
        %v1228 = vmul.f32 %v417, %v1089
        %v1229 = vmul.f32 %v419, %v1092
        %v1230 = vmul.f32 %v420, %v1092
        %v1231 = vmul.f32 %v422, %v1095
        %v1232 = vmul.f32 %v423, %v1095
        %v1233 = vmul.f32 %v425, %v1098
        %v1234 = vmul.f32 %v426, %v1098
        %v1235 = vmul.f32 %v428, %v1101
        %v1236 = vmul.f32 %v429, %v1101
        %v1237 = vmul.f32 %v431, %v1104
        %v1238 = vmul.f32 %v432, %v1104
        %v1239 = vmul.f32 %v434, %v1107
        %v1240 = vmul.f32 %v435, %v1107
        %v1241 = vmul.f32 %v437, %v1110
        %v1242 = vmul.f32 %v438, %v1110
        %v1243 = vmul.f32 %v440, %v1113
        %v1244 = vmul.f32 %v441, %v1113
        %v1245 = vmul.f32 %v443, %v1116
        %v1246 = vmul.f32 %v444, %v1116
        %v1247 = vmul.f32 %v446, %v1119
        %v1248 = vmul.f32 %v447, %v1119
        %v1249 = vmul.f32 %v449, %v1122
        %v1250 = vmul.f32 %v450, %v1122
        %v1251 = vmul.f32 %v452, %v1125
        %v1252 = vmul.f32 %v453, %v1125
        %v1253 = vmul.f32 %v455, %v1128
        %v1254 = vmul.f32 %v456, %v1128
        %v1255 = vmul.f32 %v458, %v1131
        %v1256 = vmul.f32 %v459, %v1131
        %v1257 = vmul.f32 %v461, %v1134
        %v1258 = vmul.f32 %v462, %v1134
        %v1259 = vmul.f32 %v464, %v1137
        %v1260 = vmul.f32 %v465, %v1137
        %v1261 = vmul.f32 %v467, %v1140
        %v1262 = vmul.f32 %v468, %v1140
        %v1263 = vmul.f32 %v470, %v1143
        %v1264 = vmul.f32 %v471, %v1143
        %v1265 = vmul.f32 %v473, %v1146
        %v1266 = vmul.f32 %v474, %v1146
        %v1267 = vmul.f32 %v476, %v1149
        %v1268 = vmul.f32 %v477, %v1149
        %v1269 = vmul.f32 %v479, %v1152
        %v1270 = vmul.f32 %v480, %v1152
        %v1271 = vmul.f32 %v482, %v1155
        %v1272 = vmul.f32 %v483, %v1155
        %v1273 = vmul.f32 %v485, %v1158
        %v1274 = vmul.f32 %v486, %v1158
        %v1275 = vmul.f32 %v488, %v1161
        %v1276 = vmul.f32 %v489, %v1161
        %v1277 = vmul.f32 %v491, %v1164
        %v1278 = vmul.f32 %v492, %v1164
        %v1279 = vmul.f32 %v494, %v1167
        %v1280 = vmul.f32 %v495, %v1167
        %v1281 = vmul.f32 %v497, %v1170
        %v1282 = vmul.f32 %v498, %v1170
        %v1283 = vmul.f32 %v500, %v1173
        %v1284 = vmul.f32 %v501, %v1173
        %v1285 = vmul.f32 %v503, %v1176
        %v1286 = vmul.f32 %v504, %v1176
        %v1287 = vmul.f32 %v506, %v1179
        %v1288 = vmul.f32 %v507, %v1179
        %v1289 = vmul.f32 %v509, %v1182
        %v1290 = vmul.f32 %v510, %v1182
        %v1291 = vmul.f32 %v512, %v1185
        %v1292 = vmul.f32 %v513, %v1185
        %v1293 = vmul.f32 %v515, %v1188
        %v1294 = vmul.f32 %v516, %v1188
        %v1295 = vmul.f32 %v518, %v1191
        %v1296 = vmul.f32 %v519, %v1191
        %v1297 = vmul.f32 %v521, %v1194
        %v1298 = vmul.f32 %v522, %v1194
        %v1299 = vmul.f32 %v524, %v1197
        %v1300 = vmul.f32 %v525, %v1197
        %v1301 = vmul.f32 %v527, %v1200
        %v1302 = vmul.f32 %v528, %v1200
        %v1303 = vmul.f32 %v530, %v1203
        %v1304 = vmul.f32 %v531, %v1203
        %v1305 = vmul.f32 %v533, %v1206
        %v1306 = vmul.f32 %v534, %v1206
        %v1307 = vmul.f32 %v536, %v1209
        %v1308 = vmul.f32 %v537, %v1209
        %v1309 = vmul.f32 %v539, %v1212
        %v1310 = vmul.f32 %v540, %v1212
        %v1311 = vmul.f32 %v542, %v1215
        %v1312 = vmul.f32 %v543, %v1215
        %1409 = vrot.lane.b32.xlu0 %v1217, 127
        %v1410 = vpop.permute.xlu0 %1409
        %1411 = vrot.lane.b32.xlu0 %v1218, 127
        %v1412 = vpop.permute.xlu0 %1411
        %1413 = vrot.lane.b32.xlu0 %v1219, 127
        %v1414 = vpop.permute.xlu0 %1413
        %1415 = vrot.lane.b32.xlu0 %v1220, 127
        %v1416 = vpop.permute.xlu0 %1415
        %1417 = vrot.lane.b32.xlu0 %v1221, 127
        %v1418 = vpop.permute.xlu0 %1417
        %1419 = vrot.lane.b32.xlu0 %v1222, 127
        %v1420 = vpop.permute.xlu0 %1419
        %1421 = vrot.lane.b32.xlu0 %v1223, 127
        %v1422 = vpop.permute.xlu0 %1421
        %1423 = vrot.lane.b32.xlu0 %v1224, 127
        %v1424 = vpop.permute.xlu0 %1423
        %1425 = vrot.lane.b32.xlu0 %v1225, 127
        %v1426 = vpop.permute.xlu0 %1425
        %1427 = vrot.lane.b32.xlu0 %v1226, 127
        %v1428 = vpop.permute.xlu0 %1427
        %1429 = vrot.lane.b32.xlu0 %v1227, 127
        %v1430 = vpop.permute.xlu0 %1429
        %1431 = vrot.lane.b32.xlu0 %v1228, 127
        %v1432 = vpop.permute.xlu0 %1431
        %1433 = vrot.lane.b32.xlu0 %v1229, 127
        %v1434 = vpop.permute.xlu0 %1433
        %1435 = vrot.lane.b32.xlu0 %v1230, 127
        %v1436 = vpop.permute.xlu0 %1435
        %1437 = vrot.lane.b32.xlu0 %v1231, 127
        %v1438 = vpop.permute.xlu0 %1437
        %1439 = vrot.lane.b32.xlu0 %v1232, 127
        %v1440 = vpop.permute.xlu0 %1439
        %1441 = vrot.lane.b32.xlu0 %v1233, 127
        %v1442 = vpop.permute.xlu0 %1441
        %1443 = vrot.lane.b32.xlu0 %v1234, 127
        %v1444 = vpop.permute.xlu0 %1443
        %1445 = vrot.lane.b32.xlu0 %v1235, 127
        %v1446 = vpop.permute.xlu0 %1445
        %1447 = vrot.lane.b32.xlu0 %v1236, 127
        %v1448 = vpop.permute.xlu0 %1447
        %1449 = vrot.lane.b32.xlu0 %v1237, 127
        %v1450 = vpop.permute.xlu0 %1449
        %1451 = vrot.lane.b32.xlu0 %v1238, 127
        %v1452 = vpop.permute.xlu0 %1451
        %1453 = vrot.lane.b32.xlu0 %v1239, 127
        %v1454 = vpop.permute.xlu0 %1453
        %1455 = vrot.lane.b32.xlu0 %v1240, 127
        %v1456 = vpop.permute.xlu0 %1455
        %1457 = vrot.lane.b32.xlu0 %v1241, 127
        %v1458 = vpop.permute.xlu0 %1457
        %1459 = vrot.lane.b32.xlu0 %v1242, 127
        %v1460 = vpop.permute.xlu0 %1459
        %1461 = vrot.lane.b32.xlu0 %v1243, 127
        %v1462 = vpop.permute.xlu0 %1461
        %1463 = vrot.lane.b32.xlu0 %v1244, 127
        %v1464 = vpop.permute.xlu0 %1463
        %1465 = vrot.lane.b32.xlu0 %v1245, 127
        %v1466 = vpop.permute.xlu0 %1465
        %1467 = vrot.lane.b32.xlu0 %v1246, 127
        %v1468 = vpop.permute.xlu0 %1467
        %1469 = vrot.lane.b32.xlu0 %v1247, 127
        %v1470 = vpop.permute.xlu0 %1469
        %1471 = vrot.lane.b32.xlu0 %v1248, 127
        %v1472 = vpop.permute.xlu0 %1471
        %1473 = vrot.lane.b32.xlu0 %v1249, 127
        %v1474 = vpop.permute.xlu0 %1473
        %1475 = vrot.lane.b32.xlu0 %v1250, 127
        %v1476 = vpop.permute.xlu0 %1475
        %1477 = vrot.lane.b32.xlu0 %v1251, 127
        %v1478 = vpop.permute.xlu0 %1477
        %1479 = vrot.lane.b32.xlu0 %v1252, 127
        %v1480 = vpop.permute.xlu0 %1479
        %1481 = vrot.lane.b32.xlu0 %v1253, 127
        %v1482 = vpop.permute.xlu0 %1481
        %1483 = vrot.lane.b32.xlu0 %v1254, 127
        %v1484 = vpop.permute.xlu0 %1483
        %1485 = vrot.lane.b32.xlu0 %v1255, 127
        %v1486 = vpop.permute.xlu0 %1485
        %1487 = vrot.lane.b32.xlu0 %v1256, 127
        %v1488 = vpop.permute.xlu0 %1487
        %1489 = vrot.lane.b32.xlu0 %v1257, 127
        %v1490 = vpop.permute.xlu0 %1489
        %1491 = vrot.lane.b32.xlu0 %v1258, 127
        %v1492 = vpop.permute.xlu0 %1491
        %1493 = vrot.lane.b32.xlu0 %v1259, 127
        %v1494 = vpop.permute.xlu0 %1493
        %1495 = vrot.lane.b32.xlu0 %v1260, 127
        %v1496 = vpop.permute.xlu0 %1495
        %1497 = vrot.lane.b32.xlu0 %v1261, 127
        %v1498 = vpop.permute.xlu0 %1497
        %1499 = vrot.lane.b32.xlu0 %v1262, 127
        %v1500 = vpop.permute.xlu0 %1499
        %1501 = vrot.lane.b32.xlu0 %v1263, 127
        %v1502 = vpop.permute.xlu0 %1501
        %1503 = vrot.lane.b32.xlu0 %v1264, 127
        %v1504 = vpop.permute.xlu0 %1503
        %1505 = vrot.lane.b32.xlu0 %v1265, 127
        %v1506 = vpop.permute.xlu0 %1505
        %1507 = vrot.lane.b32.xlu0 %v1266, 127
        %v1508 = vpop.permute.xlu0 %1507
        %1509 = vrot.lane.b32.xlu0 %v1267, 127
        %v1510 = vpop.permute.xlu0 %1509
        %1511 = vrot.lane.b32.xlu0 %v1268, 127
        %v1512 = vpop.permute.xlu0 %1511
        %1513 = vrot.lane.b32.xlu0 %v1269, 127
        %v1514 = vpop.permute.xlu0 %1513
        %1515 = vrot.lane.b32.xlu0 %v1270, 127
        %v1516 = vpop.permute.xlu0 %1515
        %1517 = vrot.lane.b32.xlu0 %v1271, 127
        %v1518 = vpop.permute.xlu0 %1517
        %1519 = vrot.lane.b32.xlu0 %v1272, 127
        %v1520 = vpop.permute.xlu0 %1519
        %1521 = vrot.lane.b32.xlu0 %v1273, 127
        %v1522 = vpop.permute.xlu0 %1521
        %1523 = vrot.lane.b32.xlu0 %v1274, 127
        %v1524 = vpop.permute.xlu0 %1523
        %1525 = vrot.lane.b32.xlu0 %v1275, 127
        %v1526 = vpop.permute.xlu0 %1525
        %1527 = vrot.lane.b32.xlu0 %v1276, 127
        %v1528 = vpop.permute.xlu0 %1527
        %1529 = vrot.lane.b32.xlu0 %v1277, 127
        %v1530 = vpop.permute.xlu0 %1529
        %1531 = vrot.lane.b32.xlu0 %v1278, 127
        %v1532 = vpop.permute.xlu0 %1531
        %1533 = vrot.lane.b32.xlu0 %v1279, 127
        %v1534 = vpop.permute.xlu0 %1533
        %1535 = vrot.lane.b32.xlu0 %v1280, 127
        %v1536 = vpop.permute.xlu0 %1535
        %1537 = vrot.lane.b32.xlu0 %v1281, 127
        %v1538 = vpop.permute.xlu0 %1537
        %1539 = vrot.lane.b32.xlu0 %v1282, 127
        %v1540 = vpop.permute.xlu0 %1539
        %1541 = vrot.lane.b32.xlu0 %v1283, 127
        %v1542 = vpop.permute.xlu0 %1541
        %1543 = vrot.lane.b32.xlu0 %v1284, 127
        %v1544 = vpop.permute.xlu0 %1543
        %1545 = vrot.lane.b32.xlu0 %v1285, 127
        %v1546 = vpop.permute.xlu0 %1545
        %1547 = vrot.lane.b32.xlu0 %v1286, 127
        %v1548 = vpop.permute.xlu0 %1547
        %1549 = vrot.lane.b32.xlu0 %v1287, 127
        %v1550 = vpop.permute.xlu0 %1549
        %1551 = vrot.lane.b32.xlu0 %v1288, 127
        %v1552 = vpop.permute.xlu0 %1551
        %1553 = vrot.lane.b32.xlu0 %v1289, 127
        %v1554 = vpop.permute.xlu0 %1553
        %1555 = vrot.lane.b32.xlu0 %v1290, 127
        %v1556 = vpop.permute.xlu0 %1555
        %1557 = vrot.lane.b32.xlu0 %v1291, 127
        %v1558 = vpop.permute.xlu0 %1557
        %1559 = vrot.lane.b32.xlu0 %v1292, 127
        %v1560 = vpop.permute.xlu0 %1559
        %1561 = vrot.lane.b32.xlu0 %v1293, 127
        %v1562 = vpop.permute.xlu0 %1561
        %1563 = vrot.lane.b32.xlu0 %v1294, 127
        %v1564 = vpop.permute.xlu0 %1563
        %1565 = vrot.lane.b32.xlu0 %v1295, 127
        %v1566 = vpop.permute.xlu0 %1565
        %1567 = vrot.lane.b32.xlu0 %v1296, 127
        %v1568 = vpop.permute.xlu0 %1567
        %1569 = vrot.lane.b32.xlu0 %v1297, 127
        %v1570 = vpop.permute.xlu0 %1569
        %1571 = vrot.lane.b32.xlu0 %v1298, 127
        %v1572 = vpop.permute.xlu0 %1571
        %1573 = vrot.lane.b32.xlu0 %v1299, 127
        %v1574 = vpop.permute.xlu0 %1573
        %1575 = vrot.lane.b32.xlu0 %v1300, 127
        %v1576 = vpop.permute.xlu0 %1575
        %1577 = vrot.lane.b32.xlu0 %v1301, 127
        %v1578 = vpop.permute.xlu0 %1577
        %1579 = vrot.lane.b32.xlu0 %v1302, 127
        %v1580 = vpop.permute.xlu0 %1579
        %1581 = vrot.lane.b32.xlu0 %v1303, 127
        %v1582 = vpop.permute.xlu0 %1581
        %1583 = vrot.lane.b32.xlu0 %v1304, 127
        %v1584 = vpop.permute.xlu0 %1583
        %1585 = vrot.lane.b32.xlu0 %v1305, 127
        %v1586 = vpop.permute.xlu0 %1585
        %1587 = vrot.lane.b32.xlu0 %v1306, 127
        %v1588 = vpop.permute.xlu0 %1587
        %1589 = vrot.lane.b32.xlu0 %v1307, 127
        %v1590 = vpop.permute.xlu0 %1589
        %1591 = vrot.lane.b32.xlu0 %v1308, 127
        %v1592 = vpop.permute.xlu0 %1591
        %1593 = vrot.lane.b32.xlu0 %v1309, 127
        %v1594 = vpop.permute.xlu0 %1593
        %1595 = vrot.lane.b32.xlu0 %v1310, 127
        %v1596 = vpop.permute.xlu0 %1595
        %1597 = vrot.lane.b32.xlu0 %v1311, 127
        %v1598 = vpop.permute.xlu0 %1597
        %1599 = vrot.lane.b32.xlu0 %v1312, 127
        %v1600 = vpop.permute.xlu0 %1599
        %v1697 = vadd.f32 %v881, %v1410
        %v1698 = vadd.f32 %v882, %v1412
        %v1699 = vadd.f32 %v883, %v1414
        %v1700 = vadd.f32 %v884, %v1416
        %v1701 = vadd.f32 %v885, %v1418
        %v1702 = vadd.f32 %v886, %v1420
        %v1703 = vadd.f32 %v887, %v1422
        %v1704 = vadd.f32 %v888, %v1424
        %v1705 = vadd.f32 %v889, %v1426
        %v1706 = vadd.f32 %v890, %v1428
        %v1707 = vadd.f32 %v891, %v1430
        %v1708 = vadd.f32 %v892, %v1432
        %v1709 = vadd.f32 %v893, %v1434
        %v1710 = vadd.f32 %v894, %v1436
        %v1711 = vadd.f32 %v895, %v1438
        %v1712 = vadd.f32 %v896, %v1440
        %v1713 = vadd.f32 %v897, %v1442
        %v1714 = vadd.f32 %v898, %v1444
        %v1715 = vadd.f32 %v899, %v1446
        %v1716 = vadd.f32 %v900, %v1448
        %v1717 = vadd.f32 %v901, %v1450
        %v1718 = vadd.f32 %v902, %v1452
        %v1719 = vadd.f32 %v903, %v1454
        %v1720 = vadd.f32 %v904, %v1456
        %v1721 = vadd.f32 %v905, %v1458
        %v1722 = vadd.f32 %v906, %v1460
        %v1723 = vadd.f32 %v907, %v1462
        %v1724 = vadd.f32 %v908, %v1464
        %v1725 = vadd.f32 %v909, %v1466
        %v1726 = vadd.f32 %v910, %v1468
        %v1727 = vadd.f32 %v911, %v1470
        %v1728 = vadd.f32 %v912, %v1472
        %v1729 = vadd.f32 %v913, %v1474
        %v1730 = vadd.f32 %v914, %v1476
        %v1731 = vadd.f32 %v915, %v1478
        %v1732 = vadd.f32 %v916, %v1480
        %v1733 = vadd.f32 %v917, %v1482
        %v1734 = vadd.f32 %v918, %v1484
        %v1735 = vadd.f32 %v919, %v1486
        %v1736 = vadd.f32 %v920, %v1488
        %v1737 = vadd.f32 %v921, %v1490
        %v1738 = vadd.f32 %v922, %v1492
        %v1739 = vadd.f32 %v923, %v1494
        %v1740 = vadd.f32 %v924, %v1496
        %v1741 = vadd.f32 %v925, %v1498
        %v1742 = vadd.f32 %v926, %v1500
        %v1743 = vadd.f32 %v927, %v1502
        %v1744 = vadd.f32 %v928, %v1504
        %v1745 = vadd.f32 %v929, %v1506
        %v1746 = vadd.f32 %v930, %v1508
        %v1747 = vadd.f32 %v931, %v1510
        %v1748 = vadd.f32 %v932, %v1512
        %v1749 = vadd.f32 %v933, %v1514
        %v1750 = vadd.f32 %v934, %v1516
        %v1751 = vadd.f32 %v935, %v1518
        %v1752 = vadd.f32 %v936, %v1520
        %v1753 = vadd.f32 %v937, %v1522
        %v1754 = vadd.f32 %v938, %v1524
        %v1755 = vadd.f32 %v939, %v1526
        %v1756 = vadd.f32 %v940, %v1528
        %v1757 = vadd.f32 %v941, %v1530
        %v1758 = vadd.f32 %v942, %v1532
        %v1759 = vadd.f32 %v943, %v1534
        %v1760 = vadd.f32 %v944, %v1536
        %v1761 = vadd.f32 %v945, %v1538
        %v1762 = vadd.f32 %v946, %v1540
        %v1763 = vadd.f32 %v947, %v1542
        %v1764 = vadd.f32 %v948, %v1544
        %v1765 = vadd.f32 %v949, %v1546
        %v1766 = vadd.f32 %v950, %v1548
        %v1767 = vadd.f32 %v951, %v1550
        %v1768 = vadd.f32 %v952, %v1552
        %v1769 = vadd.f32 %v953, %v1554
        %v1770 = vadd.f32 %v954, %v1556
        %v1771 = vadd.f32 %v955, %v1558
        %v1772 = vadd.f32 %v956, %v1560
        %v1773 = vadd.f32 %v957, %v1562
        %v1774 = vadd.f32 %v958, %v1564
        %v1775 = vadd.f32 %v959, %v1566
        %v1776 = vadd.f32 %v960, %v1568
        %v1777 = vadd.f32 %v961, %v1570
        %v1778 = vadd.f32 %v962, %v1572
        %v1779 = vadd.f32 %v963, %v1574
        %v1780 = vadd.f32 %v964, %v1576
        %v1781 = vadd.f32 %v965, %v1578
        %v1782 = vadd.f32 %v966, %v1580
        %v1783 = vadd.f32 %v967, %v1582
        %v1784 = vadd.f32 %v968, %v1584
        %v1785 = vadd.f32 %v969, %v1586
        %v1786 = vadd.f32 %v970, %v1588
        %v1787 = vadd.f32 %v971, %v1590
        %v1788 = vadd.f32 %v972, %v1592
        %v1789 = vadd.f32 %v973, %v1594
        %v1790 = vadd.f32 %v974, %v1596
        %v1791 = vadd.f32 %v975, %v1598
        %v1792 = vadd.f32 %v976, %v1600
        %1793 = vrot.lane.b32.xlu0 %v545, 126
        %v1794 = vpop.permute.xlu0 %1793
        %1795 = vrot.lane.b32.xlu0 %v546, 126
        %v1796 = vpop.permute.xlu0 %1795
        %1797 = vrot.lane.b32.xlu0 %v547, 126
        %v1798 = vpop.permute.xlu0 %1797
        %1799 = vrot.lane.b32.xlu0 %v548, 126
        %v1800 = vpop.permute.xlu0 %1799
        %1801 = vrot.lane.b32.xlu0 %v549, 126
        %v1802 = vpop.permute.xlu0 %1801
        %1803 = vrot.lane.b32.xlu0 %v550, 126
        %v1804 = vpop.permute.xlu0 %1803
        %1805 = vrot.lane.b32.xlu0 %v551, 126
        %v1806 = vpop.permute.xlu0 %1805
        %1807 = vrot.lane.b32.xlu0 %v552, 126
        %v1808 = vpop.permute.xlu0 %1807
        %1809 = vrot.lane.b32.xlu0 %v553, 126
        %v1810 = vpop.permute.xlu0 %1809
        %1811 = vrot.lane.b32.xlu0 %v554, 126
        %v1812 = vpop.permute.xlu0 %1811
        %1813 = vrot.lane.b32.xlu0 %v555, 126
        %v1814 = vpop.permute.xlu0 %1813
        %1815 = vrot.lane.b32.xlu0 %v556, 126
        %v1816 = vpop.permute.xlu0 %1815
        %1817 = vrot.lane.b32.xlu0 %v557, 126
        %v1818 = vpop.permute.xlu0 %1817
        %1819 = vrot.lane.b32.xlu0 %v558, 126
        %v1820 = vpop.permute.xlu0 %1819
        %1821 = vrot.lane.b32.xlu0 %v559, 126
        %v1822 = vpop.permute.xlu0 %1821
        %1823 = vrot.lane.b32.xlu0 %v560, 126
        %v1824 = vpop.permute.xlu0 %1823
        %1825 = vrot.lane.b32.xlu0 %v561, 126
        %v1826 = vpop.permute.xlu0 %1825
        %1827 = vrot.lane.b32.xlu0 %v562, 126
        %v1828 = vpop.permute.xlu0 %1827
        %1829 = vrot.lane.b32.xlu0 %v563, 126
        %v1830 = vpop.permute.xlu0 %1829
        %1831 = vrot.lane.b32.xlu0 %v564, 126
        %v1832 = vpop.permute.xlu0 %1831
        %1833 = vrot.lane.b32.xlu0 %v565, 126
        %v1834 = vpop.permute.xlu0 %1833
        %1835 = vrot.lane.b32.xlu0 %v566, 126
        %v1836 = vpop.permute.xlu0 %1835
        %1837 = vrot.lane.b32.xlu0 %v567, 126
        %v1838 = vpop.permute.xlu0 %1837
        %1839 = vrot.lane.b32.xlu0 %v568, 126
        %v1840 = vpop.permute.xlu0 %1839
        %1841 = vrot.lane.b32.xlu0 %v569, 126
        %v1842 = vpop.permute.xlu0 %1841
        %1843 = vrot.lane.b32.xlu0 %v570, 126
        %v1844 = vpop.permute.xlu0 %1843
        %1845 = vrot.lane.b32.xlu0 %v571, 126
        %v1846 = vpop.permute.xlu0 %1845
        %1847 = vrot.lane.b32.xlu0 %v572, 126
        %v1848 = vpop.permute.xlu0 %1847
        %1849 = vrot.lane.b32.xlu0 %v573, 126
        %v1850 = vpop.permute.xlu0 %1849
        %1851 = vrot.lane.b32.xlu0 %v574, 126
        %v1852 = vpop.permute.xlu0 %1851
        %1853 = vrot.lane.b32.xlu0 %v575, 126
        %v1854 = vpop.permute.xlu0 %1853
        %1855 = vrot.lane.b32.xlu0 %v576, 126
        %v1856 = vpop.permute.xlu0 %1855
        %1857 = vrot.lane.b32.xlu0 %v577, 126
        %v1858 = vpop.permute.xlu0 %1857
        %1859 = vrot.lane.b32.xlu0 %v578, 126
        %v1860 = vpop.permute.xlu0 %1859
        %1861 = vrot.lane.b32.xlu0 %v579, 126
        %v1862 = vpop.permute.xlu0 %1861
        %1863 = vrot.lane.b32.xlu0 %v580, 126
        %v1864 = vpop.permute.xlu0 %1863
        %1865 = vrot.lane.b32.xlu0 %v581, 126
        %v1866 = vpop.permute.xlu0 %1865
        %1867 = vrot.lane.b32.xlu0 %v582, 126
        %v1868 = vpop.permute.xlu0 %1867
        %1869 = vrot.lane.b32.xlu0 %v583, 126
        %v1870 = vpop.permute.xlu0 %1869
        %1871 = vrot.lane.b32.xlu0 %v584, 126
        %v1872 = vpop.permute.xlu0 %1871
        %1873 = vrot.lane.b32.xlu0 %v585, 126
        %v1874 = vpop.permute.xlu0 %1873
        %1875 = vrot.lane.b32.xlu0 %v586, 126
        %v1876 = vpop.permute.xlu0 %1875
        %1877 = vrot.lane.b32.xlu0 %v587, 126
        %v1878 = vpop.permute.xlu0 %1877
        %1879 = vrot.lane.b32.xlu0 %v588, 126
        %v1880 = vpop.permute.xlu0 %1879
        %1881 = vrot.lane.b32.xlu0 %v589, 126
        %v1882 = vpop.permute.xlu0 %1881
        %1883 = vrot.lane.b32.xlu0 %v590, 126
        %v1884 = vpop.permute.xlu0 %1883
        %1885 = vrot.lane.b32.xlu0 %v591, 126
        %v1886 = vpop.permute.xlu0 %1885
        %1887 = vrot.lane.b32.xlu0 %v592, 126
        %v1888 = vpop.permute.xlu0 %1887
        %s1889 = vtos %v1794
        %v1890 = vstv %s1889
        %s1892 = vtos %v1796
        %v1893 = vstv %s1892
        %s1895 = vtos %v1798
        %v1896 = vstv %s1895
        %s1898 = vtos %v1800
        %v1899 = vstv %s1898
        %s1901 = vtos %v1802
        %v1902 = vstv %s1901
        %s1904 = vtos %v1804
        %v1905 = vstv %s1904
        %s1907 = vtos %v1806
        %v1908 = vstv %s1907
        %s1910 = vtos %v1808
        %v1911 = vstv %s1910
        %s1913 = vtos %v1810
        %v1914 = vstv %s1913
        %s1916 = vtos %v1812
        %v1917 = vstv %s1916
        %s1919 = vtos %v1814
        %v1920 = vstv %s1919
        %s1922 = vtos %v1816
        %v1923 = vstv %s1922
        %s1925 = vtos %v1818
        %v1926 = vstv %s1925
        %s1928 = vtos %v1820
        %v1929 = vstv %s1928
        %s1931 = vtos %v1822
        %v1932 = vstv %s1931
        %s1934 = vtos %v1824
        %v1935 = vstv %s1934
        %s1937 = vtos %v1826
        %v1938 = vstv %s1937
        %s1940 = vtos %v1828
        %v1941 = vstv %s1940
        %s1943 = vtos %v1830
        %v1944 = vstv %s1943
        %s1946 = vtos %v1832
        %v1947 = vstv %s1946
        %s1949 = vtos %v1834
        %v1950 = vstv %s1949
        %s1952 = vtos %v1836
        %v1953 = vstv %s1952
        %s1955 = vtos %v1838
        %v1956 = vstv %s1955
        %s1958 = vtos %v1840
        %v1959 = vstv %s1958
        %s1961 = vtos %v1842
        %v1962 = vstv %s1961
        %s1964 = vtos %v1844
        %v1965 = vstv %s1964
        %s1967 = vtos %v1846
        %v1968 = vstv %s1967
        %s1970 = vtos %v1848
        %v1971 = vstv %s1970
        %s1973 = vtos %v1850
        %v1974 = vstv %s1973
        %s1976 = vtos %v1852
        %v1977 = vstv %s1976
        %s1979 = vtos %v1854
        %v1980 = vstv %s1979
        %s1982 = vtos %v1856
        %v1983 = vstv %s1982
        %s1985 = vtos %v1858
        %v1986 = vstv %s1985
        %s1988 = vtos %v1860
        %v1989 = vstv %s1988
        %s1991 = vtos %v1862
        %v1992 = vstv %s1991
        %s1994 = vtos %v1864
        %v1995 = vstv %s1994
        %s1997 = vtos %v1866
        %v1998 = vstv %s1997
        %s2000 = vtos %v1868
        %v2001 = vstv %s2000
        %s2003 = vtos %v1870
        %v2004 = vstv %s2003
        %s2006 = vtos %v1872
        %v2007 = vstv %s2006
        %s2009 = vtos %v1874
        %v2010 = vstv %s2009
        %s2012 = vtos %v1876
        %v2013 = vstv %s2012
        %s2015 = vtos %v1878
        %v2016 = vstv %s2015
        %s2018 = vtos %v1880
        %v2019 = vstv %s2018
        %s2021 = vtos %v1882
        %v2022 = vstv %s2021
        %s2024 = vtos %v1884
        %v2025 = vstv %s2024
        %s2027 = vtos %v1886
        %v2028 = vstv %s2027
        %s2030 = vtos %v1888
        %v2031 = vstv %s2030
        %v2033 = vmul.f32 %v401, %v1890
        %v2034 = vmul.f32 %v402, %v1890
        %v2035 = vmul.f32 %v404, %v1893
        %v2036 = vmul.f32 %v405, %v1893
        %v2037 = vmul.f32 %v407, %v1896
        %v2038 = vmul.f32 %v408, %v1896
        %v2039 = vmul.f32 %v410, %v1899
        %v2040 = vmul.f32 %v411, %v1899
        %v2041 = vmul.f32 %v413, %v1902
        %v2042 = vmul.f32 %v414, %v1902
        %v2043 = vmul.f32 %v416, %v1905
        %v2044 = vmul.f32 %v417, %v1905
        %v2045 = vmul.f32 %v419, %v1908
        %v2046 = vmul.f32 %v420, %v1908
        %v2047 = vmul.f32 %v422, %v1911
        %v2048 = vmul.f32 %v423, %v1911
        %v2049 = vmul.f32 %v425, %v1914
        %v2050 = vmul.f32 %v426, %v1914
        %v2051 = vmul.f32 %v428, %v1917
        %v2052 = vmul.f32 %v429, %v1917
        %v2053 = vmul.f32 %v431, %v1920
        %v2054 = vmul.f32 %v432, %v1920
        %v2055 = vmul.f32 %v434, %v1923
        %v2056 = vmul.f32 %v435, %v1923
        %v2057 = vmul.f32 %v437, %v1926
        %v2058 = vmul.f32 %v438, %v1926
        %v2059 = vmul.f32 %v440, %v1929
        %v2060 = vmul.f32 %v441, %v1929
        %v2061 = vmul.f32 %v443, %v1932
        %v2062 = vmul.f32 %v444, %v1932
        %v2063 = vmul.f32 %v446, %v1935
        %v2064 = vmul.f32 %v447, %v1935
        %v2065 = vmul.f32 %v449, %v1938
        %v2066 = vmul.f32 %v450, %v1938
        %v2067 = vmul.f32 %v452, %v1941
        %v2068 = vmul.f32 %v453, %v1941
        %v2069 = vmul.f32 %v455, %v1944
        %v2070 = vmul.f32 %v456, %v1944
        %v2071 = vmul.f32 %v458, %v1947
        %v2072 = vmul.f32 %v459, %v1947
        %v2073 = vmul.f32 %v461, %v1950
        %v2074 = vmul.f32 %v462, %v1950
        %v2075 = vmul.f32 %v464, %v1953
        %v2076 = vmul.f32 %v465, %v1953
        %v2077 = vmul.f32 %v467, %v1956
        %v2078 = vmul.f32 %v468, %v1956
        %v2079 = vmul.f32 %v470, %v1959
        %v2080 = vmul.f32 %v471, %v1959
        %v2081 = vmul.f32 %v473, %v1962
        %v2082 = vmul.f32 %v474, %v1962
        %v2083 = vmul.f32 %v476, %v1965
        %v2084 = vmul.f32 %v477, %v1965
        %v2085 = vmul.f32 %v479, %v1968
        %v2086 = vmul.f32 %v480, %v1968
        %v2087 = vmul.f32 %v482, %v1971
        %v2088 = vmul.f32 %v483, %v1971
        %v2089 = vmul.f32 %v485, %v1974
        %v2090 = vmul.f32 %v486, %v1974
        %v2091 = vmul.f32 %v488, %v1977
        %v2092 = vmul.f32 %v489, %v1977
        %v2093 = vmul.f32 %v491, %v1980
        %v2094 = vmul.f32 %v492, %v1980
        %v2095 = vmul.f32 %v494, %v1983
        %v2096 = vmul.f32 %v495, %v1983
        %v2097 = vmul.f32 %v497, %v1986
        %v2098 = vmul.f32 %v498, %v1986
        %v2099 = vmul.f32 %v500, %v1989
        %v2100 = vmul.f32 %v501, %v1989
        %v2101 = vmul.f32 %v503, %v1992
        %v2102 = vmul.f32 %v504, %v1992
        %v2103 = vmul.f32 %v506, %v1995
        %v2104 = vmul.f32 %v507, %v1995
        %v2105 = vmul.f32 %v509, %v1998
        %v2106 = vmul.f32 %v510, %v1998
        %v2107 = vmul.f32 %v512, %v2001
        %v2108 = vmul.f32 %v513, %v2001
        %v2109 = vmul.f32 %v515, %v2004
        %v2110 = vmul.f32 %v516, %v2004
        %v2111 = vmul.f32 %v518, %v2007
        %v2112 = vmul.f32 %v519, %v2007
        %v2113 = vmul.f32 %v521, %v2010
        %v2114 = vmul.f32 %v522, %v2010
        %v2115 = vmul.f32 %v524, %v2013
        %v2116 = vmul.f32 %v525, %v2013
        %v2117 = vmul.f32 %v527, %v2016
        %v2118 = vmul.f32 %v528, %v2016
        %v2119 = vmul.f32 %v530, %v2019
        %v2120 = vmul.f32 %v531, %v2019
        %v2121 = vmul.f32 %v533, %v2022
        %v2122 = vmul.f32 %v534, %v2022
        %v2123 = vmul.f32 %v536, %v2025
        %v2124 = vmul.f32 %v537, %v2025
        %v2125 = vmul.f32 %v539, %v2028
        %v2126 = vmul.f32 %v540, %v2028
        %v2127 = vmul.f32 %v542, %v2031
        %v2128 = vmul.f32 %v543, %v2031
        %2225 = vrot.lane.b32.xlu0 %v2033, 126
        %v2226 = vpop.permute.xlu0 %2225
        %2227 = vrot.lane.b32.xlu0 %v2034, 126
        %v2228 = vpop.permute.xlu0 %2227
        %2229 = vrot.lane.b32.xlu0 %v2035, 126
        %v2230 = vpop.permute.xlu0 %2229
        %2231 = vrot.lane.b32.xlu0 %v2036, 126
        %v2232 = vpop.permute.xlu0 %2231
        %2233 = vrot.lane.b32.xlu0 %v2037, 126
        %v2234 = vpop.permute.xlu0 %2233
        %2235 = vrot.lane.b32.xlu0 %v2038, 126
        %v2236 = vpop.permute.xlu0 %2235
        %2237 = vrot.lane.b32.xlu0 %v2039, 126
        %v2238 = vpop.permute.xlu0 %2237
        %2239 = vrot.lane.b32.xlu0 %v2040, 126
        %v2240 = vpop.permute.xlu0 %2239
        %2241 = vrot.lane.b32.xlu0 %v2041, 126
        %v2242 = vpop.permute.xlu0 %2241
        %2243 = vrot.lane.b32.xlu0 %v2042, 126
        %v2244 = vpop.permute.xlu0 %2243
        %2245 = vrot.lane.b32.xlu0 %v2043, 126
        %v2246 = vpop.permute.xlu0 %2245
        %2247 = vrot.lane.b32.xlu0 %v2044, 126
        %v2248 = vpop.permute.xlu0 %2247
        %2249 = vrot.lane.b32.xlu0 %v2045, 126
        %v2250 = vpop.permute.xlu0 %2249
        %2251 = vrot.lane.b32.xlu0 %v2046, 126
        %v2252 = vpop.permute.xlu0 %2251
        %2253 = vrot.lane.b32.xlu0 %v2047, 126
        %v2254 = vpop.permute.xlu0 %2253
        %2255 = vrot.lane.b32.xlu0 %v2048, 126
        %v2256 = vpop.permute.xlu0 %2255
        %2257 = vrot.lane.b32.xlu0 %v2049, 126
        %v2258 = vpop.permute.xlu0 %2257
        %2259 = vrot.lane.b32.xlu0 %v2050, 126
        %v2260 = vpop.permute.xlu0 %2259
        %2261 = vrot.lane.b32.xlu0 %v2051, 126
        %v2262 = vpop.permute.xlu0 %2261
        %2263 = vrot.lane.b32.xlu0 %v2052, 126
        %v2264 = vpop.permute.xlu0 %2263
        %2265 = vrot.lane.b32.xlu0 %v2053, 126
        %v2266 = vpop.permute.xlu0 %2265
        %2267 = vrot.lane.b32.xlu0 %v2054, 126
        %v2268 = vpop.permute.xlu0 %2267
        %2269 = vrot.lane.b32.xlu0 %v2055, 126
        %v2270 = vpop.permute.xlu0 %2269
        %2271 = vrot.lane.b32.xlu0 %v2056, 126
        %v2272 = vpop.permute.xlu0 %2271
        %2273 = vrot.lane.b32.xlu0 %v2057, 126
        %v2274 = vpop.permute.xlu0 %2273
        %2275 = vrot.lane.b32.xlu0 %v2058, 126
        %v2276 = vpop.permute.xlu0 %2275
        %2277 = vrot.lane.b32.xlu0 %v2059, 126
        %v2278 = vpop.permute.xlu0 %2277
        %2279 = vrot.lane.b32.xlu0 %v2060, 126
        %v2280 = vpop.permute.xlu0 %2279
        %2281 = vrot.lane.b32.xlu0 %v2061, 126
        %v2282 = vpop.permute.xlu0 %2281
        %2283 = vrot.lane.b32.xlu0 %v2062, 126
        %v2284 = vpop.permute.xlu0 %2283
        %2285 = vrot.lane.b32.xlu0 %v2063, 126
        %v2286 = vpop.permute.xlu0 %2285
        %2287 = vrot.lane.b32.xlu0 %v2064, 126
        %v2288 = vpop.permute.xlu0 %2287
        %2289 = vrot.lane.b32.xlu0 %v2065, 126
        %v2290 = vpop.permute.xlu0 %2289
        %2291 = vrot.lane.b32.xlu0 %v2066, 126
        %v2292 = vpop.permute.xlu0 %2291
        %2293 = vrot.lane.b32.xlu0 %v2067, 126
        %v2294 = vpop.permute.xlu0 %2293
        %2295 = vrot.lane.b32.xlu0 %v2068, 126
        %v2296 = vpop.permute.xlu0 %2295
        %2297 = vrot.lane.b32.xlu0 %v2069, 126
        %v2298 = vpop.permute.xlu0 %2297
        %2299 = vrot.lane.b32.xlu0 %v2070, 126
        %v2300 = vpop.permute.xlu0 %2299
        %2301 = vrot.lane.b32.xlu0 %v2071, 126
        %v2302 = vpop.permute.xlu0 %2301
        %2303 = vrot.lane.b32.xlu0 %v2072, 126
        %v2304 = vpop.permute.xlu0 %2303
        %2305 = vrot.lane.b32.xlu0 %v2073, 126
        %v2306 = vpop.permute.xlu0 %2305
        %2307 = vrot.lane.b32.xlu0 %v2074, 126
        %v2308 = vpop.permute.xlu0 %2307
        %2309 = vrot.lane.b32.xlu0 %v2075, 126
        %v2310 = vpop.permute.xlu0 %2309
        %2311 = vrot.lane.b32.xlu0 %v2076, 126
        %v2312 = vpop.permute.xlu0 %2311
        %2313 = vrot.lane.b32.xlu0 %v2077, 126
        %v2314 = vpop.permute.xlu0 %2313
        %2315 = vrot.lane.b32.xlu0 %v2078, 126
        %v2316 = vpop.permute.xlu0 %2315
        %2317 = vrot.lane.b32.xlu0 %v2079, 126
        %v2318 = vpop.permute.xlu0 %2317
        %2319 = vrot.lane.b32.xlu0 %v2080, 126
        %v2320 = vpop.permute.xlu0 %2319
        %2321 = vrot.lane.b32.xlu0 %v2081, 126
        %v2322 = vpop.permute.xlu0 %2321
        %2323 = vrot.lane.b32.xlu0 %v2082, 126
        %v2324 = vpop.permute.xlu0 %2323
        %2325 = vrot.lane.b32.xlu0 %v2083, 126
        %v2326 = vpop.permute.xlu0 %2325
        %2327 = vrot.lane.b32.xlu0 %v2084, 126
        %v2328 = vpop.permute.xlu0 %2327
        %2329 = vrot.lane.b32.xlu0 %v2085, 126
        %v2330 = vpop.permute.xlu0 %2329
        %2331 = vrot.lane.b32.xlu0 %v2086, 126
        %v2332 = vpop.permute.xlu0 %2331
        %2333 = vrot.lane.b32.xlu0 %v2087, 126
        %v2334 = vpop.permute.xlu0 %2333
        %2335 = vrot.lane.b32.xlu0 %v2088, 126
        %v2336 = vpop.permute.xlu0 %2335
        %2337 = vrot.lane.b32.xlu0 %v2089, 126
        %v2338 = vpop.permute.xlu0 %2337
        %2339 = vrot.lane.b32.xlu0 %v2090, 126
        %v2340 = vpop.permute.xlu0 %2339
        %2341 = vrot.lane.b32.xlu0 %v2091, 126
        %v2342 = vpop.permute.xlu0 %2341
        %2343 = vrot.lane.b32.xlu0 %v2092, 126
        %v2344 = vpop.permute.xlu0 %2343
        %2345 = vrot.lane.b32.xlu0 %v2093, 126
        %v2346 = vpop.permute.xlu0 %2345
        %2347 = vrot.lane.b32.xlu0 %v2094, 126
        %v2348 = vpop.permute.xlu0 %2347
        %2349 = vrot.lane.b32.xlu0 %v2095, 126
        %v2350 = vpop.permute.xlu0 %2349
        %2351 = vrot.lane.b32.xlu0 %v2096, 126
        %v2352 = vpop.permute.xlu0 %2351
        %2353 = vrot.lane.b32.xlu0 %v2097, 126
        %v2354 = vpop.permute.xlu0 %2353
        %2355 = vrot.lane.b32.xlu0 %v2098, 126
        %v2356 = vpop.permute.xlu0 %2355
        %2357 = vrot.lane.b32.xlu0 %v2099, 126
        %v2358 = vpop.permute.xlu0 %2357
        %2359 = vrot.lane.b32.xlu0 %v2100, 126
        %v2360 = vpop.permute.xlu0 %2359
        %2361 = vrot.lane.b32.xlu0 %v2101, 126
        %v2362 = vpop.permute.xlu0 %2361
        %2363 = vrot.lane.b32.xlu0 %v2102, 126
        %v2364 = vpop.permute.xlu0 %2363
        %2365 = vrot.lane.b32.xlu0 %v2103, 126
        %v2366 = vpop.permute.xlu0 %2365
        %2367 = vrot.lane.b32.xlu0 %v2104, 126
        %v2368 = vpop.permute.xlu0 %2367
        %2369 = vrot.lane.b32.xlu0 %v2105, 126
        %v2370 = vpop.permute.xlu0 %2369
        %2371 = vrot.lane.b32.xlu0 %v2106, 126
        %v2372 = vpop.permute.xlu0 %2371
        %2373 = vrot.lane.b32.xlu0 %v2107, 126
        %v2374 = vpop.permute.xlu0 %2373
        %2375 = vrot.lane.b32.xlu0 %v2108, 126
        %v2376 = vpop.permute.xlu0 %2375
        %2377 = vrot.lane.b32.xlu0 %v2109, 126
        %v2378 = vpop.permute.xlu0 %2377
        %2379 = vrot.lane.b32.xlu0 %v2110, 126
        %v2380 = vpop.permute.xlu0 %2379
        %2381 = vrot.lane.b32.xlu0 %v2111, 126
        %v2382 = vpop.permute.xlu0 %2381
        %2383 = vrot.lane.b32.xlu0 %v2112, 126
        %v2384 = vpop.permute.xlu0 %2383
        %2385 = vrot.lane.b32.xlu0 %v2113, 126
        %v2386 = vpop.permute.xlu0 %2385
        %2387 = vrot.lane.b32.xlu0 %v2114, 126
        %v2388 = vpop.permute.xlu0 %2387
        %2389 = vrot.lane.b32.xlu0 %v2115, 126
        %v2390 = vpop.permute.xlu0 %2389
        %2391 = vrot.lane.b32.xlu0 %v2116, 126
        %v2392 = vpop.permute.xlu0 %2391
        %2393 = vrot.lane.b32.xlu0 %v2117, 126
        %v2394 = vpop.permute.xlu0 %2393
        %2395 = vrot.lane.b32.xlu0 %v2118, 126
        %v2396 = vpop.permute.xlu0 %2395
        %2397 = vrot.lane.b32.xlu0 %v2119, 126
        %v2398 = vpop.permute.xlu0 %2397
        %2399 = vrot.lane.b32.xlu0 %v2120, 126
        %v2400 = vpop.permute.xlu0 %2399
        %2401 = vrot.lane.b32.xlu0 %v2121, 126
        %v2402 = vpop.permute.xlu0 %2401
        %2403 = vrot.lane.b32.xlu0 %v2122, 126
        %v2404 = vpop.permute.xlu0 %2403
        %2405 = vrot.lane.b32.xlu0 %v2123, 126
        %v2406 = vpop.permute.xlu0 %2405
        %2407 = vrot.lane.b32.xlu0 %v2124, 126
        %v2408 = vpop.permute.xlu0 %2407
        %2409 = vrot.lane.b32.xlu0 %v2125, 126
        %v2410 = vpop.permute.xlu0 %2409
        %2411 = vrot.lane.b32.xlu0 %v2126, 126
        %v2412 = vpop.permute.xlu0 %2411
        %2413 = vrot.lane.b32.xlu0 %v2127, 126
        %v2414 = vpop.permute.xlu0 %2413
        %2415 = vrot.lane.b32.xlu0 %v2128, 126
        %v2416 = vpop.permute.xlu0 %2415
        %v2513 = vadd.f32 %v1697, %v2226
        %v2514 = vadd.f32 %v1698, %v2228
        %v2515 = vadd.f32 %v1699, %v2230
        %v2516 = vadd.f32 %v1700, %v2232
        %v2517 = vadd.f32 %v1701, %v2234
        %v2518 = vadd.f32 %v1702, %v2236
        %v2519 = vadd.f32 %v1703, %v2238
        %v2520 = vadd.f32 %v1704, %v2240
        %v2521 = vadd.f32 %v1705, %v2242
        %v2522 = vadd.f32 %v1706, %v2244
        %v2523 = vadd.f32 %v1707, %v2246
        %v2524 = vadd.f32 %v1708, %v2248
        %v2525 = vadd.f32 %v1709, %v2250
        %v2526 = vadd.f32 %v1710, %v2252
        %v2527 = vadd.f32 %v1711, %v2254
        %v2528 = vadd.f32 %v1712, %v2256
        %v2529 = vadd.f32 %v1713, %v2258
        %v2530 = vadd.f32 %v1714, %v2260
        %v2531 = vadd.f32 %v1715, %v2262
        %v2532 = vadd.f32 %v1716, %v2264
        %v2533 = vadd.f32 %v1717, %v2266
        %v2534 = vadd.f32 %v1718, %v2268
        %v2535 = vadd.f32 %v1719, %v2270
        %v2536 = vadd.f32 %v1720, %v2272
        %v2537 = vadd.f32 %v1721, %v2274
        %v2538 = vadd.f32 %v1722, %v2276
        %v2539 = vadd.f32 %v1723, %v2278
        %v2540 = vadd.f32 %v1724, %v2280
        %v2541 = vadd.f32 %v1725, %v2282
        %v2542 = vadd.f32 %v1726, %v2284
        %v2543 = vadd.f32 %v1727, %v2286
        %v2544 = vadd.f32 %v1728, %v2288
        %v2545 = vadd.f32 %v1729, %v2290
        %v2546 = vadd.f32 %v1730, %v2292
        %v2547 = vadd.f32 %v1731, %v2294
        %v2548 = vadd.f32 %v1732, %v2296
        %v2549 = vadd.f32 %v1733, %v2298
        %v2550 = vadd.f32 %v1734, %v2300
        %v2551 = vadd.f32 %v1735, %v2302
        %v2552 = vadd.f32 %v1736, %v2304
        %v2553 = vadd.f32 %v1737, %v2306
        %v2554 = vadd.f32 %v1738, %v2308
        %v2555 = vadd.f32 %v1739, %v2310
        %v2556 = vadd.f32 %v1740, %v2312
        %v2557 = vadd.f32 %v1741, %v2314
        %v2558 = vadd.f32 %v1742, %v2316
        %v2559 = vadd.f32 %v1743, %v2318
        %v2560 = vadd.f32 %v1744, %v2320
        %v2561 = vadd.f32 %v1745, %v2322
        %v2562 = vadd.f32 %v1746, %v2324
        %v2563 = vadd.f32 %v1747, %v2326
        %v2564 = vadd.f32 %v1748, %v2328
        %v2565 = vadd.f32 %v1749, %v2330
        %v2566 = vadd.f32 %v1750, %v2332
        %v2567 = vadd.f32 %v1751, %v2334
        %v2568 = vadd.f32 %v1752, %v2336
        %v2569 = vadd.f32 %v1753, %v2338
        %v2570 = vadd.f32 %v1754, %v2340
        %v2571 = vadd.f32 %v1755, %v2342
        %v2572 = vadd.f32 %v1756, %v2344
        %v2573 = vadd.f32 %v1757, %v2346
        %v2574 = vadd.f32 %v1758, %v2348
        %v2575 = vadd.f32 %v1759, %v2350
        %v2576 = vadd.f32 %v1760, %v2352
        %v2577 = vadd.f32 %v1761, %v2354
        %v2578 = vadd.f32 %v1762, %v2356
        %v2579 = vadd.f32 %v1763, %v2358
        %v2580 = vadd.f32 %v1764, %v2360
        %v2581 = vadd.f32 %v1765, %v2362
        %v2582 = vadd.f32 %v1766, %v2364
        %v2583 = vadd.f32 %v1767, %v2366
        %v2584 = vadd.f32 %v1768, %v2368
        %v2585 = vadd.f32 %v1769, %v2370
        %v2586 = vadd.f32 %v1770, %v2372
        %v2587 = vadd.f32 %v1771, %v2374
        %v2588 = vadd.f32 %v1772, %v2376
        %v2589 = vadd.f32 %v1773, %v2378
        %v2590 = vadd.f32 %v1774, %v2380
        %v2591 = vadd.f32 %v1775, %v2382
        %v2592 = vadd.f32 %v1776, %v2384
        %v2593 = vadd.f32 %v1777, %v2386
        %v2594 = vadd.f32 %v1778, %v2388
        %v2595 = vadd.f32 %v1779, %v2390
        %v2596 = vadd.f32 %v1780, %v2392
        %v2597 = vadd.f32 %v1781, %v2394
        %v2598 = vadd.f32 %v1782, %v2396
        %v2599 = vadd.f32 %v1783, %v2398
        %v2600 = vadd.f32 %v1784, %v2400
        %v2601 = vadd.f32 %v1785, %v2402
        %v2602 = vadd.f32 %v1786, %v2404
        %v2603 = vadd.f32 %v1787, %v2406
        %v2604 = vadd.f32 %v1788, %v2408
        %v2605 = vadd.f32 %v1789, %v2410
        %v2606 = vadd.f32 %v1790, %v2412
        %v2607 = vadd.f32 %v1791, %v2414
        %v2608 = vadd.f32 %v1792, %v2416
        %v2609 = vrot.slane %v545, 1
        %v2610 = vrot.slane %v546, 1
        %v2611 = vrot.slane %v547, 1
        %v2612 = vrot.slane %v548, 1
        %v2613 = vrot.slane %v549, 1
        %v2614 = vrot.slane %v550, 1
        %v2615 = vrot.slane %v551, 1
        %v2616 = vrot.slane %v552, 1
        %v2617 = vrot.slane %v553, 1
        %v2618 = vrot.slane %v554, 1
        %v2619 = vrot.slane %v555, 1
        %v2620 = vrot.slane %v556, 1
        %v2621 = vrot.slane %v557, 1
        %v2622 = vrot.slane %v558, 1
        %v2623 = vrot.slane %v559, 1
        %v2624 = vrot.slane %v560, 1
        %v2625 = vrot.slane %v561, 1
        %v2626 = vrot.slane %v562, 1
        %v2627 = vrot.slane %v563, 1
        %v2628 = vrot.slane %v564, 1
        %v2629 = vrot.slane %v565, 1
        %v2630 = vrot.slane %v566, 1
        %v2631 = vrot.slane %v567, 1
        %v2632 = vrot.slane %v568, 1
        %v2633 = vrot.slane %v569, 1
        %v2634 = vrot.slane %v570, 1
        %v2635 = vrot.slane %v571, 1
        %v2636 = vrot.slane %v572, 1
        %v2637 = vrot.slane %v573, 1
        %v2638 = vrot.slane %v574, 1
        %v2639 = vrot.slane %v575, 1
        %v2640 = vrot.slane %v576, 1
        %v2641 = vrot.slane %v577, 1
        %v2642 = vrot.slane %v578, 1
        %v2643 = vrot.slane %v579, 1
        %v2644 = vrot.slane %v580, 1
        %v2645 = vrot.slane %v581, 1
        %v2646 = vrot.slane %v582, 1
        %v2647 = vrot.slane %v583, 1
        %v2648 = vrot.slane %v584, 1
        %v2649 = vrot.slane %v585, 1
        %v2650 = vrot.slane %v586, 1
        %v2651 = vrot.slane %v587, 1
        %v2652 = vrot.slane %v588, 1
        %v2653 = vrot.slane %v589, 1
        %v2654 = vrot.slane %v590, 1
        %v2655 = vrot.slane %v591, 1
        %v2656 = vrot.slane %v592, 1
        %s2657 = vtos %v2609
        %v2658 = vstv %s2657
        %s2660 = vtos %v2610
        %v2661 = vstv %s2660
        %s2663 = vtos %v2611
        %v2664 = vstv %s2663
        %s2666 = vtos %v2612
        %v2667 = vstv %s2666
        %s2669 = vtos %v2613
        %v2670 = vstv %s2669
        %s2672 = vtos %v2614
        %v2673 = vstv %s2672
        %s2675 = vtos %v2615
        %v2676 = vstv %s2675
        %s2678 = vtos %v2616
        %v2679 = vstv %s2678
        %s2681 = vtos %v2617
        %v2682 = vstv %s2681
        %s2684 = vtos %v2618
        %v2685 = vstv %s2684
        %s2687 = vtos %v2619
        %v2688 = vstv %s2687
        %s2690 = vtos %v2620
        %v2691 = vstv %s2690
        %s2693 = vtos %v2621
        %v2694 = vstv %s2693
        %s2696 = vtos %v2622
        %v2697 = vstv %s2696
        %s2699 = vtos %v2623
        %v2700 = vstv %s2699
        %s2702 = vtos %v2624
        %v2703 = vstv %s2702
        %s2705 = vtos %v2625
        %v2706 = vstv %s2705
        %s2708 = vtos %v2626
        %v2709 = vstv %s2708
        %s2711 = vtos %v2627
        %v2712 = vstv %s2711
        %s2714 = vtos %v2628
        %v2715 = vstv %s2714
        %s2717 = vtos %v2629
        %v2718 = vstv %s2717
        %s2720 = vtos %v2630
        %v2721 = vstv %s2720
        %s2723 = vtos %v2631
        %v2724 = vstv %s2723
        %s2726 = vtos %v2632
        %v2727 = vstv %s2726
        %s2729 = vtos %v2633
        %v2730 = vstv %s2729
        %s2732 = vtos %v2634
        %v2733 = vstv %s2732
        %s2735 = vtos %v2635
        %v2736 = vstv %s2735
        %s2738 = vtos %v2636
        %v2739 = vstv %s2738
        %s2741 = vtos %v2637
        %v2742 = vstv %s2741
        %s2744 = vtos %v2638
        %v2745 = vstv %s2744
        %s2747 = vtos %v2639
        %v2748 = vstv %s2747
        %s2750 = vtos %v2640
        %v2751 = vstv %s2750
        %s2753 = vtos %v2641
        %v2754 = vstv %s2753
        %s2756 = vtos %v2642
        %v2757 = vstv %s2756
        %s2759 = vtos %v2643
        %v2760 = vstv %s2759
        %s2762 = vtos %v2644
        %v2763 = vstv %s2762
        %s2765 = vtos %v2645
        %v2766 = vstv %s2765
        %s2768 = vtos %v2646
        %v2769 = vstv %s2768
        %s2771 = vtos %v2647
        %v2772 = vstv %s2771
        %s2774 = vtos %v2648
        %v2775 = vstv %s2774
        %s2777 = vtos %v2649
        %v2778 = vstv %s2777
        %s2780 = vtos %v2650
        %v2781 = vstv %s2780
        %s2783 = vtos %v2651
        %v2784 = vstv %s2783
        %s2786 = vtos %v2652
        %v2787 = vstv %s2786
        %s2789 = vtos %v2653
        %v2790 = vstv %s2789
        %s2792 = vtos %v2654
        %v2793 = vstv %s2792
        %s2795 = vtos %v2655
        %v2796 = vstv %s2795
        %s2798 = vtos %v2656
        %v2799 = vstv %s2798
        %v2801 = vmul.f32 %v401, %v2658
        %v2802 = vmul.f32 %v402, %v2658
        %v2803 = vmul.f32 %v403, %v2658
        %v2804 = vmul.f32 %v404, %v2661
        %v2805 = vmul.f32 %v405, %v2661
        %v2806 = vmul.f32 %v406, %v2661
        %v2807 = vmul.f32 %v407, %v2664
        %v2808 = vmul.f32 %v408, %v2664
        %v2809 = vmul.f32 %v409, %v2664
        %v2810 = vmul.f32 %v410, %v2667
        %v2811 = vmul.f32 %v411, %v2667
        %v2812 = vmul.f32 %v412, %v2667
        %v2813 = vmul.f32 %v413, %v2670
        %v2814 = vmul.f32 %v414, %v2670
        %v2815 = vmul.f32 %v415, %v2670
        %v2816 = vmul.f32 %v416, %v2673
        %v2817 = vmul.f32 %v417, %v2673
        %v2818 = vmul.f32 %v418, %v2673
        %v2819 = vmul.f32 %v419, %v2676
        %v2820 = vmul.f32 %v420, %v2676
        %v2821 = vmul.f32 %v421, %v2676
        %v2822 = vmul.f32 %v422, %v2679
        %v2823 = vmul.f32 %v423, %v2679
        %v2824 = vmul.f32 %v424, %v2679
        %v2825 = vmul.f32 %v425, %v2682
        %v2826 = vmul.f32 %v426, %v2682
        %v2827 = vmul.f32 %v427, %v2682
        %v2828 = vmul.f32 %v428, %v2685
        %v2829 = vmul.f32 %v429, %v2685
        %v2830 = vmul.f32 %v430, %v2685
        %v2831 = vmul.f32 %v431, %v2688
        %v2832 = vmul.f32 %v432, %v2688
        %v2833 = vmul.f32 %v433, %v2688
        %v2834 = vmul.f32 %v434, %v2691
        %v2835 = vmul.f32 %v435, %v2691
        %v2836 = vmul.f32 %v436, %v2691
        %v2837 = vmul.f32 %v437, %v2694
        %v2838 = vmul.f32 %v438, %v2694
        %v2839 = vmul.f32 %v439, %v2694
        %v2840 = vmul.f32 %v440, %v2697
        %v2841 = vmul.f32 %v441, %v2697
        %v2842 = vmul.f32 %v442, %v2697
        %v2843 = vmul.f32 %v443, %v2700
        %v2844 = vmul.f32 %v444, %v2700
        %v2845 = vmul.f32 %v445, %v2700
        %v2846 = vmul.f32 %v446, %v2703
        %v2847 = vmul.f32 %v447, %v2703
        %v2848 = vmul.f32 %v448, %v2703
        %v2849 = vmul.f32 %v449, %v2706
        %v2850 = vmul.f32 %v450, %v2706
        %v2851 = vmul.f32 %v451, %v2706
        %v2852 = vmul.f32 %v452, %v2709
        %v2853 = vmul.f32 %v453, %v2709
        %v2854 = vmul.f32 %v454, %v2709
        %v2855 = vmul.f32 %v455, %v2712
        %v2856 = vmul.f32 %v456, %v2712
        %v2857 = vmul.f32 %v457, %v2712
        %v2858 = vmul.f32 %v458, %v2715
        %v2859 = vmul.f32 %v459, %v2715
        %v2860 = vmul.f32 %v460, %v2715
        %v2861 = vmul.f32 %v461, %v2718
        %v2862 = vmul.f32 %v462, %v2718
        %v2863 = vmul.f32 %v463, %v2718
        %v2864 = vmul.f32 %v464, %v2721
        %v2865 = vmul.f32 %v465, %v2721
        %v2866 = vmul.f32 %v466, %v2721
        %v2867 = vmul.f32 %v467, %v2724
        %v2868 = vmul.f32 %v468, %v2724
        %v2869 = vmul.f32 %v469, %v2724
        %v2870 = vmul.f32 %v470, %v2727
        %v2871 = vmul.f32 %v471, %v2727
        %v2872 = vmul.f32 %v472, %v2727
        %v2873 = vmul.f32 %v473, %v2730
        %v2874 = vmul.f32 %v474, %v2730
        %v2875 = vmul.f32 %v475, %v2730
        %v2876 = vmul.f32 %v476, %v2733
        %v2877 = vmul.f32 %v477, %v2733
        %v2878 = vmul.f32 %v478, %v2733
        %v2879 = vmul.f32 %v479, %v2736
        %v2880 = vmul.f32 %v480, %v2736
        %v2881 = vmul.f32 %v481, %v2736
        %v2882 = vmul.f32 %v482, %v2739
        %v2883 = vmul.f32 %v483, %v2739
        %v2884 = vmul.f32 %v484, %v2739
        %v2885 = vmul.f32 %v485, %v2742
        %v2886 = vmul.f32 %v486, %v2742
        %v2887 = vmul.f32 %v487, %v2742
        %v2888 = vmul.f32 %v488, %v2745
        %v2889 = vmul.f32 %v489, %v2745
        %v2890 = vmul.f32 %v490, %v2745
        %v2891 = vmul.f32 %v491, %v2748
        %v2892 = vmul.f32 %v492, %v2748
        %v2893 = vmul.f32 %v493, %v2748
        %v2894 = vmul.f32 %v494, %v2751
        %v2895 = vmul.f32 %v495, %v2751
        %v2896 = vmul.f32 %v496, %v2751
        %v2897 = vmul.f32 %v497, %v2754
        %v2898 = vmul.f32 %v498, %v2754
        %v2899 = vmul.f32 %v499, %v2754
        %v2900 = vmul.f32 %v500, %v2757
        %v2901 = vmul.f32 %v501, %v2757
        %v2902 = vmul.f32 %v502, %v2757
        %v2903 = vmul.f32 %v503, %v2760
        %v2904 = vmul.f32 %v504, %v2760
        %v2905 = vmul.f32 %v505, %v2760
        %v2906 = vmul.f32 %v506, %v2763
        %v2907 = vmul.f32 %v507, %v2763
        %v2908 = vmul.f32 %v508, %v2763
        %v2909 = vmul.f32 %v509, %v2766
        %v2910 = vmul.f32 %v510, %v2766
        %v2911 = vmul.f32 %v511, %v2766
        %v2912 = vmul.f32 %v512, %v2769
        %v2913 = vmul.f32 %v513, %v2769
        %v2914 = vmul.f32 %v514, %v2769
        %v2915 = vmul.f32 %v515, %v2772
        %v2916 = vmul.f32 %v516, %v2772
        %v2917 = vmul.f32 %v517, %v2772
        %v2918 = vmul.f32 %v518, %v2775
        %v2919 = vmul.f32 %v519, %v2775
        %v2920 = vmul.f32 %v520, %v2775
        %v2921 = vmul.f32 %v521, %v2778
        %v2922 = vmul.f32 %v522, %v2778
        %v2923 = vmul.f32 %v523, %v2778
        %v2924 = vmul.f32 %v524, %v2781
        %v2925 = vmul.f32 %v525, %v2781
        %v2926 = vmul.f32 %v526, %v2781
        %v2927 = vmul.f32 %v527, %v2784
        %v2928 = vmul.f32 %v528, %v2784
        %v2929 = vmul.f32 %v529, %v2784
        %v2930 = vmul.f32 %v530, %v2787
        %v2931 = vmul.f32 %v531, %v2787
        %v2932 = vmul.f32 %v532, %v2787
        %v2933 = vmul.f32 %v533, %v2790
        %v2934 = vmul.f32 %v534, %v2790
        %v2935 = vmul.f32 %v535, %v2790
        %v2936 = vmul.f32 %v536, %v2793
        %v2937 = vmul.f32 %v537, %v2793
        %v2938 = vmul.f32 %v538, %v2793
        %v2939 = vmul.f32 %v539, %v2796
        %v2940 = vmul.f32 %v540, %v2796
        %v2941 = vmul.f32 %v541, %v2796
        %v2942 = vmul.f32 %v542, %v2799
        %v2943 = vmul.f32 %v543, %v2799
        %v2944 = vmul.f32 %v544, %v2799
        %vm3089 = vcmask 1046528
        %v3090 = vrot.slane %v2801, 1
        %v3091 = vrot.slane %v2802, 1
        %v3092 = vsel %vm3089, %v3090, %v3091
        %v3093 = vrot.slane %v2803, 1
        %v3094 = vsel %vm3089, %v3091, %v3093
        %v3095 = vrot.slane %v2804, 1
        %v3096 = vrot.slane %v2805, 1
        %v3097 = vsel %vm3089, %v3095, %v3096
        %v3098 = vrot.slane %v2806, 1
        %v3099 = vsel %vm3089, %v3096, %v3098
        %v3100 = vrot.slane %v2807, 1
        %v3101 = vrot.slane %v2808, 1
        %v3102 = vsel %vm3089, %v3100, %v3101
        %v3103 = vrot.slane %v2809, 1
        %v3104 = vsel %vm3089, %v3101, %v3103
        %v3105 = vrot.slane %v2810, 1
        %v3106 = vrot.slane %v2811, 1
        %v3107 = vsel %vm3089, %v3105, %v3106
        %v3108 = vrot.slane %v2812, 1
        %v3109 = vsel %vm3089, %v3106, %v3108
        %v3110 = vrot.slane %v2813, 1
        %v3111 = vrot.slane %v2814, 1
        %v3112 = vsel %vm3089, %v3110, %v3111
        %v3113 = vrot.slane %v2815, 1
        %v3114 = vsel %vm3089, %v3111, %v3113
        %v3115 = vrot.slane %v2816, 1
        %v3116 = vrot.slane %v2817, 1
        %v3117 = vsel %vm3089, %v3115, %v3116
        %v3118 = vrot.slane %v2818, 1
        %v3119 = vsel %vm3089, %v3116, %v3118
        %v3120 = vrot.slane %v2819, 1
        %v3121 = vrot.slane %v2820, 1
        %v3122 = vsel %vm3089, %v3120, %v3121
        %v3123 = vrot.slane %v2821, 1
        %v3124 = vsel %vm3089, %v3121, %v3123
        %v3125 = vrot.slane %v2822, 1
        %v3126 = vrot.slane %v2823, 1
        %v3127 = vsel %vm3089, %v3125, %v3126
        %v3128 = vrot.slane %v2824, 1
        %v3129 = vsel %vm3089, %v3126, %v3128
        %v3130 = vrot.slane %v2825, 1
        %v3131 = vrot.slane %v2826, 1
        %v3132 = vsel %vm3089, %v3130, %v3131
        %v3133 = vrot.slane %v2827, 1
        %v3134 = vsel %vm3089, %v3131, %v3133
        %v3135 = vrot.slane %v2828, 1
        %v3136 = vrot.slane %v2829, 1
        %v3137 = vsel %vm3089, %v3135, %v3136
        %v3138 = vrot.slane %v2830, 1
        %v3139 = vsel %vm3089, %v3136, %v3138
        %v3140 = vrot.slane %v2831, 1
        %v3141 = vrot.slane %v2832, 1
        %v3142 = vsel %vm3089, %v3140, %v3141
        %v3143 = vrot.slane %v2833, 1
        %v3144 = vsel %vm3089, %v3141, %v3143
        %v3145 = vrot.slane %v2834, 1
        %v3146 = vrot.slane %v2835, 1
        %v3147 = vsel %vm3089, %v3145, %v3146
        %v3148 = vrot.slane %v2836, 1
        %v3149 = vsel %vm3089, %v3146, %v3148
        %v3150 = vrot.slane %v2837, 1
        %v3151 = vrot.slane %v2838, 1
        %v3152 = vsel %vm3089, %v3150, %v3151
        %v3153 = vrot.slane %v2839, 1
        %v3154 = vsel %vm3089, %v3151, %v3153
        %v3155 = vrot.slane %v2840, 1
        %v3156 = vrot.slane %v2841, 1
        %v3157 = vsel %vm3089, %v3155, %v3156
        %v3158 = vrot.slane %v2842, 1
        %v3159 = vsel %vm3089, %v3156, %v3158
        %v3160 = vrot.slane %v2843, 1
        %v3161 = vrot.slane %v2844, 1
        %v3162 = vsel %vm3089, %v3160, %v3161
        %v3163 = vrot.slane %v2845, 1
        %v3164 = vsel %vm3089, %v3161, %v3163
        %v3165 = vrot.slane %v2846, 1
        %v3166 = vrot.slane %v2847, 1
        %v3167 = vsel %vm3089, %v3165, %v3166
        %v3168 = vrot.slane %v2848, 1
        %v3169 = vsel %vm3089, %v3166, %v3168
        %v3170 = vrot.slane %v2849, 1
        %v3171 = vrot.slane %v2850, 1
        %v3172 = vsel %vm3089, %v3170, %v3171
        %v3173 = vrot.slane %v2851, 1
        %v3174 = vsel %vm3089, %v3171, %v3173
        %v3175 = vrot.slane %v2852, 1
        %v3176 = vrot.slane %v2853, 1
        %v3177 = vsel %vm3089, %v3175, %v3176
        %v3178 = vrot.slane %v2854, 1
        %v3179 = vsel %vm3089, %v3176, %v3178
        %v3180 = vrot.slane %v2855, 1
        %v3181 = vrot.slane %v2856, 1
        %v3182 = vsel %vm3089, %v3180, %v3181
        %v3183 = vrot.slane %v2857, 1
        %v3184 = vsel %vm3089, %v3181, %v3183
        %v3185 = vrot.slane %v2858, 1
        %v3186 = vrot.slane %v2859, 1
        %v3187 = vsel %vm3089, %v3185, %v3186
        %v3188 = vrot.slane %v2860, 1
        %v3189 = vsel %vm3089, %v3186, %v3188
        %v3190 = vrot.slane %v2861, 1
        %v3191 = vrot.slane %v2862, 1
        %v3192 = vsel %vm3089, %v3190, %v3191
        %v3193 = vrot.slane %v2863, 1
        %v3194 = vsel %vm3089, %v3191, %v3193
        %v3195 = vrot.slane %v2864, 1
        %v3196 = vrot.slane %v2865, 1
        %v3197 = vsel %vm3089, %v3195, %v3196
        %v3198 = vrot.slane %v2866, 1
        %v3199 = vsel %vm3089, %v3196, %v3198
        %v3200 = vrot.slane %v2867, 1
        %v3201 = vrot.slane %v2868, 1
        %v3202 = vsel %vm3089, %v3200, %v3201
        %v3203 = vrot.slane %v2869, 1
        %v3204 = vsel %vm3089, %v3201, %v3203
        %v3205 = vrot.slane %v2870, 1
        %v3206 = vrot.slane %v2871, 1
        %v3207 = vsel %vm3089, %v3205, %v3206
        %v3208 = vrot.slane %v2872, 1
        %v3209 = vsel %vm3089, %v3206, %v3208
        %v3210 = vrot.slane %v2873, 1
        %v3211 = vrot.slane %v2874, 1
        %v3212 = vsel %vm3089, %v3210, %v3211
        %v3213 = vrot.slane %v2875, 1
        %v3214 = vsel %vm3089, %v3211, %v3213
        %v3215 = vrot.slane %v2876, 1
        %v3216 = vrot.slane %v2877, 1
        %v3217 = vsel %vm3089, %v3215, %v3216
        %v3218 = vrot.slane %v2878, 1
        %v3219 = vsel %vm3089, %v3216, %v3218
        %v3220 = vrot.slane %v2879, 1
        %v3221 = vrot.slane %v2880, 1
        %v3222 = vsel %vm3089, %v3220, %v3221
        %v3223 = vrot.slane %v2881, 1
        %v3224 = vsel %vm3089, %v3221, %v3223
        %v3225 = vrot.slane %v2882, 1
        %v3226 = vrot.slane %v2883, 1
        %v3227 = vsel %vm3089, %v3225, %v3226
        %v3228 = vrot.slane %v2884, 1
        %v3229 = vsel %vm3089, %v3226, %v3228
        %v3230 = vrot.slane %v2885, 1
        %v3231 = vrot.slane %v2886, 1
        %v3232 = vsel %vm3089, %v3230, %v3231
        %v3233 = vrot.slane %v2887, 1
        %v3234 = vsel %vm3089, %v3231, %v3233
        %v3235 = vrot.slane %v2888, 1
        %v3236 = vrot.slane %v2889, 1
        %v3237 = vsel %vm3089, %v3235, %v3236
        %v3238 = vrot.slane %v2890, 1
        %v3239 = vsel %vm3089, %v3236, %v3238
        %v3240 = vrot.slane %v2891, 1
        %v3241 = vrot.slane %v2892, 1
        %v3242 = vsel %vm3089, %v3240, %v3241
        %v3243 = vrot.slane %v2893, 1
        %v3244 = vsel %vm3089, %v3241, %v3243
        %v3245 = vrot.slane %v2894, 1
        %v3246 = vrot.slane %v2895, 1
        %v3247 = vsel %vm3089, %v3245, %v3246
        %v3248 = vrot.slane %v2896, 1
        %v3249 = vsel %vm3089, %v3246, %v3248
        %v3250 = vrot.slane %v2897, 1
        %v3251 = vrot.slane %v2898, 1
        %v3252 = vsel %vm3089, %v3250, %v3251
        %v3253 = vrot.slane %v2899, 1
        %v3254 = vsel %vm3089, %v3251, %v3253
        %v3255 = vrot.slane %v2900, 1
        %v3256 = vrot.slane %v2901, 1
        %v3257 = vsel %vm3089, %v3255, %v3256
        %v3258 = vrot.slane %v2902, 1
        %v3259 = vsel %vm3089, %v3256, %v3258
        %v3260 = vrot.slane %v2903, 1
        %v3261 = vrot.slane %v2904, 1
        %v3262 = vsel %vm3089, %v3260, %v3261
        %v3263 = vrot.slane %v2905, 1
        %v3264 = vsel %vm3089, %v3261, %v3263
        %v3265 = vrot.slane %v2906, 1
        %v3266 = vrot.slane %v2907, 1
        %v3267 = vsel %vm3089, %v3265, %v3266
        %v3268 = vrot.slane %v2908, 1
        %v3269 = vsel %vm3089, %v3266, %v3268
        %v3270 = vrot.slane %v2909, 1
        %v3271 = vrot.slane %v2910, 1
        %v3272 = vsel %vm3089, %v3270, %v3271
        %v3273 = vrot.slane %v2911, 1
        %v3274 = vsel %vm3089, %v3271, %v3273
        %v3275 = vrot.slane %v2912, 1
        %v3276 = vrot.slane %v2913, 1
        %v3277 = vsel %vm3089, %v3275, %v3276
        %v3278 = vrot.slane %v2914, 1
        %v3279 = vsel %vm3089, %v3276, %v3278
        %v3280 = vrot.slane %v2915, 1
        %v3281 = vrot.slane %v2916, 1
        %v3282 = vsel %vm3089, %v3280, %v3281
        %v3283 = vrot.slane %v2917, 1
        %v3284 = vsel %vm3089, %v3281, %v3283
        %v3285 = vrot.slane %v2918, 1
        %v3286 = vrot.slane %v2919, 1
        %v3287 = vsel %vm3089, %v3285, %v3286
        %v3288 = vrot.slane %v2920, 1
        %v3289 = vsel %vm3089, %v3286, %v3288
        %v3290 = vrot.slane %v2921, 1
        %v3291 = vrot.slane %v2922, 1
        %v3292 = vsel %vm3089, %v3290, %v3291
        %v3293 = vrot.slane %v2923, 1
        %v3294 = vsel %vm3089, %v3291, %v3293
        %v3295 = vrot.slane %v2924, 1
        %v3296 = vrot.slane %v2925, 1
        %v3297 = vsel %vm3089, %v3295, %v3296
        %v3298 = vrot.slane %v2926, 1
        %v3299 = vsel %vm3089, %v3296, %v3298
        %v3300 = vrot.slane %v2927, 1
        %v3301 = vrot.slane %v2928, 1
        %v3302 = vsel %vm3089, %v3300, %v3301
        %v3303 = vrot.slane %v2929, 1
        %v3304 = vsel %vm3089, %v3301, %v3303
        %v3305 = vrot.slane %v2930, 1
        %v3306 = vrot.slane %v2931, 1
        %v3307 = vsel %vm3089, %v3305, %v3306
        %v3308 = vrot.slane %v2932, 1
        %v3309 = vsel %vm3089, %v3306, %v3308
        %v3310 = vrot.slane %v2933, 1
        %v3311 = vrot.slane %v2934, 1
        %v3312 = vsel %vm3089, %v3310, %v3311
        %v3313 = vrot.slane %v2935, 1
        %v3314 = vsel %vm3089, %v3311, %v3313
        %v3315 = vrot.slane %v2936, 1
        %v3316 = vrot.slane %v2937, 1
        %v3317 = vsel %vm3089, %v3315, %v3316
        %v3318 = vrot.slane %v2938, 1
        %v3319 = vsel %vm3089, %v3316, %v3318
        %v3320 = vrot.slane %v2939, 1
        %v3321 = vrot.slane %v2940, 1
        %v3322 = vsel %vm3089, %v3320, %v3321
        %v3323 = vrot.slane %v2941, 1
        %v3324 = vsel %vm3089, %v3321, %v3323
        %v3325 = vrot.slane %v2942, 1
        %v3326 = vrot.slane %v2943, 1
        %v3327 = vsel %vm3089, %v3325, %v3326
        %v3328 = vrot.slane %v2944, 1
        %v3329 = vsel %vm3089, %v3326, %v3328
        %v3426 = vadd.f32 %v2513, %v3092
        %v3427 = vadd.f32 %v2514, %v3094
        %v3428 = vadd.f32 %v2515, %v3097
        %v3429 = vadd.f32 %v2516, %v3099
        %v3430 = vadd.f32 %v2517, %v3102
        %v3431 = vadd.f32 %v2518, %v3104
        %v3432 = vadd.f32 %v2519, %v3107
        %v3433 = vadd.f32 %v2520, %v3109
        %v3434 = vadd.f32 %v2521, %v3112
        %v3435 = vadd.f32 %v2522, %v3114
        %v3436 = vadd.f32 %v2523, %v3117
        %v3437 = vadd.f32 %v2524, %v3119
        %v3438 = vadd.f32 %v2525, %v3122
        %v3439 = vadd.f32 %v2526, %v3124
        %v3440 = vadd.f32 %v2527, %v3127
        %v3441 = vadd.f32 %v2528, %v3129
        %v3442 = vadd.f32 %v2529, %v3132
        %v3443 = vadd.f32 %v2530, %v3134
        %v3444 = vadd.f32 %v2531, %v3137
        %v3445 = vadd.f32 %v2532, %v3139
        %v3446 = vadd.f32 %v2533, %v3142
        %v3447 = vadd.f32 %v2534, %v3144
        %v3448 = vadd.f32 %v2535, %v3147
        %v3449 = vadd.f32 %v2536, %v3149
        %v3450 = vadd.f32 %v2537, %v3152
        %v3451 = vadd.f32 %v2538, %v3154
        %v3452 = vadd.f32 %v2539, %v3157
        %v3453 = vadd.f32 %v2540, %v3159
        %v3454 = vadd.f32 %v2541, %v3162
        %v3455 = vadd.f32 %v2542, %v3164
        %v3456 = vadd.f32 %v2543, %v3167
        %v3457 = vadd.f32 %v2544, %v3169
        %v3458 = vadd.f32 %v2545, %v3172
        %v3459 = vadd.f32 %v2546, %v3174
        %v3460 = vadd.f32 %v2547, %v3177
        %v3461 = vadd.f32 %v2548, %v3179
        %v3462 = vadd.f32 %v2549, %v3182
        %v3463 = vadd.f32 %v2550, %v3184
        %v3464 = vadd.f32 %v2551, %v3187
        %v3465 = vadd.f32 %v2552, %v3189
        %v3466 = vadd.f32 %v2553, %v3192
        %v3467 = vadd.f32 %v2554, %v3194
        %v3468 = vadd.f32 %v2555, %v3197
        %v3469 = vadd.f32 %v2556, %v3199
        %v3470 = vadd.f32 %v2557, %v3202
        %v3471 = vadd.f32 %v2558, %v3204
        %v3472 = vadd.f32 %v2559, %v3207
        %v3473 = vadd.f32 %v2560, %v3209
        %v3474 = vadd.f32 %v2561, %v3212
        %v3475 = vadd.f32 %v2562, %v3214
        %v3476 = vadd.f32 %v2563, %v3217
        %v3477 = vadd.f32 %v2564, %v3219
        %v3478 = vadd.f32 %v2565, %v3222
        %v3479 = vadd.f32 %v2566, %v3224
        %v3480 = vadd.f32 %v2567, %v3227
        %v3481 = vadd.f32 %v2568, %v3229
        %v3482 = vadd.f32 %v2569, %v3232
        %v3483 = vadd.f32 %v2570, %v3234
        %v3484 = vadd.f32 %v2571, %v3237
        %v3485 = vadd.f32 %v2572, %v3239
        %v3486 = vadd.f32 %v2573, %v3242
        %v3487 = vadd.f32 %v2574, %v3244
        %v3488 = vadd.f32 %v2575, %v3247
        %v3489 = vadd.f32 %v2576, %v3249
        %v3490 = vadd.f32 %v2577, %v3252
        %v3491 = vadd.f32 %v2578, %v3254
        %v3492 = vadd.f32 %v2579, %v3257
        %v3493 = vadd.f32 %v2580, %v3259
        %v3494 = vadd.f32 %v2581, %v3262
        %v3495 = vadd.f32 %v2582, %v3264
        %v3496 = vadd.f32 %v2583, %v3267
        %v3497 = vadd.f32 %v2584, %v3269
        %v3498 = vadd.f32 %v2585, %v3272
        %v3499 = vadd.f32 %v2586, %v3274
        %v3500 = vadd.f32 %v2587, %v3277
        %v3501 = vadd.f32 %v2588, %v3279
        %v3502 = vadd.f32 %v2589, %v3282
        %v3503 = vadd.f32 %v2590, %v3284
        %v3504 = vadd.f32 %v2591, %v3287
        %v3505 = vadd.f32 %v2592, %v3289
        %v3506 = vadd.f32 %v2593, %v3292
        %v3507 = vadd.f32 %v2594, %v3294
        %v3508 = vadd.f32 %v2595, %v3297
        %v3509 = vadd.f32 %v2596, %v3299
        %v3510 = vadd.f32 %v2597, %v3302
        %v3511 = vadd.f32 %v2598, %v3304
        %v3512 = vadd.f32 %v2599, %v3307
        %v3513 = vadd.f32 %v2600, %v3309
        %v3514 = vadd.f32 %v2601, %v3312
        %v3515 = vadd.f32 %v2602, %v3314
        %v3516 = vadd.f32 %v2603, %v3317
        %v3517 = vadd.f32 %v2604, %v3319
        %v3518 = vadd.f32 %v2605, %v3322
        %v3519 = vadd.f32 %v2606, %v3324
        %v3520 = vadd.f32 %v2607, %v3327
        %v3521 = vadd.f32 %v2608, %v3329
        %3522 = vrot.lane.b32.xlu0 %v2609, 127
        %v3523 = vpop.permute.xlu0 %3522
        %3524 = vrot.lane.b32.xlu0 %v2610, 127
        %v3525 = vpop.permute.xlu0 %3524
        %3526 = vrot.lane.b32.xlu0 %v2611, 127
        %v3527 = vpop.permute.xlu0 %3526
        %3528 = vrot.lane.b32.xlu0 %v2612, 127
        %v3529 = vpop.permute.xlu0 %3528
        %3530 = vrot.lane.b32.xlu0 %v2613, 127
        %v3531 = vpop.permute.xlu0 %3530
        %3532 = vrot.lane.b32.xlu0 %v2614, 127
        %v3533 = vpop.permute.xlu0 %3532
        %3534 = vrot.lane.b32.xlu0 %v2615, 127
        %v3535 = vpop.permute.xlu0 %3534
        %3536 = vrot.lane.b32.xlu0 %v2616, 127
        %v3537 = vpop.permute.xlu0 %3536
        %3538 = vrot.lane.b32.xlu0 %v2617, 127
        %v3539 = vpop.permute.xlu0 %3538
        %3540 = vrot.lane.b32.xlu0 %v2618, 127
        %v3541 = vpop.permute.xlu0 %3540
        %3542 = vrot.lane.b32.xlu0 %v2619, 127
        %v3543 = vpop.permute.xlu0 %3542
        %3544 = vrot.lane.b32.xlu0 %v2620, 127
        %v3545 = vpop.permute.xlu0 %3544
        %3546 = vrot.lane.b32.xlu0 %v2621, 127
        %v3547 = vpop.permute.xlu0 %3546
        %3548 = vrot.lane.b32.xlu0 %v2622, 127
        %v3549 = vpop.permute.xlu0 %3548
        %3550 = vrot.lane.b32.xlu0 %v2623, 127
        %v3551 = vpop.permute.xlu0 %3550
        %3552 = vrot.lane.b32.xlu0 %v2624, 127
        %v3553 = vpop.permute.xlu0 %3552
        %3554 = vrot.lane.b32.xlu0 %v2625, 127
        %v3555 = vpop.permute.xlu0 %3554
        %3556 = vrot.lane.b32.xlu0 %v2626, 127
        %v3557 = vpop.permute.xlu0 %3556
        %3558 = vrot.lane.b32.xlu0 %v2627, 127
        %v3559 = vpop.permute.xlu0 %3558
        %3560 = vrot.lane.b32.xlu0 %v2628, 127
        %v3561 = vpop.permute.xlu0 %3560
        %3562 = vrot.lane.b32.xlu0 %v2629, 127
        %v3563 = vpop.permute.xlu0 %3562
        %3564 = vrot.lane.b32.xlu0 %v2630, 127
        %v3565 = vpop.permute.xlu0 %3564
        %3566 = vrot.lane.b32.xlu0 %v2631, 127
        %v3567 = vpop.permute.xlu0 %3566
        %3568 = vrot.lane.b32.xlu0 %v2632, 127
        %v3569 = vpop.permute.xlu0 %3568
        %3570 = vrot.lane.b32.xlu0 %v2633, 127
        %v3571 = vpop.permute.xlu0 %3570
        %3572 = vrot.lane.b32.xlu0 %v2634, 127
        %v3573 = vpop.permute.xlu0 %3572
        %3574 = vrot.lane.b32.xlu0 %v2635, 127
        %v3575 = vpop.permute.xlu0 %3574
        %3576 = vrot.lane.b32.xlu0 %v2636, 127
        %v3577 = vpop.permute.xlu0 %3576
        %3578 = vrot.lane.b32.xlu0 %v2637, 127
        %v3579 = vpop.permute.xlu0 %3578
        %3580 = vrot.lane.b32.xlu0 %v2638, 127
        %v3581 = vpop.permute.xlu0 %3580
        %3582 = vrot.lane.b32.xlu0 %v2639, 127
        %v3583 = vpop.permute.xlu0 %3582
        %3584 = vrot.lane.b32.xlu0 %v2640, 127
        %v3585 = vpop.permute.xlu0 %3584
        %3586 = vrot.lane.b32.xlu0 %v2641, 127
        %v3587 = vpop.permute.xlu0 %3586
        %3588 = vrot.lane.b32.xlu0 %v2642, 127
        %v3589 = vpop.permute.xlu0 %3588
        %3590 = vrot.lane.b32.xlu0 %v2643, 127
        %v3591 = vpop.permute.xlu0 %3590
        %3592 = vrot.lane.b32.xlu0 %v2644, 127
        %v3593 = vpop.permute.xlu0 %3592
        %3594 = vrot.lane.b32.xlu0 %v2645, 127
        %v3595 = vpop.permute.xlu0 %3594
        %3596 = vrot.lane.b32.xlu0 %v2646, 127
        %v3597 = vpop.permute.xlu0 %3596
        %3598 = vrot.lane.b32.xlu0 %v2647, 127
        %v3599 = vpop.permute.xlu0 %3598
        %3600 = vrot.lane.b32.xlu0 %v2648, 127
        %v3601 = vpop.permute.xlu0 %3600
        %3602 = vrot.lane.b32.xlu0 %v2649, 127
        %v3603 = vpop.permute.xlu0 %3602
        %3604 = vrot.lane.b32.xlu0 %v2650, 127
        %v3605 = vpop.permute.xlu0 %3604
        %3606 = vrot.lane.b32.xlu0 %v2651, 127
        %v3607 = vpop.permute.xlu0 %3606
        %3608 = vrot.lane.b32.xlu0 %v2652, 127
        %v3609 = vpop.permute.xlu0 %3608
        %3610 = vrot.lane.b32.xlu0 %v2653, 127
        %v3611 = vpop.permute.xlu0 %3610
        %3612 = vrot.lane.b32.xlu0 %v2654, 127
        %v3613 = vpop.permute.xlu0 %3612
        %3614 = vrot.lane.b32.xlu0 %v2655, 127
        %v3615 = vpop.permute.xlu0 %3614
        %3616 = vrot.lane.b32.xlu0 %v2656, 127
        %v3617 = vpop.permute.xlu0 %3616
        %s3618 = vtos %v3523
        %v3619 = vstv %s3618
        %s3621 = vtos %v3525
        %v3622 = vstv %s3621
        %s3624 = vtos %v3527
        %v3625 = vstv %s3624
        %s3627 = vtos %v3529
        %v3628 = vstv %s3627
        %s3630 = vtos %v3531
        %v3631 = vstv %s3630
        %s3633 = vtos %v3533
        %v3634 = vstv %s3633
        %s3636 = vtos %v3535
        %v3637 = vstv %s3636
        %s3639 = vtos %v3537
        %v3640 = vstv %s3639
        %s3642 = vtos %v3539
        %v3643 = vstv %s3642
        %s3645 = vtos %v3541
        %v3646 = vstv %s3645
        %s3648 = vtos %v3543
        %v3649 = vstv %s3648
        %s3651 = vtos %v3545
        %v3652 = vstv %s3651
        %s3654 = vtos %v3547
        %v3655 = vstv %s3654
        %s3657 = vtos %v3549
        %v3658 = vstv %s3657
        %s3660 = vtos %v3551
        %v3661 = vstv %s3660
        %s3663 = vtos %v3553
        %v3664 = vstv %s3663
        %s3666 = vtos %v3555
        %v3667 = vstv %s3666
        %s3669 = vtos %v3557
        %v3670 = vstv %s3669
        %s3672 = vtos %v3559
        %v3673 = vstv %s3672
        %s3675 = vtos %v3561
        %v3676 = vstv %s3675
        %s3678 = vtos %v3563
        %v3679 = vstv %s3678
        %s3681 = vtos %v3565
        %v3682 = vstv %s3681
        %s3684 = vtos %v3567
        %v3685 = vstv %s3684
        %s3687 = vtos %v3569
        %v3688 = vstv %s3687
        %s3690 = vtos %v3571
        %v3691 = vstv %s3690
        %s3693 = vtos %v3573
        %v3694 = vstv %s3693
        %s3696 = vtos %v3575
        %v3697 = vstv %s3696
        %s3699 = vtos %v3577
        %v3700 = vstv %s3699
        %s3702 = vtos %v3579
        %v3703 = vstv %s3702
        %s3705 = vtos %v3581
        %v3706 = vstv %s3705
        %s3708 = vtos %v3583
        %v3709 = vstv %s3708
        %s3711 = vtos %v3585
        %v3712 = vstv %s3711
        %s3714 = vtos %v3587
        %v3715 = vstv %s3714
        %s3717 = vtos %v3589
        %v3718 = vstv %s3717
        %s3720 = vtos %v3591
        %v3721 = vstv %s3720
        %s3723 = vtos %v3593
        %v3724 = vstv %s3723
        %s3726 = vtos %v3595
        %v3727 = vstv %s3726
        %s3729 = vtos %v3597
        %v3730 = vstv %s3729
        %s3732 = vtos %v3599
        %v3733 = vstv %s3732
        %s3735 = vtos %v3601
        %v3736 = vstv %s3735
        %s3738 = vtos %v3603
        %v3739 = vstv %s3738
        %s3741 = vtos %v3605
        %v3742 = vstv %s3741
        %s3744 = vtos %v3607
        %v3745 = vstv %s3744
        %s3747 = vtos %v3609
        %v3748 = vstv %s3747
        %s3750 = vtos %v3611
        %v3751 = vstv %s3750
        %s3753 = vtos %v3613
        %v3754 = vstv %s3753
        %s3756 = vtos %v3615
        %v3757 = vstv %s3756
        %s3759 = vtos %v3617
        %v3760 = vstv %s3759
        %v3762 = vmul.f32 %v401, %v3619
        %v3763 = vmul.f32 %v402, %v3619
        %v3764 = vmul.f32 %v403, %v3619
        %v3765 = vmul.f32 %v404, %v3622
        %v3766 = vmul.f32 %v405, %v3622
        %v3767 = vmul.f32 %v406, %v3622
        %v3768 = vmul.f32 %v407, %v3625
        %v3769 = vmul.f32 %v408, %v3625
        %v3770 = vmul.f32 %v409, %v3625
        %v3771 = vmul.f32 %v410, %v3628
        %v3772 = vmul.f32 %v411, %v3628
        %v3773 = vmul.f32 %v412, %v3628
        %v3774 = vmul.f32 %v413, %v3631
        %v3775 = vmul.f32 %v414, %v3631
        %v3776 = vmul.f32 %v415, %v3631
        %v3777 = vmul.f32 %v416, %v3634
        %v3778 = vmul.f32 %v417, %v3634
        %v3779 = vmul.f32 %v418, %v3634
        %v3780 = vmul.f32 %v419, %v3637
        %v3781 = vmul.f32 %v420, %v3637
        %v3782 = vmul.f32 %v421, %v3637
        %v3783 = vmul.f32 %v422, %v3640
        %v3784 = vmul.f32 %v423, %v3640
        %v3785 = vmul.f32 %v424, %v3640
        %v3786 = vmul.f32 %v425, %v3643
        %v3787 = vmul.f32 %v426, %v3643
        %v3788 = vmul.f32 %v427, %v3643
        %v3789 = vmul.f32 %v428, %v3646
        %v3790 = vmul.f32 %v429, %v3646
        %v3791 = vmul.f32 %v430, %v3646
        %v3792 = vmul.f32 %v431, %v3649
        %v3793 = vmul.f32 %v432, %v3649
        %v3794 = vmul.f32 %v433, %v3649
        %v3795 = vmul.f32 %v434, %v3652
        %v3796 = vmul.f32 %v435, %v3652
        %v3797 = vmul.f32 %v436, %v3652
        %v3798 = vmul.f32 %v437, %v3655
        %v3799 = vmul.f32 %v438, %v3655
        %v3800 = vmul.f32 %v439, %v3655
        %v3801 = vmul.f32 %v440, %v3658
        %v3802 = vmul.f32 %v441, %v3658
        %v3803 = vmul.f32 %v442, %v3658
        %v3804 = vmul.f32 %v443, %v3661
        %v3805 = vmul.f32 %v444, %v3661
        %v3806 = vmul.f32 %v445, %v3661
        %v3807 = vmul.f32 %v446, %v3664
        %v3808 = vmul.f32 %v447, %v3664
        %v3809 = vmul.f32 %v448, %v3664
        %v3810 = vmul.f32 %v449, %v3667
        %v3811 = vmul.f32 %v450, %v3667
        %v3812 = vmul.f32 %v451, %v3667
        %v3813 = vmul.f32 %v452, %v3670
        %v3814 = vmul.f32 %v453, %v3670
        %v3815 = vmul.f32 %v454, %v3670
        %v3816 = vmul.f32 %v455, %v3673
        %v3817 = vmul.f32 %v456, %v3673
        %v3818 = vmul.f32 %v457, %v3673
        %v3819 = vmul.f32 %v458, %v3676
        %v3820 = vmul.f32 %v459, %v3676
        %v3821 = vmul.f32 %v460, %v3676
        %v3822 = vmul.f32 %v461, %v3679
        %v3823 = vmul.f32 %v462, %v3679
        %v3824 = vmul.f32 %v463, %v3679
        %v3825 = vmul.f32 %v464, %v3682
        %v3826 = vmul.f32 %v465, %v3682
        %v3827 = vmul.f32 %v466, %v3682
        %v3828 = vmul.f32 %v467, %v3685
        %v3829 = vmul.f32 %v468, %v3685
        %v3830 = vmul.f32 %v469, %v3685
        %v3831 = vmul.f32 %v470, %v3688
        %v3832 = vmul.f32 %v471, %v3688
        %v3833 = vmul.f32 %v472, %v3688
        %v3834 = vmul.f32 %v473, %v3691
        %v3835 = vmul.f32 %v474, %v3691
        %v3836 = vmul.f32 %v475, %v3691
        %v3837 = vmul.f32 %v476, %v3694
        %v3838 = vmul.f32 %v477, %v3694
        %v3839 = vmul.f32 %v478, %v3694
        %v3840 = vmul.f32 %v479, %v3697
        %v3841 = vmul.f32 %v480, %v3697
        %v3842 = vmul.f32 %v481, %v3697
        %v3843 = vmul.f32 %v482, %v3700
        %v3844 = vmul.f32 %v483, %v3700
        %v3845 = vmul.f32 %v484, %v3700
        %v3846 = vmul.f32 %v485, %v3703
        %v3847 = vmul.f32 %v486, %v3703
        %v3848 = vmul.f32 %v487, %v3703
        %v3849 = vmul.f32 %v488, %v3706
        %v3850 = vmul.f32 %v489, %v3706
        %v3851 = vmul.f32 %v490, %v3706
        %v3852 = vmul.f32 %v491, %v3709
        %v3853 = vmul.f32 %v492, %v3709
        %v3854 = vmul.f32 %v493, %v3709
        %v3855 = vmul.f32 %v494, %v3712
        %v3856 = vmul.f32 %v495, %v3712
        %v3857 = vmul.f32 %v496, %v3712
        %v3858 = vmul.f32 %v497, %v3715
        %v3859 = vmul.f32 %v498, %v3715
        %v3860 = vmul.f32 %v499, %v3715
        %v3861 = vmul.f32 %v500, %v3718
        %v3862 = vmul.f32 %v501, %v3718
        %v3863 = vmul.f32 %v502, %v3718
        %v3864 = vmul.f32 %v503, %v3721
        %v3865 = vmul.f32 %v504, %v3721
        %v3866 = vmul.f32 %v505, %v3721
        %v3867 = vmul.f32 %v506, %v3724
        %v3868 = vmul.f32 %v507, %v3724
        %v3869 = vmul.f32 %v508, %v3724
        %v3870 = vmul.f32 %v509, %v3727
        %v3871 = vmul.f32 %v510, %v3727
        %v3872 = vmul.f32 %v511, %v3727
        %v3873 = vmul.f32 %v512, %v3730
        %v3874 = vmul.f32 %v513, %v3730
        %v3875 = vmul.f32 %v514, %v3730
        %v3876 = vmul.f32 %v515, %v3733
        %v3877 = vmul.f32 %v516, %v3733
        %v3878 = vmul.f32 %v517, %v3733
        %v3879 = vmul.f32 %v518, %v3736
        %v3880 = vmul.f32 %v519, %v3736
        %v3881 = vmul.f32 %v520, %v3736
        %v3882 = vmul.f32 %v521, %v3739
        %v3883 = vmul.f32 %v522, %v3739
        %v3884 = vmul.f32 %v523, %v3739
        %v3885 = vmul.f32 %v524, %v3742
        %v3886 = vmul.f32 %v525, %v3742
        %v3887 = vmul.f32 %v526, %v3742
        %v3888 = vmul.f32 %v527, %v3745
        %v3889 = vmul.f32 %v528, %v3745
        %v3890 = vmul.f32 %v529, %v3745
        %v3891 = vmul.f32 %v530, %v3748
        %v3892 = vmul.f32 %v531, %v3748
        %v3893 = vmul.f32 %v532, %v3748
        %v3894 = vmul.f32 %v533, %v3751
        %v3895 = vmul.f32 %v534, %v3751
        %v3896 = vmul.f32 %v535, %v3751
        %v3897 = vmul.f32 %v536, %v3754
        %v3898 = vmul.f32 %v537, %v3754
        %v3899 = vmul.f32 %v538, %v3754
        %v3900 = vmul.f32 %v539, %v3757
        %v3901 = vmul.f32 %v540, %v3757
        %v3902 = vmul.f32 %v541, %v3757
        %v3903 = vmul.f32 %v542, %v3760
        %v3904 = vmul.f32 %v543, %v3760
        %v3905 = vmul.f32 %v544, %v3760
        %v4050 = vrot.slane %v3762, 1
        %v4051 = vrot.slane %v3763, 1
        %v4052 = vsel %vm3089, %v4050, %v4051
        %v4053 = vrot.slane %v3764, 1
        %v4054 = vsel %vm3089, %v4051, %v4053
        %v4055 = vrot.slane %v3765, 1
        %v4056 = vrot.slane %v3766, 1
        %v4057 = vsel %vm3089, %v4055, %v4056
        %v4058 = vrot.slane %v3767, 1
        %v4059 = vsel %vm3089, %v4056, %v4058
        %v4060 = vrot.slane %v3768, 1
        %v4061 = vrot.slane %v3769, 1
        %v4062 = vsel %vm3089, %v4060, %v4061
        %v4063 = vrot.slane %v3770, 1
        %v4064 = vsel %vm3089, %v4061, %v4063
        %v4065 = vrot.slane %v3771, 1
        %v4066 = vrot.slane %v3772, 1
        %v4067 = vsel %vm3089, %v4065, %v4066
        %v4068 = vrot.slane %v3773, 1
        %v4069 = vsel %vm3089, %v4066, %v4068
        %v4070 = vrot.slane %v3774, 1
        %v4071 = vrot.slane %v3775, 1
        %v4072 = vsel %vm3089, %v4070, %v4071
        %v4073 = vrot.slane %v3776, 1
        %v4074 = vsel %vm3089, %v4071, %v4073
        %v4075 = vrot.slane %v3777, 1
        %v4076 = vrot.slane %v3778, 1
        %v4077 = vsel %vm3089, %v4075, %v4076
        %v4078 = vrot.slane %v3779, 1
        %v4079 = vsel %vm3089, %v4076, %v4078
        %v4080 = vrot.slane %v3780, 1
        %v4081 = vrot.slane %v3781, 1
        %v4082 = vsel %vm3089, %v4080, %v4081
        %v4083 = vrot.slane %v3782, 1
        %v4084 = vsel %vm3089, %v4081, %v4083
        %v4085 = vrot.slane %v3783, 1
        %v4086 = vrot.slane %v3784, 1
        %v4087 = vsel %vm3089, %v4085, %v4086
        %v4088 = vrot.slane %v3785, 1
        %v4089 = vsel %vm3089, %v4086, %v4088
        %v4090 = vrot.slane %v3786, 1
        %v4091 = vrot.slane %v3787, 1
        %v4092 = vsel %vm3089, %v4090, %v4091
        %v4093 = vrot.slane %v3788, 1
        %v4094 = vsel %vm3089, %v4091, %v4093
        %v4095 = vrot.slane %v3789, 1
        %v4096 = vrot.slane %v3790, 1
        %v4097 = vsel %vm3089, %v4095, %v4096
        %v4098 = vrot.slane %v3791, 1
        %v4099 = vsel %vm3089, %v4096, %v4098
        %v4100 = vrot.slane %v3792, 1
        %v4101 = vrot.slane %v3793, 1
        %v4102 = vsel %vm3089, %v4100, %v4101
        %v4103 = vrot.slane %v3794, 1
        %v4104 = vsel %vm3089, %v4101, %v4103
        %v4105 = vrot.slane %v3795, 1
        %v4106 = vrot.slane %v3796, 1
        %v4107 = vsel %vm3089, %v4105, %v4106
        %v4108 = vrot.slane %v3797, 1
        %v4109 = vsel %vm3089, %v4106, %v4108
        %v4110 = vrot.slane %v3798, 1
        %v4111 = vrot.slane %v3799, 1
        %v4112 = vsel %vm3089, %v4110, %v4111
        %v4113 = vrot.slane %v3800, 1
        %v4114 = vsel %vm3089, %v4111, %v4113
        %v4115 = vrot.slane %v3801, 1
        %v4116 = vrot.slane %v3802, 1
        %v4117 = vsel %vm3089, %v4115, %v4116
        %v4118 = vrot.slane %v3803, 1
        %v4119 = vsel %vm3089, %v4116, %v4118
        %v4120 = vrot.slane %v3804, 1
        %v4121 = vrot.slane %v3805, 1
        %v4122 = vsel %vm3089, %v4120, %v4121
        %v4123 = vrot.slane %v3806, 1
        %v4124 = vsel %vm3089, %v4121, %v4123
        %v4125 = vrot.slane %v3807, 1
        %v4126 = vrot.slane %v3808, 1
        %v4127 = vsel %vm3089, %v4125, %v4126
        %v4128 = vrot.slane %v3809, 1
        %v4129 = vsel %vm3089, %v4126, %v4128
        %v4130 = vrot.slane %v3810, 1
        %v4131 = vrot.slane %v3811, 1
        %v4132 = vsel %vm3089, %v4130, %v4131
        %v4133 = vrot.slane %v3812, 1
        %v4134 = vsel %vm3089, %v4131, %v4133
        %v4135 = vrot.slane %v3813, 1
        %v4136 = vrot.slane %v3814, 1
        %v4137 = vsel %vm3089, %v4135, %v4136
        %v4138 = vrot.slane %v3815, 1
        %v4139 = vsel %vm3089, %v4136, %v4138
        %v4140 = vrot.slane %v3816, 1
        %v4141 = vrot.slane %v3817, 1
        %v4142 = vsel %vm3089, %v4140, %v4141
        %v4143 = vrot.slane %v3818, 1
        %v4144 = vsel %vm3089, %v4141, %v4143
        %v4145 = vrot.slane %v3819, 1
        %v4146 = vrot.slane %v3820, 1
        %v4147 = vsel %vm3089, %v4145, %v4146
        %v4148 = vrot.slane %v3821, 1
        %v4149 = vsel %vm3089, %v4146, %v4148
        %v4150 = vrot.slane %v3822, 1
        %v4151 = vrot.slane %v3823, 1
        %v4152 = vsel %vm3089, %v4150, %v4151
        %v4153 = vrot.slane %v3824, 1
        %v4154 = vsel %vm3089, %v4151, %v4153
        %v4155 = vrot.slane %v3825, 1
        %v4156 = vrot.slane %v3826, 1
        %v4157 = vsel %vm3089, %v4155, %v4156
        %v4158 = vrot.slane %v3827, 1
        %v4159 = vsel %vm3089, %v4156, %v4158
        %v4160 = vrot.slane %v3828, 1
        %v4161 = vrot.slane %v3829, 1
        %v4162 = vsel %vm3089, %v4160, %v4161
        %v4163 = vrot.slane %v3830, 1
        %v4164 = vsel %vm3089, %v4161, %v4163
        %v4165 = vrot.slane %v3831, 1
        %v4166 = vrot.slane %v3832, 1
        %v4167 = vsel %vm3089, %v4165, %v4166
        %v4168 = vrot.slane %v3833, 1
        %v4169 = vsel %vm3089, %v4166, %v4168
        %v4170 = vrot.slane %v3834, 1
        %v4171 = vrot.slane %v3835, 1
        %v4172 = vsel %vm3089, %v4170, %v4171
        %v4173 = vrot.slane %v3836, 1
        %v4174 = vsel %vm3089, %v4171, %v4173
        %v4175 = vrot.slane %v3837, 1
        %v4176 = vrot.slane %v3838, 1
        %v4177 = vsel %vm3089, %v4175, %v4176
        %v4178 = vrot.slane %v3839, 1
        %v4179 = vsel %vm3089, %v4176, %v4178
        %v4180 = vrot.slane %v3840, 1
        %v4181 = vrot.slane %v3841, 1
        %v4182 = vsel %vm3089, %v4180, %v4181
        %v4183 = vrot.slane %v3842, 1
        %v4184 = vsel %vm3089, %v4181, %v4183
        %v4185 = vrot.slane %v3843, 1
        %v4186 = vrot.slane %v3844, 1
        %v4187 = vsel %vm3089, %v4185, %v4186
        %v4188 = vrot.slane %v3845, 1
        %v4189 = vsel %vm3089, %v4186, %v4188
        %v4190 = vrot.slane %v3846, 1
        %v4191 = vrot.slane %v3847, 1
        %v4192 = vsel %vm3089, %v4190, %v4191
        %v4193 = vrot.slane %v3848, 1
        %v4194 = vsel %vm3089, %v4191, %v4193
        %v4195 = vrot.slane %v3849, 1
        %v4196 = vrot.slane %v3850, 1
        %v4197 = vsel %vm3089, %v4195, %v4196
        %v4198 = vrot.slane %v3851, 1
        %v4199 = vsel %vm3089, %v4196, %v4198
        %v4200 = vrot.slane %v3852, 1
        %v4201 = vrot.slane %v3853, 1
        %v4202 = vsel %vm3089, %v4200, %v4201
        %v4203 = vrot.slane %v3854, 1
        %v4204 = vsel %vm3089, %v4201, %v4203
        %v4205 = vrot.slane %v3855, 1
        %v4206 = vrot.slane %v3856, 1
        %v4207 = vsel %vm3089, %v4205, %v4206
        %v4208 = vrot.slane %v3857, 1
        %v4209 = vsel %vm3089, %v4206, %v4208
        %v4210 = vrot.slane %v3858, 1
        %v4211 = vrot.slane %v3859, 1
        %v4212 = vsel %vm3089, %v4210, %v4211
        %v4213 = vrot.slane %v3860, 1
        %v4214 = vsel %vm3089, %v4211, %v4213
        %v4215 = vrot.slane %v3861, 1
        %v4216 = vrot.slane %v3862, 1
        %v4217 = vsel %vm3089, %v4215, %v4216
        %v4218 = vrot.slane %v3863, 1
        %v4219 = vsel %vm3089, %v4216, %v4218
        %v4220 = vrot.slane %v3864, 1
        %v4221 = vrot.slane %v3865, 1
        %v4222 = vsel %vm3089, %v4220, %v4221
        %v4223 = vrot.slane %v3866, 1
        %v4224 = vsel %vm3089, %v4221, %v4223
        %v4225 = vrot.slane %v3867, 1
        %v4226 = vrot.slane %v3868, 1
        %v4227 = vsel %vm3089, %v4225, %v4226
        %v4228 = vrot.slane %v3869, 1
        %v4229 = vsel %vm3089, %v4226, %v4228
        %v4230 = vrot.slane %v3870, 1
        %v4231 = vrot.slane %v3871, 1
        %v4232 = vsel %vm3089, %v4230, %v4231
        %v4233 = vrot.slane %v3872, 1
        %v4234 = vsel %vm3089, %v4231, %v4233
        %v4235 = vrot.slane %v3873, 1
        %v4236 = vrot.slane %v3874, 1
        %v4237 = vsel %vm3089, %v4235, %v4236
        %v4238 = vrot.slane %v3875, 1
        %v4239 = vsel %vm3089, %v4236, %v4238
        %v4240 = vrot.slane %v3876, 1
        %v4241 = vrot.slane %v3877, 1
        %v4242 = vsel %vm3089, %v4240, %v4241
        %v4243 = vrot.slane %v3878, 1
        %v4244 = vsel %vm3089, %v4241, %v4243
        %v4245 = vrot.slane %v3879, 1
        %v4246 = vrot.slane %v3880, 1
        %v4247 = vsel %vm3089, %v4245, %v4246
        %v4248 = vrot.slane %v3881, 1
        %v4249 = vsel %vm3089, %v4246, %v4248
        %v4250 = vrot.slane %v3882, 1
        %v4251 = vrot.slane %v3883, 1
        %v4252 = vsel %vm3089, %v4250, %v4251
        %v4253 = vrot.slane %v3884, 1
        %v4254 = vsel %vm3089, %v4251, %v4253
        %v4255 = vrot.slane %v3885, 1
        %v4256 = vrot.slane %v3886, 1
        %v4257 = vsel %vm3089, %v4255, %v4256
        %v4258 = vrot.slane %v3887, 1
        %v4259 = vsel %vm3089, %v4256, %v4258
        %v4260 = vrot.slane %v3888, 1
        %v4261 = vrot.slane %v3889, 1
        %v4262 = vsel %vm3089, %v4260, %v4261
        %v4263 = vrot.slane %v3890, 1
        %v4264 = vsel %vm3089, %v4261, %v4263
        %v4265 = vrot.slane %v3891, 1
        %v4266 = vrot.slane %v3892, 1
        %v4267 = vsel %vm3089, %v4265, %v4266
        %v4268 = vrot.slane %v3893, 1
        %v4269 = vsel %vm3089, %v4266, %v4268
        %v4270 = vrot.slane %v3894, 1
        %v4271 = vrot.slane %v3895, 1
        %v4272 = vsel %vm3089, %v4270, %v4271
        %v4273 = vrot.slane %v3896, 1
        %v4274 = vsel %vm3089, %v4271, %v4273
        %v4275 = vrot.slane %v3897, 1
        %v4276 = vrot.slane %v3898, 1
        %v4277 = vsel %vm3089, %v4275, %v4276
        %v4278 = vrot.slane %v3899, 1
        %v4279 = vsel %vm3089, %v4276, %v4278
        %v4280 = vrot.slane %v3900, 1
        %v4281 = vrot.slane %v3901, 1
        %v4282 = vsel %vm3089, %v4280, %v4281
        %v4283 = vrot.slane %v3902, 1
        %v4284 = vsel %vm3089, %v4281, %v4283
        %v4285 = vrot.slane %v3903, 1
        %v4286 = vrot.slane %v3904, 1
        %v4287 = vsel %vm3089, %v4285, %v4286
        %v4288 = vrot.slane %v3905, 1
        %v4289 = vsel %vm3089, %v4286, %v4288
        %4290 = vrot.lane.b32.xlu0 %v4052, 127
        %v4291 = vpop.permute.xlu0 %4290
        %4292 = vrot.lane.b32.xlu0 %v4054, 127
        %v4293 = vpop.permute.xlu0 %4292
        %4294 = vrot.lane.b32.xlu0 %v4057, 127
        %v4295 = vpop.permute.xlu0 %4294
        %4296 = vrot.lane.b32.xlu0 %v4059, 127
        %v4297 = vpop.permute.xlu0 %4296
        %4298 = vrot.lane.b32.xlu0 %v4062, 127
        %v4299 = vpop.permute.xlu0 %4298
        %4300 = vrot.lane.b32.xlu0 %v4064, 127
        %v4301 = vpop.permute.xlu0 %4300
        %4302 = vrot.lane.b32.xlu0 %v4067, 127
        %v4303 = vpop.permute.xlu0 %4302
        %4304 = vrot.lane.b32.xlu0 %v4069, 127
        %v4305 = vpop.permute.xlu0 %4304
        %4306 = vrot.lane.b32.xlu0 %v4072, 127
        %v4307 = vpop.permute.xlu0 %4306
        %4308 = vrot.lane.b32.xlu0 %v4074, 127
        %v4309 = vpop.permute.xlu0 %4308
        %4310 = vrot.lane.b32.xlu0 %v4077, 127
        %v4311 = vpop.permute.xlu0 %4310
        %4312 = vrot.lane.b32.xlu0 %v4079, 127
        %v4313 = vpop.permute.xlu0 %4312
        %4314 = vrot.lane.b32.xlu0 %v4082, 127
        %v4315 = vpop.permute.xlu0 %4314
        %4316 = vrot.lane.b32.xlu0 %v4084, 127
        %v4317 = vpop.permute.xlu0 %4316
        %4318 = vrot.lane.b32.xlu0 %v4087, 127
        %v4319 = vpop.permute.xlu0 %4318
        %4320 = vrot.lane.b32.xlu0 %v4089, 127
        %v4321 = vpop.permute.xlu0 %4320
        %4322 = vrot.lane.b32.xlu0 %v4092, 127
        %v4323 = vpop.permute.xlu0 %4322
        %4324 = vrot.lane.b32.xlu0 %v4094, 127
        %v4325 = vpop.permute.xlu0 %4324
        %4326 = vrot.lane.b32.xlu0 %v4097, 127
        %v4327 = vpop.permute.xlu0 %4326
        %4328 = vrot.lane.b32.xlu0 %v4099, 127
        %v4329 = vpop.permute.xlu0 %4328
        %4330 = vrot.lane.b32.xlu0 %v4102, 127
        %v4331 = vpop.permute.xlu0 %4330
        %4332 = vrot.lane.b32.xlu0 %v4104, 127
        %v4333 = vpop.permute.xlu0 %4332
        %4334 = vrot.lane.b32.xlu0 %v4107, 127
        %v4335 = vpop.permute.xlu0 %4334
        %4336 = vrot.lane.b32.xlu0 %v4109, 127
        %v4337 = vpop.permute.xlu0 %4336
        %4338 = vrot.lane.b32.xlu0 %v4112, 127
        %v4339 = vpop.permute.xlu0 %4338
        %4340 = vrot.lane.b32.xlu0 %v4114, 127
        %v4341 = vpop.permute.xlu0 %4340
        %4342 = vrot.lane.b32.xlu0 %v4117, 127
        %v4343 = vpop.permute.xlu0 %4342
        %4344 = vrot.lane.b32.xlu0 %v4119, 127
        %v4345 = vpop.permute.xlu0 %4344
        %4346 = vrot.lane.b32.xlu0 %v4122, 127
        %v4347 = vpop.permute.xlu0 %4346
        %4348 = vrot.lane.b32.xlu0 %v4124, 127
        %v4349 = vpop.permute.xlu0 %4348
        %4350 = vrot.lane.b32.xlu0 %v4127, 127
        %v4351 = vpop.permute.xlu0 %4350
        %4352 = vrot.lane.b32.xlu0 %v4129, 127
        %v4353 = vpop.permute.xlu0 %4352
        %4354 = vrot.lane.b32.xlu0 %v4132, 127
        %v4355 = vpop.permute.xlu0 %4354
        %4356 = vrot.lane.b32.xlu0 %v4134, 127
        %v4357 = vpop.permute.xlu0 %4356
        %4358 = vrot.lane.b32.xlu0 %v4137, 127
        %v4359 = vpop.permute.xlu0 %4358
        %4360 = vrot.lane.b32.xlu0 %v4139, 127
        %v4361 = vpop.permute.xlu0 %4360
        %4362 = vrot.lane.b32.xlu0 %v4142, 127
        %v4363 = vpop.permute.xlu0 %4362
        %4364 = vrot.lane.b32.xlu0 %v4144, 127
        %v4365 = vpop.permute.xlu0 %4364
        %4366 = vrot.lane.b32.xlu0 %v4147, 127
        %v4367 = vpop.permute.xlu0 %4366
        %4368 = vrot.lane.b32.xlu0 %v4149, 127
        %v4369 = vpop.permute.xlu0 %4368
        %4370 = vrot.lane.b32.xlu0 %v4152, 127
        %v4371 = vpop.permute.xlu0 %4370
        %4372 = vrot.lane.b32.xlu0 %v4154, 127
        %v4373 = vpop.permute.xlu0 %4372
        %4374 = vrot.lane.b32.xlu0 %v4157, 127
        %v4375 = vpop.permute.xlu0 %4374
        %4376 = vrot.lane.b32.xlu0 %v4159, 127
        %v4377 = vpop.permute.xlu0 %4376
        %4378 = vrot.lane.b32.xlu0 %v4162, 127
        %v4379 = vpop.permute.xlu0 %4378
        %4380 = vrot.lane.b32.xlu0 %v4164, 127
        %v4381 = vpop.permute.xlu0 %4380
        %4382 = vrot.lane.b32.xlu0 %v4167, 127
        %v4383 = vpop.permute.xlu0 %4382
        %4384 = vrot.lane.b32.xlu0 %v4169, 127
        %v4385 = vpop.permute.xlu0 %4384
        %4386 = vrot.lane.b32.xlu0 %v4172, 127
        %v4387 = vpop.permute.xlu0 %4386
        %4388 = vrot.lane.b32.xlu0 %v4174, 127
        %v4389 = vpop.permute.xlu0 %4388
        %4390 = vrot.lane.b32.xlu0 %v4177, 127
        %v4391 = vpop.permute.xlu0 %4390
        %4392 = vrot.lane.b32.xlu0 %v4179, 127
        %v4393 = vpop.permute.xlu0 %4392
        %4394 = vrot.lane.b32.xlu0 %v4182, 127
        %v4395 = vpop.permute.xlu0 %4394
        %4396 = vrot.lane.b32.xlu0 %v4184, 127
        %v4397 = vpop.permute.xlu0 %4396
        %4398 = vrot.lane.b32.xlu0 %v4187, 127
        %v4399 = vpop.permute.xlu0 %4398
        %4400 = vrot.lane.b32.xlu0 %v4189, 127
        %v4401 = vpop.permute.xlu0 %4400
        %4402 = vrot.lane.b32.xlu0 %v4192, 127
        %v4403 = vpop.permute.xlu0 %4402
        %4404 = vrot.lane.b32.xlu0 %v4194, 127
        %v4405 = vpop.permute.xlu0 %4404
        %4406 = vrot.lane.b32.xlu0 %v4197, 127
        %v4407 = vpop.permute.xlu0 %4406
        %4408 = vrot.lane.b32.xlu0 %v4199, 127
        %v4409 = vpop.permute.xlu0 %4408
        %4410 = vrot.lane.b32.xlu0 %v4202, 127
        %v4411 = vpop.permute.xlu0 %4410
        %4412 = vrot.lane.b32.xlu0 %v4204, 127
        %v4413 = vpop.permute.xlu0 %4412
        %4414 = vrot.lane.b32.xlu0 %v4207, 127
        %v4415 = vpop.permute.xlu0 %4414
        %4416 = vrot.lane.b32.xlu0 %v4209, 127
        %v4417 = vpop.permute.xlu0 %4416
        %4418 = vrot.lane.b32.xlu0 %v4212, 127
        %v4419 = vpop.permute.xlu0 %4418
        %4420 = vrot.lane.b32.xlu0 %v4214, 127
        %v4421 = vpop.permute.xlu0 %4420
        %4422 = vrot.lane.b32.xlu0 %v4217, 127
        %v4423 = vpop.permute.xlu0 %4422
        %4424 = vrot.lane.b32.xlu0 %v4219, 127
        %v4425 = vpop.permute.xlu0 %4424
        %4426 = vrot.lane.b32.xlu0 %v4222, 127
        %v4427 = vpop.permute.xlu0 %4426
        %4428 = vrot.lane.b32.xlu0 %v4224, 127
        %v4429 = vpop.permute.xlu0 %4428
        %4430 = vrot.lane.b32.xlu0 %v4227, 127
        %v4431 = vpop.permute.xlu0 %4430
        %4432 = vrot.lane.b32.xlu0 %v4229, 127
        %v4433 = vpop.permute.xlu0 %4432
        %4434 = vrot.lane.b32.xlu0 %v4232, 127
        %v4435 = vpop.permute.xlu0 %4434
        %4436 = vrot.lane.b32.xlu0 %v4234, 127
        %v4437 = vpop.permute.xlu0 %4436
        %4438 = vrot.lane.b32.xlu0 %v4237, 127
        %v4439 = vpop.permute.xlu0 %4438
        %4440 = vrot.lane.b32.xlu0 %v4239, 127
        %v4441 = vpop.permute.xlu0 %4440
        %4442 = vrot.lane.b32.xlu0 %v4242, 127
        %v4443 = vpop.permute.xlu0 %4442
        %4444 = vrot.lane.b32.xlu0 %v4244, 127
        %v4445 = vpop.permute.xlu0 %4444
        %4446 = vrot.lane.b32.xlu0 %v4247, 127
        %v4447 = vpop.permute.xlu0 %4446
        %4448 = vrot.lane.b32.xlu0 %v4249, 127
        %v4449 = vpop.permute.xlu0 %4448
        %4450 = vrot.lane.b32.xlu0 %v4252, 127
        %v4451 = vpop.permute.xlu0 %4450
        %4452 = vrot.lane.b32.xlu0 %v4254, 127
        %v4453 = vpop.permute.xlu0 %4452
        %4454 = vrot.lane.b32.xlu0 %v4257, 127
        %v4455 = vpop.permute.xlu0 %4454
        %4456 = vrot.lane.b32.xlu0 %v4259, 127
        %v4457 = vpop.permute.xlu0 %4456
        %4458 = vrot.lane.b32.xlu0 %v4262, 127
        %v4459 = vpop.permute.xlu0 %4458
        %4460 = vrot.lane.b32.xlu0 %v4264, 127
        %v4461 = vpop.permute.xlu0 %4460
        %4462 = vrot.lane.b32.xlu0 %v4267, 127
        %v4463 = vpop.permute.xlu0 %4462
        %4464 = vrot.lane.b32.xlu0 %v4269, 127
        %v4465 = vpop.permute.xlu0 %4464
        %4466 = vrot.lane.b32.xlu0 %v4272, 127
        %v4467 = vpop.permute.xlu0 %4466
        %4468 = vrot.lane.b32.xlu0 %v4274, 127
        %v4469 = vpop.permute.xlu0 %4468
        %4470 = vrot.lane.b32.xlu0 %v4277, 127
        %v4471 = vpop.permute.xlu0 %4470
        %4472 = vrot.lane.b32.xlu0 %v4279, 127
        %v4473 = vpop.permute.xlu0 %4472
        %4474 = vrot.lane.b32.xlu0 %v4282, 127
        %v4475 = vpop.permute.xlu0 %4474
        %4476 = vrot.lane.b32.xlu0 %v4284, 127
        %v4477 = vpop.permute.xlu0 %4476
        %4478 = vrot.lane.b32.xlu0 %v4287, 127
        %v4479 = vpop.permute.xlu0 %4478
        %4480 = vrot.lane.b32.xlu0 %v4289, 127
        %v4481 = vpop.permute.xlu0 %4480
        %v4578 = vadd.f32 %v3426, %v4291
        %v4579 = vadd.f32 %v3427, %v4293
        %v4580 = vadd.f32 %v3428, %v4295
        %v4581 = vadd.f32 %v3429, %v4297
        %v4582 = vadd.f32 %v3430, %v4299
        %v4583 = vadd.f32 %v3431, %v4301
        %v4584 = vadd.f32 %v3432, %v4303
        %v4585 = vadd.f32 %v3433, %v4305
        %v4586 = vadd.f32 %v3434, %v4307
        %v4587 = vadd.f32 %v3435, %v4309
        %v4588 = vadd.f32 %v3436, %v4311
        %v4589 = vadd.f32 %v3437, %v4313
        %v4590 = vadd.f32 %v3438, %v4315
        %v4591 = vadd.f32 %v3439, %v4317
        %v4592 = vadd.f32 %v3440, %v4319
        %v4593 = vadd.f32 %v3441, %v4321
        %v4594 = vadd.f32 %v3442, %v4323
        %v4595 = vadd.f32 %v3443, %v4325
        %v4596 = vadd.f32 %v3444, %v4327
        %v4597 = vadd.f32 %v3445, %v4329
        %v4598 = vadd.f32 %v3446, %v4331
        %v4599 = vadd.f32 %v3447, %v4333
        %v4600 = vadd.f32 %v3448, %v4335
        %v4601 = vadd.f32 %v3449, %v4337
        %v4602 = vadd.f32 %v3450, %v4339
        %v4603 = vadd.f32 %v3451, %v4341
        %v4604 = vadd.f32 %v3452, %v4343
        %v4605 = vadd.f32 %v3453, %v4345
        %v4606 = vadd.f32 %v3454, %v4347
        %v4607 = vadd.f32 %v3455, %v4349
        %v4608 = vadd.f32 %v3456, %v4351
        %v4609 = vadd.f32 %v3457, %v4353
        %v4610 = vadd.f32 %v3458, %v4355
        %v4611 = vadd.f32 %v3459, %v4357
        %v4612 = vadd.f32 %v3460, %v4359
        %v4613 = vadd.f32 %v3461, %v4361
        %v4614 = vadd.f32 %v3462, %v4363
        %v4615 = vadd.f32 %v3463, %v4365
        %v4616 = vadd.f32 %v3464, %v4367
        %v4617 = vadd.f32 %v3465, %v4369
        %v4618 = vadd.f32 %v3466, %v4371
        %v4619 = vadd.f32 %v3467, %v4373
        %v4620 = vadd.f32 %v3468, %v4375
        %v4621 = vadd.f32 %v3469, %v4377
        %v4622 = vadd.f32 %v3470, %v4379
        %v4623 = vadd.f32 %v3471, %v4381
        %v4624 = vadd.f32 %v3472, %v4383
        %v4625 = vadd.f32 %v3473, %v4385
        %v4626 = vadd.f32 %v3474, %v4387
        %v4627 = vadd.f32 %v3475, %v4389
        %v4628 = vadd.f32 %v3476, %v4391
        %v4629 = vadd.f32 %v3477, %v4393
        %v4630 = vadd.f32 %v3478, %v4395
        %v4631 = vadd.f32 %v3479, %v4397
        %v4632 = vadd.f32 %v3480, %v4399
        %v4633 = vadd.f32 %v3481, %v4401
        %v4634 = vadd.f32 %v3482, %v4403
        %v4635 = vadd.f32 %v3483, %v4405
        %v4636 = vadd.f32 %v3484, %v4407
        %v4637 = vadd.f32 %v3485, %v4409
        %v4638 = vadd.f32 %v3486, %v4411
        %v4639 = vadd.f32 %v3487, %v4413
        %v4640 = vadd.f32 %v3488, %v4415
        %v4641 = vadd.f32 %v3489, %v4417
        %v4642 = vadd.f32 %v3490, %v4419
        %v4643 = vadd.f32 %v3491, %v4421
        %v4644 = vadd.f32 %v3492, %v4423
        %v4645 = vadd.f32 %v3493, %v4425
        %v4646 = vadd.f32 %v3494, %v4427
        %v4647 = vadd.f32 %v3495, %v4429
        %v4648 = vadd.f32 %v3496, %v4431
        %v4649 = vadd.f32 %v3497, %v4433
        %v4650 = vadd.f32 %v3498, %v4435
        %v4651 = vadd.f32 %v3499, %v4437
        %v4652 = vadd.f32 %v3500, %v4439
        %v4653 = vadd.f32 %v3501, %v4441
        %v4654 = vadd.f32 %v3502, %v4443
        %v4655 = vadd.f32 %v3503, %v4445
        %v4656 = vadd.f32 %v3504, %v4447
        %v4657 = vadd.f32 %v3505, %v4449
        %v4658 = vadd.f32 %v3506, %v4451
        %v4659 = vadd.f32 %v3507, %v4453
        %v4660 = vadd.f32 %v3508, %v4455
        %v4661 = vadd.f32 %v3509, %v4457
        %v4662 = vadd.f32 %v3510, %v4459
        %v4663 = vadd.f32 %v3511, %v4461
        %v4664 = vadd.f32 %v3512, %v4463
        %v4665 = vadd.f32 %v3513, %v4465
        %v4666 = vadd.f32 %v3514, %v4467
        %v4667 = vadd.f32 %v3515, %v4469
        %v4668 = vadd.f32 %v3516, %v4471
        %v4669 = vadd.f32 %v3517, %v4473
        %v4670 = vadd.f32 %v3518, %v4475
        %v4671 = vadd.f32 %v3519, %v4477
        %v4672 = vadd.f32 %v3520, %v4479
        %v4673 = vadd.f32 %v3521, %v4481
        %4674 = vrot.lane.b32.xlu0 %v2609, 126
        %v4675 = vpop.permute.xlu0 %4674
        %4676 = vrot.lane.b32.xlu0 %v2610, 126
        %v4677 = vpop.permute.xlu0 %4676
        %4678 = vrot.lane.b32.xlu0 %v2611, 126
        %v4679 = vpop.permute.xlu0 %4678
        %4680 = vrot.lane.b32.xlu0 %v2612, 126
        %v4681 = vpop.permute.xlu0 %4680
        %4682 = vrot.lane.b32.xlu0 %v2613, 126
        %v4683 = vpop.permute.xlu0 %4682
        %4684 = vrot.lane.b32.xlu0 %v2614, 126
        %v4685 = vpop.permute.xlu0 %4684
        %4686 = vrot.lane.b32.xlu0 %v2615, 126
        %v4687 = vpop.permute.xlu0 %4686
        %4688 = vrot.lane.b32.xlu0 %v2616, 126
        %v4689 = vpop.permute.xlu0 %4688
        %4690 = vrot.lane.b32.xlu0 %v2617, 126
        %v4691 = vpop.permute.xlu0 %4690
        %4692 = vrot.lane.b32.xlu0 %v2618, 126
        %v4693 = vpop.permute.xlu0 %4692
        %4694 = vrot.lane.b32.xlu0 %v2619, 126
        %v4695 = vpop.permute.xlu0 %4694
        %4696 = vrot.lane.b32.xlu0 %v2620, 126
        %v4697 = vpop.permute.xlu0 %4696
        %4698 = vrot.lane.b32.xlu0 %v2621, 126
        %v4699 = vpop.permute.xlu0 %4698
        %4700 = vrot.lane.b32.xlu0 %v2622, 126
        %v4701 = vpop.permute.xlu0 %4700
        %4702 = vrot.lane.b32.xlu0 %v2623, 126
        %v4703 = vpop.permute.xlu0 %4702
        %4704 = vrot.lane.b32.xlu0 %v2624, 126
        %v4705 = vpop.permute.xlu0 %4704
        %4706 = vrot.lane.b32.xlu0 %v2625, 126
        %v4707 = vpop.permute.xlu0 %4706
        %4708 = vrot.lane.b32.xlu0 %v2626, 126
        %v4709 = vpop.permute.xlu0 %4708
        %4710 = vrot.lane.b32.xlu0 %v2627, 126
        %v4711 = vpop.permute.xlu0 %4710
        %4712 = vrot.lane.b32.xlu0 %v2628, 126
        %v4713 = vpop.permute.xlu0 %4712
        %4714 = vrot.lane.b32.xlu0 %v2629, 126
        %v4715 = vpop.permute.xlu0 %4714
        %4716 = vrot.lane.b32.xlu0 %v2630, 126
        %v4717 = vpop.permute.xlu0 %4716
        %4718 = vrot.lane.b32.xlu0 %v2631, 126
        %v4719 = vpop.permute.xlu0 %4718
        %4720 = vrot.lane.b32.xlu0 %v2632, 126
        %v4721 = vpop.permute.xlu0 %4720
        %4722 = vrot.lane.b32.xlu0 %v2633, 126
        %v4723 = vpop.permute.xlu0 %4722
        %4724 = vrot.lane.b32.xlu0 %v2634, 126
        %v4725 = vpop.permute.xlu0 %4724
        %4726 = vrot.lane.b32.xlu0 %v2635, 126
        %v4727 = vpop.permute.xlu0 %4726
        %4728 = vrot.lane.b32.xlu0 %v2636, 126
        %v4729 = vpop.permute.xlu0 %4728
        %4730 = vrot.lane.b32.xlu0 %v2637, 126
        %v4731 = vpop.permute.xlu0 %4730
        %4732 = vrot.lane.b32.xlu0 %v2638, 126
        %v4733 = vpop.permute.xlu0 %4732
        %4734 = vrot.lane.b32.xlu0 %v2639, 126
        %v4735 = vpop.permute.xlu0 %4734
        %4736 = vrot.lane.b32.xlu0 %v2640, 126
        %v4737 = vpop.permute.xlu0 %4736
        %4738 = vrot.lane.b32.xlu0 %v2641, 126
        %v4739 = vpop.permute.xlu0 %4738
        %4740 = vrot.lane.b32.xlu0 %v2642, 126
        %v4741 = vpop.permute.xlu0 %4740
        %4742 = vrot.lane.b32.xlu0 %v2643, 126
        %v4743 = vpop.permute.xlu0 %4742
        %4744 = vrot.lane.b32.xlu0 %v2644, 126
        %v4745 = vpop.permute.xlu0 %4744
        %4746 = vrot.lane.b32.xlu0 %v2645, 126
        %v4747 = vpop.permute.xlu0 %4746
        %4748 = vrot.lane.b32.xlu0 %v2646, 126
        %v4749 = vpop.permute.xlu0 %4748
        %4750 = vrot.lane.b32.xlu0 %v2647, 126
        %v4751 = vpop.permute.xlu0 %4750
        %4752 = vrot.lane.b32.xlu0 %v2648, 126
        %v4753 = vpop.permute.xlu0 %4752
        %4754 = vrot.lane.b32.xlu0 %v2649, 126
        %v4755 = vpop.permute.xlu0 %4754
        %4756 = vrot.lane.b32.xlu0 %v2650, 126
        %v4757 = vpop.permute.xlu0 %4756
        %4758 = vrot.lane.b32.xlu0 %v2651, 126
        %v4759 = vpop.permute.xlu0 %4758
        %4760 = vrot.lane.b32.xlu0 %v2652, 126
        %v4761 = vpop.permute.xlu0 %4760
        %4762 = vrot.lane.b32.xlu0 %v2653, 126
        %v4763 = vpop.permute.xlu0 %4762
        %4764 = vrot.lane.b32.xlu0 %v2654, 126
        %v4765 = vpop.permute.xlu0 %4764
        %4766 = vrot.lane.b32.xlu0 %v2655, 126
        %v4767 = vpop.permute.xlu0 %4766
        %4768 = vrot.lane.b32.xlu0 %v2656, 126
        %v4769 = vpop.permute.xlu0 %4768
        %s4770 = vtos %v4675
        %v4771 = vstv %s4770
        %s4773 = vtos %v4677
        %v4774 = vstv %s4773
        %s4776 = vtos %v4679
        %v4777 = vstv %s4776
        %s4779 = vtos %v4681
        %v4780 = vstv %s4779
        %s4782 = vtos %v4683
        %v4783 = vstv %s4782
        %s4785 = vtos %v4685
        %v4786 = vstv %s4785
        %s4788 = vtos %v4687
        %v4789 = vstv %s4788
        %s4791 = vtos %v4689
        %v4792 = vstv %s4791
        %s4794 = vtos %v4691
        %v4795 = vstv %s4794
        %s4797 = vtos %v4693
        %v4798 = vstv %s4797
        %s4800 = vtos %v4695
        %v4801 = vstv %s4800
        %s4803 = vtos %v4697
        %v4804 = vstv %s4803
        %s4806 = vtos %v4699
        %v4807 = vstv %s4806
        %s4809 = vtos %v4701
        %v4810 = vstv %s4809
        %s4812 = vtos %v4703
        %v4813 = vstv %s4812
        %s4815 = vtos %v4705
        %v4816 = vstv %s4815
        %s4818 = vtos %v4707
        %v4819 = vstv %s4818
        %s4821 = vtos %v4709
        %v4822 = vstv %s4821
        %s4824 = vtos %v4711
        %v4825 = vstv %s4824
        %s4827 = vtos %v4713
        %v4828 = vstv %s4827
        %s4830 = vtos %v4715
        %v4831 = vstv %s4830
        %s4833 = vtos %v4717
        %v4834 = vstv %s4833
        %s4836 = vtos %v4719
        %v4837 = vstv %s4836
        %s4839 = vtos %v4721
        %v4840 = vstv %s4839
        %s4842 = vtos %v4723
        %v4843 = vstv %s4842
        %s4845 = vtos %v4725
        %v4846 = vstv %s4845
        %s4848 = vtos %v4727
        %v4849 = vstv %s4848
        %s4851 = vtos %v4729
        %v4852 = vstv %s4851
        %s4854 = vtos %v4731
        %v4855 = vstv %s4854
        %s4857 = vtos %v4733
        %v4858 = vstv %s4857
        %s4860 = vtos %v4735
        %v4861 = vstv %s4860
        %s4863 = vtos %v4737
        %v4864 = vstv %s4863
        %s4866 = vtos %v4739
        %v4867 = vstv %s4866
        %s4869 = vtos %v4741
        %v4870 = vstv %s4869
        %s4872 = vtos %v4743
        %v4873 = vstv %s4872
        %s4875 = vtos %v4745
        %v4876 = vstv %s4875
        %s4878 = vtos %v4747
        %v4879 = vstv %s4878
        %s4881 = vtos %v4749
        %v4882 = vstv %s4881
        %s4884 = vtos %v4751
        %v4885 = vstv %s4884
        %s4887 = vtos %v4753
        %v4888 = vstv %s4887
        %s4890 = vtos %v4755
        %v4891 = vstv %s4890
        %s4893 = vtos %v4757
        %v4894 = vstv %s4893
        %s4896 = vtos %v4759
        %v4897 = vstv %s4896
        %s4899 = vtos %v4761
        %v4900 = vstv %s4899
        %s4902 = vtos %v4763
        %v4903 = vstv %s4902
        %s4905 = vtos %v4765
        %v4906 = vstv %s4905
        %s4908 = vtos %v4767
        %v4909 = vstv %s4908
        %s4911 = vtos %v4769
        %v4912 = vstv %s4911
        %v4914 = vmul.f32 %v401, %v4771
        %v4915 = vmul.f32 %v402, %v4771
        %v4916 = vmul.f32 %v403, %v4771
        %v4917 = vmul.f32 %v404, %v4774
        %v4918 = vmul.f32 %v405, %v4774
        %v4919 = vmul.f32 %v406, %v4774
        %v4920 = vmul.f32 %v407, %v4777
        %v4921 = vmul.f32 %v408, %v4777
        %v4922 = vmul.f32 %v409, %v4777
        %v4923 = vmul.f32 %v410, %v4780
        %v4924 = vmul.f32 %v411, %v4780
        %v4925 = vmul.f32 %v412, %v4780
        %v4926 = vmul.f32 %v413, %v4783
        %v4927 = vmul.f32 %v414, %v4783
        %v4928 = vmul.f32 %v415, %v4783
        %v4929 = vmul.f32 %v416, %v4786
        %v4930 = vmul.f32 %v417, %v4786
        %v4931 = vmul.f32 %v418, %v4786
        %v4932 = vmul.f32 %v419, %v4789
        %v4933 = vmul.f32 %v420, %v4789
        %v4934 = vmul.f32 %v421, %v4789
        %v4935 = vmul.f32 %v422, %v4792
        %v4936 = vmul.f32 %v423, %v4792
        %v4937 = vmul.f32 %v424, %v4792
        %v4938 = vmul.f32 %v425, %v4795
        %v4939 = vmul.f32 %v426, %v4795
        %v4940 = vmul.f32 %v427, %v4795
        %v4941 = vmul.f32 %v428, %v4798
        %v4942 = vmul.f32 %v429, %v4798
        %v4943 = vmul.f32 %v430, %v4798
        %v4944 = vmul.f32 %v431, %v4801
        %v4945 = vmul.f32 %v432, %v4801
        %v4946 = vmul.f32 %v433, %v4801
        %v4947 = vmul.f32 %v434, %v4804
        %v4948 = vmul.f32 %v435, %v4804
        %v4949 = vmul.f32 %v436, %v4804
        %v4950 = vmul.f32 %v437, %v4807
        %v4951 = vmul.f32 %v438, %v4807
        %v4952 = vmul.f32 %v439, %v4807
        %v4953 = vmul.f32 %v440, %v4810
        %v4954 = vmul.f32 %v441, %v4810
        %v4955 = vmul.f32 %v442, %v4810
        %v4956 = vmul.f32 %v443, %v4813
        %v4957 = vmul.f32 %v444, %v4813
        %v4958 = vmul.f32 %v445, %v4813
        %v4959 = vmul.f32 %v446, %v4816
        %v4960 = vmul.f32 %v447, %v4816
        %v4961 = vmul.f32 %v448, %v4816
        %v4962 = vmul.f32 %v449, %v4819
        %v4963 = vmul.f32 %v450, %v4819
        %v4964 = vmul.f32 %v451, %v4819
        %v4965 = vmul.f32 %v452, %v4822
        %v4966 = vmul.f32 %v453, %v4822
        %v4967 = vmul.f32 %v454, %v4822
        %v4968 = vmul.f32 %v455, %v4825
        %v4969 = vmul.f32 %v456, %v4825
        %v4970 = vmul.f32 %v457, %v4825
        %v4971 = vmul.f32 %v458, %v4828
        %v4972 = vmul.f32 %v459, %v4828
        %v4973 = vmul.f32 %v460, %v4828
        %v4974 = vmul.f32 %v461, %v4831
        %v4975 = vmul.f32 %v462, %v4831
        %v4976 = vmul.f32 %v463, %v4831
        %v4977 = vmul.f32 %v464, %v4834
        %v4978 = vmul.f32 %v465, %v4834
        %v4979 = vmul.f32 %v466, %v4834
        %v4980 = vmul.f32 %v467, %v4837
        %v4981 = vmul.f32 %v468, %v4837
        %v4982 = vmul.f32 %v469, %v4837
        %v4983 = vmul.f32 %v470, %v4840
        %v4984 = vmul.f32 %v471, %v4840
        %v4985 = vmul.f32 %v472, %v4840
        %v4986 = vmul.f32 %v473, %v4843
        %v4987 = vmul.f32 %v474, %v4843
        %v4988 = vmul.f32 %v475, %v4843
        %v4989 = vmul.f32 %v476, %v4846
        %v4990 = vmul.f32 %v477, %v4846
        %v4991 = vmul.f32 %v478, %v4846
        %v4992 = vmul.f32 %v479, %v4849
        %v4993 = vmul.f32 %v480, %v4849
        %v4994 = vmul.f32 %v481, %v4849
        %v4995 = vmul.f32 %v482, %v4852
        %v4996 = vmul.f32 %v483, %v4852
        %v4997 = vmul.f32 %v484, %v4852
        %v4998 = vmul.f32 %v485, %v4855
        %v4999 = vmul.f32 %v486, %v4855
        %v5000 = vmul.f32 %v487, %v4855
        %v5001 = vmul.f32 %v488, %v4858
        %v5002 = vmul.f32 %v489, %v4858
        %v5003 = vmul.f32 %v490, %v4858
        %v5004 = vmul.f32 %v491, %v4861
        %v5005 = vmul.f32 %v492, %v4861
        %v5006 = vmul.f32 %v493, %v4861
        %v5007 = vmul.f32 %v494, %v4864
        %v5008 = vmul.f32 %v495, %v4864
        %v5009 = vmul.f32 %v496, %v4864
        %v5010 = vmul.f32 %v497, %v4867
        %v5011 = vmul.f32 %v498, %v4867
        %v5012 = vmul.f32 %v499, %v4867
        %v5013 = vmul.f32 %v500, %v4870
        %v5014 = vmul.f32 %v501, %v4870
        %v5015 = vmul.f32 %v502, %v4870
        %v5016 = vmul.f32 %v503, %v4873
        %v5017 = vmul.f32 %v504, %v4873
        %v5018 = vmul.f32 %v505, %v4873
        %v5019 = vmul.f32 %v506, %v4876
        %v5020 = vmul.f32 %v507, %v4876
        %v5021 = vmul.f32 %v508, %v4876
        %v5022 = vmul.f32 %v509, %v4879
        %v5023 = vmul.f32 %v510, %v4879
        %v5024 = vmul.f32 %v511, %v4879
        %v5025 = vmul.f32 %v512, %v4882
        %v5026 = vmul.f32 %v513, %v4882
        %v5027 = vmul.f32 %v514, %v4882
        %v5028 = vmul.f32 %v515, %v4885
        %v5029 = vmul.f32 %v516, %v4885
        %v5030 = vmul.f32 %v517, %v4885
        %v5031 = vmul.f32 %v518, %v4888
        %v5032 = vmul.f32 %v519, %v4888
        %v5033 = vmul.f32 %v520, %v4888
        %v5034 = vmul.f32 %v521, %v4891
        %v5035 = vmul.f32 %v522, %v4891
        %v5036 = vmul.f32 %v523, %v4891
        %v5037 = vmul.f32 %v524, %v4894
        %v5038 = vmul.f32 %v525, %v4894
        %v5039 = vmul.f32 %v526, %v4894
        %v5040 = vmul.f32 %v527, %v4897
        %v5041 = vmul.f32 %v528, %v4897
        %v5042 = vmul.f32 %v529, %v4897
        %v5043 = vmul.f32 %v530, %v4900
        %v5044 = vmul.f32 %v531, %v4900
        %v5045 = vmul.f32 %v532, %v4900
        %v5046 = vmul.f32 %v533, %v4903
        %v5047 = vmul.f32 %v534, %v4903
        %v5048 = vmul.f32 %v535, %v4903
        %v5049 = vmul.f32 %v536, %v4906
        %v5050 = vmul.f32 %v537, %v4906
        %v5051 = vmul.f32 %v538, %v4906
        %v5052 = vmul.f32 %v539, %v4909
        %v5053 = vmul.f32 %v540, %v4909
        %v5054 = vmul.f32 %v541, %v4909
        %v5055 = vmul.f32 %v542, %v4912
        %v5056 = vmul.f32 %v543, %v4912
        %v5057 = vmul.f32 %v544, %v4912
        %v5202 = vrot.slane %v4914, 1
        %v5203 = vrot.slane %v4915, 1
        %v5204 = vsel %vm3089, %v5202, %v5203
        %v5205 = vrot.slane %v4916, 1
        %v5206 = vsel %vm3089, %v5203, %v5205
        %v5207 = vrot.slane %v4917, 1
        %v5208 = vrot.slane %v4918, 1
        %v5209 = vsel %vm3089, %v5207, %v5208
        %v5210 = vrot.slane %v4919, 1
        %v5211 = vsel %vm3089, %v5208, %v5210
        %v5212 = vrot.slane %v4920, 1
        %v5213 = vrot.slane %v4921, 1
        %v5214 = vsel %vm3089, %v5212, %v5213
        %v5215 = vrot.slane %v4922, 1
        %v5216 = vsel %vm3089, %v5213, %v5215
        %v5217 = vrot.slane %v4923, 1
        %v5218 = vrot.slane %v4924, 1
        %v5219 = vsel %vm3089, %v5217, %v5218
        %v5220 = vrot.slane %v4925, 1
        %v5221 = vsel %vm3089, %v5218, %v5220
        %v5222 = vrot.slane %v4926, 1
        %v5223 = vrot.slane %v4927, 1
        %v5224 = vsel %vm3089, %v5222, %v5223
        %v5225 = vrot.slane %v4928, 1
        %v5226 = vsel %vm3089, %v5223, %v5225
        %v5227 = vrot.slane %v4929, 1
        %v5228 = vrot.slane %v4930, 1
        %v5229 = vsel %vm3089, %v5227, %v5228
        %v5230 = vrot.slane %v4931, 1
        %v5231 = vsel %vm3089, %v5228, %v5230
        %v5232 = vrot.slane %v4932, 1
        %v5233 = vrot.slane %v4933, 1
        %v5234 = vsel %vm3089, %v5232, %v5233
        %v5235 = vrot.slane %v4934, 1
        %v5236 = vsel %vm3089, %v5233, %v5235
        %v5237 = vrot.slane %v4935, 1
        %v5238 = vrot.slane %v4936, 1
        %v5239 = vsel %vm3089, %v5237, %v5238
        %v5240 = vrot.slane %v4937, 1
        %v5241 = vsel %vm3089, %v5238, %v5240
        %v5242 = vrot.slane %v4938, 1
        %v5243 = vrot.slane %v4939, 1
        %v5244 = vsel %vm3089, %v5242, %v5243
        %v5245 = vrot.slane %v4940, 1
        %v5246 = vsel %vm3089, %v5243, %v5245
        %v5247 = vrot.slane %v4941, 1
        %v5248 = vrot.slane %v4942, 1
        %v5249 = vsel %vm3089, %v5247, %v5248
        %v5250 = vrot.slane %v4943, 1
        %v5251 = vsel %vm3089, %v5248, %v5250
        %v5252 = vrot.slane %v4944, 1
        %v5253 = vrot.slane %v4945, 1
        %v5254 = vsel %vm3089, %v5252, %v5253
        %v5255 = vrot.slane %v4946, 1
        %v5256 = vsel %vm3089, %v5253, %v5255
        %v5257 = vrot.slane %v4947, 1
        %v5258 = vrot.slane %v4948, 1
        %v5259 = vsel %vm3089, %v5257, %v5258
        %v5260 = vrot.slane %v4949, 1
        %v5261 = vsel %vm3089, %v5258, %v5260
        %v5262 = vrot.slane %v4950, 1
        %v5263 = vrot.slane %v4951, 1
        %v5264 = vsel %vm3089, %v5262, %v5263
        %v5265 = vrot.slane %v4952, 1
        %v5266 = vsel %vm3089, %v5263, %v5265
        %v5267 = vrot.slane %v4953, 1
        %v5268 = vrot.slane %v4954, 1
        %v5269 = vsel %vm3089, %v5267, %v5268
        %v5270 = vrot.slane %v4955, 1
        %v5271 = vsel %vm3089, %v5268, %v5270
        %v5272 = vrot.slane %v4956, 1
        %v5273 = vrot.slane %v4957, 1
        %v5274 = vsel %vm3089, %v5272, %v5273
        %v5275 = vrot.slane %v4958, 1
        %v5276 = vsel %vm3089, %v5273, %v5275
        %v5277 = vrot.slane %v4959, 1
        %v5278 = vrot.slane %v4960, 1
        %v5279 = vsel %vm3089, %v5277, %v5278
        %v5280 = vrot.slane %v4961, 1
        %v5281 = vsel %vm3089, %v5278, %v5280
        %v5282 = vrot.slane %v4962, 1
        %v5283 = vrot.slane %v4963, 1
        %v5284 = vsel %vm3089, %v5282, %v5283
        %v5285 = vrot.slane %v4964, 1
        %v5286 = vsel %vm3089, %v5283, %v5285
        %v5287 = vrot.slane %v4965, 1
        %v5288 = vrot.slane %v4966, 1
        %v5289 = vsel %vm3089, %v5287, %v5288
        %v5290 = vrot.slane %v4967, 1
        %v5291 = vsel %vm3089, %v5288, %v5290
        %v5292 = vrot.slane %v4968, 1
        %v5293 = vrot.slane %v4969, 1
        %v5294 = vsel %vm3089, %v5292, %v5293
        %v5295 = vrot.slane %v4970, 1
        %v5296 = vsel %vm3089, %v5293, %v5295
        %v5297 = vrot.slane %v4971, 1
        %v5298 = vrot.slane %v4972, 1
        %v5299 = vsel %vm3089, %v5297, %v5298
        %v5300 = vrot.slane %v4973, 1
        %v5301 = vsel %vm3089, %v5298, %v5300
        %v5302 = vrot.slane %v4974, 1
        %v5303 = vrot.slane %v4975, 1
        %v5304 = vsel %vm3089, %v5302, %v5303
        %v5305 = vrot.slane %v4976, 1
        %v5306 = vsel %vm3089, %v5303, %v5305
        %v5307 = vrot.slane %v4977, 1
        %v5308 = vrot.slane %v4978, 1
        %v5309 = vsel %vm3089, %v5307, %v5308
        %v5310 = vrot.slane %v4979, 1
        %v5311 = vsel %vm3089, %v5308, %v5310
        %v5312 = vrot.slane %v4980, 1
        %v5313 = vrot.slane %v4981, 1
        %v5314 = vsel %vm3089, %v5312, %v5313
        %v5315 = vrot.slane %v4982, 1
        %v5316 = vsel %vm3089, %v5313, %v5315
        %v5317 = vrot.slane %v4983, 1
        %v5318 = vrot.slane %v4984, 1
        %v5319 = vsel %vm3089, %v5317, %v5318
        %v5320 = vrot.slane %v4985, 1
        %v5321 = vsel %vm3089, %v5318, %v5320
        %v5322 = vrot.slane %v4986, 1
        %v5323 = vrot.slane %v4987, 1
        %v5324 = vsel %vm3089, %v5322, %v5323
        %v5325 = vrot.slane %v4988, 1
        %v5326 = vsel %vm3089, %v5323, %v5325
        %v5327 = vrot.slane %v4989, 1
        %v5328 = vrot.slane %v4990, 1
        %v5329 = vsel %vm3089, %v5327, %v5328
        %v5330 = vrot.slane %v4991, 1
        %v5331 = vsel %vm3089, %v5328, %v5330
        %v5332 = vrot.slane %v4992, 1
        %v5333 = vrot.slane %v4993, 1
        %v5334 = vsel %vm3089, %v5332, %v5333
        %v5335 = vrot.slane %v4994, 1
        %v5336 = vsel %vm3089, %v5333, %v5335
        %v5337 = vrot.slane %v4995, 1
        %v5338 = vrot.slane %v4996, 1
        %v5339 = vsel %vm3089, %v5337, %v5338
        %v5340 = vrot.slane %v4997, 1
        %v5341 = vsel %vm3089, %v5338, %v5340
        %v5342 = vrot.slane %v4998, 1
        %v5343 = vrot.slane %v4999, 1
        %v5344 = vsel %vm3089, %v5342, %v5343
        %v5345 = vrot.slane %v5000, 1
        %v5346 = vsel %vm3089, %v5343, %v5345
        %v5347 = vrot.slane %v5001, 1
        %v5348 = vrot.slane %v5002, 1
        %v5349 = vsel %vm3089, %v5347, %v5348
        %v5350 = vrot.slane %v5003, 1
        %v5351 = vsel %vm3089, %v5348, %v5350
        %v5352 = vrot.slane %v5004, 1
        %v5353 = vrot.slane %v5005, 1
        %v5354 = vsel %vm3089, %v5352, %v5353
        %v5355 = vrot.slane %v5006, 1
        %v5356 = vsel %vm3089, %v5353, %v5355
        %v5357 = vrot.slane %v5007, 1
        %v5358 = vrot.slane %v5008, 1
        %v5359 = vsel %vm3089, %v5357, %v5358
        %v5360 = vrot.slane %v5009, 1
        %v5361 = vsel %vm3089, %v5358, %v5360
        %v5362 = vrot.slane %v5010, 1
        %v5363 = vrot.slane %v5011, 1
        %v5364 = vsel %vm3089, %v5362, %v5363
        %v5365 = vrot.slane %v5012, 1
        %v5366 = vsel %vm3089, %v5363, %v5365
        %v5367 = vrot.slane %v5013, 1
        %v5368 = vrot.slane %v5014, 1
        %v5369 = vsel %vm3089, %v5367, %v5368
        %v5370 = vrot.slane %v5015, 1
        %v5371 = vsel %vm3089, %v5368, %v5370
        %v5372 = vrot.slane %v5016, 1
        %v5373 = vrot.slane %v5017, 1
        %v5374 = vsel %vm3089, %v5372, %v5373
        %v5375 = vrot.slane %v5018, 1
        %v5376 = vsel %vm3089, %v5373, %v5375
        %v5377 = vrot.slane %v5019, 1
        %v5378 = vrot.slane %v5020, 1
        %v5379 = vsel %vm3089, %v5377, %v5378
        %v5380 = vrot.slane %v5021, 1
        %v5381 = vsel %vm3089, %v5378, %v5380
        %v5382 = vrot.slane %v5022, 1
        %v5383 = vrot.slane %v5023, 1
        %v5384 = vsel %vm3089, %v5382, %v5383
        %v5385 = vrot.slane %v5024, 1
        %v5386 = vsel %vm3089, %v5383, %v5385
        %v5387 = vrot.slane %v5025, 1
        %v5388 = vrot.slane %v5026, 1
        %v5389 = vsel %vm3089, %v5387, %v5388
        %v5390 = vrot.slane %v5027, 1
        %v5391 = vsel %vm3089, %v5388, %v5390
        %v5392 = vrot.slane %v5028, 1
        %v5393 = vrot.slane %v5029, 1
        %v5394 = vsel %vm3089, %v5392, %v5393
        %v5395 = vrot.slane %v5030, 1
        %v5396 = vsel %vm3089, %v5393, %v5395
        %v5397 = vrot.slane %v5031, 1
        %v5398 = vrot.slane %v5032, 1
        %v5399 = vsel %vm3089, %v5397, %v5398
        %v5400 = vrot.slane %v5033, 1
        %v5401 = vsel %vm3089, %v5398, %v5400
        %v5402 = vrot.slane %v5034, 1
        %v5403 = vrot.slane %v5035, 1
        %v5404 = vsel %vm3089, %v5402, %v5403
        %v5405 = vrot.slane %v5036, 1
        %v5406 = vsel %vm3089, %v5403, %v5405
        %v5407 = vrot.slane %v5037, 1
        %v5408 = vrot.slane %v5038, 1
        %v5409 = vsel %vm3089, %v5407, %v5408
        %v5410 = vrot.slane %v5039, 1
        %v5411 = vsel %vm3089, %v5408, %v5410
        %v5412 = vrot.slane %v5040, 1
        %v5413 = vrot.slane %v5041, 1
        %v5414 = vsel %vm3089, %v5412, %v5413
        %v5415 = vrot.slane %v5042, 1
        %v5416 = vsel %vm3089, %v5413, %v5415
        %v5417 = vrot.slane %v5043, 1
        %v5418 = vrot.slane %v5044, 1
        %v5419 = vsel %vm3089, %v5417, %v5418
        %v5420 = vrot.slane %v5045, 1
        %v5421 = vsel %vm3089, %v5418, %v5420
        %v5422 = vrot.slane %v5046, 1
        %v5423 = vrot.slane %v5047, 1
        %v5424 = vsel %vm3089, %v5422, %v5423
        %v5425 = vrot.slane %v5048, 1
        %v5426 = vsel %vm3089, %v5423, %v5425
        %v5427 = vrot.slane %v5049, 1
        %v5428 = vrot.slane %v5050, 1
        %v5429 = vsel %vm3089, %v5427, %v5428
        %v5430 = vrot.slane %v5051, 1
        %v5431 = vsel %vm3089, %v5428, %v5430
        %v5432 = vrot.slane %v5052, 1
        %v5433 = vrot.slane %v5053, 1
        %v5434 = vsel %vm3089, %v5432, %v5433
        %v5435 = vrot.slane %v5054, 1
        %v5436 = vsel %vm3089, %v5433, %v5435
        %v5437 = vrot.slane %v5055, 1
        %v5438 = vrot.slane %v5056, 1
        %v5439 = vsel %vm3089, %v5437, %v5438
        %v5440 = vrot.slane %v5057, 1
        %v5441 = vsel %vm3089, %v5438, %v5440
        %5442 = vrot.lane.b32.xlu0 %v5204, 126
        %v5443 = vpop.permute.xlu0 %5442
        %5444 = vrot.lane.b32.xlu0 %v5206, 126
        %v5445 = vpop.permute.xlu0 %5444
        %5446 = vrot.lane.b32.xlu0 %v5209, 126
        %v5447 = vpop.permute.xlu0 %5446
        %5448 = vrot.lane.b32.xlu0 %v5211, 126
        %v5449 = vpop.permute.xlu0 %5448
        %5450 = vrot.lane.b32.xlu0 %v5214, 126
        %v5451 = vpop.permute.xlu0 %5450
        %5452 = vrot.lane.b32.xlu0 %v5216, 126
        %v5453 = vpop.permute.xlu0 %5452
        %5454 = vrot.lane.b32.xlu0 %v5219, 126
        %v5455 = vpop.permute.xlu0 %5454
        %5456 = vrot.lane.b32.xlu0 %v5221, 126
        %v5457 = vpop.permute.xlu0 %5456
        %5458 = vrot.lane.b32.xlu0 %v5224, 126
        %v5459 = vpop.permute.xlu0 %5458
        %5460 = vrot.lane.b32.xlu0 %v5226, 126
        %v5461 = vpop.permute.xlu0 %5460
        %5462 = vrot.lane.b32.xlu0 %v5229, 126
        %v5463 = vpop.permute.xlu0 %5462
        %5464 = vrot.lane.b32.xlu0 %v5231, 126
        %v5465 = vpop.permute.xlu0 %5464
        %5466 = vrot.lane.b32.xlu0 %v5234, 126
        %v5467 = vpop.permute.xlu0 %5466
        %5468 = vrot.lane.b32.xlu0 %v5236, 126
        %v5469 = vpop.permute.xlu0 %5468
        %5470 = vrot.lane.b32.xlu0 %v5239, 126
        %v5471 = vpop.permute.xlu0 %5470
        %5472 = vrot.lane.b32.xlu0 %v5241, 126
        %v5473 = vpop.permute.xlu0 %5472
        %5474 = vrot.lane.b32.xlu0 %v5244, 126
        %v5475 = vpop.permute.xlu0 %5474
        %5476 = vrot.lane.b32.xlu0 %v5246, 126
        %v5477 = vpop.permute.xlu0 %5476
        %5478 = vrot.lane.b32.xlu0 %v5249, 126
        %v5479 = vpop.permute.xlu0 %5478
        %5480 = vrot.lane.b32.xlu0 %v5251, 126
        %v5481 = vpop.permute.xlu0 %5480
        %5482 = vrot.lane.b32.xlu0 %v5254, 126
        %v5483 = vpop.permute.xlu0 %5482
        %5484 = vrot.lane.b32.xlu0 %v5256, 126
        %v5485 = vpop.permute.xlu0 %5484
        %5486 = vrot.lane.b32.xlu0 %v5259, 126
        %v5487 = vpop.permute.xlu0 %5486
        %5488 = vrot.lane.b32.xlu0 %v5261, 126
        %v5489 = vpop.permute.xlu0 %5488
        %5490 = vrot.lane.b32.xlu0 %v5264, 126
        %v5491 = vpop.permute.xlu0 %5490
        %5492 = vrot.lane.b32.xlu0 %v5266, 126
        %v5493 = vpop.permute.xlu0 %5492
        %5494 = vrot.lane.b32.xlu0 %v5269, 126
        %v5495 = vpop.permute.xlu0 %5494
        %5496 = vrot.lane.b32.xlu0 %v5271, 126
        %v5497 = vpop.permute.xlu0 %5496
        %5498 = vrot.lane.b32.xlu0 %v5274, 126
        %v5499 = vpop.permute.xlu0 %5498
        %5500 = vrot.lane.b32.xlu0 %v5276, 126
        %v5501 = vpop.permute.xlu0 %5500
        %5502 = vrot.lane.b32.xlu0 %v5279, 126
        %v5503 = vpop.permute.xlu0 %5502
        %5504 = vrot.lane.b32.xlu0 %v5281, 126
        %v5505 = vpop.permute.xlu0 %5504
        %5506 = vrot.lane.b32.xlu0 %v5284, 126
        %v5507 = vpop.permute.xlu0 %5506
        %5508 = vrot.lane.b32.xlu0 %v5286, 126
        %v5509 = vpop.permute.xlu0 %5508
        %5510 = vrot.lane.b32.xlu0 %v5289, 126
        %v5511 = vpop.permute.xlu0 %5510
        %5512 = vrot.lane.b32.xlu0 %v5291, 126
        %v5513 = vpop.permute.xlu0 %5512
        %5514 = vrot.lane.b32.xlu0 %v5294, 126
        %v5515 = vpop.permute.xlu0 %5514
        %5516 = vrot.lane.b32.xlu0 %v5296, 126
        %v5517 = vpop.permute.xlu0 %5516
        %5518 = vrot.lane.b32.xlu0 %v5299, 126
        %v5519 = vpop.permute.xlu0 %5518
        %5520 = vrot.lane.b32.xlu0 %v5301, 126
        %v5521 = vpop.permute.xlu0 %5520
        %5522 = vrot.lane.b32.xlu0 %v5304, 126
        %v5523 = vpop.permute.xlu0 %5522
        %5524 = vrot.lane.b32.xlu0 %v5306, 126
        %v5525 = vpop.permute.xlu0 %5524
        %5526 = vrot.lane.b32.xlu0 %v5309, 126
        %v5527 = vpop.permute.xlu0 %5526
        %5528 = vrot.lane.b32.xlu0 %v5311, 126
        %v5529 = vpop.permute.xlu0 %5528
        %5530 = vrot.lane.b32.xlu0 %v5314, 126
        %v5531 = vpop.permute.xlu0 %5530
        %5532 = vrot.lane.b32.xlu0 %v5316, 126
        %v5533 = vpop.permute.xlu0 %5532
        %5534 = vrot.lane.b32.xlu0 %v5319, 126
        %v5535 = vpop.permute.xlu0 %5534
        %5536 = vrot.lane.b32.xlu0 %v5321, 126
        %v5537 = vpop.permute.xlu0 %5536
        %5538 = vrot.lane.b32.xlu0 %v5324, 126
        %v5539 = vpop.permute.xlu0 %5538
        %5540 = vrot.lane.b32.xlu0 %v5326, 126
        %v5541 = vpop.permute.xlu0 %5540
        %5542 = vrot.lane.b32.xlu0 %v5329, 126
        %v5543 = vpop.permute.xlu0 %5542
        %5544 = vrot.lane.b32.xlu0 %v5331, 126
        %v5545 = vpop.permute.xlu0 %5544
        %5546 = vrot.lane.b32.xlu0 %v5334, 126
        %v5547 = vpop.permute.xlu0 %5546
        %5548 = vrot.lane.b32.xlu0 %v5336, 126
        %v5549 = vpop.permute.xlu0 %5548
        %5550 = vrot.lane.b32.xlu0 %v5339, 126
        %v5551 = vpop.permute.xlu0 %5550
        %5552 = vrot.lane.b32.xlu0 %v5341, 126
        %v5553 = vpop.permute.xlu0 %5552
        %5554 = vrot.lane.b32.xlu0 %v5344, 126
        %v5555 = vpop.permute.xlu0 %5554
        %5556 = vrot.lane.b32.xlu0 %v5346, 126
        %v5557 = vpop.permute.xlu0 %5556
        %5558 = vrot.lane.b32.xlu0 %v5349, 126
        %v5559 = vpop.permute.xlu0 %5558
        %5560 = vrot.lane.b32.xlu0 %v5351, 126
        %v5561 = vpop.permute.xlu0 %5560
        %5562 = vrot.lane.b32.xlu0 %v5354, 126
        %v5563 = vpop.permute.xlu0 %5562
        %5564 = vrot.lane.b32.xlu0 %v5356, 126
        %v5565 = vpop.permute.xlu0 %5564
        %5566 = vrot.lane.b32.xlu0 %v5359, 126
        %v5567 = vpop.permute.xlu0 %5566
        %5568 = vrot.lane.b32.xlu0 %v5361, 126
        %v5569 = vpop.permute.xlu0 %5568
        %5570 = vrot.lane.b32.xlu0 %v5364, 126
        %v5571 = vpop.permute.xlu0 %5570
        %5572 = vrot.lane.b32.xlu0 %v5366, 126
        %v5573 = vpop.permute.xlu0 %5572
        %5574 = vrot.lane.b32.xlu0 %v5369, 126
        %v5575 = vpop.permute.xlu0 %5574
        %5576 = vrot.lane.b32.xlu0 %v5371, 126
        %v5577 = vpop.permute.xlu0 %5576
        %5578 = vrot.lane.b32.xlu0 %v5374, 126
        %v5579 = vpop.permute.xlu0 %5578
        %5580 = vrot.lane.b32.xlu0 %v5376, 126
        %v5581 = vpop.permute.xlu0 %5580
        %5582 = vrot.lane.b32.xlu0 %v5379, 126
        %v5583 = vpop.permute.xlu0 %5582
        %5584 = vrot.lane.b32.xlu0 %v5381, 126
        %v5585 = vpop.permute.xlu0 %5584
        %5586 = vrot.lane.b32.xlu0 %v5384, 126
        %v5587 = vpop.permute.xlu0 %5586
        %5588 = vrot.lane.b32.xlu0 %v5386, 126
        %v5589 = vpop.permute.xlu0 %5588
        %5590 = vrot.lane.b32.xlu0 %v5389, 126
        %v5591 = vpop.permute.xlu0 %5590
        %5592 = vrot.lane.b32.xlu0 %v5391, 126
        %v5593 = vpop.permute.xlu0 %5592
        %5594 = vrot.lane.b32.xlu0 %v5394, 126
        %v5595 = vpop.permute.xlu0 %5594
        %5596 = vrot.lane.b32.xlu0 %v5396, 126
        %v5597 = vpop.permute.xlu0 %5596
        %5598 = vrot.lane.b32.xlu0 %v5399, 126
        %v5599 = vpop.permute.xlu0 %5598
        %5600 = vrot.lane.b32.xlu0 %v5401, 126
        %v5601 = vpop.permute.xlu0 %5600
        %5602 = vrot.lane.b32.xlu0 %v5404, 126
        %v5603 = vpop.permute.xlu0 %5602
        %5604 = vrot.lane.b32.xlu0 %v5406, 126
        %v5605 = vpop.permute.xlu0 %5604
        %5606 = vrot.lane.b32.xlu0 %v5409, 126
        %v5607 = vpop.permute.xlu0 %5606
        %5608 = vrot.lane.b32.xlu0 %v5411, 126
        %v5609 = vpop.permute.xlu0 %5608
        %5610 = vrot.lane.b32.xlu0 %v5414, 126
        %v5611 = vpop.permute.xlu0 %5610
        %5612 = vrot.lane.b32.xlu0 %v5416, 126
        %v5613 = vpop.permute.xlu0 %5612
        %5614 = vrot.lane.b32.xlu0 %v5419, 126
        %v5615 = vpop.permute.xlu0 %5614
        %5616 = vrot.lane.b32.xlu0 %v5421, 126
        %v5617 = vpop.permute.xlu0 %5616
        %5618 = vrot.lane.b32.xlu0 %v5424, 126
        %v5619 = vpop.permute.xlu0 %5618
        %5620 = vrot.lane.b32.xlu0 %v5426, 126
        %v5621 = vpop.permute.xlu0 %5620
        %5622 = vrot.lane.b32.xlu0 %v5429, 126
        %v5623 = vpop.permute.xlu0 %5622
        %5624 = vrot.lane.b32.xlu0 %v5431, 126
        %v5625 = vpop.permute.xlu0 %5624
        %5626 = vrot.lane.b32.xlu0 %v5434, 126
        %v5627 = vpop.permute.xlu0 %5626
        %5628 = vrot.lane.b32.xlu0 %v5436, 126
        %v5629 = vpop.permute.xlu0 %5628
        %5630 = vrot.lane.b32.xlu0 %v5439, 126
        %v5631 = vpop.permute.xlu0 %5630
        %5632 = vrot.lane.b32.xlu0 %v5441, 126
        %v5633 = vpop.permute.xlu0 %5632
        %v5730 = vadd.f32 %v4578, %v5443
        %v5731 = vadd.f32 %v4579, %v5445
        %v5732 = vadd.f32 %v4580, %v5447
        %v5733 = vadd.f32 %v4581, %v5449
        %v5734 = vadd.f32 %v4582, %v5451
        %v5735 = vadd.f32 %v4583, %v5453
        %v5736 = vadd.f32 %v4584, %v5455
        %v5737 = vadd.f32 %v4585, %v5457
        %v5738 = vadd.f32 %v4586, %v5459
        %v5739 = vadd.f32 %v4587, %v5461
        %v5740 = vadd.f32 %v4588, %v5463
        %v5741 = vadd.f32 %v4589, %v5465
        %v5742 = vadd.f32 %v4590, %v5467
        %v5743 = vadd.f32 %v4591, %v5469
        %v5744 = vadd.f32 %v4592, %v5471
        %v5745 = vadd.f32 %v4593, %v5473
        %v5746 = vadd.f32 %v4594, %v5475
        %v5747 = vadd.f32 %v4595, %v5477
        %v5748 = vadd.f32 %v4596, %v5479
        %v5749 = vadd.f32 %v4597, %v5481
        %v5750 = vadd.f32 %v4598, %v5483
        %v5751 = vadd.f32 %v4599, %v5485
        %v5752 = vadd.f32 %v4600, %v5487
        %v5753 = vadd.f32 %v4601, %v5489
        %v5754 = vadd.f32 %v4602, %v5491
        %v5755 = vadd.f32 %v4603, %v5493
        %v5756 = vadd.f32 %v4604, %v5495
        %v5757 = vadd.f32 %v4605, %v5497
        %v5758 = vadd.f32 %v4606, %v5499
        %v5759 = vadd.f32 %v4607, %v5501
        %v5760 = vadd.f32 %v4608, %v5503
        %v5761 = vadd.f32 %v4609, %v5505
        %v5762 = vadd.f32 %v4610, %v5507
        %v5763 = vadd.f32 %v4611, %v5509
        %v5764 = vadd.f32 %v4612, %v5511
        %v5765 = vadd.f32 %v4613, %v5513
        %v5766 = vadd.f32 %v4614, %v5515
        %v5767 = vadd.f32 %v4615, %v5517
        %v5768 = vadd.f32 %v4616, %v5519
        %v5769 = vadd.f32 %v4617, %v5521
        %v5770 = vadd.f32 %v4618, %v5523
        %v5771 = vadd.f32 %v4619, %v5525
        %v5772 = vadd.f32 %v4620, %v5527
        %v5773 = vadd.f32 %v4621, %v5529
        %v5774 = vadd.f32 %v4622, %v5531
        %v5775 = vadd.f32 %v4623, %v5533
        %v5776 = vadd.f32 %v4624, %v5535
        %v5777 = vadd.f32 %v4625, %v5537
        %v5778 = vadd.f32 %v4626, %v5539
        %v5779 = vadd.f32 %v4627, %v5541
        %v5780 = vadd.f32 %v4628, %v5543
        %v5781 = vadd.f32 %v4629, %v5545
        %v5782 = vadd.f32 %v4630, %v5547
        %v5783 = vadd.f32 %v4631, %v5549
        %v5784 = vadd.f32 %v4632, %v5551
        %v5785 = vadd.f32 %v4633, %v5553
        %v5786 = vadd.f32 %v4634, %v5555
        %v5787 = vadd.f32 %v4635, %v5557
        %v5788 = vadd.f32 %v4636, %v5559
        %v5789 = vadd.f32 %v4637, %v5561
        %v5790 = vadd.f32 %v4638, %v5563
        %v5791 = vadd.f32 %v4639, %v5565
        %v5792 = vadd.f32 %v4640, %v5567
        %v5793 = vadd.f32 %v4641, %v5569
        %v5794 = vadd.f32 %v4642, %v5571
        %v5795 = vadd.f32 %v4643, %v5573
        %v5796 = vadd.f32 %v4644, %v5575
        %v5797 = vadd.f32 %v4645, %v5577
        %v5798 = vadd.f32 %v4646, %v5579
        %v5799 = vadd.f32 %v4647, %v5581
        %v5800 = vadd.f32 %v4648, %v5583
        %v5801 = vadd.f32 %v4649, %v5585
        %v5802 = vadd.f32 %v4650, %v5587
        %v5803 = vadd.f32 %v4651, %v5589
        %v5804 = vadd.f32 %v4652, %v5591
        %v5805 = vadd.f32 %v4653, %v5593
        %v5806 = vadd.f32 %v4654, %v5595
        %v5807 = vadd.f32 %v4655, %v5597
        %v5808 = vadd.f32 %v4656, %v5599
        %v5809 = vadd.f32 %v4657, %v5601
        %v5810 = vadd.f32 %v4658, %v5603
        %v5811 = vadd.f32 %v4659, %v5605
        %v5812 = vadd.f32 %v4660, %v5607
        %v5813 = vadd.f32 %v4661, %v5609
        %v5814 = vadd.f32 %v4662, %v5611
        %v5815 = vadd.f32 %v4663, %v5613
        %v5816 = vadd.f32 %v4664, %v5615
        %v5817 = vadd.f32 %v4665, %v5617
        %v5818 = vadd.f32 %v4666, %v5619
        %v5819 = vadd.f32 %v4667, %v5621
        %v5820 = vadd.f32 %v4668, %v5623
        %v5821 = vadd.f32 %v4669, %v5625
        %v5822 = vadd.f32 %v4670, %v5627
        %v5823 = vadd.f32 %v4671, %v5629
        %v5824 = vadd.f32 %v4672, %v5631
        %v5825 = vadd.f32 %v4673, %v5633
        %v5826 = vrot.slane %v545, 2
        %v5827 = vrot.slane %v546, 2
        %v5828 = vrot.slane %v547, 2
        %v5829 = vrot.slane %v548, 2
        %v5830 = vrot.slane %v549, 2
        %v5831 = vrot.slane %v550, 2
        %v5832 = vrot.slane %v551, 2
        %v5833 = vrot.slane %v552, 2
        %v5834 = vrot.slane %v553, 2
        %v5835 = vrot.slane %v554, 2
        %v5836 = vrot.slane %v555, 2
        %v5837 = vrot.slane %v556, 2
        %v5838 = vrot.slane %v557, 2
        %v5839 = vrot.slane %v558, 2
        %v5840 = vrot.slane %v559, 2
        %v5841 = vrot.slane %v560, 2
        %v5842 = vrot.slane %v561, 2
        %v5843 = vrot.slane %v562, 2
        %v5844 = vrot.slane %v563, 2
        %v5845 = vrot.slane %v564, 2
        %v5846 = vrot.slane %v565, 2
        %v5847 = vrot.slane %v566, 2
        %v5848 = vrot.slane %v567, 2
        %v5849 = vrot.slane %v568, 2
        %v5850 = vrot.slane %v569, 2
        %v5851 = vrot.slane %v570, 2
        %v5852 = vrot.slane %v571, 2
        %v5853 = vrot.slane %v572, 2
        %v5854 = vrot.slane %v573, 2
        %v5855 = vrot.slane %v574, 2
        %v5856 = vrot.slane %v575, 2
        %v5857 = vrot.slane %v576, 2
        %v5858 = vrot.slane %v577, 2
        %v5859 = vrot.slane %v578, 2
        %v5860 = vrot.slane %v579, 2
        %v5861 = vrot.slane %v580, 2
        %v5862 = vrot.slane %v581, 2
        %v5863 = vrot.slane %v582, 2
        %v5864 = vrot.slane %v583, 2
        %v5865 = vrot.slane %v584, 2
        %v5866 = vrot.slane %v585, 2
        %v5867 = vrot.slane %v586, 2
        %v5868 = vrot.slane %v587, 2
        %v5869 = vrot.slane %v588, 2
        %v5870 = vrot.slane %v589, 2
        %v5871 = vrot.slane %v590, 2
        %v5872 = vrot.slane %v591, 2
        %v5873 = vrot.slane %v592, 2
        %s5874 = vtos %v5826
        %v5875 = vstv %s5874
        %s5877 = vtos %v5827
        %v5878 = vstv %s5877
        %s5880 = vtos %v5828
        %v5881 = vstv %s5880
        %s5883 = vtos %v5829
        %v5884 = vstv %s5883
        %s5886 = vtos %v5830
        %v5887 = vstv %s5886
        %s5889 = vtos %v5831
        %v5890 = vstv %s5889
        %s5892 = vtos %v5832
        %v5893 = vstv %s5892
        %s5895 = vtos %v5833
        %v5896 = vstv %s5895
        %s5898 = vtos %v5834
        %v5899 = vstv %s5898
        %s5901 = vtos %v5835
        %v5902 = vstv %s5901
        %s5904 = vtos %v5836
        %v5905 = vstv %s5904
        %s5907 = vtos %v5837
        %v5908 = vstv %s5907
        %s5910 = vtos %v5838
        %v5911 = vstv %s5910
        %s5913 = vtos %v5839
        %v5914 = vstv %s5913
        %s5916 = vtos %v5840
        %v5917 = vstv %s5916
        %s5919 = vtos %v5841
        %v5920 = vstv %s5919
        %s5922 = vtos %v5842
        %v5923 = vstv %s5922
        %s5925 = vtos %v5843
        %v5926 = vstv %s5925
        %s5928 = vtos %v5844
        %v5929 = vstv %s5928
        %s5931 = vtos %v5845
        %v5932 = vstv %s5931
        %s5934 = vtos %v5846
        %v5935 = vstv %s5934
        %s5937 = vtos %v5847
        %v5938 = vstv %s5937
        %s5940 = vtos %v5848
        %v5941 = vstv %s5940
        %s5943 = vtos %v5849
        %v5944 = vstv %s5943
        %s5946 = vtos %v5850
        %v5947 = vstv %s5946
        %s5949 = vtos %v5851
        %v5950 = vstv %s5949
        %s5952 = vtos %v5852
        %v5953 = vstv %s5952
        %s5955 = vtos %v5853
        %v5956 = vstv %s5955
        %s5958 = vtos %v5854
        %v5959 = vstv %s5958
        %s5961 = vtos %v5855
        %v5962 = vstv %s5961
        %s5964 = vtos %v5856
        %v5965 = vstv %s5964
        %s5967 = vtos %v5857
        %v5968 = vstv %s5967
        %s5970 = vtos %v5858
        %v5971 = vstv %s5970
        %s5973 = vtos %v5859
        %v5974 = vstv %s5973
        %s5976 = vtos %v5860
        %v5977 = vstv %s5976
        %s5979 = vtos %v5861
        %v5980 = vstv %s5979
        %s5982 = vtos %v5862
        %v5983 = vstv %s5982
        %s5985 = vtos %v5863
        %v5986 = vstv %s5985
        %s5988 = vtos %v5864
        %v5989 = vstv %s5988
        %s5991 = vtos %v5865
        %v5992 = vstv %s5991
        %s5994 = vtos %v5866
        %v5995 = vstv %s5994
        %s5997 = vtos %v5867
        %v5998 = vstv %s5997
        %s6000 = vtos %v5868
        %v6001 = vstv %s6000
        %s6003 = vtos %v5869
        %v6004 = vstv %s6003
        %s6006 = vtos %v5870
        %v6007 = vstv %s6006
        %s6009 = vtos %v5871
        %v6010 = vstv %s6009
        %s6012 = vtos %v5872
        %v6013 = vstv %s6012
        %s6015 = vtos %v5873
        %v6016 = vstv %s6015
        %v6018 = vmul.f32 %v401, %v5875
        %v6019 = vmul.f32 %v402, %v5875
        %v6020 = vmul.f32 %v403, %v5875
        %v6021 = vmul.f32 %v404, %v5878
        %v6022 = vmul.f32 %v405, %v5878
        %v6023 = vmul.f32 %v406, %v5878
        %v6024 = vmul.f32 %v407, %v5881
        %v6025 = vmul.f32 %v408, %v5881
        %v6026 = vmul.f32 %v409, %v5881
        %v6027 = vmul.f32 %v410, %v5884
        %v6028 = vmul.f32 %v411, %v5884
        %v6029 = vmul.f32 %v412, %v5884
        %v6030 = vmul.f32 %v413, %v5887
        %v6031 = vmul.f32 %v414, %v5887
        %v6032 = vmul.f32 %v415, %v5887
        %v6033 = vmul.f32 %v416, %v5890
        %v6034 = vmul.f32 %v417, %v5890
        %v6035 = vmul.f32 %v418, %v5890
        %v6036 = vmul.f32 %v419, %v5893
        %v6037 = vmul.f32 %v420, %v5893
        %v6038 = vmul.f32 %v421, %v5893
        %v6039 = vmul.f32 %v422, %v5896
        %v6040 = vmul.f32 %v423, %v5896
        %v6041 = vmul.f32 %v424, %v5896
        %v6042 = vmul.f32 %v425, %v5899
        %v6043 = vmul.f32 %v426, %v5899
        %v6044 = vmul.f32 %v427, %v5899
        %v6045 = vmul.f32 %v428, %v5902
        %v6046 = vmul.f32 %v429, %v5902
        %v6047 = vmul.f32 %v430, %v5902
        %v6048 = vmul.f32 %v431, %v5905
        %v6049 = vmul.f32 %v432, %v5905
        %v6050 = vmul.f32 %v433, %v5905
        %v6051 = vmul.f32 %v434, %v5908
        %v6052 = vmul.f32 %v435, %v5908
        %v6053 = vmul.f32 %v436, %v5908
        %v6054 = vmul.f32 %v437, %v5911
        %v6055 = vmul.f32 %v438, %v5911
        %v6056 = vmul.f32 %v439, %v5911
        %v6057 = vmul.f32 %v440, %v5914
        %v6058 = vmul.f32 %v441, %v5914
        %v6059 = vmul.f32 %v442, %v5914
        %v6060 = vmul.f32 %v443, %v5917
        %v6061 = vmul.f32 %v444, %v5917
        %v6062 = vmul.f32 %v445, %v5917
        %v6063 = vmul.f32 %v446, %v5920
        %v6064 = vmul.f32 %v447, %v5920
        %v6065 = vmul.f32 %v448, %v5920
        %v6066 = vmul.f32 %v449, %v5923
        %v6067 = vmul.f32 %v450, %v5923
        %v6068 = vmul.f32 %v451, %v5923
        %v6069 = vmul.f32 %v452, %v5926
        %v6070 = vmul.f32 %v453, %v5926
        %v6071 = vmul.f32 %v454, %v5926
        %v6072 = vmul.f32 %v455, %v5929
        %v6073 = vmul.f32 %v456, %v5929
        %v6074 = vmul.f32 %v457, %v5929
        %v6075 = vmul.f32 %v458, %v5932
        %v6076 = vmul.f32 %v459, %v5932
        %v6077 = vmul.f32 %v460, %v5932
        %v6078 = vmul.f32 %v461, %v5935
        %v6079 = vmul.f32 %v462, %v5935
        %v6080 = vmul.f32 %v463, %v5935
        %v6081 = vmul.f32 %v464, %v5938
        %v6082 = vmul.f32 %v465, %v5938
        %v6083 = vmul.f32 %v466, %v5938
        %v6084 = vmul.f32 %v467, %v5941
        %v6085 = vmul.f32 %v468, %v5941
        %v6086 = vmul.f32 %v469, %v5941
        %v6087 = vmul.f32 %v470, %v5944
        %v6088 = vmul.f32 %v471, %v5944
        %v6089 = vmul.f32 %v472, %v5944
        %v6090 = vmul.f32 %v473, %v5947
        %v6091 = vmul.f32 %v474, %v5947
        %v6092 = vmul.f32 %v475, %v5947
        %v6093 = vmul.f32 %v476, %v5950
        %v6094 = vmul.f32 %v477, %v5950
        %v6095 = vmul.f32 %v478, %v5950
        %v6096 = vmul.f32 %v479, %v5953
        %v6097 = vmul.f32 %v480, %v5953
        %v6098 = vmul.f32 %v481, %v5953
        %v6099 = vmul.f32 %v482, %v5956
        %v6100 = vmul.f32 %v483, %v5956
        %v6101 = vmul.f32 %v484, %v5956
        %v6102 = vmul.f32 %v485, %v5959
        %v6103 = vmul.f32 %v486, %v5959
        %v6104 = vmul.f32 %v487, %v5959
        %v6105 = vmul.f32 %v488, %v5962
        %v6106 = vmul.f32 %v489, %v5962
        %v6107 = vmul.f32 %v490, %v5962
        %v6108 = vmul.f32 %v491, %v5965
        %v6109 = vmul.f32 %v492, %v5965
        %v6110 = vmul.f32 %v493, %v5965
        %v6111 = vmul.f32 %v494, %v5968
        %v6112 = vmul.f32 %v495, %v5968
        %v6113 = vmul.f32 %v496, %v5968
        %v6114 = vmul.f32 %v497, %v5971
        %v6115 = vmul.f32 %v498, %v5971
        %v6116 = vmul.f32 %v499, %v5971
        %v6117 = vmul.f32 %v500, %v5974
        %v6118 = vmul.f32 %v501, %v5974
        %v6119 = vmul.f32 %v502, %v5974
        %v6120 = vmul.f32 %v503, %v5977
        %v6121 = vmul.f32 %v504, %v5977
        %v6122 = vmul.f32 %v505, %v5977
        %v6123 = vmul.f32 %v506, %v5980
        %v6124 = vmul.f32 %v507, %v5980
        %v6125 = vmul.f32 %v508, %v5980
        %v6126 = vmul.f32 %v509, %v5983
        %v6127 = vmul.f32 %v510, %v5983
        %v6128 = vmul.f32 %v511, %v5983
        %v6129 = vmul.f32 %v512, %v5986
        %v6130 = vmul.f32 %v513, %v5986
        %v6131 = vmul.f32 %v514, %v5986
        %v6132 = vmul.f32 %v515, %v5989
        %v6133 = vmul.f32 %v516, %v5989
        %v6134 = vmul.f32 %v517, %v5989
        %v6135 = vmul.f32 %v518, %v5992
        %v6136 = vmul.f32 %v519, %v5992
        %v6137 = vmul.f32 %v520, %v5992
        %v6138 = vmul.f32 %v521, %v5995
        %v6139 = vmul.f32 %v522, %v5995
        %v6140 = vmul.f32 %v523, %v5995
        %v6141 = vmul.f32 %v524, %v5998
        %v6142 = vmul.f32 %v525, %v5998
        %v6143 = vmul.f32 %v526, %v5998
        %v6144 = vmul.f32 %v527, %v6001
        %v6145 = vmul.f32 %v528, %v6001
        %v6146 = vmul.f32 %v529, %v6001
        %v6147 = vmul.f32 %v530, %v6004
        %v6148 = vmul.f32 %v531, %v6004
        %v6149 = vmul.f32 %v532, %v6004
        %v6150 = vmul.f32 %v533, %v6007
        %v6151 = vmul.f32 %v534, %v6007
        %v6152 = vmul.f32 %v535, %v6007
        %v6153 = vmul.f32 %v536, %v6010
        %v6154 = vmul.f32 %v537, %v6010
        %v6155 = vmul.f32 %v538, %v6010
        %v6156 = vmul.f32 %v539, %v6013
        %v6157 = vmul.f32 %v540, %v6013
        %v6158 = vmul.f32 %v541, %v6013
        %v6159 = vmul.f32 %v542, %v6016
        %v6160 = vmul.f32 %v543, %v6016
        %v6161 = vmul.f32 %v544, %v6016
        %vm6306 = vcmask 1045504
        %v6307 = vrot.slane %v6018, 2
        %v6308 = vrot.slane %v6019, 2
        %v6309 = vsel %vm6306, %v6307, %v6308
        %v6310 = vrot.slane %v6020, 2
        %v6311 = vsel %vm6306, %v6308, %v6310
        %v6312 = vrot.slane %v6021, 2
        %v6313 = vrot.slane %v6022, 2
        %v6314 = vsel %vm6306, %v6312, %v6313
        %v6315 = vrot.slane %v6023, 2
        %v6316 = vsel %vm6306, %v6313, %v6315
        %v6317 = vrot.slane %v6024, 2
        %v6318 = vrot.slane %v6025, 2
        %v6319 = vsel %vm6306, %v6317, %v6318
        %v6320 = vrot.slane %v6026, 2
        %v6321 = vsel %vm6306, %v6318, %v6320
        %v6322 = vrot.slane %v6027, 2
        %v6323 = vrot.slane %v6028, 2
        %v6324 = vsel %vm6306, %v6322, %v6323
        %v6325 = vrot.slane %v6029, 2
        %v6326 = vsel %vm6306, %v6323, %v6325
        %v6327 = vrot.slane %v6030, 2
        %v6328 = vrot.slane %v6031, 2
        %v6329 = vsel %vm6306, %v6327, %v6328
        %v6330 = vrot.slane %v6032, 2
        %v6331 = vsel %vm6306, %v6328, %v6330
        %v6332 = vrot.slane %v6033, 2
        %v6333 = vrot.slane %v6034, 2
        %v6334 = vsel %vm6306, %v6332, %v6333
        %v6335 = vrot.slane %v6035, 2
        %v6336 = vsel %vm6306, %v6333, %v6335
        %v6337 = vrot.slane %v6036, 2
        %v6338 = vrot.slane %v6037, 2
        %v6339 = vsel %vm6306, %v6337, %v6338
        %v6340 = vrot.slane %v6038, 2
        %v6341 = vsel %vm6306, %v6338, %v6340
        %v6342 = vrot.slane %v6039, 2
        %v6343 = vrot.slane %v6040, 2
        %v6344 = vsel %vm6306, %v6342, %v6343
        %v6345 = vrot.slane %v6041, 2
        %v6346 = vsel %vm6306, %v6343, %v6345
        %v6347 = vrot.slane %v6042, 2
        %v6348 = vrot.slane %v6043, 2
        %v6349 = vsel %vm6306, %v6347, %v6348
        %v6350 = vrot.slane %v6044, 2
        %v6351 = vsel %vm6306, %v6348, %v6350
        %v6352 = vrot.slane %v6045, 2
        %v6353 = vrot.slane %v6046, 2
        %v6354 = vsel %vm6306, %v6352, %v6353
        %v6355 = vrot.slane %v6047, 2
        %v6356 = vsel %vm6306, %v6353, %v6355
        %v6357 = vrot.slane %v6048, 2
        %v6358 = vrot.slane %v6049, 2
        %v6359 = vsel %vm6306, %v6357, %v6358
        %v6360 = vrot.slane %v6050, 2
        %v6361 = vsel %vm6306, %v6358, %v6360
        %v6362 = vrot.slane %v6051, 2
        %v6363 = vrot.slane %v6052, 2
        %v6364 = vsel %vm6306, %v6362, %v6363
        %v6365 = vrot.slane %v6053, 2
        %v6366 = vsel %vm6306, %v6363, %v6365
        %v6367 = vrot.slane %v6054, 2
        %v6368 = vrot.slane %v6055, 2
        %v6369 = vsel %vm6306, %v6367, %v6368
        %v6370 = vrot.slane %v6056, 2
        %v6371 = vsel %vm6306, %v6368, %v6370
        %v6372 = vrot.slane %v6057, 2
        %v6373 = vrot.slane %v6058, 2
        %v6374 = vsel %vm6306, %v6372, %v6373
        %v6375 = vrot.slane %v6059, 2
        %v6376 = vsel %vm6306, %v6373, %v6375
        %v6377 = vrot.slane %v6060, 2
        %v6378 = vrot.slane %v6061, 2
        %v6379 = vsel %vm6306, %v6377, %v6378
        %v6380 = vrot.slane %v6062, 2
        %v6381 = vsel %vm6306, %v6378, %v6380
        %v6382 = vrot.slane %v6063, 2
        %v6383 = vrot.slane %v6064, 2
        %v6384 = vsel %vm6306, %v6382, %v6383
        %v6385 = vrot.slane %v6065, 2
        %v6386 = vsel %vm6306, %v6383, %v6385
        %v6387 = vrot.slane %v6066, 2
        %v6388 = vrot.slane %v6067, 2
        %v6389 = vsel %vm6306, %v6387, %v6388
        %v6390 = vrot.slane %v6068, 2
        %v6391 = vsel %vm6306, %v6388, %v6390
        %v6392 = vrot.slane %v6069, 2
        %v6393 = vrot.slane %v6070, 2
        %v6394 = vsel %vm6306, %v6392, %v6393
        %v6395 = vrot.slane %v6071, 2
        %v6396 = vsel %vm6306, %v6393, %v6395
        %v6397 = vrot.slane %v6072, 2
        %v6398 = vrot.slane %v6073, 2
        %v6399 = vsel %vm6306, %v6397, %v6398
        %v6400 = vrot.slane %v6074, 2
        %v6401 = vsel %vm6306, %v6398, %v6400
        %v6402 = vrot.slane %v6075, 2
        %v6403 = vrot.slane %v6076, 2
        %v6404 = vsel %vm6306, %v6402, %v6403
        %v6405 = vrot.slane %v6077, 2
        %v6406 = vsel %vm6306, %v6403, %v6405
        %v6407 = vrot.slane %v6078, 2
        %v6408 = vrot.slane %v6079, 2
        %v6409 = vsel %vm6306, %v6407, %v6408
        %v6410 = vrot.slane %v6080, 2
        %v6411 = vsel %vm6306, %v6408, %v6410
        %v6412 = vrot.slane %v6081, 2
        %v6413 = vrot.slane %v6082, 2
        %v6414 = vsel %vm6306, %v6412, %v6413
        %v6415 = vrot.slane %v6083, 2
        %v6416 = vsel %vm6306, %v6413, %v6415
        %v6417 = vrot.slane %v6084, 2
        %v6418 = vrot.slane %v6085, 2
        %v6419 = vsel %vm6306, %v6417, %v6418
        %v6420 = vrot.slane %v6086, 2
        %v6421 = vsel %vm6306, %v6418, %v6420
        %v6422 = vrot.slane %v6087, 2
        %v6423 = vrot.slane %v6088, 2
        %v6424 = vsel %vm6306, %v6422, %v6423
        %v6425 = vrot.slane %v6089, 2
        %v6426 = vsel %vm6306, %v6423, %v6425
        %v6427 = vrot.slane %v6090, 2
        %v6428 = vrot.slane %v6091, 2
        %v6429 = vsel %vm6306, %v6427, %v6428
        %v6430 = vrot.slane %v6092, 2
        %v6431 = vsel %vm6306, %v6428, %v6430
        %v6432 = vrot.slane %v6093, 2
        %v6433 = vrot.slane %v6094, 2
        %v6434 = vsel %vm6306, %v6432, %v6433
        %v6435 = vrot.slane %v6095, 2
        %v6436 = vsel %vm6306, %v6433, %v6435
        %v6437 = vrot.slane %v6096, 2
        %v6438 = vrot.slane %v6097, 2
        %v6439 = vsel %vm6306, %v6437, %v6438
        %v6440 = vrot.slane %v6098, 2
        %v6441 = vsel %vm6306, %v6438, %v6440
        %v6442 = vrot.slane %v6099, 2
        %v6443 = vrot.slane %v6100, 2
        %v6444 = vsel %vm6306, %v6442, %v6443
        %v6445 = vrot.slane %v6101, 2
        %v6446 = vsel %vm6306, %v6443, %v6445
        %v6447 = vrot.slane %v6102, 2
        %v6448 = vrot.slane %v6103, 2
        %v6449 = vsel %vm6306, %v6447, %v6448
        %v6450 = vrot.slane %v6104, 2
        %v6451 = vsel %vm6306, %v6448, %v6450
        %v6452 = vrot.slane %v6105, 2
        %v6453 = vrot.slane %v6106, 2
        %v6454 = vsel %vm6306, %v6452, %v6453
        %v6455 = vrot.slane %v6107, 2
        %v6456 = vsel %vm6306, %v6453, %v6455
        %v6457 = vrot.slane %v6108, 2
        %v6458 = vrot.slane %v6109, 2
        %v6459 = vsel %vm6306, %v6457, %v6458
        %v6460 = vrot.slane %v6110, 2
        %v6461 = vsel %vm6306, %v6458, %v6460
        %v6462 = vrot.slane %v6111, 2
        %v6463 = vrot.slane %v6112, 2
        %v6464 = vsel %vm6306, %v6462, %v6463
        %v6465 = vrot.slane %v6113, 2
        %v6466 = vsel %vm6306, %v6463, %v6465
        %v6467 = vrot.slane %v6114, 2
        %v6468 = vrot.slane %v6115, 2
        %v6469 = vsel %vm6306, %v6467, %v6468
        %v6470 = vrot.slane %v6116, 2
        %v6471 = vsel %vm6306, %v6468, %v6470
        %v6472 = vrot.slane %v6117, 2
        %v6473 = vrot.slane %v6118, 2
        %v6474 = vsel %vm6306, %v6472, %v6473
        %v6475 = vrot.slane %v6119, 2
        %v6476 = vsel %vm6306, %v6473, %v6475
        %v6477 = vrot.slane %v6120, 2
        %v6478 = vrot.slane %v6121, 2
        %v6479 = vsel %vm6306, %v6477, %v6478
        %v6480 = vrot.slane %v6122, 2
        %v6481 = vsel %vm6306, %v6478, %v6480
        %v6482 = vrot.slane %v6123, 2
        %v6483 = vrot.slane %v6124, 2
        %v6484 = vsel %vm6306, %v6482, %v6483
        %v6485 = vrot.slane %v6125, 2
        %v6486 = vsel %vm6306, %v6483, %v6485
        %v6487 = vrot.slane %v6126, 2
        %v6488 = vrot.slane %v6127, 2
        %v6489 = vsel %vm6306, %v6487, %v6488
        %v6490 = vrot.slane %v6128, 2
        %v6491 = vsel %vm6306, %v6488, %v6490
        %v6492 = vrot.slane %v6129, 2
        %v6493 = vrot.slane %v6130, 2
        %v6494 = vsel %vm6306, %v6492, %v6493
        %v6495 = vrot.slane %v6131, 2
        %v6496 = vsel %vm6306, %v6493, %v6495
        %v6497 = vrot.slane %v6132, 2
        %v6498 = vrot.slane %v6133, 2
        %v6499 = vsel %vm6306, %v6497, %v6498
        %v6500 = vrot.slane %v6134, 2
        %v6501 = vsel %vm6306, %v6498, %v6500
        %v6502 = vrot.slane %v6135, 2
        %v6503 = vrot.slane %v6136, 2
        %v6504 = vsel %vm6306, %v6502, %v6503
        %v6505 = vrot.slane %v6137, 2
        %v6506 = vsel %vm6306, %v6503, %v6505
        %v6507 = vrot.slane %v6138, 2
        %v6508 = vrot.slane %v6139, 2
        %v6509 = vsel %vm6306, %v6507, %v6508
        %v6510 = vrot.slane %v6140, 2
        %v6511 = vsel %vm6306, %v6508, %v6510
        %v6512 = vrot.slane %v6141, 2
        %v6513 = vrot.slane %v6142, 2
        %v6514 = vsel %vm6306, %v6512, %v6513
        %v6515 = vrot.slane %v6143, 2
        %v6516 = vsel %vm6306, %v6513, %v6515
        %v6517 = vrot.slane %v6144, 2
        %v6518 = vrot.slane %v6145, 2
        %v6519 = vsel %vm6306, %v6517, %v6518
        %v6520 = vrot.slane %v6146, 2
        %v6521 = vsel %vm6306, %v6518, %v6520
        %v6522 = vrot.slane %v6147, 2
        %v6523 = vrot.slane %v6148, 2
        %v6524 = vsel %vm6306, %v6522, %v6523
        %v6525 = vrot.slane %v6149, 2
        %v6526 = vsel %vm6306, %v6523, %v6525
        %v6527 = vrot.slane %v6150, 2
        %v6528 = vrot.slane %v6151, 2
        %v6529 = vsel %vm6306, %v6527, %v6528
        %v6530 = vrot.slane %v6152, 2
        %v6531 = vsel %vm6306, %v6528, %v6530
        %v6532 = vrot.slane %v6153, 2
        %v6533 = vrot.slane %v6154, 2
        %v6534 = vsel %vm6306, %v6532, %v6533
        %v6535 = vrot.slane %v6155, 2
        %v6536 = vsel %vm6306, %v6533, %v6535
        %v6537 = vrot.slane %v6156, 2
        %v6538 = vrot.slane %v6157, 2
        %v6539 = vsel %vm6306, %v6537, %v6538
        %v6540 = vrot.slane %v6158, 2
        %v6541 = vsel %vm6306, %v6538, %v6540
        %v6542 = vrot.slane %v6159, 2
        %v6543 = vrot.slane %v6160, 2
        %v6544 = vsel %vm6306, %v6542, %v6543
        %v6545 = vrot.slane %v6161, 2
        %v6546 = vsel %vm6306, %v6543, %v6545
        %v6643 = vadd.f32 %v5730, %v6309
        %v6644 = vadd.f32 %v5731, %v6311
        %v6645 = vadd.f32 %v5732, %v6314
        %v6646 = vadd.f32 %v5733, %v6316
        %v6647 = vadd.f32 %v5734, %v6319
        %v6648 = vadd.f32 %v5735, %v6321
        %v6649 = vadd.f32 %v5736, %v6324
        %v6650 = vadd.f32 %v5737, %v6326
        %v6651 = vadd.f32 %v5738, %v6329
        %v6652 = vadd.f32 %v5739, %v6331
        %v6653 = vadd.f32 %v5740, %v6334
        %v6654 = vadd.f32 %v5741, %v6336
        %v6655 = vadd.f32 %v5742, %v6339
        %v6656 = vadd.f32 %v5743, %v6341
        %v6657 = vadd.f32 %v5744, %v6344
        %v6658 = vadd.f32 %v5745, %v6346
        %v6659 = vadd.f32 %v5746, %v6349
        %v6660 = vadd.f32 %v5747, %v6351
        %v6661 = vadd.f32 %v5748, %v6354
        %v6662 = vadd.f32 %v5749, %v6356
        %v6663 = vadd.f32 %v5750, %v6359
        %v6664 = vadd.f32 %v5751, %v6361
        %v6665 = vadd.f32 %v5752, %v6364
        %v6666 = vadd.f32 %v5753, %v6366
        %v6667 = vadd.f32 %v5754, %v6369
        %v6668 = vadd.f32 %v5755, %v6371
        %v6669 = vadd.f32 %v5756, %v6374
        %v6670 = vadd.f32 %v5757, %v6376
        %v6671 = vadd.f32 %v5758, %v6379
        %v6672 = vadd.f32 %v5759, %v6381
        %v6673 = vadd.f32 %v5760, %v6384
        %v6674 = vadd.f32 %v5761, %v6386
        %v6675 = vadd.f32 %v5762, %v6389
        %v6676 = vadd.f32 %v5763, %v6391
        %v6677 = vadd.f32 %v5764, %v6394
        %v6678 = vadd.f32 %v5765, %v6396
        %v6679 = vadd.f32 %v5766, %v6399
        %v6680 = vadd.f32 %v5767, %v6401
        %v6681 = vadd.f32 %v5768, %v6404
        %v6682 = vadd.f32 %v5769, %v6406
        %v6683 = vadd.f32 %v5770, %v6409
        %v6684 = vadd.f32 %v5771, %v6411
        %v6685 = vadd.f32 %v5772, %v6414
        %v6686 = vadd.f32 %v5773, %v6416
        %v6687 = vadd.f32 %v5774, %v6419
        %v6688 = vadd.f32 %v5775, %v6421
        %v6689 = vadd.f32 %v5776, %v6424
        %v6690 = vadd.f32 %v5777, %v6426
        %v6691 = vadd.f32 %v5778, %v6429
        %v6692 = vadd.f32 %v5779, %v6431
        %v6693 = vadd.f32 %v5780, %v6434
        %v6694 = vadd.f32 %v5781, %v6436
        %v6695 = vadd.f32 %v5782, %v6439
        %v6696 = vadd.f32 %v5783, %v6441
        %v6697 = vadd.f32 %v5784, %v6444
        %v6698 = vadd.f32 %v5785, %v6446
        %v6699 = vadd.f32 %v5786, %v6449
        %v6700 = vadd.f32 %v5787, %v6451
        %v6701 = vadd.f32 %v5788, %v6454
        %v6702 = vadd.f32 %v5789, %v6456
        %v6703 = vadd.f32 %v5790, %v6459
        %v6704 = vadd.f32 %v5791, %v6461
        %v6705 = vadd.f32 %v5792, %v6464
        %v6706 = vadd.f32 %v5793, %v6466
        %v6707 = vadd.f32 %v5794, %v6469
        %v6708 = vadd.f32 %v5795, %v6471
        %v6709 = vadd.f32 %v5796, %v6474
        %v6710 = vadd.f32 %v5797, %v6476
        %v6711 = vadd.f32 %v5798, %v6479
        %v6712 = vadd.f32 %v5799, %v6481
        %v6713 = vadd.f32 %v5800, %v6484
        %v6714 = vadd.f32 %v5801, %v6486
        %v6715 = vadd.f32 %v5802, %v6489
        %v6716 = vadd.f32 %v5803, %v6491
        %v6717 = vadd.f32 %v5804, %v6494
        %v6718 = vadd.f32 %v5805, %v6496
        %v6719 = vadd.f32 %v5806, %v6499
        %v6720 = vadd.f32 %v5807, %v6501
        %v6721 = vadd.f32 %v5808, %v6504
        %v6722 = vadd.f32 %v5809, %v6506
        %v6723 = vadd.f32 %v5810, %v6509
        %v6724 = vadd.f32 %v5811, %v6511
        %v6725 = vadd.f32 %v5812, %v6514
        %v6726 = vadd.f32 %v5813, %v6516
        %v6727 = vadd.f32 %v5814, %v6519
        %v6728 = vadd.f32 %v5815, %v6521
        %v6729 = vadd.f32 %v5816, %v6524
        %v6730 = vadd.f32 %v5817, %v6526
        %v6731 = vadd.f32 %v5818, %v6529
        %v6732 = vadd.f32 %v5819, %v6531
        %v6733 = vadd.f32 %v5820, %v6534
        %v6734 = vadd.f32 %v5821, %v6536
        %v6735 = vadd.f32 %v5822, %v6539
        %v6736 = vadd.f32 %v5823, %v6541
        %v6737 = vadd.f32 %v5824, %v6544
        %v6738 = vadd.f32 %v5825, %v6546
        %6739 = vrot.lane.b32.xlu0 %v5826, 127
        %v6740 = vpop.permute.xlu0 %6739
        %6741 = vrot.lane.b32.xlu0 %v5827, 127
        %v6742 = vpop.permute.xlu0 %6741
        %6743 = vrot.lane.b32.xlu0 %v5828, 127
        %v6744 = vpop.permute.xlu0 %6743
        %6745 = vrot.lane.b32.xlu0 %v5829, 127
        %v6746 = vpop.permute.xlu0 %6745
        %6747 = vrot.lane.b32.xlu0 %v5830, 127
        %v6748 = vpop.permute.xlu0 %6747
        %6749 = vrot.lane.b32.xlu0 %v5831, 127
        %v6750 = vpop.permute.xlu0 %6749
        %6751 = vrot.lane.b32.xlu0 %v5832, 127
        %v6752 = vpop.permute.xlu0 %6751
        %6753 = vrot.lane.b32.xlu0 %v5833, 127
        %v6754 = vpop.permute.xlu0 %6753
        %6755 = vrot.lane.b32.xlu0 %v5834, 127
        %v6756 = vpop.permute.xlu0 %6755
        %6757 = vrot.lane.b32.xlu0 %v5835, 127
        %v6758 = vpop.permute.xlu0 %6757
        %6759 = vrot.lane.b32.xlu0 %v5836, 127
        %v6760 = vpop.permute.xlu0 %6759
        %6761 = vrot.lane.b32.xlu0 %v5837, 127
        %v6762 = vpop.permute.xlu0 %6761
        %6763 = vrot.lane.b32.xlu0 %v5838, 127
        %v6764 = vpop.permute.xlu0 %6763
        %6765 = vrot.lane.b32.xlu0 %v5839, 127
        %v6766 = vpop.permute.xlu0 %6765
        %6767 = vrot.lane.b32.xlu0 %v5840, 127
        %v6768 = vpop.permute.xlu0 %6767
        %6769 = vrot.lane.b32.xlu0 %v5841, 127
        %v6770 = vpop.permute.xlu0 %6769
        %6771 = vrot.lane.b32.xlu0 %v5842, 127
        %v6772 = vpop.permute.xlu0 %6771
        %6773 = vrot.lane.b32.xlu0 %v5843, 127
        %v6774 = vpop.permute.xlu0 %6773
        %6775 = vrot.lane.b32.xlu0 %v5844, 127
        %v6776 = vpop.permute.xlu0 %6775
        %6777 = vrot.lane.b32.xlu0 %v5845, 127
        %v6778 = vpop.permute.xlu0 %6777
        %6779 = vrot.lane.b32.xlu0 %v5846, 127
        %v6780 = vpop.permute.xlu0 %6779
        %6781 = vrot.lane.b32.xlu0 %v5847, 127
        %v6782 = vpop.permute.xlu0 %6781
        %6783 = vrot.lane.b32.xlu0 %v5848, 127
        %v6784 = vpop.permute.xlu0 %6783
        %6785 = vrot.lane.b32.xlu0 %v5849, 127
        %v6786 = vpop.permute.xlu0 %6785
        %6787 = vrot.lane.b32.xlu0 %v5850, 127
        %v6788 = vpop.permute.xlu0 %6787
        %6789 = vrot.lane.b32.xlu0 %v5851, 127
        %v6790 = vpop.permute.xlu0 %6789
        %6791 = vrot.lane.b32.xlu0 %v5852, 127
        %v6792 = vpop.permute.xlu0 %6791
        %6793 = vrot.lane.b32.xlu0 %v5853, 127
        %v6794 = vpop.permute.xlu0 %6793
        %6795 = vrot.lane.b32.xlu0 %v5854, 127
        %v6796 = vpop.permute.xlu0 %6795
        %6797 = vrot.lane.b32.xlu0 %v5855, 127
        %v6798 = vpop.permute.xlu0 %6797
        %6799 = vrot.lane.b32.xlu0 %v5856, 127
        %v6800 = vpop.permute.xlu0 %6799
        %6801 = vrot.lane.b32.xlu0 %v5857, 127
        %v6802 = vpop.permute.xlu0 %6801
        %6803 = vrot.lane.b32.xlu0 %v5858, 127
        %v6804 = vpop.permute.xlu0 %6803
        %6805 = vrot.lane.b32.xlu0 %v5859, 127
        %v6806 = vpop.permute.xlu0 %6805
        %6807 = vrot.lane.b32.xlu0 %v5860, 127
        %v6808 = vpop.permute.xlu0 %6807
        %6809 = vrot.lane.b32.xlu0 %v5861, 127
        %v6810 = vpop.permute.xlu0 %6809
        %6811 = vrot.lane.b32.xlu0 %v5862, 127
        %v6812 = vpop.permute.xlu0 %6811
        %6813 = vrot.lane.b32.xlu0 %v5863, 127
        %v6814 = vpop.permute.xlu0 %6813
        %6815 = vrot.lane.b32.xlu0 %v5864, 127
        %v6816 = vpop.permute.xlu0 %6815
        %6817 = vrot.lane.b32.xlu0 %v5865, 127
        %v6818 = vpop.permute.xlu0 %6817
        %6819 = vrot.lane.b32.xlu0 %v5866, 127
        %v6820 = vpop.permute.xlu0 %6819
        %6821 = vrot.lane.b32.xlu0 %v5867, 127
        %v6822 = vpop.permute.xlu0 %6821
        %6823 = vrot.lane.b32.xlu0 %v5868, 127
        %v6824 = vpop.permute.xlu0 %6823
        %6825 = vrot.lane.b32.xlu0 %v5869, 127
        %v6826 = vpop.permute.xlu0 %6825
        %6827 = vrot.lane.b32.xlu0 %v5870, 127
        %v6828 = vpop.permute.xlu0 %6827
        %6829 = vrot.lane.b32.xlu0 %v5871, 127
        %v6830 = vpop.permute.xlu0 %6829
        %6831 = vrot.lane.b32.xlu0 %v5872, 127
        %v6832 = vpop.permute.xlu0 %6831
        %6833 = vrot.lane.b32.xlu0 %v5873, 127
        %v6834 = vpop.permute.xlu0 %6833
        %s6835 = vtos %v6740
        %v6836 = vstv %s6835
        %s6838 = vtos %v6742
        %v6839 = vstv %s6838
        %s6841 = vtos %v6744
        %v6842 = vstv %s6841
        %s6844 = vtos %v6746
        %v6845 = vstv %s6844
        %s6847 = vtos %v6748
        %v6848 = vstv %s6847
        %s6850 = vtos %v6750
        %v6851 = vstv %s6850
        %s6853 = vtos %v6752
        %v6854 = vstv %s6853
        %s6856 = vtos %v6754
        %v6857 = vstv %s6856
        %s6859 = vtos %v6756
        %v6860 = vstv %s6859
        %s6862 = vtos %v6758
        %v6863 = vstv %s6862
        %s6865 = vtos %v6760
        %v6866 = vstv %s6865
        %s6868 = vtos %v6762
        %v6869 = vstv %s6868
        %s6871 = vtos %v6764
        %v6872 = vstv %s6871
        %s6874 = vtos %v6766
        %v6875 = vstv %s6874
        %s6877 = vtos %v6768
        %v6878 = vstv %s6877
        %s6880 = vtos %v6770
        %v6881 = vstv %s6880
        %s6883 = vtos %v6772
        %v6884 = vstv %s6883
        %s6886 = vtos %v6774
        %v6887 = vstv %s6886
        %s6889 = vtos %v6776
        %v6890 = vstv %s6889
        %s6892 = vtos %v6778
        %v6893 = vstv %s6892
        %s6895 = vtos %v6780
        %v6896 = vstv %s6895
        %s6898 = vtos %v6782
        %v6899 = vstv %s6898
        %s6901 = vtos %v6784
        %v6902 = vstv %s6901
        %s6904 = vtos %v6786
        %v6905 = vstv %s6904
        %s6907 = vtos %v6788
        %v6908 = vstv %s6907
        %s6910 = vtos %v6790
        %v6911 = vstv %s6910
        %s6913 = vtos %v6792
        %v6914 = vstv %s6913
        %s6916 = vtos %v6794
        %v6917 = vstv %s6916
        %s6919 = vtos %v6796
        %v6920 = vstv %s6919
        %s6922 = vtos %v6798
        %v6923 = vstv %s6922
        %s6925 = vtos %v6800
        %v6926 = vstv %s6925
        %s6928 = vtos %v6802
        %v6929 = vstv %s6928
        %s6931 = vtos %v6804
        %v6932 = vstv %s6931
        %s6934 = vtos %v6806
        %v6935 = vstv %s6934
        %s6937 = vtos %v6808
        %v6938 = vstv %s6937
        %s6940 = vtos %v6810
        %v6941 = vstv %s6940
        %s6943 = vtos %v6812
        %v6944 = vstv %s6943
        %s6946 = vtos %v6814
        %v6947 = vstv %s6946
        %s6949 = vtos %v6816
        %v6950 = vstv %s6949
        %s6952 = vtos %v6818
        %v6953 = vstv %s6952
        %s6955 = vtos %v6820
        %v6956 = vstv %s6955
        %s6958 = vtos %v6822
        %v6959 = vstv %s6958
        %s6961 = vtos %v6824
        %v6962 = vstv %s6961
        %s6964 = vtos %v6826
        %v6965 = vstv %s6964
        %s6967 = vtos %v6828
        %v6968 = vstv %s6967
        %s6970 = vtos %v6830
        %v6971 = vstv %s6970
        %s6973 = vtos %v6832
        %v6974 = vstv %s6973
        %s6976 = vtos %v6834
        %v6977 = vstv %s6976
        %v6979 = vmul.f32 %v401, %v6836
        %v6980 = vmul.f32 %v402, %v6836
        %v6981 = vmul.f32 %v403, %v6836
        %v6982 = vmul.f32 %v404, %v6839
        %v6983 = vmul.f32 %v405, %v6839
        %v6984 = vmul.f32 %v406, %v6839
        %v6985 = vmul.f32 %v407, %v6842
        %v6986 = vmul.f32 %v408, %v6842
        %v6987 = vmul.f32 %v409, %v6842
        %v6988 = vmul.f32 %v410, %v6845
        %v6989 = vmul.f32 %v411, %v6845
        %v6990 = vmul.f32 %v412, %v6845
        %v6991 = vmul.f32 %v413, %v6848
        %v6992 = vmul.f32 %v414, %v6848
        %v6993 = vmul.f32 %v415, %v6848
        %v6994 = vmul.f32 %v416, %v6851
        %v6995 = vmul.f32 %v417, %v6851
        %v6996 = vmul.f32 %v418, %v6851
        %v6997 = vmul.f32 %v419, %v6854
        %v6998 = vmul.f32 %v420, %v6854
        %v6999 = vmul.f32 %v421, %v6854
        %v7000 = vmul.f32 %v422, %v6857
        %v7001 = vmul.f32 %v423, %v6857
        %v7002 = vmul.f32 %v424, %v6857
        %v7003 = vmul.f32 %v425, %v6860
        %v7004 = vmul.f32 %v426, %v6860
        %v7005 = vmul.f32 %v427, %v6860
        %v7006 = vmul.f32 %v428, %v6863
        %v7007 = vmul.f32 %v429, %v6863
        %v7008 = vmul.f32 %v430, %v6863
        %v7009 = vmul.f32 %v431, %v6866
        %v7010 = vmul.f32 %v432, %v6866
        %v7011 = vmul.f32 %v433, %v6866
        %v7012 = vmul.f32 %v434, %v6869
        %v7013 = vmul.f32 %v435, %v6869
        %v7014 = vmul.f32 %v436, %v6869
        %v7015 = vmul.f32 %v437, %v6872
        %v7016 = vmul.f32 %v438, %v6872
        %v7017 = vmul.f32 %v439, %v6872
        %v7018 = vmul.f32 %v440, %v6875
        %v7019 = vmul.f32 %v441, %v6875
        %v7020 = vmul.f32 %v442, %v6875
        %v7021 = vmul.f32 %v443, %v6878
        %v7022 = vmul.f32 %v444, %v6878
        %v7023 = vmul.f32 %v445, %v6878
        %v7024 = vmul.f32 %v446, %v6881
        %v7025 = vmul.f32 %v447, %v6881
        %v7026 = vmul.f32 %v448, %v6881
        %v7027 = vmul.f32 %v449, %v6884
        %v7028 = vmul.f32 %v450, %v6884
        %v7029 = vmul.f32 %v451, %v6884
        %v7030 = vmul.f32 %v452, %v6887
        %v7031 = vmul.f32 %v453, %v6887
        %v7032 = vmul.f32 %v454, %v6887
        %v7033 = vmul.f32 %v455, %v6890
        %v7034 = vmul.f32 %v456, %v6890
        %v7035 = vmul.f32 %v457, %v6890
        %v7036 = vmul.f32 %v458, %v6893
        %v7037 = vmul.f32 %v459, %v6893
        %v7038 = vmul.f32 %v460, %v6893
        %v7039 = vmul.f32 %v461, %v6896
        %v7040 = vmul.f32 %v462, %v6896
        %v7041 = vmul.f32 %v463, %v6896
        %v7042 = vmul.f32 %v464, %v6899
        %v7043 = vmul.f32 %v465, %v6899
        %v7044 = vmul.f32 %v466, %v6899
        %v7045 = vmul.f32 %v467, %v6902
        %v7046 = vmul.f32 %v468, %v6902
        %v7047 = vmul.f32 %v469, %v6902
        %v7048 = vmul.f32 %v470, %v6905
        %v7049 = vmul.f32 %v471, %v6905
        %v7050 = vmul.f32 %v472, %v6905
        %v7051 = vmul.f32 %v473, %v6908
        %v7052 = vmul.f32 %v474, %v6908
        %v7053 = vmul.f32 %v475, %v6908
        %v7054 = vmul.f32 %v476, %v6911
        %v7055 = vmul.f32 %v477, %v6911
        %v7056 = vmul.f32 %v478, %v6911
        %v7057 = vmul.f32 %v479, %v6914
        %v7058 = vmul.f32 %v480, %v6914
        %v7059 = vmul.f32 %v481, %v6914
        %v7060 = vmul.f32 %v482, %v6917
        %v7061 = vmul.f32 %v483, %v6917
        %v7062 = vmul.f32 %v484, %v6917
        %v7063 = vmul.f32 %v485, %v6920
        %v7064 = vmul.f32 %v486, %v6920
        %v7065 = vmul.f32 %v487, %v6920
        %v7066 = vmul.f32 %v488, %v6923
        %v7067 = vmul.f32 %v489, %v6923
        %v7068 = vmul.f32 %v490, %v6923
        %v7069 = vmul.f32 %v491, %v6926
        %v7070 = vmul.f32 %v492, %v6926
        %v7071 = vmul.f32 %v493, %v6926
        %v7072 = vmul.f32 %v494, %v6929
        %v7073 = vmul.f32 %v495, %v6929
        %v7074 = vmul.f32 %v496, %v6929
        %v7075 = vmul.f32 %v497, %v6932
        %v7076 = vmul.f32 %v498, %v6932
        %v7077 = vmul.f32 %v499, %v6932
        %v7078 = vmul.f32 %v500, %v6935
        %v7079 = vmul.f32 %v501, %v6935
        %v7080 = vmul.f32 %v502, %v6935
        %v7081 = vmul.f32 %v503, %v6938
        %v7082 = vmul.f32 %v504, %v6938
        %v7083 = vmul.f32 %v505, %v6938
        %v7084 = vmul.f32 %v506, %v6941
        %v7085 = vmul.f32 %v507, %v6941
        %v7086 = vmul.f32 %v508, %v6941
        %v7087 = vmul.f32 %v509, %v6944
        %v7088 = vmul.f32 %v510, %v6944
        %v7089 = vmul.f32 %v511, %v6944
        %v7090 = vmul.f32 %v512, %v6947
        %v7091 = vmul.f32 %v513, %v6947
        %v7092 = vmul.f32 %v514, %v6947
        %v7093 = vmul.f32 %v515, %v6950
        %v7094 = vmul.f32 %v516, %v6950
        %v7095 = vmul.f32 %v517, %v6950
        %v7096 = vmul.f32 %v518, %v6953
        %v7097 = vmul.f32 %v519, %v6953
        %v7098 = vmul.f32 %v520, %v6953
        %v7099 = vmul.f32 %v521, %v6956
        %v7100 = vmul.f32 %v522, %v6956
        %v7101 = vmul.f32 %v523, %v6956
        %v7102 = vmul.f32 %v524, %v6959
        %v7103 = vmul.f32 %v525, %v6959
        %v7104 = vmul.f32 %v526, %v6959
        %v7105 = vmul.f32 %v527, %v6962
        %v7106 = vmul.f32 %v528, %v6962
        %v7107 = vmul.f32 %v529, %v6962
        %v7108 = vmul.f32 %v530, %v6965
        %v7109 = vmul.f32 %v531, %v6965
        %v7110 = vmul.f32 %v532, %v6965
        %v7111 = vmul.f32 %v533, %v6968
        %v7112 = vmul.f32 %v534, %v6968
        %v7113 = vmul.f32 %v535, %v6968
        %v7114 = vmul.f32 %v536, %v6971
        %v7115 = vmul.f32 %v537, %v6971
        %v7116 = vmul.f32 %v538, %v6971
        %v7117 = vmul.f32 %v539, %v6974
        %v7118 = vmul.f32 %v540, %v6974
        %v7119 = vmul.f32 %v541, %v6974
        %v7120 = vmul.f32 %v542, %v6977
        %v7121 = vmul.f32 %v543, %v6977
        %v7122 = vmul.f32 %v544, %v6977
        %v7267 = vrot.slane %v6979, 2
        %v7268 = vrot.slane %v6980, 2
        %v7269 = vsel %vm6306, %v7267, %v7268
        %v7270 = vrot.slane %v6981, 2
        %v7271 = vsel %vm6306, %v7268, %v7270
        %v7272 = vrot.slane %v6982, 2
        %v7273 = vrot.slane %v6983, 2
        %v7274 = vsel %vm6306, %v7272, %v7273
        %v7275 = vrot.slane %v6984, 2
        %v7276 = vsel %vm6306, %v7273, %v7275
        %v7277 = vrot.slane %v6985, 2
        %v7278 = vrot.slane %v6986, 2
        %v7279 = vsel %vm6306, %v7277, %v7278
        %v7280 = vrot.slane %v6987, 2
        %v7281 = vsel %vm6306, %v7278, %v7280
        %v7282 = vrot.slane %v6988, 2
        %v7283 = vrot.slane %v6989, 2
        %v7284 = vsel %vm6306, %v7282, %v7283
        %v7285 = vrot.slane %v6990, 2
        %v7286 = vsel %vm6306, %v7283, %v7285
        %v7287 = vrot.slane %v6991, 2
        %v7288 = vrot.slane %v6992, 2
        %v7289 = vsel %vm6306, %v7287, %v7288
        %v7290 = vrot.slane %v6993, 2
        %v7291 = vsel %vm6306, %v7288, %v7290
        %v7292 = vrot.slane %v6994, 2
        %v7293 = vrot.slane %v6995, 2
        %v7294 = vsel %vm6306, %v7292, %v7293
        %v7295 = vrot.slane %v6996, 2
        %v7296 = vsel %vm6306, %v7293, %v7295
        %v7297 = vrot.slane %v6997, 2
        %v7298 = vrot.slane %v6998, 2
        %v7299 = vsel %vm6306, %v7297, %v7298
        %v7300 = vrot.slane %v6999, 2
        %v7301 = vsel %vm6306, %v7298, %v7300
        %v7302 = vrot.slane %v7000, 2
        %v7303 = vrot.slane %v7001, 2
        %v7304 = vsel %vm6306, %v7302, %v7303
        %v7305 = vrot.slane %v7002, 2
        %v7306 = vsel %vm6306, %v7303, %v7305
        %v7307 = vrot.slane %v7003, 2
        %v7308 = vrot.slane %v7004, 2
        %v7309 = vsel %vm6306, %v7307, %v7308
        %v7310 = vrot.slane %v7005, 2
        %v7311 = vsel %vm6306, %v7308, %v7310
        %v7312 = vrot.slane %v7006, 2
        %v7313 = vrot.slane %v7007, 2
        %v7314 = vsel %vm6306, %v7312, %v7313
        %v7315 = vrot.slane %v7008, 2
        %v7316 = vsel %vm6306, %v7313, %v7315
        %v7317 = vrot.slane %v7009, 2
        %v7318 = vrot.slane %v7010, 2
        %v7319 = vsel %vm6306, %v7317, %v7318
        %v7320 = vrot.slane %v7011, 2
        %v7321 = vsel %vm6306, %v7318, %v7320
        %v7322 = vrot.slane %v7012, 2
        %v7323 = vrot.slane %v7013, 2
        %v7324 = vsel %vm6306, %v7322, %v7323
        %v7325 = vrot.slane %v7014, 2
        %v7326 = vsel %vm6306, %v7323, %v7325
        %v7327 = vrot.slane %v7015, 2
        %v7328 = vrot.slane %v7016, 2
        %v7329 = vsel %vm6306, %v7327, %v7328
        %v7330 = vrot.slane %v7017, 2
        %v7331 = vsel %vm6306, %v7328, %v7330
        %v7332 = vrot.slane %v7018, 2
        %v7333 = vrot.slane %v7019, 2
        %v7334 = vsel %vm6306, %v7332, %v7333
        %v7335 = vrot.slane %v7020, 2
        %v7336 = vsel %vm6306, %v7333, %v7335
        %v7337 = vrot.slane %v7021, 2
        %v7338 = vrot.slane %v7022, 2
        %v7339 = vsel %vm6306, %v7337, %v7338
        %v7340 = vrot.slane %v7023, 2
        %v7341 = vsel %vm6306, %v7338, %v7340
        %v7342 = vrot.slane %v7024, 2
        %v7343 = vrot.slane %v7025, 2
        %v7344 = vsel %vm6306, %v7342, %v7343
        %v7345 = vrot.slane %v7026, 2
        %v7346 = vsel %vm6306, %v7343, %v7345
        %v7347 = vrot.slane %v7027, 2
        %v7348 = vrot.slane %v7028, 2
        %v7349 = vsel %vm6306, %v7347, %v7348
        %v7350 = vrot.slane %v7029, 2
        %v7351 = vsel %vm6306, %v7348, %v7350
        %v7352 = vrot.slane %v7030, 2
        %v7353 = vrot.slane %v7031, 2
        %v7354 = vsel %vm6306, %v7352, %v7353
        %v7355 = vrot.slane %v7032, 2
        %v7356 = vsel %vm6306, %v7353, %v7355
        %v7357 = vrot.slane %v7033, 2
        %v7358 = vrot.slane %v7034, 2
        %v7359 = vsel %vm6306, %v7357, %v7358
        %v7360 = vrot.slane %v7035, 2
        %v7361 = vsel %vm6306, %v7358, %v7360
        %v7362 = vrot.slane %v7036, 2
        %v7363 = vrot.slane %v7037, 2
        %v7364 = vsel %vm6306, %v7362, %v7363
        %v7365 = vrot.slane %v7038, 2
        %v7366 = vsel %vm6306, %v7363, %v7365
        %v7367 = vrot.slane %v7039, 2
        %v7368 = vrot.slane %v7040, 2
        %v7369 = vsel %vm6306, %v7367, %v7368
        %v7370 = vrot.slane %v7041, 2
        %v7371 = vsel %vm6306, %v7368, %v7370
        %v7372 = vrot.slane %v7042, 2
        %v7373 = vrot.slane %v7043, 2
        %v7374 = vsel %vm6306, %v7372, %v7373
        %v7375 = vrot.slane %v7044, 2
        %v7376 = vsel %vm6306, %v7373, %v7375
        %v7377 = vrot.slane %v7045, 2
        %v7378 = vrot.slane %v7046, 2
        %v7379 = vsel %vm6306, %v7377, %v7378
        %v7380 = vrot.slane %v7047, 2
        %v7381 = vsel %vm6306, %v7378, %v7380
        %v7382 = vrot.slane %v7048, 2
        %v7383 = vrot.slane %v7049, 2
        %v7384 = vsel %vm6306, %v7382, %v7383
        %v7385 = vrot.slane %v7050, 2
        %v7386 = vsel %vm6306, %v7383, %v7385
        %v7387 = vrot.slane %v7051, 2
        %v7388 = vrot.slane %v7052, 2
        %v7389 = vsel %vm6306, %v7387, %v7388
        %v7390 = vrot.slane %v7053, 2
        %v7391 = vsel %vm6306, %v7388, %v7390
        %v7392 = vrot.slane %v7054, 2
        %v7393 = vrot.slane %v7055, 2
        %v7394 = vsel %vm6306, %v7392, %v7393
        %v7395 = vrot.slane %v7056, 2
        %v7396 = vsel %vm6306, %v7393, %v7395
        %v7397 = vrot.slane %v7057, 2
        %v7398 = vrot.slane %v7058, 2
        %v7399 = vsel %vm6306, %v7397, %v7398
        %v7400 = vrot.slane %v7059, 2
        %v7401 = vsel %vm6306, %v7398, %v7400
        %v7402 = vrot.slane %v7060, 2
        %v7403 = vrot.slane %v7061, 2
        %v7404 = vsel %vm6306, %v7402, %v7403
        %v7405 = vrot.slane %v7062, 2
        %v7406 = vsel %vm6306, %v7403, %v7405
        %v7407 = vrot.slane %v7063, 2
        %v7408 = vrot.slane %v7064, 2
        %v7409 = vsel %vm6306, %v7407, %v7408
        %v7410 = vrot.slane %v7065, 2
        %v7411 = vsel %vm6306, %v7408, %v7410
        %v7412 = vrot.slane %v7066, 2
        %v7413 = vrot.slane %v7067, 2
        %v7414 = vsel %vm6306, %v7412, %v7413
        %v7415 = vrot.slane %v7068, 2
        %v7416 = vsel %vm6306, %v7413, %v7415
        %v7417 = vrot.slane %v7069, 2
        %v7418 = vrot.slane %v7070, 2
        %v7419 = vsel %vm6306, %v7417, %v7418
        %v7420 = vrot.slane %v7071, 2
        %v7421 = vsel %vm6306, %v7418, %v7420
        %v7422 = vrot.slane %v7072, 2
        %v7423 = vrot.slane %v7073, 2
        %v7424 = vsel %vm6306, %v7422, %v7423
        %v7425 = vrot.slane %v7074, 2
        %v7426 = vsel %vm6306, %v7423, %v7425
        %v7427 = vrot.slane %v7075, 2
        %v7428 = vrot.slane %v7076, 2
        %v7429 = vsel %vm6306, %v7427, %v7428
        %v7430 = vrot.slane %v7077, 2
        %v7431 = vsel %vm6306, %v7428, %v7430
        %v7432 = vrot.slane %v7078, 2
        %v7433 = vrot.slane %v7079, 2
        %v7434 = vsel %vm6306, %v7432, %v7433
        %v7435 = vrot.slane %v7080, 2
        %v7436 = vsel %vm6306, %v7433, %v7435
        %v7437 = vrot.slane %v7081, 2
        %v7438 = vrot.slane %v7082, 2
        %v7439 = vsel %vm6306, %v7437, %v7438
        %v7440 = vrot.slane %v7083, 2
        %v7441 = vsel %vm6306, %v7438, %v7440
        %v7442 = vrot.slane %v7084, 2
        %v7443 = vrot.slane %v7085, 2
        %v7444 = vsel %vm6306, %v7442, %v7443
        %v7445 = vrot.slane %v7086, 2
        %v7446 = vsel %vm6306, %v7443, %v7445
        %v7447 = vrot.slane %v7087, 2
        %v7448 = vrot.slane %v7088, 2
        %v7449 = vsel %vm6306, %v7447, %v7448
        %v7450 = vrot.slane %v7089, 2
        %v7451 = vsel %vm6306, %v7448, %v7450
        %v7452 = vrot.slane %v7090, 2
        %v7453 = vrot.slane %v7091, 2
        %v7454 = vsel %vm6306, %v7452, %v7453
        %v7455 = vrot.slane %v7092, 2
        %v7456 = vsel %vm6306, %v7453, %v7455
        %v7457 = vrot.slane %v7093, 2
        %v7458 = vrot.slane %v7094, 2
        %v7459 = vsel %vm6306, %v7457, %v7458
        %v7460 = vrot.slane %v7095, 2
        %v7461 = vsel %vm6306, %v7458, %v7460
        %v7462 = vrot.slane %v7096, 2
        %v7463 = vrot.slane %v7097, 2
        %v7464 = vsel %vm6306, %v7462, %v7463
        %v7465 = vrot.slane %v7098, 2
        %v7466 = vsel %vm6306, %v7463, %v7465
        %v7467 = vrot.slane %v7099, 2
        %v7468 = vrot.slane %v7100, 2
        %v7469 = vsel %vm6306, %v7467, %v7468
        %v7470 = vrot.slane %v7101, 2
        %v7471 = vsel %vm6306, %v7468, %v7470
        %v7472 = vrot.slane %v7102, 2
        %v7473 = vrot.slane %v7103, 2
        %v7474 = vsel %vm6306, %v7472, %v7473
        %v7475 = vrot.slane %v7104, 2
        %v7476 = vsel %vm6306, %v7473, %v7475
        %v7477 = vrot.slane %v7105, 2
        %v7478 = vrot.slane %v7106, 2
        %v7479 = vsel %vm6306, %v7477, %v7478
        %v7480 = vrot.slane %v7107, 2
        %v7481 = vsel %vm6306, %v7478, %v7480
        %v7482 = vrot.slane %v7108, 2
        %v7483 = vrot.slane %v7109, 2
        %v7484 = vsel %vm6306, %v7482, %v7483
        %v7485 = vrot.slane %v7110, 2
        %v7486 = vsel %vm6306, %v7483, %v7485
        %v7487 = vrot.slane %v7111, 2
        %v7488 = vrot.slane %v7112, 2
        %v7489 = vsel %vm6306, %v7487, %v7488
        %v7490 = vrot.slane %v7113, 2
        %v7491 = vsel %vm6306, %v7488, %v7490
        %v7492 = vrot.slane %v7114, 2
        %v7493 = vrot.slane %v7115, 2
        %v7494 = vsel %vm6306, %v7492, %v7493
        %v7495 = vrot.slane %v7116, 2
        %v7496 = vsel %vm6306, %v7493, %v7495
        %v7497 = vrot.slane %v7117, 2
        %v7498 = vrot.slane %v7118, 2
        %v7499 = vsel %vm6306, %v7497, %v7498
        %v7500 = vrot.slane %v7119, 2
        %v7501 = vsel %vm6306, %v7498, %v7500
        %v7502 = vrot.slane %v7120, 2
        %v7503 = vrot.slane %v7121, 2
        %v7504 = vsel %vm6306, %v7502, %v7503
        %v7505 = vrot.slane %v7122, 2
        %v7506 = vsel %vm6306, %v7503, %v7505
        %7507 = vrot.lane.b32.xlu0 %v7269, 127
        %v7508 = vpop.permute.xlu0 %7507
        %7509 = vrot.lane.b32.xlu0 %v7271, 127
        %v7510 = vpop.permute.xlu0 %7509
        %7511 = vrot.lane.b32.xlu0 %v7274, 127
        %v7512 = vpop.permute.xlu0 %7511
        %7513 = vrot.lane.b32.xlu0 %v7276, 127
        %v7514 = vpop.permute.xlu0 %7513
        %7515 = vrot.lane.b32.xlu0 %v7279, 127
        %v7516 = vpop.permute.xlu0 %7515
        %7517 = vrot.lane.b32.xlu0 %v7281, 127
        %v7518 = vpop.permute.xlu0 %7517
        %7519 = vrot.lane.b32.xlu0 %v7284, 127
        %v7520 = vpop.permute.xlu0 %7519
        %7521 = vrot.lane.b32.xlu0 %v7286, 127
        %v7522 = vpop.permute.xlu0 %7521
        %7523 = vrot.lane.b32.xlu0 %v7289, 127
        %v7524 = vpop.permute.xlu0 %7523
        %7525 = vrot.lane.b32.xlu0 %v7291, 127
        %v7526 = vpop.permute.xlu0 %7525
        %7527 = vrot.lane.b32.xlu0 %v7294, 127
        %v7528 = vpop.permute.xlu0 %7527
        %7529 = vrot.lane.b32.xlu0 %v7296, 127
        %v7530 = vpop.permute.xlu0 %7529
        %7531 = vrot.lane.b32.xlu0 %v7299, 127
        %v7532 = vpop.permute.xlu0 %7531
        %7533 = vrot.lane.b32.xlu0 %v7301, 127
        %v7534 = vpop.permute.xlu0 %7533
        %7535 = vrot.lane.b32.xlu0 %v7304, 127
        %v7536 = vpop.permute.xlu0 %7535
        %7537 = vrot.lane.b32.xlu0 %v7306, 127
        %v7538 = vpop.permute.xlu0 %7537
        %7539 = vrot.lane.b32.xlu0 %v7309, 127
        %v7540 = vpop.permute.xlu0 %7539
        %7541 = vrot.lane.b32.xlu0 %v7311, 127
        %v7542 = vpop.permute.xlu0 %7541
        %7543 = vrot.lane.b32.xlu0 %v7314, 127
        %v7544 = vpop.permute.xlu0 %7543
        %7545 = vrot.lane.b32.xlu0 %v7316, 127
        %v7546 = vpop.permute.xlu0 %7545
        %7547 = vrot.lane.b32.xlu0 %v7319, 127
        %v7548 = vpop.permute.xlu0 %7547
        %7549 = vrot.lane.b32.xlu0 %v7321, 127
        %v7550 = vpop.permute.xlu0 %7549
        %7551 = vrot.lane.b32.xlu0 %v7324, 127
        %v7552 = vpop.permute.xlu0 %7551
        %7553 = vrot.lane.b32.xlu0 %v7326, 127
        %v7554 = vpop.permute.xlu0 %7553
        %7555 = vrot.lane.b32.xlu0 %v7329, 127
        %v7556 = vpop.permute.xlu0 %7555
        %7557 = vrot.lane.b32.xlu0 %v7331, 127
        %v7558 = vpop.permute.xlu0 %7557
        %7559 = vrot.lane.b32.xlu0 %v7334, 127
        %v7560 = vpop.permute.xlu0 %7559
        %7561 = vrot.lane.b32.xlu0 %v7336, 127
        %v7562 = vpop.permute.xlu0 %7561
        %7563 = vrot.lane.b32.xlu0 %v7339, 127
        %v7564 = vpop.permute.xlu0 %7563
        %7565 = vrot.lane.b32.xlu0 %v7341, 127
        %v7566 = vpop.permute.xlu0 %7565
        %7567 = vrot.lane.b32.xlu0 %v7344, 127
        %v7568 = vpop.permute.xlu0 %7567
        %7569 = vrot.lane.b32.xlu0 %v7346, 127
        %v7570 = vpop.permute.xlu0 %7569
        %7571 = vrot.lane.b32.xlu0 %v7349, 127
        %v7572 = vpop.permute.xlu0 %7571
        %7573 = vrot.lane.b32.xlu0 %v7351, 127
        %v7574 = vpop.permute.xlu0 %7573
        %7575 = vrot.lane.b32.xlu0 %v7354, 127
        %v7576 = vpop.permute.xlu0 %7575
        %7577 = vrot.lane.b32.xlu0 %v7356, 127
        %v7578 = vpop.permute.xlu0 %7577
        %7579 = vrot.lane.b32.xlu0 %v7359, 127
        %v7580 = vpop.permute.xlu0 %7579
        %7581 = vrot.lane.b32.xlu0 %v7361, 127
        %v7582 = vpop.permute.xlu0 %7581
        %7583 = vrot.lane.b32.xlu0 %v7364, 127
        %v7584 = vpop.permute.xlu0 %7583
        %7585 = vrot.lane.b32.xlu0 %v7366, 127
        %v7586 = vpop.permute.xlu0 %7585
        %7587 = vrot.lane.b32.xlu0 %v7369, 127
        %v7588 = vpop.permute.xlu0 %7587
        %7589 = vrot.lane.b32.xlu0 %v7371, 127
        %v7590 = vpop.permute.xlu0 %7589
        %7591 = vrot.lane.b32.xlu0 %v7374, 127
        %v7592 = vpop.permute.xlu0 %7591
        %7593 = vrot.lane.b32.xlu0 %v7376, 127
        %v7594 = vpop.permute.xlu0 %7593
        %7595 = vrot.lane.b32.xlu0 %v7379, 127
        %v7596 = vpop.permute.xlu0 %7595
        %7597 = vrot.lane.b32.xlu0 %v7381, 127
        %v7598 = vpop.permute.xlu0 %7597
        %7599 = vrot.lane.b32.xlu0 %v7384, 127
        %v7600 = vpop.permute.xlu0 %7599
        %7601 = vrot.lane.b32.xlu0 %v7386, 127
        %v7602 = vpop.permute.xlu0 %7601
        %7603 = vrot.lane.b32.xlu0 %v7389, 127
        %v7604 = vpop.permute.xlu0 %7603
        %7605 = vrot.lane.b32.xlu0 %v7391, 127
        %v7606 = vpop.permute.xlu0 %7605
        %7607 = vrot.lane.b32.xlu0 %v7394, 127
        %v7608 = vpop.permute.xlu0 %7607
        %7609 = vrot.lane.b32.xlu0 %v7396, 127
        %v7610 = vpop.permute.xlu0 %7609
        %7611 = vrot.lane.b32.xlu0 %v7399, 127
        %v7612 = vpop.permute.xlu0 %7611
        %7613 = vrot.lane.b32.xlu0 %v7401, 127
        %v7614 = vpop.permute.xlu0 %7613
        %7615 = vrot.lane.b32.xlu0 %v7404, 127
        %v7616 = vpop.permute.xlu0 %7615
        %7617 = vrot.lane.b32.xlu0 %v7406, 127
        %v7618 = vpop.permute.xlu0 %7617
        %7619 = vrot.lane.b32.xlu0 %v7409, 127
        %v7620 = vpop.permute.xlu0 %7619
        %7621 = vrot.lane.b32.xlu0 %v7411, 127
        %v7622 = vpop.permute.xlu0 %7621
        %7623 = vrot.lane.b32.xlu0 %v7414, 127
        %v7624 = vpop.permute.xlu0 %7623
        %7625 = vrot.lane.b32.xlu0 %v7416, 127
        %v7626 = vpop.permute.xlu0 %7625
        %7627 = vrot.lane.b32.xlu0 %v7419, 127
        %v7628 = vpop.permute.xlu0 %7627
        %7629 = vrot.lane.b32.xlu0 %v7421, 127
        %v7630 = vpop.permute.xlu0 %7629
        %7631 = vrot.lane.b32.xlu0 %v7424, 127
        %v7632 = vpop.permute.xlu0 %7631
        %7633 = vrot.lane.b32.xlu0 %v7426, 127
        %v7634 = vpop.permute.xlu0 %7633
        %7635 = vrot.lane.b32.xlu0 %v7429, 127
        %v7636 = vpop.permute.xlu0 %7635
        %7637 = vrot.lane.b32.xlu0 %v7431, 127
        %v7638 = vpop.permute.xlu0 %7637
        %7639 = vrot.lane.b32.xlu0 %v7434, 127
        %v7640 = vpop.permute.xlu0 %7639
        %7641 = vrot.lane.b32.xlu0 %v7436, 127
        %v7642 = vpop.permute.xlu0 %7641
        %7643 = vrot.lane.b32.xlu0 %v7439, 127
        %v7644 = vpop.permute.xlu0 %7643
        %7645 = vrot.lane.b32.xlu0 %v7441, 127
        %v7646 = vpop.permute.xlu0 %7645
        %7647 = vrot.lane.b32.xlu0 %v7444, 127
        %v7648 = vpop.permute.xlu0 %7647
        %7649 = vrot.lane.b32.xlu0 %v7446, 127
        %v7650 = vpop.permute.xlu0 %7649
        %7651 = vrot.lane.b32.xlu0 %v7449, 127
        %v7652 = vpop.permute.xlu0 %7651
        %7653 = vrot.lane.b32.xlu0 %v7451, 127
        %v7654 = vpop.permute.xlu0 %7653
        %7655 = vrot.lane.b32.xlu0 %v7454, 127
        %v7656 = vpop.permute.xlu0 %7655
        %7657 = vrot.lane.b32.xlu0 %v7456, 127
        %v7658 = vpop.permute.xlu0 %7657
        %7659 = vrot.lane.b32.xlu0 %v7459, 127
        %v7660 = vpop.permute.xlu0 %7659
        %7661 = vrot.lane.b32.xlu0 %v7461, 127
        %v7662 = vpop.permute.xlu0 %7661
        %7663 = vrot.lane.b32.xlu0 %v7464, 127
        %v7664 = vpop.permute.xlu0 %7663
        %7665 = vrot.lane.b32.xlu0 %v7466, 127
        %v7666 = vpop.permute.xlu0 %7665
        %7667 = vrot.lane.b32.xlu0 %v7469, 127
        %v7668 = vpop.permute.xlu0 %7667
        %7669 = vrot.lane.b32.xlu0 %v7471, 127
        %v7670 = vpop.permute.xlu0 %7669
        %7671 = vrot.lane.b32.xlu0 %v7474, 127
        %v7672 = vpop.permute.xlu0 %7671
        %7673 = vrot.lane.b32.xlu0 %v7476, 127
        %v7674 = vpop.permute.xlu0 %7673
        %7675 = vrot.lane.b32.xlu0 %v7479, 127
        %v7676 = vpop.permute.xlu0 %7675
        %7677 = vrot.lane.b32.xlu0 %v7481, 127
        %v7678 = vpop.permute.xlu0 %7677
        %7679 = vrot.lane.b32.xlu0 %v7484, 127
        %v7680 = vpop.permute.xlu0 %7679
        %7681 = vrot.lane.b32.xlu0 %v7486, 127
        %v7682 = vpop.permute.xlu0 %7681
        %7683 = vrot.lane.b32.xlu0 %v7489, 127
        %v7684 = vpop.permute.xlu0 %7683
        %7685 = vrot.lane.b32.xlu0 %v7491, 127
        %v7686 = vpop.permute.xlu0 %7685
        %7687 = vrot.lane.b32.xlu0 %v7494, 127
        %v7688 = vpop.permute.xlu0 %7687
        %7689 = vrot.lane.b32.xlu0 %v7496, 127
        %v7690 = vpop.permute.xlu0 %7689
        %7691 = vrot.lane.b32.xlu0 %v7499, 127
        %v7692 = vpop.permute.xlu0 %7691
        %7693 = vrot.lane.b32.xlu0 %v7501, 127
        %v7694 = vpop.permute.xlu0 %7693
        %7695 = vrot.lane.b32.xlu0 %v7504, 127
        %v7696 = vpop.permute.xlu0 %7695
        %7697 = vrot.lane.b32.xlu0 %v7506, 127
        %v7698 = vpop.permute.xlu0 %7697
        %v7795 = vadd.f32 %v6643, %v7508
        %v7796 = vadd.f32 %v6644, %v7510
        %v7797 = vadd.f32 %v6645, %v7512
        %v7798 = vadd.f32 %v6646, %v7514
        %v7799 = vadd.f32 %v6647, %v7516
        %v7800 = vadd.f32 %v6648, %v7518
        %v7801 = vadd.f32 %v6649, %v7520
        %v7802 = vadd.f32 %v6650, %v7522
        %v7803 = vadd.f32 %v6651, %v7524
        %v7804 = vadd.f32 %v6652, %v7526
        %v7805 = vadd.f32 %v6653, %v7528
        %v7806 = vadd.f32 %v6654, %v7530
        %v7807 = vadd.f32 %v6655, %v7532
        %v7808 = vadd.f32 %v6656, %v7534
        %v7809 = vadd.f32 %v6657, %v7536
        %v7810 = vadd.f32 %v6658, %v7538
        %v7811 = vadd.f32 %v6659, %v7540
        %v7812 = vadd.f32 %v6660, %v7542
        %v7813 = vadd.f32 %v6661, %v7544
        %v7814 = vadd.f32 %v6662, %v7546
        %v7815 = vadd.f32 %v6663, %v7548
        %v7816 = vadd.f32 %v6664, %v7550
        %v7817 = vadd.f32 %v6665, %v7552
        %v7818 = vadd.f32 %v6666, %v7554
        %v7819 = vadd.f32 %v6667, %v7556
        %v7820 = vadd.f32 %v6668, %v7558
        %v7821 = vadd.f32 %v6669, %v7560
        %v7822 = vadd.f32 %v6670, %v7562
        %v7823 = vadd.f32 %v6671, %v7564
        %v7824 = vadd.f32 %v6672, %v7566
        %v7825 = vadd.f32 %v6673, %v7568
        %v7826 = vadd.f32 %v6674, %v7570
        %v7827 = vadd.f32 %v6675, %v7572
        %v7828 = vadd.f32 %v6676, %v7574
        %v7829 = vadd.f32 %v6677, %v7576
        %v7830 = vadd.f32 %v6678, %v7578
        %v7831 = vadd.f32 %v6679, %v7580
        %v7832 = vadd.f32 %v6680, %v7582
        %v7833 = vadd.f32 %v6681, %v7584
        %v7834 = vadd.f32 %v6682, %v7586
        %v7835 = vadd.f32 %v6683, %v7588
        %v7836 = vadd.f32 %v6684, %v7590
        %v7837 = vadd.f32 %v6685, %v7592
        %v7838 = vadd.f32 %v6686, %v7594
        %v7839 = vadd.f32 %v6687, %v7596
        %v7840 = vadd.f32 %v6688, %v7598
        %v7841 = vadd.f32 %v6689, %v7600
        %v7842 = vadd.f32 %v6690, %v7602
        %v7843 = vadd.f32 %v6691, %v7604
        %v7844 = vadd.f32 %v6692, %v7606
        %v7845 = vadd.f32 %v6693, %v7608
        %v7846 = vadd.f32 %v6694, %v7610
        %v7847 = vadd.f32 %v6695, %v7612
        %v7848 = vadd.f32 %v6696, %v7614
        %v7849 = vadd.f32 %v6697, %v7616
        %v7850 = vadd.f32 %v6698, %v7618
        %v7851 = vadd.f32 %v6699, %v7620
        %v7852 = vadd.f32 %v6700, %v7622
        %v7853 = vadd.f32 %v6701, %v7624
        %v7854 = vadd.f32 %v6702, %v7626
        %v7855 = vadd.f32 %v6703, %v7628
        %v7856 = vadd.f32 %v6704, %v7630
        %v7857 = vadd.f32 %v6705, %v7632
        %v7858 = vadd.f32 %v6706, %v7634
        %v7859 = vadd.f32 %v6707, %v7636
        %v7860 = vadd.f32 %v6708, %v7638
        %v7861 = vadd.f32 %v6709, %v7640
        %v7862 = vadd.f32 %v6710, %v7642
        %v7863 = vadd.f32 %v6711, %v7644
        %v7864 = vadd.f32 %v6712, %v7646
        %v7865 = vadd.f32 %v6713, %v7648
        %v7866 = vadd.f32 %v6714, %v7650
        %v7867 = vadd.f32 %v6715, %v7652
        %v7868 = vadd.f32 %v6716, %v7654
        %v7869 = vadd.f32 %v6717, %v7656
        %v7870 = vadd.f32 %v6718, %v7658
        %v7871 = vadd.f32 %v6719, %v7660
        %v7872 = vadd.f32 %v6720, %v7662
        %v7873 = vadd.f32 %v6721, %v7664
        %v7874 = vadd.f32 %v6722, %v7666
        %v7875 = vadd.f32 %v6723, %v7668
        %v7876 = vadd.f32 %v6724, %v7670
        %v7877 = vadd.f32 %v6725, %v7672
        %v7878 = vadd.f32 %v6726, %v7674
        %v7879 = vadd.f32 %v6727, %v7676
        %v7880 = vadd.f32 %v6728, %v7678
        %v7881 = vadd.f32 %v6729, %v7680
        %v7882 = vadd.f32 %v6730, %v7682
        %v7883 = vadd.f32 %v6731, %v7684
        %v7884 = vadd.f32 %v6732, %v7686
        %v7885 = vadd.f32 %v6733, %v7688
        %v7886 = vadd.f32 %v6734, %v7690
        %v7887 = vadd.f32 %v6735, %v7692
        %v7888 = vadd.f32 %v6736, %v7694
        %v7889 = vadd.f32 %v6737, %v7696
        %v7890 = vadd.f32 %v6738, %v7698
        %7891 = vrot.lane.b32.xlu0 %v5826, 126
        %v7892 = vpop.permute.xlu0 %7891
        %7893 = vrot.lane.b32.xlu0 %v5827, 126
        %v7894 = vpop.permute.xlu0 %7893
        %7895 = vrot.lane.b32.xlu0 %v5828, 126
        %v7896 = vpop.permute.xlu0 %7895
        %7897 = vrot.lane.b32.xlu0 %v5829, 126
        %v7898 = vpop.permute.xlu0 %7897
        %7899 = vrot.lane.b32.xlu0 %v5830, 126
        %v7900 = vpop.permute.xlu0 %7899
        %7901 = vrot.lane.b32.xlu0 %v5831, 126
        %v7902 = vpop.permute.xlu0 %7901
        %7903 = vrot.lane.b32.xlu0 %v5832, 126
        %v7904 = vpop.permute.xlu0 %7903
        %7905 = vrot.lane.b32.xlu0 %v5833, 126
        %v7906 = vpop.permute.xlu0 %7905
        %7907 = vrot.lane.b32.xlu0 %v5834, 126
        %v7908 = vpop.permute.xlu0 %7907
        %7909 = vrot.lane.b32.xlu0 %v5835, 126
        %v7910 = vpop.permute.xlu0 %7909
        %7911 = vrot.lane.b32.xlu0 %v5836, 126
        %v7912 = vpop.permute.xlu0 %7911
        %7913 = vrot.lane.b32.xlu0 %v5837, 126
        %v7914 = vpop.permute.xlu0 %7913
        %7915 = vrot.lane.b32.xlu0 %v5838, 126
        %v7916 = vpop.permute.xlu0 %7915
        %7917 = vrot.lane.b32.xlu0 %v5839, 126
        %v7918 = vpop.permute.xlu0 %7917
        %7919 = vrot.lane.b32.xlu0 %v5840, 126
        %v7920 = vpop.permute.xlu0 %7919
        %7921 = vrot.lane.b32.xlu0 %v5841, 126
        %v7922 = vpop.permute.xlu0 %7921
        %7923 = vrot.lane.b32.xlu0 %v5842, 126
        %v7924 = vpop.permute.xlu0 %7923
        %7925 = vrot.lane.b32.xlu0 %v5843, 126
        %v7926 = vpop.permute.xlu0 %7925
        %7927 = vrot.lane.b32.xlu0 %v5844, 126
        %v7928 = vpop.permute.xlu0 %7927
        %7929 = vrot.lane.b32.xlu0 %v5845, 126
        %v7930 = vpop.permute.xlu0 %7929
        %7931 = vrot.lane.b32.xlu0 %v5846, 126
        %v7932 = vpop.permute.xlu0 %7931
        %7933 = vrot.lane.b32.xlu0 %v5847, 126
        %v7934 = vpop.permute.xlu0 %7933
        %7935 = vrot.lane.b32.xlu0 %v5848, 126
        %v7936 = vpop.permute.xlu0 %7935
        %7937 = vrot.lane.b32.xlu0 %v5849, 126
        %v7938 = vpop.permute.xlu0 %7937
        %7939 = vrot.lane.b32.xlu0 %v5850, 126
        %v7940 = vpop.permute.xlu0 %7939
        %7941 = vrot.lane.b32.xlu0 %v5851, 126
        %v7942 = vpop.permute.xlu0 %7941
        %7943 = vrot.lane.b32.xlu0 %v5852, 126
        %v7944 = vpop.permute.xlu0 %7943
        %7945 = vrot.lane.b32.xlu0 %v5853, 126
        %v7946 = vpop.permute.xlu0 %7945
        %7947 = vrot.lane.b32.xlu0 %v5854, 126
        %v7948 = vpop.permute.xlu0 %7947
        %7949 = vrot.lane.b32.xlu0 %v5855, 126
        %v7950 = vpop.permute.xlu0 %7949
        %7951 = vrot.lane.b32.xlu0 %v5856, 126
        %v7952 = vpop.permute.xlu0 %7951
        %7953 = vrot.lane.b32.xlu0 %v5857, 126
        %v7954 = vpop.permute.xlu0 %7953
        %7955 = vrot.lane.b32.xlu0 %v5858, 126
        %v7956 = vpop.permute.xlu0 %7955
        %7957 = vrot.lane.b32.xlu0 %v5859, 126
        %v7958 = vpop.permute.xlu0 %7957
        %7959 = vrot.lane.b32.xlu0 %v5860, 126
        %v7960 = vpop.permute.xlu0 %7959
        %7961 = vrot.lane.b32.xlu0 %v5861, 126
        %v7962 = vpop.permute.xlu0 %7961
        %7963 = vrot.lane.b32.xlu0 %v5862, 126
        %v7964 = vpop.permute.xlu0 %7963
        %7965 = vrot.lane.b32.xlu0 %v5863, 126
        %v7966 = vpop.permute.xlu0 %7965
        %7967 = vrot.lane.b32.xlu0 %v5864, 126
        %v7968 = vpop.permute.xlu0 %7967
        %7969 = vrot.lane.b32.xlu0 %v5865, 126
        %v7970 = vpop.permute.xlu0 %7969
        %7971 = vrot.lane.b32.xlu0 %v5866, 126
        %v7972 = vpop.permute.xlu0 %7971
        %7973 = vrot.lane.b32.xlu0 %v5867, 126
        %v7974 = vpop.permute.xlu0 %7973
        %7975 = vrot.lane.b32.xlu0 %v5868, 126
        %v7976 = vpop.permute.xlu0 %7975
        %7977 = vrot.lane.b32.xlu0 %v5869, 126
        %v7978 = vpop.permute.xlu0 %7977
        %7979 = vrot.lane.b32.xlu0 %v5870, 126
        %v7980 = vpop.permute.xlu0 %7979
        %7981 = vrot.lane.b32.xlu0 %v5871, 126
        %v7982 = vpop.permute.xlu0 %7981
        %7983 = vrot.lane.b32.xlu0 %v5872, 126
        %v7984 = vpop.permute.xlu0 %7983
        %7985 = vrot.lane.b32.xlu0 %v5873, 126
        %v7986 = vpop.permute.xlu0 %7985
        %s7987 = vtos %v7892
        %v7988 = vstv %s7987
        %s7990 = vtos %v7894
        %v7991 = vstv %s7990
        %s7993 = vtos %v7896
        %v7994 = vstv %s7993
        %s7996 = vtos %v7898
        %v7997 = vstv %s7996
        %s7999 = vtos %v7900
        %v8000 = vstv %s7999
        %s8002 = vtos %v7902
        %v8003 = vstv %s8002
        %s8005 = vtos %v7904
        %v8006 = vstv %s8005
        %s8008 = vtos %v7906
        %v8009 = vstv %s8008
        %s8011 = vtos %v7908
        %v8012 = vstv %s8011
        %s8014 = vtos %v7910
        %v8015 = vstv %s8014
        %s8017 = vtos %v7912
        %v8018 = vstv %s8017
        %s8020 = vtos %v7914
        %v8021 = vstv %s8020
        %s8023 = vtos %v7916
        %v8024 = vstv %s8023
        %s8026 = vtos %v7918
        %v8027 = vstv %s8026
        %s8029 = vtos %v7920
        %v8030 = vstv %s8029
        %s8032 = vtos %v7922
        %v8033 = vstv %s8032
        %s8035 = vtos %v7924
        %v8036 = vstv %s8035
        %s8038 = vtos %v7926
        %v8039 = vstv %s8038
        %s8041 = vtos %v7928
        %v8042 = vstv %s8041
        %s8044 = vtos %v7930
        %v8045 = vstv %s8044
        %s8047 = vtos %v7932
        %v8048 = vstv %s8047
        %s8050 = vtos %v7934
        %v8051 = vstv %s8050
        %s8053 = vtos %v7936
        %v8054 = vstv %s8053
        %s8056 = vtos %v7938
        %v8057 = vstv %s8056
        %s8059 = vtos %v7940
        %v8060 = vstv %s8059
        %s8062 = vtos %v7942
        %v8063 = vstv %s8062
        %s8065 = vtos %v7944
        %v8066 = vstv %s8065
        %s8068 = vtos %v7946
        %v8069 = vstv %s8068
        %s8071 = vtos %v7948
        %v8072 = vstv %s8071
        %s8074 = vtos %v7950
        %v8075 = vstv %s8074
        %s8077 = vtos %v7952
        %v8078 = vstv %s8077
        %s8080 = vtos %v7954
        %v8081 = vstv %s8080
        %s8083 = vtos %v7956
        %v8084 = vstv %s8083
        %s8086 = vtos %v7958
        %v8087 = vstv %s8086
        %s8089 = vtos %v7960
        %v8090 = vstv %s8089
        %s8092 = vtos %v7962
        %v8093 = vstv %s8092
        %s8095 = vtos %v7964
        %v8096 = vstv %s8095
        %s8098 = vtos %v7966
        %v8099 = vstv %s8098
        %s8101 = vtos %v7968
        %v8102 = vstv %s8101
        %s8104 = vtos %v7970
        %v8105 = vstv %s8104
        %s8107 = vtos %v7972
        %v8108 = vstv %s8107
        %s8110 = vtos %v7974
        %v8111 = vstv %s8110
        %s8113 = vtos %v7976
        %v8114 = vstv %s8113
        %s8116 = vtos %v7978
        %v8117 = vstv %s8116
        %s8119 = vtos %v7980
        %v8120 = vstv %s8119
        %s8122 = vtos %v7982
        %v8123 = vstv %s8122
        %s8125 = vtos %v7984
        %v8126 = vstv %s8125
        %s8128 = vtos %v7986
        %v8129 = vstv %s8128
        %v8131 = vmul.f32 %v401, %v7988
        %v8132 = vmul.f32 %v402, %v7988
        %v8133 = vmul.f32 %v403, %v7988
        %v8134 = vmul.f32 %v404, %v7991
        %v8135 = vmul.f32 %v405, %v7991
        %v8136 = vmul.f32 %v406, %v7991
        %v8137 = vmul.f32 %v407, %v7994
        %v8138 = vmul.f32 %v408, %v7994
        %v8139 = vmul.f32 %v409, %v7994
        %v8140 = vmul.f32 %v410, %v7997
        %v8141 = vmul.f32 %v411, %v7997
        %v8142 = vmul.f32 %v412, %v7997
        %v8143 = vmul.f32 %v413, %v8000
        %v8144 = vmul.f32 %v414, %v8000
        %v8145 = vmul.f32 %v415, %v8000
        %v8146 = vmul.f32 %v416, %v8003
        %v8147 = vmul.f32 %v417, %v8003
        %v8148 = vmul.f32 %v418, %v8003
        %v8149 = vmul.f32 %v419, %v8006
        %v8150 = vmul.f32 %v420, %v8006
        %v8151 = vmul.f32 %v421, %v8006
        %v8152 = vmul.f32 %v422, %v8009
        %v8153 = vmul.f32 %v423, %v8009
        %v8154 = vmul.f32 %v424, %v8009
        %v8155 = vmul.f32 %v425, %v8012
        %v8156 = vmul.f32 %v426, %v8012
        %v8157 = vmul.f32 %v427, %v8012
        %v8158 = vmul.f32 %v428, %v8015
        %v8159 = vmul.f32 %v429, %v8015
        %v8160 = vmul.f32 %v430, %v8015
        %v8161 = vmul.f32 %v431, %v8018
        %v8162 = vmul.f32 %v432, %v8018
        %v8163 = vmul.f32 %v433, %v8018
        %v8164 = vmul.f32 %v434, %v8021
        %v8165 = vmul.f32 %v435, %v8021
        %v8166 = vmul.f32 %v436, %v8021
        %v8167 = vmul.f32 %v437, %v8024
        %v8168 = vmul.f32 %v438, %v8024
        %v8169 = vmul.f32 %v439, %v8024
        %v8170 = vmul.f32 %v440, %v8027
        %v8171 = vmul.f32 %v441, %v8027
        %v8172 = vmul.f32 %v442, %v8027
        %v8173 = vmul.f32 %v443, %v8030
        %v8174 = vmul.f32 %v444, %v8030
        %v8175 = vmul.f32 %v445, %v8030
        %v8176 = vmul.f32 %v446, %v8033
        %v8177 = vmul.f32 %v447, %v8033
        %v8178 = vmul.f32 %v448, %v8033
        %v8179 = vmul.f32 %v449, %v8036
        %v8180 = vmul.f32 %v450, %v8036
        %v8181 = vmul.f32 %v451, %v8036
        %v8182 = vmul.f32 %v452, %v8039
        %v8183 = vmul.f32 %v453, %v8039
        %v8184 = vmul.f32 %v454, %v8039
        %v8185 = vmul.f32 %v455, %v8042
        %v8186 = vmul.f32 %v456, %v8042
        %v8187 = vmul.f32 %v457, %v8042
        %v8188 = vmul.f32 %v458, %v8045
        %v8189 = vmul.f32 %v459, %v8045
        %v8190 = vmul.f32 %v460, %v8045
        %v8191 = vmul.f32 %v461, %v8048
        %v8192 = vmul.f32 %v462, %v8048
        %v8193 = vmul.f32 %v463, %v8048
        %v8194 = vmul.f32 %v464, %v8051
        %v8195 = vmul.f32 %v465, %v8051
        %v8196 = vmul.f32 %v466, %v8051
        %v8197 = vmul.f32 %v467, %v8054
        %v8198 = vmul.f32 %v468, %v8054
        %v8199 = vmul.f32 %v469, %v8054
        %v8200 = vmul.f32 %v470, %v8057
        %v8201 = vmul.f32 %v471, %v8057
        %v8202 = vmul.f32 %v472, %v8057
        %v8203 = vmul.f32 %v473, %v8060
        %v8204 = vmul.f32 %v474, %v8060
        %v8205 = vmul.f32 %v475, %v8060
        %v8206 = vmul.f32 %v476, %v8063
        %v8207 = vmul.f32 %v477, %v8063
        %v8208 = vmul.f32 %v478, %v8063
        %v8209 = vmul.f32 %v479, %v8066
        %v8210 = vmul.f32 %v480, %v8066
        %v8211 = vmul.f32 %v481, %v8066
        %v8212 = vmul.f32 %v482, %v8069
        %v8213 = vmul.f32 %v483, %v8069
        %v8214 = vmul.f32 %v484, %v8069
        %v8215 = vmul.f32 %v485, %v8072
        %v8216 = vmul.f32 %v486, %v8072
        %v8217 = vmul.f32 %v487, %v8072
        %v8218 = vmul.f32 %v488, %v8075
        %v8219 = vmul.f32 %v489, %v8075
        %v8220 = vmul.f32 %v490, %v8075
        %v8221 = vmul.f32 %v491, %v8078
        %v8222 = vmul.f32 %v492, %v8078
        %v8223 = vmul.f32 %v493, %v8078
        %v8224 = vmul.f32 %v494, %v8081
        %v8225 = vmul.f32 %v495, %v8081
        %v8226 = vmul.f32 %v496, %v8081
        %v8227 = vmul.f32 %v497, %v8084
        %v8228 = vmul.f32 %v498, %v8084
        %v8229 = vmul.f32 %v499, %v8084
        %v8230 = vmul.f32 %v500, %v8087
        %v8231 = vmul.f32 %v501, %v8087
        %v8232 = vmul.f32 %v502, %v8087
        %v8233 = vmul.f32 %v503, %v8090
        %v8234 = vmul.f32 %v504, %v8090
        %v8235 = vmul.f32 %v505, %v8090
        %v8236 = vmul.f32 %v506, %v8093
        %v8237 = vmul.f32 %v507, %v8093
        %v8238 = vmul.f32 %v508, %v8093
        %v8239 = vmul.f32 %v509, %v8096
        %v8240 = vmul.f32 %v510, %v8096
        %v8241 = vmul.f32 %v511, %v8096
        %v8242 = vmul.f32 %v512, %v8099
        %v8243 = vmul.f32 %v513, %v8099
        %v8244 = vmul.f32 %v514, %v8099
        %v8245 = vmul.f32 %v515, %v8102
        %v8246 = vmul.f32 %v516, %v8102
        %v8247 = vmul.f32 %v517, %v8102
        %v8248 = vmul.f32 %v518, %v8105
        %v8249 = vmul.f32 %v519, %v8105
        %v8250 = vmul.f32 %v520, %v8105
        %v8251 = vmul.f32 %v521, %v8108
        %v8252 = vmul.f32 %v522, %v8108
        %v8253 = vmul.f32 %v523, %v8108
        %v8254 = vmul.f32 %v524, %v8111
        %v8255 = vmul.f32 %v525, %v8111
        %v8256 = vmul.f32 %v526, %v8111
        %v8257 = vmul.f32 %v527, %v8114
        %v8258 = vmul.f32 %v528, %v8114
        %v8259 = vmul.f32 %v529, %v8114
        %v8260 = vmul.f32 %v530, %v8117
        %v8261 = vmul.f32 %v531, %v8117
        %v8262 = vmul.f32 %v532, %v8117
        %v8263 = vmul.f32 %v533, %v8120
        %v8264 = vmul.f32 %v534, %v8120
        %v8265 = vmul.f32 %v535, %v8120
        %v8266 = vmul.f32 %v536, %v8123
        %v8267 = vmul.f32 %v537, %v8123
        %v8268 = vmul.f32 %v538, %v8123
        %v8269 = vmul.f32 %v539, %v8126
        %v8270 = vmul.f32 %v540, %v8126
        %v8271 = vmul.f32 %v541, %v8126
        %v8272 = vmul.f32 %v542, %v8129
        %v8273 = vmul.f32 %v543, %v8129
        %v8274 = vmul.f32 %v544, %v8129
        %v8419 = vrot.slane %v8131, 2
        %v8420 = vrot.slane %v8132, 2
        %v8421 = vsel %vm6306, %v8419, %v8420
        %v8422 = vrot.slane %v8133, 2
        %v8423 = vsel %vm6306, %v8420, %v8422
        %v8424 = vrot.slane %v8134, 2
        %v8425 = vrot.slane %v8135, 2
        %v8426 = vsel %vm6306, %v8424, %v8425
        %v8427 = vrot.slane %v8136, 2
        %v8428 = vsel %vm6306, %v8425, %v8427
        %v8429 = vrot.slane %v8137, 2
        %v8430 = vrot.slane %v8138, 2
        %v8431 = vsel %vm6306, %v8429, %v8430
        %v8432 = vrot.slane %v8139, 2
        %v8433 = vsel %vm6306, %v8430, %v8432
        %v8434 = vrot.slane %v8140, 2
        %v8435 = vrot.slane %v8141, 2
        %v8436 = vsel %vm6306, %v8434, %v8435
        %v8437 = vrot.slane %v8142, 2
        %v8438 = vsel %vm6306, %v8435, %v8437
        %v8439 = vrot.slane %v8143, 2
        %v8440 = vrot.slane %v8144, 2
        %v8441 = vsel %vm6306, %v8439, %v8440
        %v8442 = vrot.slane %v8145, 2
        %v8443 = vsel %vm6306, %v8440, %v8442
        %v8444 = vrot.slane %v8146, 2
        %v8445 = vrot.slane %v8147, 2
        %v8446 = vsel %vm6306, %v8444, %v8445
        %v8447 = vrot.slane %v8148, 2
        %v8448 = vsel %vm6306, %v8445, %v8447
        %v8449 = vrot.slane %v8149, 2
        %v8450 = vrot.slane %v8150, 2
        %v8451 = vsel %vm6306, %v8449, %v8450
        %v8452 = vrot.slane %v8151, 2
        %v8453 = vsel %vm6306, %v8450, %v8452
        %v8454 = vrot.slane %v8152, 2
        %v8455 = vrot.slane %v8153, 2
        %v8456 = vsel %vm6306, %v8454, %v8455
        %v8457 = vrot.slane %v8154, 2
        %v8458 = vsel %vm6306, %v8455, %v8457
        %v8459 = vrot.slane %v8155, 2
        %v8460 = vrot.slane %v8156, 2
        %v8461 = vsel %vm6306, %v8459, %v8460
        %v8462 = vrot.slane %v8157, 2
        %v8463 = vsel %vm6306, %v8460, %v8462
        %v8464 = vrot.slane %v8158, 2
        %v8465 = vrot.slane %v8159, 2
        %v8466 = vsel %vm6306, %v8464, %v8465
        %v8467 = vrot.slane %v8160, 2
        %v8468 = vsel %vm6306, %v8465, %v8467
        %v8469 = vrot.slane %v8161, 2
        %v8470 = vrot.slane %v8162, 2
        %v8471 = vsel %vm6306, %v8469, %v8470
        %v8472 = vrot.slane %v8163, 2
        %v8473 = vsel %vm6306, %v8470, %v8472
        %v8474 = vrot.slane %v8164, 2
        %v8475 = vrot.slane %v8165, 2
        %v8476 = vsel %vm6306, %v8474, %v8475
        %v8477 = vrot.slane %v8166, 2
        %v8478 = vsel %vm6306, %v8475, %v8477
        %v8479 = vrot.slane %v8167, 2
        %v8480 = vrot.slane %v8168, 2
        %v8481 = vsel %vm6306, %v8479, %v8480
        %v8482 = vrot.slane %v8169, 2
        %v8483 = vsel %vm6306, %v8480, %v8482
        %v8484 = vrot.slane %v8170, 2
        %v8485 = vrot.slane %v8171, 2
        %v8486 = vsel %vm6306, %v8484, %v8485
        %v8487 = vrot.slane %v8172, 2
        %v8488 = vsel %vm6306, %v8485, %v8487
        %v8489 = vrot.slane %v8173, 2
        %v8490 = vrot.slane %v8174, 2
        %v8491 = vsel %vm6306, %v8489, %v8490
        %v8492 = vrot.slane %v8175, 2
        %v8493 = vsel %vm6306, %v8490, %v8492
        %v8494 = vrot.slane %v8176, 2
        %v8495 = vrot.slane %v8177, 2
        %v8496 = vsel %vm6306, %v8494, %v8495
        %v8497 = vrot.slane %v8178, 2
        %v8498 = vsel %vm6306, %v8495, %v8497
        %v8499 = vrot.slane %v8179, 2
        %v8500 = vrot.slane %v8180, 2
        %v8501 = vsel %vm6306, %v8499, %v8500
        %v8502 = vrot.slane %v8181, 2
        %v8503 = vsel %vm6306, %v8500, %v8502
        %v8504 = vrot.slane %v8182, 2
        %v8505 = vrot.slane %v8183, 2
        %v8506 = vsel %vm6306, %v8504, %v8505
        %v8507 = vrot.slane %v8184, 2
        %v8508 = vsel %vm6306, %v8505, %v8507
        %v8509 = vrot.slane %v8185, 2
        %v8510 = vrot.slane %v8186, 2
        %v8511 = vsel %vm6306, %v8509, %v8510
        %v8512 = vrot.slane %v8187, 2
        %v8513 = vsel %vm6306, %v8510, %v8512
        %v8514 = vrot.slane %v8188, 2
        %v8515 = vrot.slane %v8189, 2
        %v8516 = vsel %vm6306, %v8514, %v8515
        %v8517 = vrot.slane %v8190, 2
        %v8518 = vsel %vm6306, %v8515, %v8517
        %v8519 = vrot.slane %v8191, 2
        %v8520 = vrot.slane %v8192, 2
        %v8521 = vsel %vm6306, %v8519, %v8520
        %v8522 = vrot.slane %v8193, 2
        %v8523 = vsel %vm6306, %v8520, %v8522
        %v8524 = vrot.slane %v8194, 2
        %v8525 = vrot.slane %v8195, 2
        %v8526 = vsel %vm6306, %v8524, %v8525
        %v8527 = vrot.slane %v8196, 2
        %v8528 = vsel %vm6306, %v8525, %v8527
        %v8529 = vrot.slane %v8197, 2
        %v8530 = vrot.slane %v8198, 2
        %v8531 = vsel %vm6306, %v8529, %v8530
        %v8532 = vrot.slane %v8199, 2
        %v8533 = vsel %vm6306, %v8530, %v8532
        %v8534 = vrot.slane %v8200, 2
        %v8535 = vrot.slane %v8201, 2
        %v8536 = vsel %vm6306, %v8534, %v8535
        %v8537 = vrot.slane %v8202, 2
        %v8538 = vsel %vm6306, %v8535, %v8537
        %v8539 = vrot.slane %v8203, 2
        %v8540 = vrot.slane %v8204, 2
        %v8541 = vsel %vm6306, %v8539, %v8540
        %v8542 = vrot.slane %v8205, 2
        %v8543 = vsel %vm6306, %v8540, %v8542
        %v8544 = vrot.slane %v8206, 2
        %v8545 = vrot.slane %v8207, 2
        %v8546 = vsel %vm6306, %v8544, %v8545
        %v8547 = vrot.slane %v8208, 2
        %v8548 = vsel %vm6306, %v8545, %v8547
        %v8549 = vrot.slane %v8209, 2
        %v8550 = vrot.slane %v8210, 2
        %v8551 = vsel %vm6306, %v8549, %v8550
        %v8552 = vrot.slane %v8211, 2
        %v8553 = vsel %vm6306, %v8550, %v8552
        %v8554 = vrot.slane %v8212, 2
        %v8555 = vrot.slane %v8213, 2
        %v8556 = vsel %vm6306, %v8554, %v8555
        %v8557 = vrot.slane %v8214, 2
        %v8558 = vsel %vm6306, %v8555, %v8557
        %v8559 = vrot.slane %v8215, 2
        %v8560 = vrot.slane %v8216, 2
        %v8561 = vsel %vm6306, %v8559, %v8560
        %v8562 = vrot.slane %v8217, 2
        %v8563 = vsel %vm6306, %v8560, %v8562
        %v8564 = vrot.slane %v8218, 2
        %v8565 = vrot.slane %v8219, 2
        %v8566 = vsel %vm6306, %v8564, %v8565
        %v8567 = vrot.slane %v8220, 2
        %v8568 = vsel %vm6306, %v8565, %v8567
        %v8569 = vrot.slane %v8221, 2
        %v8570 = vrot.slane %v8222, 2
        %v8571 = vsel %vm6306, %v8569, %v8570
        %v8572 = vrot.slane %v8223, 2
        %v8573 = vsel %vm6306, %v8570, %v8572
        %v8574 = vrot.slane %v8224, 2
        %v8575 = vrot.slane %v8225, 2
        %v8576 = vsel %vm6306, %v8574, %v8575
        %v8577 = vrot.slane %v8226, 2
        %v8578 = vsel %vm6306, %v8575, %v8577
        %v8579 = vrot.slane %v8227, 2
        %v8580 = vrot.slane %v8228, 2
        %v8581 = vsel %vm6306, %v8579, %v8580
        %v8582 = vrot.slane %v8229, 2
        %v8583 = vsel %vm6306, %v8580, %v8582
        %v8584 = vrot.slane %v8230, 2
        %v8585 = vrot.slane %v8231, 2
        %v8586 = vsel %vm6306, %v8584, %v8585
        %v8587 = vrot.slane %v8232, 2
        %v8588 = vsel %vm6306, %v8585, %v8587
        %v8589 = vrot.slane %v8233, 2
        %v8590 = vrot.slane %v8234, 2
        %v8591 = vsel %vm6306, %v8589, %v8590
        %v8592 = vrot.slane %v8235, 2
        %v8593 = vsel %vm6306, %v8590, %v8592
        %v8594 = vrot.slane %v8236, 2
        %v8595 = vrot.slane %v8237, 2
        %v8596 = vsel %vm6306, %v8594, %v8595
        %v8597 = vrot.slane %v8238, 2
        %v8598 = vsel %vm6306, %v8595, %v8597
        %v8599 = vrot.slane %v8239, 2
        %v8600 = vrot.slane %v8240, 2
        %v8601 = vsel %vm6306, %v8599, %v8600
        %v8602 = vrot.slane %v8241, 2
        %v8603 = vsel %vm6306, %v8600, %v8602
        %v8604 = vrot.slane %v8242, 2
        %v8605 = vrot.slane %v8243, 2
        %v8606 = vsel %vm6306, %v8604, %v8605
        %v8607 = vrot.slane %v8244, 2
        %v8608 = vsel %vm6306, %v8605, %v8607
        %v8609 = vrot.slane %v8245, 2
        %v8610 = vrot.slane %v8246, 2
        %v8611 = vsel %vm6306, %v8609, %v8610
        %v8612 = vrot.slane %v8247, 2
        %v8613 = vsel %vm6306, %v8610, %v8612
        %v8614 = vrot.slane %v8248, 2
        %v8615 = vrot.slane %v8249, 2
        %v8616 = vsel %vm6306, %v8614, %v8615
        %v8617 = vrot.slane %v8250, 2
        %v8618 = vsel %vm6306, %v8615, %v8617
        %v8619 = vrot.slane %v8251, 2
        %v8620 = vrot.slane %v8252, 2
        %v8621 = vsel %vm6306, %v8619, %v8620
        %v8622 = vrot.slane %v8253, 2
        %v8623 = vsel %vm6306, %v8620, %v8622
        %v8624 = vrot.slane %v8254, 2
        %v8625 = vrot.slane %v8255, 2
        %v8626 = vsel %vm6306, %v8624, %v8625
        %v8627 = vrot.slane %v8256, 2
        %v8628 = vsel %vm6306, %v8625, %v8627
        %v8629 = vrot.slane %v8257, 2
        %v8630 = vrot.slane %v8258, 2
        %v8631 = vsel %vm6306, %v8629, %v8630
        %v8632 = vrot.slane %v8259, 2
        %v8633 = vsel %vm6306, %v8630, %v8632
        %v8634 = vrot.slane %v8260, 2
        %v8635 = vrot.slane %v8261, 2
        %v8636 = vsel %vm6306, %v8634, %v8635
        %v8637 = vrot.slane %v8262, 2
        %v8638 = vsel %vm6306, %v8635, %v8637
        %v8639 = vrot.slane %v8263, 2
        %v8640 = vrot.slane %v8264, 2
        %v8641 = vsel %vm6306, %v8639, %v8640
        %v8642 = vrot.slane %v8265, 2
        %v8643 = vsel %vm6306, %v8640, %v8642
        %v8644 = vrot.slane %v8266, 2
        %v8645 = vrot.slane %v8267, 2
        %v8646 = vsel %vm6306, %v8644, %v8645
        %v8647 = vrot.slane %v8268, 2
        %v8648 = vsel %vm6306, %v8645, %v8647
        %v8649 = vrot.slane %v8269, 2
        %v8650 = vrot.slane %v8270, 2
        %v8651 = vsel %vm6306, %v8649, %v8650
        %v8652 = vrot.slane %v8271, 2
        %v8653 = vsel %vm6306, %v8650, %v8652
        %v8654 = vrot.slane %v8272, 2
        %v8655 = vrot.slane %v8273, 2
        %v8656 = vsel %vm6306, %v8654, %v8655
        %v8657 = vrot.slane %v8274, 2
        %v8658 = vsel %vm6306, %v8655, %v8657
        %8659 = vrot.lane.b32.xlu0 %v8421, 126
        %v8660 = vpop.permute.xlu0 %8659
        %8661 = vrot.lane.b32.xlu0 %v8423, 126
        %v8662 = vpop.permute.xlu0 %8661
        %8663 = vrot.lane.b32.xlu0 %v8426, 126
        %v8664 = vpop.permute.xlu0 %8663
        %8665 = vrot.lane.b32.xlu0 %v8428, 126
        %v8666 = vpop.permute.xlu0 %8665
        %8667 = vrot.lane.b32.xlu0 %v8431, 126
        %v8668 = vpop.permute.xlu0 %8667
        %8669 = vrot.lane.b32.xlu0 %v8433, 126
        %v8670 = vpop.permute.xlu0 %8669
        %8671 = vrot.lane.b32.xlu0 %v8436, 126
        %v8672 = vpop.permute.xlu0 %8671
        %8673 = vrot.lane.b32.xlu0 %v8438, 126
        %v8674 = vpop.permute.xlu0 %8673
        %8675 = vrot.lane.b32.xlu0 %v8441, 126
        %v8676 = vpop.permute.xlu0 %8675
        %8677 = vrot.lane.b32.xlu0 %v8443, 126
        %v8678 = vpop.permute.xlu0 %8677
        %8679 = vrot.lane.b32.xlu0 %v8446, 126
        %v8680 = vpop.permute.xlu0 %8679
        %8681 = vrot.lane.b32.xlu0 %v8448, 126
        %v8682 = vpop.permute.xlu0 %8681
        %8683 = vrot.lane.b32.xlu0 %v8451, 126
        %v8684 = vpop.permute.xlu0 %8683
        %8685 = vrot.lane.b32.xlu0 %v8453, 126
        %v8686 = vpop.permute.xlu0 %8685
        %8687 = vrot.lane.b32.xlu0 %v8456, 126
        %v8688 = vpop.permute.xlu0 %8687
        %8689 = vrot.lane.b32.xlu0 %v8458, 126
        %v8690 = vpop.permute.xlu0 %8689
        %8691 = vrot.lane.b32.xlu0 %v8461, 126
        %v8692 = vpop.permute.xlu0 %8691
        %8693 = vrot.lane.b32.xlu0 %v8463, 126
        %v8694 = vpop.permute.xlu0 %8693
        %8695 = vrot.lane.b32.xlu0 %v8466, 126
        %v8696 = vpop.permute.xlu0 %8695
        %8697 = vrot.lane.b32.xlu0 %v8468, 126
        %v8698 = vpop.permute.xlu0 %8697
        %8699 = vrot.lane.b32.xlu0 %v8471, 126
        %v8700 = vpop.permute.xlu0 %8699
        %8701 = vrot.lane.b32.xlu0 %v8473, 126
        %v8702 = vpop.permute.xlu0 %8701
        %8703 = vrot.lane.b32.xlu0 %v8476, 126
        %v8704 = vpop.permute.xlu0 %8703
        %8705 = vrot.lane.b32.xlu0 %v8478, 126
        %v8706 = vpop.permute.xlu0 %8705
        %8707 = vrot.lane.b32.xlu0 %v8481, 126
        %v8708 = vpop.permute.xlu0 %8707
        %8709 = vrot.lane.b32.xlu0 %v8483, 126
        %v8710 = vpop.permute.xlu0 %8709
        %8711 = vrot.lane.b32.xlu0 %v8486, 126
        %v8712 = vpop.permute.xlu0 %8711
        %8713 = vrot.lane.b32.xlu0 %v8488, 126
        %v8714 = vpop.permute.xlu0 %8713
        %8715 = vrot.lane.b32.xlu0 %v8491, 126
        %v8716 = vpop.permute.xlu0 %8715
        %8717 = vrot.lane.b32.xlu0 %v8493, 126
        %v8718 = vpop.permute.xlu0 %8717
        %8719 = vrot.lane.b32.xlu0 %v8496, 126
        %v8720 = vpop.permute.xlu0 %8719
        %8721 = vrot.lane.b32.xlu0 %v8498, 126
        %v8722 = vpop.permute.xlu0 %8721
        %8723 = vrot.lane.b32.xlu0 %v8501, 126
        %v8724 = vpop.permute.xlu0 %8723
        %8725 = vrot.lane.b32.xlu0 %v8503, 126
        %v8726 = vpop.permute.xlu0 %8725
        %8727 = vrot.lane.b32.xlu0 %v8506, 126
        %v8728 = vpop.permute.xlu0 %8727
        %8729 = vrot.lane.b32.xlu0 %v8508, 126
        %v8730 = vpop.permute.xlu0 %8729
        %8731 = vrot.lane.b32.xlu0 %v8511, 126
        %v8732 = vpop.permute.xlu0 %8731
        %8733 = vrot.lane.b32.xlu0 %v8513, 126
        %v8734 = vpop.permute.xlu0 %8733
        %8735 = vrot.lane.b32.xlu0 %v8516, 126
        %v8736 = vpop.permute.xlu0 %8735
        %8737 = vrot.lane.b32.xlu0 %v8518, 126
        %v8738 = vpop.permute.xlu0 %8737
        %8739 = vrot.lane.b32.xlu0 %v8521, 126
        %v8740 = vpop.permute.xlu0 %8739
        %8741 = vrot.lane.b32.xlu0 %v8523, 126
        %v8742 = vpop.permute.xlu0 %8741
        %8743 = vrot.lane.b32.xlu0 %v8526, 126
        %v8744 = vpop.permute.xlu0 %8743
        %8745 = vrot.lane.b32.xlu0 %v8528, 126
        %v8746 = vpop.permute.xlu0 %8745
        %8747 = vrot.lane.b32.xlu0 %v8531, 126
        %v8748 = vpop.permute.xlu0 %8747
        %8749 = vrot.lane.b32.xlu0 %v8533, 126
        %v8750 = vpop.permute.xlu0 %8749
        %8751 = vrot.lane.b32.xlu0 %v8536, 126
        %v8752 = vpop.permute.xlu0 %8751
        %8753 = vrot.lane.b32.xlu0 %v8538, 126
        %v8754 = vpop.permute.xlu0 %8753
        %8755 = vrot.lane.b32.xlu0 %v8541, 126
        %v8756 = vpop.permute.xlu0 %8755
        %8757 = vrot.lane.b32.xlu0 %v8543, 126
        %v8758 = vpop.permute.xlu0 %8757
        %8759 = vrot.lane.b32.xlu0 %v8546, 126
        %v8760 = vpop.permute.xlu0 %8759
        %8761 = vrot.lane.b32.xlu0 %v8548, 126
        %v8762 = vpop.permute.xlu0 %8761
        %8763 = vrot.lane.b32.xlu0 %v8551, 126
        %v8764 = vpop.permute.xlu0 %8763
        %8765 = vrot.lane.b32.xlu0 %v8553, 126
        %v8766 = vpop.permute.xlu0 %8765
        %8767 = vrot.lane.b32.xlu0 %v8556, 126
        %v8768 = vpop.permute.xlu0 %8767
        %8769 = vrot.lane.b32.xlu0 %v8558, 126
        %v8770 = vpop.permute.xlu0 %8769
        %8771 = vrot.lane.b32.xlu0 %v8561, 126
        %v8772 = vpop.permute.xlu0 %8771
        %8773 = vrot.lane.b32.xlu0 %v8563, 126
        %v8774 = vpop.permute.xlu0 %8773
        %8775 = vrot.lane.b32.xlu0 %v8566, 126
        %v8776 = vpop.permute.xlu0 %8775
        %8777 = vrot.lane.b32.xlu0 %v8568, 126
        %v8778 = vpop.permute.xlu0 %8777
        %8779 = vrot.lane.b32.xlu0 %v8571, 126
        %v8780 = vpop.permute.xlu0 %8779
        %8781 = vrot.lane.b32.xlu0 %v8573, 126
        %v8782 = vpop.permute.xlu0 %8781
        %8783 = vrot.lane.b32.xlu0 %v8576, 126
        %v8784 = vpop.permute.xlu0 %8783
        %8785 = vrot.lane.b32.xlu0 %v8578, 126
        %v8786 = vpop.permute.xlu0 %8785
        %8787 = vrot.lane.b32.xlu0 %v8581, 126
        %v8788 = vpop.permute.xlu0 %8787
        %8789 = vrot.lane.b32.xlu0 %v8583, 126
        %v8790 = vpop.permute.xlu0 %8789
        %8791 = vrot.lane.b32.xlu0 %v8586, 126
        %v8792 = vpop.permute.xlu0 %8791
        %8793 = vrot.lane.b32.xlu0 %v8588, 126
        %v8794 = vpop.permute.xlu0 %8793
        %8795 = vrot.lane.b32.xlu0 %v8591, 126
        %v8796 = vpop.permute.xlu0 %8795
        %8797 = vrot.lane.b32.xlu0 %v8593, 126
        %v8798 = vpop.permute.xlu0 %8797
        %8799 = vrot.lane.b32.xlu0 %v8596, 126
        %v8800 = vpop.permute.xlu0 %8799
        %8801 = vrot.lane.b32.xlu0 %v8598, 126
        %v8802 = vpop.permute.xlu0 %8801
        %8803 = vrot.lane.b32.xlu0 %v8601, 126
        %v8804 = vpop.permute.xlu0 %8803
        %8805 = vrot.lane.b32.xlu0 %v8603, 126
        %v8806 = vpop.permute.xlu0 %8805
        %8807 = vrot.lane.b32.xlu0 %v8606, 126
        %v8808 = vpop.permute.xlu0 %8807
        %8809 = vrot.lane.b32.xlu0 %v8608, 126
        %v8810 = vpop.permute.xlu0 %8809
        %8811 = vrot.lane.b32.xlu0 %v8611, 126
        %v8812 = vpop.permute.xlu0 %8811
        %8813 = vrot.lane.b32.xlu0 %v8613, 126
        %v8814 = vpop.permute.xlu0 %8813
        %8815 = vrot.lane.b32.xlu0 %v8616, 126
        %v8816 = vpop.permute.xlu0 %8815
        %8817 = vrot.lane.b32.xlu0 %v8618, 126
        %v8818 = vpop.permute.xlu0 %8817
        %8819 = vrot.lane.b32.xlu0 %v8621, 126
        %v8820 = vpop.permute.xlu0 %8819
        %8821 = vrot.lane.b32.xlu0 %v8623, 126
        %v8822 = vpop.permute.xlu0 %8821
        %8823 = vrot.lane.b32.xlu0 %v8626, 126
        %v8824 = vpop.permute.xlu0 %8823
        %8825 = vrot.lane.b32.xlu0 %v8628, 126
        %v8826 = vpop.permute.xlu0 %8825
        %8827 = vrot.lane.b32.xlu0 %v8631, 126
        %v8828 = vpop.permute.xlu0 %8827
        %8829 = vrot.lane.b32.xlu0 %v8633, 126
        %v8830 = vpop.permute.xlu0 %8829
        %8831 = vrot.lane.b32.xlu0 %v8636, 126
        %v8832 = vpop.permute.xlu0 %8831
        %8833 = vrot.lane.b32.xlu0 %v8638, 126
        %v8834 = vpop.permute.xlu0 %8833
        %8835 = vrot.lane.b32.xlu0 %v8641, 126
        %v8836 = vpop.permute.xlu0 %8835
        %8837 = vrot.lane.b32.xlu0 %v8643, 126
        %v8838 = vpop.permute.xlu0 %8837
        %8839 = vrot.lane.b32.xlu0 %v8646, 126
        %v8840 = vpop.permute.xlu0 %8839
        %8841 = vrot.lane.b32.xlu0 %v8648, 126
        %v8842 = vpop.permute.xlu0 %8841
        %8843 = vrot.lane.b32.xlu0 %v8651, 126
        %v8844 = vpop.permute.xlu0 %8843
        %8845 = vrot.lane.b32.xlu0 %v8653, 126
        %v8846 = vpop.permute.xlu0 %8845
        %8847 = vrot.lane.b32.xlu0 %v8656, 126
        %v8848 = vpop.permute.xlu0 %8847
        %8849 = vrot.lane.b32.xlu0 %v8658, 126
        %v8850 = vpop.permute.xlu0 %8849
        %v8947 = vadd.f32 %v7795, %v8660
        %v8948 = vadd.f32 %v7796, %v8662
        %v8949 = vadd.f32 %v7797, %v8664
        %v8950 = vadd.f32 %v7798, %v8666
        %v8951 = vadd.f32 %v7799, %v8668
        %v8952 = vadd.f32 %v7800, %v8670
        %v8953 = vadd.f32 %v7801, %v8672
        %v8954 = vadd.f32 %v7802, %v8674
        %v8955 = vadd.f32 %v7803, %v8676
        %v8956 = vadd.f32 %v7804, %v8678
        %v8957 = vadd.f32 %v7805, %v8680
        %v8958 = vadd.f32 %v7806, %v8682
        %v8959 = vadd.f32 %v7807, %v8684
        %v8960 = vadd.f32 %v7808, %v8686
        %v8961 = vadd.f32 %v7809, %v8688
        %v8962 = vadd.f32 %v7810, %v8690
        %v8963 = vadd.f32 %v7811, %v8692
        %v8964 = vadd.f32 %v7812, %v8694
        %v8965 = vadd.f32 %v7813, %v8696
        %v8966 = vadd.f32 %v7814, %v8698
        %v8967 = vadd.f32 %v7815, %v8700
        %v8968 = vadd.f32 %v7816, %v8702
        %v8969 = vadd.f32 %v7817, %v8704
        %v8970 = vadd.f32 %v7818, %v8706
        %v8971 = vadd.f32 %v7819, %v8708
        %v8972 = vadd.f32 %v7820, %v8710
        %v8973 = vadd.f32 %v7821, %v8712
        %v8974 = vadd.f32 %v7822, %v8714
        %v8975 = vadd.f32 %v7823, %v8716
        %v8976 = vadd.f32 %v7824, %v8718
        %v8977 = vadd.f32 %v7825, %v8720
        %v8978 = vadd.f32 %v7826, %v8722
        %v8979 = vadd.f32 %v7827, %v8724
        %v8980 = vadd.f32 %v7828, %v8726
        %v8981 = vadd.f32 %v7829, %v8728
        %v8982 = vadd.f32 %v7830, %v8730
        %v8983 = vadd.f32 %v7831, %v8732
        %v8984 = vadd.f32 %v7832, %v8734
        %v8985 = vadd.f32 %v7833, %v8736
        %v8986 = vadd.f32 %v7834, %v8738
        %v8987 = vadd.f32 %v7835, %v8740
        %v8988 = vadd.f32 %v7836, %v8742
        %v8989 = vadd.f32 %v7837, %v8744
        %v8990 = vadd.f32 %v7838, %v8746
        %v8991 = vadd.f32 %v7839, %v8748
        %v8992 = vadd.f32 %v7840, %v8750
        %v8993 = vadd.f32 %v7841, %v8752
        %v8994 = vadd.f32 %v7842, %v8754
        %v8995 = vadd.f32 %v7843, %v8756
        %v8996 = vadd.f32 %v7844, %v8758
        %v8997 = vadd.f32 %v7845, %v8760
        %v8998 = vadd.f32 %v7846, %v8762
        %v8999 = vadd.f32 %v7847, %v8764
        %v9000 = vadd.f32 %v7848, %v8766
        %v9001 = vadd.f32 %v7849, %v8768
        %v9002 = vadd.f32 %v7850, %v8770
        %v9003 = vadd.f32 %v7851, %v8772
        %v9004 = vadd.f32 %v7852, %v8774
        %v9005 = vadd.f32 %v7853, %v8776
        %v9006 = vadd.f32 %v7854, %v8778
        %v9007 = vadd.f32 %v7855, %v8780
        %v9008 = vadd.f32 %v7856, %v8782
        %v9009 = vadd.f32 %v7857, %v8784
        %v9010 = vadd.f32 %v7858, %v8786
        %v9011 = vadd.f32 %v7859, %v8788
        %v9012 = vadd.f32 %v7860, %v8790
        %v9013 = vadd.f32 %v7861, %v8792
        %v9014 = vadd.f32 %v7862, %v8794
        %v9015 = vadd.f32 %v7863, %v8796
        %v9016 = vadd.f32 %v7864, %v8798
        %v9017 = vadd.f32 %v7865, %v8800
        %v9018 = vadd.f32 %v7866, %v8802
        %v9019 = vadd.f32 %v7867, %v8804
        %v9020 = vadd.f32 %v7868, %v8806
        %v9021 = vadd.f32 %v7869, %v8808
        %v9022 = vadd.f32 %v7870, %v8810
        %v9023 = vadd.f32 %v7871, %v8812
        %v9024 = vadd.f32 %v7872, %v8814
        %v9025 = vadd.f32 %v7873, %v8816
        %v9026 = vadd.f32 %v7874, %v8818
        %v9027 = vadd.f32 %v7875, %v8820
        %v9028 = vadd.f32 %v7876, %v8822
        %v9029 = vadd.f32 %v7877, %v8824
        %v9030 = vadd.f32 %v7878, %v8826
        %v9031 = vadd.f32 %v7879, %v8828
        %v9032 = vadd.f32 %v7880, %v8830
        %v9033 = vadd.f32 %v7881, %v8832
        %v9034 = vadd.f32 %v7882, %v8834
        %v9035 = vadd.f32 %v7883, %v8836
        %v9036 = vadd.f32 %v7884, %v8838
        %v9037 = vadd.f32 %v7885, %v8840
        %v9038 = vadd.f32 %v7886, %v8842
        %v9039 = vadd.f32 %v7887, %v8844
        %v9040 = vadd.f32 %v7888, %v8846
        %v9041 = vadd.f32 %v7889, %v8848
        %v9042 = vadd.f32 %v7890, %v8850
        %v9043 = vld [vmem:[#allocation7] sm:$0xff]
        %v9044 = vld [vmem:[#allocation7 + $0x8] sm:$0xff]
        %v9045 = vld [vmem:[#allocation7 + $0x10] sm:$0xff]
        %v9046 = vld [vmem:[#allocation7 + $0x18] sm:$0xff]
        %v9047 = vld [vmem:[#allocation7 + $0x20] sm:$0xff]
        %v9048 = vld [vmem:[#allocation7 + $0x28] sm:$0xff]
        %v9055 = vcombine.high %v9043, %v9043
        %v9057 = vunpack.c.l.s4 1966171168
        %v9058 = vunpack.c.0.s8 %v9057
        %v9059 = vlaneseq
        %v9060 = vshrl.u32 %v9059, 7
        %v9061 = vsub.s32 %v9058, %v9060
        %v9062 = vrot.slane %v9043, %v9061
        %v9064 = vunpack.c.l.s4 1966171168
        %v9065 = vunpack.c.0.s8 %v9064
        %v9066 = vlaneseq
        %v9067 = vshrl.u32 %v9066, 7
        %v9068 = vsub.s32 %v9065, %v9067
        %v9069 = vrot.slane %v9055, %v9068
        %v9070 = vcombine.high %v9062, %v9062
        %v9071 = vcombine.high %v9069, %v9069
        %v9073 = vunpack.c.l.s4 1966171168
        %v9074 = vunpack.c.0.s8 %v9073
        %v9075 = vlaneseq
        %v9076 = vshrl.u32 %v9075, 7
        %v9077 = vsub.s32 %v9074, %v9076
        %v9078 = vrot.slane %v9062, %v9077
        %v9080 = vunpack.c.l.s4 1966171168
        %v9081 = vunpack.c.0.s8 %v9080
        %v9082 = vlaneseq
        %v9083 = vshrl.u32 %v9082, 7
        %v9084 = vsub.s32 %v9081, %v9083
        %v9085 = vrot.slane %v9069, %v9084
        %v9087 = vunpack.c.l.s4 1966171168
        %v9088 = vunpack.c.0.s8 %v9087
        %v9089 = vlaneseq
        %v9090 = vshrl.u32 %v9089, 7
        %v9091 = vsub.s32 %v9088, %v9090
        %v9092 = vrot.slane %v9070, %v9091
        %v9094 = vunpack.c.l.s4 1966171168
        %v9095 = vunpack.c.0.s8 %v9094
        %v9096 = vlaneseq
        %v9097 = vshrl.u32 %v9096, 7
        %v9098 = vsub.s32 %v9095, %v9097
        %v9099 = vrot.slane %v9071, %v9098
        %v9100 = vcombine.high %v9078, %v9078
        %v9101 = vcombine.high %v9085, %v9085
        %v9102 = vcombine.high %v9092, %v9092
        %v9103 = vcombine.high %v9099, %v9099
        %v9104 = vcombine.high %v9044, %v9044
        %v9106 = vunpack.c.l.s4 1966171168
        %v9107 = vunpack.c.0.s8 %v9106
        %v9108 = vlaneseq
        %v9109 = vshrl.u32 %v9108, 7
        %v9110 = vsub.s32 %v9107, %v9109
        %v9111 = vrot.slane %v9044, %v9110
        %v9113 = vunpack.c.l.s4 1966171168
        %v9114 = vunpack.c.0.s8 %v9113
        %v9115 = vlaneseq
        %v9116 = vshrl.u32 %v9115, 7
        %v9117 = vsub.s32 %v9114, %v9116
        %v9118 = vrot.slane %v9104, %v9117
        %v9119 = vcombine.high %v9111, %v9111
        %v9120 = vcombine.high %v9118, %v9118
        %v9122 = vunpack.c.l.s4 1966171168
        %v9123 = vunpack.c.0.s8 %v9122
        %v9124 = vlaneseq
        %v9125 = vshrl.u32 %v9124, 7
        %v9126 = vsub.s32 %v9123, %v9125
        %v9127 = vrot.slane %v9111, %v9126
        %v9129 = vunpack.c.l.s4 1966171168
        %v9130 = vunpack.c.0.s8 %v9129
        %v9131 = vlaneseq
        %v9132 = vshrl.u32 %v9131, 7
        %v9133 = vsub.s32 %v9130, %v9132
        %v9134 = vrot.slane %v9118, %v9133
        %v9136 = vunpack.c.l.s4 1966171168
        %v9137 = vunpack.c.0.s8 %v9136
        %v9138 = vlaneseq
        %v9139 = vshrl.u32 %v9138, 7
        %v9140 = vsub.s32 %v9137, %v9139
        %v9141 = vrot.slane %v9119, %v9140
        %v9143 = vunpack.c.l.s4 1966171168
        %v9144 = vunpack.c.0.s8 %v9143
        %v9145 = vlaneseq
        %v9146 = vshrl.u32 %v9145, 7
        %v9147 = vsub.s32 %v9144, %v9146
        %v9148 = vrot.slane %v9120, %v9147
        %v9149 = vcombine.high %v9127, %v9127
        %v9150 = vcombine.high %v9134, %v9134
        %v9151 = vcombine.high %v9141, %v9141
        %v9152 = vcombine.high %v9148, %v9148
        %v9153 = vcombine.high %v9045, %v9045
        %v9155 = vunpack.c.l.s4 1966171168
        %v9156 = vunpack.c.0.s8 %v9155
        %v9157 = vlaneseq
        %v9158 = vshrl.u32 %v9157, 7
        %v9159 = vsub.s32 %v9156, %v9158
        %v9160 = vrot.slane %v9045, %v9159
        %v9162 = vunpack.c.l.s4 1966171168
        %v9163 = vunpack.c.0.s8 %v9162
        %v9164 = vlaneseq
        %v9165 = vshrl.u32 %v9164, 7
        %v9166 = vsub.s32 %v9163, %v9165
        %v9167 = vrot.slane %v9153, %v9166
        %v9168 = vcombine.high %v9160, %v9160
        %v9169 = vcombine.high %v9167, %v9167
        %v9171 = vunpack.c.l.s4 1966171168
        %v9172 = vunpack.c.0.s8 %v9171
        %v9173 = vlaneseq
        %v9174 = vshrl.u32 %v9173, 7
        %v9175 = vsub.s32 %v9172, %v9174
        %v9176 = vrot.slane %v9160, %v9175
        %v9178 = vunpack.c.l.s4 1966171168
        %v9179 = vunpack.c.0.s8 %v9178
        %v9180 = vlaneseq
        %v9181 = vshrl.u32 %v9180, 7
        %v9182 = vsub.s32 %v9179, %v9181
        %v9183 = vrot.slane %v9167, %v9182
        %v9185 = vunpack.c.l.s4 1966171168
        %v9186 = vunpack.c.0.s8 %v9185
        %v9187 = vlaneseq
        %v9188 = vshrl.u32 %v9187, 7
        %v9189 = vsub.s32 %v9186, %v9188
        %v9190 = vrot.slane %v9168, %v9189
        %v9192 = vunpack.c.l.s4 1966171168
        %v9193 = vunpack.c.0.s8 %v9192
        %v9194 = vlaneseq
        %v9195 = vshrl.u32 %v9194, 7
        %v9196 = vsub.s32 %v9193, %v9195
        %v9197 = vrot.slane %v9169, %v9196
        %v9198 = vcombine.high %v9176, %v9176
        %v9199 = vcombine.high %v9183, %v9183
        %v9200 = vcombine.high %v9190, %v9190
        %v9201 = vcombine.high %v9197, %v9197
        %v9202 = vcombine.high %v9046, %v9046
        %v9204 = vunpack.c.l.s4 1966171168
        %v9205 = vunpack.c.0.s8 %v9204
        %v9206 = vlaneseq
        %v9207 = vshrl.u32 %v9206, 7
        %v9208 = vsub.s32 %v9205, %v9207
        %v9209 = vrot.slane %v9046, %v9208
        %v9211 = vunpack.c.l.s4 1966171168
        %v9212 = vunpack.c.0.s8 %v9211
        %v9213 = vlaneseq
        %v9214 = vshrl.u32 %v9213, 7
        %v9215 = vsub.s32 %v9212, %v9214
        %v9216 = vrot.slane %v9202, %v9215
        %v9217 = vcombine.high %v9209, %v9209
        %v9218 = vcombine.high %v9216, %v9216
        %v9220 = vunpack.c.l.s4 1966171168
        %v9221 = vunpack.c.0.s8 %v9220
        %v9222 = vlaneseq
        %v9223 = vshrl.u32 %v9222, 7
        %v9224 = vsub.s32 %v9221, %v9223
        %v9225 = vrot.slane %v9209, %v9224
        %v9227 = vunpack.c.l.s4 1966171168
        %v9228 = vunpack.c.0.s8 %v9227
        %v9229 = vlaneseq
        %v9230 = vshrl.u32 %v9229, 7
        %v9231 = vsub.s32 %v9228, %v9230
        %v9232 = vrot.slane %v9216, %v9231
        %v9234 = vunpack.c.l.s4 1966171168
        %v9235 = vunpack.c.0.s8 %v9234
        %v9236 = vlaneseq
        %v9237 = vshrl.u32 %v9236, 7
        %v9238 = vsub.s32 %v9235, %v9237
        %v9239 = vrot.slane %v9217, %v9238
        %v9241 = vunpack.c.l.s4 1966171168
        %v9242 = vunpack.c.0.s8 %v9241
        %v9243 = vlaneseq
        %v9244 = vshrl.u32 %v9243, 7
        %v9245 = vsub.s32 %v9242, %v9244
        %v9246 = vrot.slane %v9218, %v9245
        %v9247 = vcombine.high %v9225, %v9225
        %v9248 = vcombine.high %v9232, %v9232
        %v9249 = vcombine.high %v9239, %v9239
        %v9250 = vcombine.high %v9246, %v9246
        %v9251 = vcombine.high %v9047, %v9047
        %v9253 = vunpack.c.l.s4 1966171168
        %v9254 = vunpack.c.0.s8 %v9253
        %v9255 = vlaneseq
        %v9256 = vshrl.u32 %v9255, 7
        %v9257 = vsub.s32 %v9254, %v9256
        %v9258 = vrot.slane %v9047, %v9257
        %v9260 = vunpack.c.l.s4 1966171168
        %v9261 = vunpack.c.0.s8 %v9260
        %v9262 = vlaneseq
        %v9263 = vshrl.u32 %v9262, 7
        %v9264 = vsub.s32 %v9261, %v9263
        %v9265 = vrot.slane %v9251, %v9264
        %v9266 = vcombine.high %v9258, %v9258
        %v9267 = vcombine.high %v9265, %v9265
        %v9269 = vunpack.c.l.s4 1966171168
        %v9270 = vunpack.c.0.s8 %v9269
        %v9271 = vlaneseq
        %v9272 = vshrl.u32 %v9271, 7
        %v9273 = vsub.s32 %v9270, %v9272
        %v9274 = vrot.slane %v9258, %v9273
        %v9276 = vunpack.c.l.s4 1966171168
        %v9277 = vunpack.c.0.s8 %v9276
        %v9278 = vlaneseq
        %v9279 = vshrl.u32 %v9278, 7
        %v9280 = vsub.s32 %v9277, %v9279
        %v9281 = vrot.slane %v9265, %v9280
        %v9283 = vunpack.c.l.s4 1966171168
        %v9284 = vunpack.c.0.s8 %v9283
        %v9285 = vlaneseq
        %v9286 = vshrl.u32 %v9285, 7
        %v9287 = vsub.s32 %v9284, %v9286
        %v9288 = vrot.slane %v9266, %v9287
        %v9290 = vunpack.c.l.s4 1966171168
        %v9291 = vunpack.c.0.s8 %v9290
        %v9292 = vlaneseq
        %v9293 = vshrl.u32 %v9292, 7
        %v9294 = vsub.s32 %v9291, %v9293
        %v9295 = vrot.slane %v9267, %v9294
        %v9296 = vcombine.high %v9274, %v9274
        %v9297 = vcombine.high %v9281, %v9281
        %v9298 = vcombine.high %v9288, %v9288
        %v9299 = vcombine.high %v9295, %v9295
        %v9300 = vcombine.high %v9048, %v9048
        %v9302 = vunpack.c.l.s4 1966171168
        %v9303 = vunpack.c.0.s8 %v9302
        %v9304 = vlaneseq
        %v9305 = vshrl.u32 %v9304, 7
        %v9306 = vsub.s32 %v9303, %v9305
        %v9307 = vrot.slane %v9048, %v9306
        %v9309 = vunpack.c.l.s4 1966171168
        %v9310 = vunpack.c.0.s8 %v9309
        %v9311 = vlaneseq
        %v9312 = vshrl.u32 %v9311, 7
        %v9313 = vsub.s32 %v9310, %v9312
        %v9314 = vrot.slane %v9300, %v9313
        %v9315 = vcombine.high %v9307, %v9307
        %v9316 = vcombine.high %v9314, %v9314
        %v9318 = vunpack.c.l.s4 1966171168
        %v9319 = vunpack.c.0.s8 %v9318
        %v9320 = vlaneseq
        %v9321 = vshrl.u32 %v9320, 7
        %v9322 = vsub.s32 %v9319, %v9321
        %v9323 = vrot.slane %v9307, %v9322
        %v9325 = vunpack.c.l.s4 1966171168
        %v9326 = vunpack.c.0.s8 %v9325
        %v9327 = vlaneseq
        %v9328 = vshrl.u32 %v9327, 7
        %v9329 = vsub.s32 %v9326, %v9328
        %v9330 = vrot.slane %v9314, %v9329
        %v9332 = vunpack.c.l.s4 1966171168
        %v9333 = vunpack.c.0.s8 %v9332
        %v9334 = vlaneseq
        %v9335 = vshrl.u32 %v9334, 7
        %v9336 = vsub.s32 %v9333, %v9335
        %v9337 = vrot.slane %v9315, %v9336
        %v9339 = vunpack.c.l.s4 1966171168
        %v9340 = vunpack.c.0.s8 %v9339
        %v9341 = vlaneseq
        %v9342 = vshrl.u32 %v9341, 7
        %v9343 = vsub.s32 %v9340, %v9342
        %v9344 = vrot.slane %v9316, %v9343
        %v9345 = vcombine.high %v9323, %v9323
        %v9346 = vcombine.high %v9330, %v9330
        %v9347 = vcombine.high %v9337, %v9337
        %v9348 = vcombine.high %v9344, %v9344
        %v9349 = vlaneseq
        %v9350 = vshrl.u32 %v9349, 7
        %v9351 = vsub.s32 0, %v9350
        %v9352 = vrot.slane %v9078, %v9351
        %v9353 = vlaneseq
        %v9354 = vshrl.u32 %v9353, 7
        %v9355 = vsub.s32 0, %v9354
        %v9356 = vrot.slane %v9092, %v9355
        %v9357 = vlaneseq
        %v9358 = vshrl.u32 %v9357, 7
        %v9359 = vsub.s32 0, %v9358
        %v9360 = vrot.slane %v9100, %v9359
        %v9361 = vlaneseq
        %v9362 = vshrl.u32 %v9361, 7
        %v9363 = vsub.s32 0, %v9362
        %v9364 = vrot.slane %v9102, %v9363
        %v9365 = vlaneseq
        %v9366 = vshrl.u32 %v9365, 7
        %v9367 = vsub.s32 0, %v9366
        %v9368 = vrot.slane %v9085, %v9367
        %v9369 = vlaneseq
        %v9370 = vshrl.u32 %v9369, 7
        %v9371 = vsub.s32 0, %v9370
        %v9372 = vrot.slane %v9099, %v9371
        %v9373 = vlaneseq
        %v9374 = vshrl.u32 %v9373, 7
        %v9375 = vsub.s32 0, %v9374
        %v9376 = vrot.slane %v9101, %v9375
        %v9377 = vlaneseq
        %v9378 = vshrl.u32 %v9377, 7
        %v9379 = vsub.s32 0, %v9378
        %v9380 = vrot.slane %v9103, %v9379
        %v9381 = vlaneseq
        %v9382 = vshrl.u32 %v9381, 7
        %v9383 = vsub.s32 0, %v9382
        %v9384 = vrot.slane %v9127, %v9383
        %v9385 = vlaneseq
        %v9386 = vshrl.u32 %v9385, 7
        %v9387 = vsub.s32 0, %v9386
        %v9388 = vrot.slane %v9141, %v9387
        %v9389 = vlaneseq
        %v9390 = vshrl.u32 %v9389, 7
        %v9391 = vsub.s32 0, %v9390
        %v9392 = vrot.slane %v9149, %v9391
        %v9393 = vlaneseq
        %v9394 = vshrl.u32 %v9393, 7
        %v9395 = vsub.s32 0, %v9394
        %v9396 = vrot.slane %v9151, %v9395
        %v9397 = vlaneseq
        %v9398 = vshrl.u32 %v9397, 7
        %v9399 = vsub.s32 0, %v9398
        %v9400 = vrot.slane %v9134, %v9399
        %v9401 = vlaneseq
        %v9402 = vshrl.u32 %v9401, 7
        %v9403 = vsub.s32 0, %v9402
        %v9404 = vrot.slane %v9148, %v9403
        %v9405 = vlaneseq
        %v9406 = vshrl.u32 %v9405, 7
        %v9407 = vsub.s32 0, %v9406
        %v9408 = vrot.slane %v9150, %v9407
        %v9409 = vlaneseq
        %v9410 = vshrl.u32 %v9409, 7
        %v9411 = vsub.s32 0, %v9410
        %v9412 = vrot.slane %v9152, %v9411
        %v9413 = vlaneseq
        %v9414 = vshrl.u32 %v9413, 7
        %v9415 = vsub.s32 0, %v9414
        %v9416 = vrot.slane %v9176, %v9415
        %v9417 = vlaneseq
        %v9418 = vshrl.u32 %v9417, 7
        %v9419 = vsub.s32 0, %v9418
        %v9420 = vrot.slane %v9190, %v9419
        %v9421 = vlaneseq
        %v9422 = vshrl.u32 %v9421, 7
        %v9423 = vsub.s32 0, %v9422
        %v9424 = vrot.slane %v9198, %v9423
        %v9425 = vlaneseq
        %v9426 = vshrl.u32 %v9425, 7
        %v9427 = vsub.s32 0, %v9426
        %v9428 = vrot.slane %v9200, %v9427
        %v9429 = vlaneseq
        %v9430 = vshrl.u32 %v9429, 7
        %v9431 = vsub.s32 0, %v9430
        %v9432 = vrot.slane %v9183, %v9431
        %v9433 = vlaneseq
        %v9434 = vshrl.u32 %v9433, 7
        %v9435 = vsub.s32 0, %v9434
        %v9436 = vrot.slane %v9197, %v9435
        %v9437 = vlaneseq
        %v9438 = vshrl.u32 %v9437, 7
        %v9439 = vsub.s32 0, %v9438
        %v9440 = vrot.slane %v9199, %v9439
        %v9441 = vlaneseq
        %v9442 = vshrl.u32 %v9441, 7
        %v9443 = vsub.s32 0, %v9442
        %v9444 = vrot.slane %v9201, %v9443
        %v9445 = vlaneseq
        %v9446 = vshrl.u32 %v9445, 7
        %v9447 = vsub.s32 0, %v9446
        %v9448 = vrot.slane %v9225, %v9447
        %v9449 = vlaneseq
        %v9450 = vshrl.u32 %v9449, 7
        %v9451 = vsub.s32 0, %v9450
        %v9452 = vrot.slane %v9239, %v9451
        %v9453 = vlaneseq
        %v9454 = vshrl.u32 %v9453, 7
        %v9455 = vsub.s32 0, %v9454
        %v9456 = vrot.slane %v9247, %v9455
        %v9457 = vlaneseq
        %v9458 = vshrl.u32 %v9457, 7
        %v9459 = vsub.s32 0, %v9458
        %v9460 = vrot.slane %v9249, %v9459
        %v9461 = vlaneseq
        %v9462 = vshrl.u32 %v9461, 7
        %v9463 = vsub.s32 0, %v9462
        %v9464 = vrot.slane %v9232, %v9463
        %v9465 = vlaneseq
        %v9466 = vshrl.u32 %v9465, 7
        %v9467 = vsub.s32 0, %v9466
        %v9468 = vrot.slane %v9246, %v9467
        %v9469 = vlaneseq
        %v9470 = vshrl.u32 %v9469, 7
        %v9471 = vsub.s32 0, %v9470
        %v9472 = vrot.slane %v9248, %v9471
        %v9473 = vlaneseq
        %v9474 = vshrl.u32 %v9473, 7
        %v9475 = vsub.s32 0, %v9474
        %v9476 = vrot.slane %v9250, %v9475
        %v9477 = vlaneseq
        %v9478 = vshrl.u32 %v9477, 7
        %v9479 = vsub.s32 0, %v9478
        %v9480 = vrot.slane %v9274, %v9479
        %v9481 = vlaneseq
        %v9482 = vshrl.u32 %v9481, 7
        %v9483 = vsub.s32 0, %v9482
        %v9484 = vrot.slane %v9288, %v9483
        %v9485 = vlaneseq
        %v9486 = vshrl.u32 %v9485, 7
        %v9487 = vsub.s32 0, %v9486
        %v9488 = vrot.slane %v9296, %v9487
        %v9489 = vlaneseq
        %v9490 = vshrl.u32 %v9489, 7
        %v9491 = vsub.s32 0, %v9490
        %v9492 = vrot.slane %v9298, %v9491
        %v9493 = vlaneseq
        %v9494 = vshrl.u32 %v9493, 7
        %v9495 = vsub.s32 0, %v9494
        %v9496 = vrot.slane %v9281, %v9495
        %v9497 = vlaneseq
        %v9498 = vshrl.u32 %v9497, 7
        %v9499 = vsub.s32 0, %v9498
        %v9500 = vrot.slane %v9295, %v9499
        %v9501 = vlaneseq
        %v9502 = vshrl.u32 %v9501, 7
        %v9503 = vsub.s32 0, %v9502
        %v9504 = vrot.slane %v9297, %v9503
        %v9505 = vlaneseq
        %v9506 = vshrl.u32 %v9505, 7
        %v9507 = vsub.s32 0, %v9506
        %v9508 = vrot.slane %v9299, %v9507
        %v9509 = vlaneseq
        %v9510 = vshrl.u32 %v9509, 7
        %v9511 = vsub.s32 0, %v9510
        %v9512 = vrot.slane %v9323, %v9511
        %v9513 = vlaneseq
        %v9514 = vshrl.u32 %v9513, 7
        %v9515 = vsub.s32 0, %v9514
        %v9516 = vrot.slane %v9337, %v9515
        %v9517 = vlaneseq
        %v9518 = vshrl.u32 %v9517, 7
        %v9519 = vsub.s32 0, %v9518
        %v9520 = vrot.slane %v9345, %v9519
        %v9521 = vlaneseq
        %v9522 = vshrl.u32 %v9521, 7
        %v9523 = vsub.s32 0, %v9522
        %v9524 = vrot.slane %v9347, %v9523
        %v9525 = vlaneseq
        %v9526 = vshrl.u32 %v9525, 7
        %v9527 = vsub.s32 0, %v9526
        %v9528 = vrot.slane %v9330, %v9527
        %v9529 = vlaneseq
        %v9530 = vshrl.u32 %v9529, 7
        %v9531 = vsub.s32 0, %v9530
        %v9532 = vrot.slane %v9344, %v9531
        %v9533 = vlaneseq
        %v9534 = vshrl.u32 %v9533, 7
        %v9535 = vsub.s32 0, %v9534
        %v9536 = vrot.slane %v9346, %v9535
        %v9537 = vlaneseq
        %v9538 = vshrl.u32 %v9537, 7
        %v9539 = vsub.s32 0, %v9538
        %v9540 = vrot.slane %v9348, %v9539
        %9541 = vset.pattern.permute.xlu0 0
        %9542 = vperm.xlu0 %9541, %v9352
        %v9543 = vpop.permute.xlu0 %9542
        %9545 = vset.pattern.permute.xlu0 0
        %9546 = vperm.xlu0 %9545, %v9356
        %v9547 = vpop.permute.xlu0 %9546
        %9549 = vset.pattern.permute.xlu0 0
        %9550 = vperm.xlu0 %9549, %v9360
        %v9551 = vpop.permute.xlu0 %9550
        %9553 = vset.pattern.permute.xlu0 0
        %9554 = vperm.xlu0 %9553, %v9364
        %v9555 = vpop.permute.xlu0 %9554
        %9557 = vset.pattern.permute.xlu0 0
        %9558 = vperm.xlu0 %9557, %v9368
        %v9559 = vpop.permute.xlu0 %9558
        %9561 = vset.pattern.permute.xlu0 0
        %9562 = vperm.xlu0 %9561, %v9372
        %v9563 = vpop.permute.xlu0 %9562
        %9565 = vset.pattern.permute.xlu0 0
        %9566 = vperm.xlu0 %9565, %v9376
        %v9567 = vpop.permute.xlu0 %9566
        %9569 = vset.pattern.permute.xlu0 0
        %9570 = vperm.xlu0 %9569, %v9380
        %v9571 = vpop.permute.xlu0 %9570
        %9573 = vset.pattern.permute.xlu0 0
        %9574 = vperm.xlu0 %9573, %v9384
        %v9575 = vpop.permute.xlu0 %9574
        %9577 = vset.pattern.permute.xlu0 0
        %9578 = vperm.xlu0 %9577, %v9388
        %v9579 = vpop.permute.xlu0 %9578
        %9581 = vset.pattern.permute.xlu0 0
        %9582 = vperm.xlu0 %9581, %v9392
        %v9583 = vpop.permute.xlu0 %9582
        %9585 = vset.pattern.permute.xlu0 0
        %9586 = vperm.xlu0 %9585, %v9396
        %v9587 = vpop.permute.xlu0 %9586
        %9589 = vset.pattern.permute.xlu0 0
        %9590 = vperm.xlu0 %9589, %v9400
        %v9591 = vpop.permute.xlu0 %9590
        %9593 = vset.pattern.permute.xlu0 0
        %9594 = vperm.xlu0 %9593, %v9404
        %v9595 = vpop.permute.xlu0 %9594
        %9597 = vset.pattern.permute.xlu0 0
        %9598 = vperm.xlu0 %9597, %v9408
        %v9599 = vpop.permute.xlu0 %9598
        %9601 = vset.pattern.permute.xlu0 0
        %9602 = vperm.xlu0 %9601, %v9412
        %v9603 = vpop.permute.xlu0 %9602
        %9605 = vset.pattern.permute.xlu0 0
        %9606 = vperm.xlu0 %9605, %v9416
        %v9607 = vpop.permute.xlu0 %9606
        %9609 = vset.pattern.permute.xlu0 0
        %9610 = vperm.xlu0 %9609, %v9420
        %v9611 = vpop.permute.xlu0 %9610
        %9613 = vset.pattern.permute.xlu0 0
        %9614 = vperm.xlu0 %9613, %v9424
        %v9615 = vpop.permute.xlu0 %9614
        %9617 = vset.pattern.permute.xlu0 0
        %9618 = vperm.xlu0 %9617, %v9428
        %v9619 = vpop.permute.xlu0 %9618
        %9621 = vset.pattern.permute.xlu0 0
        %9622 = vperm.xlu0 %9621, %v9432
        %v9623 = vpop.permute.xlu0 %9622
        %9625 = vset.pattern.permute.xlu0 0
        %9626 = vperm.xlu0 %9625, %v9436
        %v9627 = vpop.permute.xlu0 %9626
        %9629 = vset.pattern.permute.xlu0 0
        %9630 = vperm.xlu0 %9629, %v9440
        %v9631 = vpop.permute.xlu0 %9630
        %9633 = vset.pattern.permute.xlu0 0
        %9634 = vperm.xlu0 %9633, %v9444
        %v9635 = vpop.permute.xlu0 %9634
        %9637 = vset.pattern.permute.xlu0 0
        %9638 = vperm.xlu0 %9637, %v9448
        %v9639 = vpop.permute.xlu0 %9638
        %9641 = vset.pattern.permute.xlu0 0
        %9642 = vperm.xlu0 %9641, %v9452
        %v9643 = vpop.permute.xlu0 %9642
        %9645 = vset.pattern.permute.xlu0 0
        %9646 = vperm.xlu0 %9645, %v9456
        %v9647 = vpop.permute.xlu0 %9646
        %9649 = vset.pattern.permute.xlu0 0
        %9650 = vperm.xlu0 %9649, %v9460
        %v9651 = vpop.permute.xlu0 %9650
        %9653 = vset.pattern.permute.xlu0 0
        %9654 = vperm.xlu0 %9653, %v9464
        %v9655 = vpop.permute.xlu0 %9654
        %9657 = vset.pattern.permute.xlu0 0
        %9658 = vperm.xlu0 %9657, %v9468
        %v9659 = vpop.permute.xlu0 %9658
        %9661 = vset.pattern.permute.xlu0 0
        %9662 = vperm.xlu0 %9661, %v9472
        %v9663 = vpop.permute.xlu0 %9662
        %9665 = vset.pattern.permute.xlu0 0
        %9666 = vperm.xlu0 %9665, %v9476
        %v9667 = vpop.permute.xlu0 %9666
        %9669 = vset.pattern.permute.xlu0 0
        %9670 = vperm.xlu0 %9669, %v9480
        %v9671 = vpop.permute.xlu0 %9670
        %9673 = vset.pattern.permute.xlu0 0
        %9674 = vperm.xlu0 %9673, %v9484
        %v9675 = vpop.permute.xlu0 %9674
        %9677 = vset.pattern.permute.xlu0 0
        %9678 = vperm.xlu0 %9677, %v9488
        %v9679 = vpop.permute.xlu0 %9678
        %9681 = vset.pattern.permute.xlu0 0
        %9682 = vperm.xlu0 %9681, %v9492
        %v9683 = vpop.permute.xlu0 %9682
        %9685 = vset.pattern.permute.xlu0 0
        %9686 = vperm.xlu0 %9685, %v9496
        %v9687 = vpop.permute.xlu0 %9686
        %9689 = vset.pattern.permute.xlu0 0
        %9690 = vperm.xlu0 %9689, %v9500
        %v9691 = vpop.permute.xlu0 %9690
        %9693 = vset.pattern.permute.xlu0 0
        %9694 = vperm.xlu0 %9693, %v9504
        %v9695 = vpop.permute.xlu0 %9694
        %9697 = vset.pattern.permute.xlu0 0
        %9698 = vperm.xlu0 %9697, %v9508
        %v9699 = vpop.permute.xlu0 %9698
        %9701 = vset.pattern.permute.xlu0 0
        %9702 = vperm.xlu0 %9701, %v9512
        %v9703 = vpop.permute.xlu0 %9702
        %9705 = vset.pattern.permute.xlu0 0
        %9706 = vperm.xlu0 %9705, %v9516
        %v9707 = vpop.permute.xlu0 %9706
        %9709 = vset.pattern.permute.xlu0 0
        %9710 = vperm.xlu0 %9709, %v9520
        %v9711 = vpop.permute.xlu0 %9710
        %9713 = vset.pattern.permute.xlu0 0
        %9714 = vperm.xlu0 %9713, %v9524
        %v9715 = vpop.permute.xlu0 %9714
        %9717 = vset.pattern.permute.xlu0 0
        %9718 = vperm.xlu0 %9717, %v9528
        %v9719 = vpop.permute.xlu0 %9718
        %9721 = vset.pattern.permute.xlu0 0
        %9722 = vperm.xlu0 %9721, %v9532
        %v9723 = vpop.permute.xlu0 %9722
        %9725 = vset.pattern.permute.xlu0 0
        %9726 = vperm.xlu0 %9725, %v9536
        %v9727 = vpop.permute.xlu0 %9726
        %9729 = vset.pattern.permute.xlu0 0
        %9730 = vperm.xlu0 %9729, %v9540
        %v9731 = vpop.permute.xlu0 %9730
        %v9733 = vadd.f32 %v8947, %v9543
        %v9734 = vadd.f32 %v8948, %v9543
        %v9735 = vadd.f32 %v8949, %v9547
        %v9736 = vadd.f32 %v8950, %v9547
        %v9737 = vadd.f32 %v8951, %v9551
        %v9738 = vadd.f32 %v8952, %v9551
        %v9739 = vadd.f32 %v8953, %v9555
        %v9740 = vadd.f32 %v8954, %v9555
        %v9741 = vadd.f32 %v8955, %v9559
        %v9742 = vadd.f32 %v8956, %v9559
        %v9743 = vadd.f32 %v8957, %v9563
        %v9744 = vadd.f32 %v8958, %v9563
        %v9745 = vadd.f32 %v8959, %v9567
        %v9746 = vadd.f32 %v8960, %v9567
        %v9747 = vadd.f32 %v8961, %v9571
        %v9748 = vadd.f32 %v8962, %v9571
        %v9749 = vadd.f32 %v8963, %v9575
        %v9750 = vadd.f32 %v8964, %v9575
        %v9751 = vadd.f32 %v8965, %v9579
        %v9752 = vadd.f32 %v8966, %v9579
        %v9753 = vadd.f32 %v8967, %v9583
        %v9754 = vadd.f32 %v8968, %v9583
        %v9755 = vadd.f32 %v8969, %v9587
        %v9756 = vadd.f32 %v8970, %v9587
        %v9757 = vadd.f32 %v8971, %v9591
        %v9758 = vadd.f32 %v8972, %v9591
        %v9759 = vadd.f32 %v8973, %v9595
        %v9760 = vadd.f32 %v8974, %v9595
        %v9761 = vadd.f32 %v8975, %v9599
        %v9762 = vadd.f32 %v8976, %v9599
        %v9763 = vadd.f32 %v8977, %v9603
        %v9764 = vadd.f32 %v8978, %v9603
        %v9765 = vadd.f32 %v8979, %v9607
        %v9766 = vadd.f32 %v8980, %v9607
        %v9767 = vadd.f32 %v8981, %v9611
        %v9768 = vadd.f32 %v8982, %v9611
        %v9769 = vadd.f32 %v8983, %v9615
        %v9770 = vadd.f32 %v8984, %v9615
        %v9771 = vadd.f32 %v8985, %v9619
        %v9772 = vadd.f32 %v8986, %v9619
        %v9773 = vadd.f32 %v8987, %v9623
        %v9774 = vadd.f32 %v8988, %v9623
        %v9775 = vadd.f32 %v8989, %v9627
        %v9776 = vadd.f32 %v8990, %v9627
        %v9777 = vadd.f32 %v8991, %v9631
        %v9778 = vadd.f32 %v8992, %v9631
        %v9779 = vadd.f32 %v8993, %v9635
        %v9780 = vadd.f32 %v8994, %v9635
        %v9781 = vadd.f32 %v8995, %v9639
        %v9782 = vadd.f32 %v8996, %v9639
        %v9783 = vadd.f32 %v8997, %v9643
        %v9784 = vadd.f32 %v8998, %v9643
        %v9785 = vadd.f32 %v8999, %v9647
        %v9786 = vadd.f32 %v9000, %v9647
        %v9787 = vadd.f32 %v9001, %v9651
        %v9788 = vadd.f32 %v9002, %v9651
        %v9789 = vadd.f32 %v9003, %v9655
        %v9790 = vadd.f32 %v9004, %v9655
        %v9791 = vadd.f32 %v9005, %v9659
        %v9792 = vadd.f32 %v9006, %v9659
        %v9793 = vadd.f32 %v9007, %v9663
        %v9794 = vadd.f32 %v9008, %v9663
        %v9795 = vadd.f32 %v9009, %v9667
        %v9796 = vadd.f32 %v9010, %v9667
        %v9797 = vadd.f32 %v9011, %v9671
        %v9798 = vadd.f32 %v9012, %v9671
        %v9799 = vadd.f32 %v9013, %v9675
        %v9800 = vadd.f32 %v9014, %v9675
        %v9801 = vadd.f32 %v9015, %v9679
        %v9802 = vadd.f32 %v9016, %v9679
        %v9803 = vadd.f32 %v9017, %v9683
        %v9804 = vadd.f32 %v9018, %v9683
        %v9805 = vadd.f32 %v9019, %v9687
        %v9806 = vadd.f32 %v9020, %v9687
        %v9807 = vadd.f32 %v9021, %v9691
        %v9808 = vadd.f32 %v9022, %v9691
        %v9809 = vadd.f32 %v9023, %v9695
        %v9810 = vadd.f32 %v9024, %v9695
        %v9811 = vadd.f32 %v9025, %v9699
        %v9812 = vadd.f32 %v9026, %v9699
        %v9813 = vadd.f32 %v9027, %v9703
        %v9814 = vadd.f32 %v9028, %v9703
        %v9815 = vadd.f32 %v9029, %v9707
        %v9816 = vadd.f32 %v9030, %v9707
        %v9817 = vadd.f32 %v9031, %v9711
        %v9818 = vadd.f32 %v9032, %v9711
        %v9819 = vadd.f32 %v9033, %v9715
        %v9820 = vadd.f32 %v9034, %v9715
        %v9821 = vadd.f32 %v9035, %v9719
        %v9822 = vadd.f32 %v9036, %v9719
        %v9823 = vadd.f32 %v9037, %v9723
        %v9824 = vadd.f32 %v9038, %v9723
        %v9825 = vadd.f32 %v9039, %v9727
        %v9826 = vadd.f32 %v9040, %v9727
        %v9827 = vadd.f32 %v9041, %v9731
        %v9828 = vadd.f32 %v9042, %v9731
        %v9829 = vpack.c.bf16 %v9734, %v9733
        %v9830 = vpack.c.bf16 %v9736, %v9735
        %v9831 = vpack.c.bf16 %v9738, %v9737
        %v9832 = vpack.c.bf16 %v9740, %v9739
        %v9833 = vpack.c.bf16 %v9742, %v9741
        %v9834 = vpack.c.bf16 %v9744, %v9743
        %v9835 = vpack.c.bf16 %v9746, %v9745
        %v9836 = vpack.c.bf16 %v9748, %v9747
        %v9837 = vpack.c.bf16 %v9750, %v9749
        %v9838 = vpack.c.bf16 %v9752, %v9751
        %v9839 = vpack.c.bf16 %v9754, %v9753
        %v9840 = vpack.c.bf16 %v9756, %v9755
        %v9841 = vpack.c.bf16 %v9758, %v9757
        %v9842 = vpack.c.bf16 %v9760, %v9759
        %v9843 = vpack.c.bf16 %v9762, %v9761
        %v9844 = vpack.c.bf16 %v9764, %v9763
        %v9845 = vpack.c.bf16 %v9766, %v9765
        %v9846 = vpack.c.bf16 %v9768, %v9767
        %v9847 = vpack.c.bf16 %v9770, %v9769
        %v9848 = vpack.c.bf16 %v9772, %v9771
        %v9849 = vpack.c.bf16 %v9774, %v9773
        %v9850 = vpack.c.bf16 %v9776, %v9775
        %v9851 = vpack.c.bf16 %v9778, %v9777
        %v9852 = vpack.c.bf16 %v9780, %v9779
        %v9853 = vpack.c.bf16 %v9782, %v9781
        %v9854 = vpack.c.bf16 %v9784, %v9783
        %v9855 = vpack.c.bf16 %v9786, %v9785
        %v9856 = vpack.c.bf16 %v9788, %v9787
        %v9857 = vpack.c.bf16 %v9790, %v9789
        %v9858 = vpack.c.bf16 %v9792, %v9791
        %v9859 = vpack.c.bf16 %v9794, %v9793
        %v9860 = vpack.c.bf16 %v9796, %v9795
        %v9861 = vpack.c.bf16 %v9798, %v9797
        %v9862 = vpack.c.bf16 %v9800, %v9799
        %v9863 = vpack.c.bf16 %v9802, %v9801
        %v9864 = vpack.c.bf16 %v9804, %v9803
        %v9865 = vpack.c.bf16 %v9806, %v9805
        %v9866 = vpack.c.bf16 %v9808, %v9807
        %v9867 = vpack.c.bf16 %v9810, %v9809
        %v9868 = vpack.c.bf16 %v9812, %v9811
        %v9869 = vpack.c.bf16 %v9814, %v9813
        %v9870 = vpack.c.bf16 %v9816, %v9815
        %v9871 = vpack.c.bf16 %v9818, %v9817
        %v9872 = vpack.c.bf16 %v9820, %v9819
        %v9873 = vpack.c.bf16 %v9822, %v9821
        %v9874 = vpack.c.bf16 %v9824, %v9823
        %v9875 = vpack.c.bf16 %v9826, %v9825
        %v9876 = vpack.c.bf16 %v9828, %v9827
        %v9925 = vunpack.c.l.b16 %v9829
        %v9926 = vunpack.c.h.b16 %v9829
        %v9927 = vunpack.c.l.b16 %v9830
        %v9928 = vunpack.c.h.b16 %v9830
        %v9929 = vunpack.c.l.b16 %v9831
        %v9930 = vunpack.c.h.b16 %v9831
        %v9931 = vunpack.c.l.b16 %v9832
        %v9932 = vunpack.c.h.b16 %v9832
        %v9933 = vunpack.c.l.b16 %v9833
        %v9934 = vunpack.c.h.b16 %v9833
        %v9935 = vunpack.c.l.b16 %v9834
        %v9936 = vunpack.c.h.b16 %v9834
        %v9937 = vunpack.c.l.b16 %v9835
        %v9938 = vunpack.c.h.b16 %v9835
        %v9939 = vunpack.c.l.b16 %v9836
        %v9940 = vunpack.c.h.b16 %v9836
        %v9941 = vunpack.c.l.b16 %v9837
        %v9942 = vunpack.c.h.b16 %v9837
        %v9943 = vunpack.c.l.b16 %v9838
        %v9944 = vunpack.c.h.b16 %v9838
        %v9945 = vunpack.c.l.b16 %v9839
        %v9946 = vunpack.c.h.b16 %v9839
        %v9947 = vunpack.c.l.b16 %v9840
        %v9948 = vunpack.c.h.b16 %v9840
        %v9949 = vunpack.c.l.b16 %v9841
        %v9950 = vunpack.c.h.b16 %v9841
        %v9951 = vunpack.c.l.b16 %v9842
        %v9952 = vunpack.c.h.b16 %v9842
        %v9953 = vunpack.c.l.b16 %v9843
        %v9954 = vunpack.c.h.b16 %v9843
        %v9955 = vunpack.c.l.b16 %v9844
        %v9956 = vunpack.c.h.b16 %v9844
        %v9957 = vunpack.c.l.b16 %v9845
        %v9958 = vunpack.c.h.b16 %v9845
        %v9959 = vunpack.c.l.b16 %v9846
        %v9960 = vunpack.c.h.b16 %v9846
        %v9961 = vunpack.c.l.b16 %v9847
        %v9962 = vunpack.c.h.b16 %v9847
        %v9963 = vunpack.c.l.b16 %v9848
        %v9964 = vunpack.c.h.b16 %v9848
        %v9965 = vunpack.c.l.b16 %v9849
        %v9966 = vunpack.c.h.b16 %v9849
        %v9967 = vunpack.c.l.b16 %v9850
        %v9968 = vunpack.c.h.b16 %v9850
        %v9969 = vunpack.c.l.b16 %v9851
        %v9970 = vunpack.c.h.b16 %v9851
        %v9971 = vunpack.c.l.b16 %v9852
        %v9972 = vunpack.c.h.b16 %v9852
        %v9973 = vunpack.c.l.b16 %v9853
        %v9974 = vunpack.c.h.b16 %v9853
        %v9975 = vunpack.c.l.b16 %v9854
        %v9976 = vunpack.c.h.b16 %v9854
        %v9977 = vunpack.c.l.b16 %v9855
        %v9978 = vunpack.c.h.b16 %v9855
        %v9979 = vunpack.c.l.b16 %v9856
        %v9980 = vunpack.c.h.b16 %v9856
        %v9981 = vunpack.c.l.b16 %v9857
        %v9982 = vunpack.c.h.b16 %v9857
        %v9983 = vunpack.c.l.b16 %v9858
        %v9984 = vunpack.c.h.b16 %v9858
        %v9985 = vunpack.c.l.b16 %v9859
        %v9986 = vunpack.c.h.b16 %v9859
        %v9987 = vunpack.c.l.b16 %v9860
        %v9988 = vunpack.c.h.b16 %v9860
        %v9989 = vunpack.c.l.b16 %v9861
        %v9990 = vunpack.c.h.b16 %v9861
        %v9991 = vunpack.c.l.b16 %v9862
        %v9992 = vunpack.c.h.b16 %v9862
        %v9993 = vunpack.c.l.b16 %v9863
        %v9994 = vunpack.c.h.b16 %v9863
        %v9995 = vunpack.c.l.b16 %v9864
        %v9996 = vunpack.c.h.b16 %v9864
        %v9997 = vunpack.c.l.b16 %v9865
        %v9998 = vunpack.c.h.b16 %v9865
        %v9999 = vunpack.c.l.b16 %v9866
        %v10000 = vunpack.c.h.b16 %v9866
        %v10001 = vunpack.c.l.b16 %v9867
        %v10002 = vunpack.c.h.b16 %v9867
        %v10003 = vunpack.c.l.b16 %v9868
        %v10004 = vunpack.c.h.b16 %v9868
        %v10005 = vunpack.c.l.b16 %v9869
        %v10006 = vunpack.c.h.b16 %v9869
        %v10007 = vunpack.c.l.b16 %v9870
        %v10008 = vunpack.c.h.b16 %v9870
        %v10009 = vunpack.c.l.b16 %v9871
        %v10010 = vunpack.c.h.b16 %v9871
        %v10011 = vunpack.c.l.b16 %v9872
        %v10012 = vunpack.c.h.b16 %v9872
        %v10013 = vunpack.c.l.b16 %v9873
        %v10014 = vunpack.c.h.b16 %v9873
        %v10015 = vunpack.c.l.b16 %v9874
        %v10016 = vunpack.c.h.b16 %v9874
        %v10017 = vunpack.c.l.b16 %v9875
        %v10018 = vunpack.c.h.b16 %v9875
        %v10019 = vunpack.c.l.b16 %v9876
        %v10020 = vunpack.c.h.b16 %v9876
        %v10021 = vpack.c.b16 %v9925, %v9925
        %v10022 = vpack.c.b16 %v9926, %v9926
        %v10023 = vpack.c.b16 %v9927, %v9927
        %v10024 = vpack.c.b16 %v9928, %v9928
        %v10025 = vpack.c.b16 %v9929, %v9929
        %v10026 = vpack.c.b16 %v9930, %v9930
        %v10027 = vpack.c.b16 %v9931, %v9931
        %v10028 = vpack.c.b16 %v9932, %v9932
        %v10029 = vpack.c.b16 %v9933, %v9933
        %v10030 = vpack.c.b16 %v9934, %v9934
        %v10031 = vpack.c.b16 %v9935, %v9935
        %v10032 = vpack.c.b16 %v9936, %v9936
        %v10033 = vpack.c.b16 %v9937, %v9937
        %v10034 = vpack.c.b16 %v9938, %v9938
        %v10035 = vpack.c.b16 %v9939, %v9939
        %v10036 = vpack.c.b16 %v9940, %v9940
        %v10037 = vpack.c.b16 %v9941, %v9941
        %v10038 = vpack.c.b16 %v9942, %v9942
        %v10039 = vpack.c.b16 %v9943, %v9943
        %v10040 = vpack.c.b16 %v9944, %v9944
        %v10041 = vpack.c.b16 %v9945, %v9945
        %v10042 = vpack.c.b16 %v9946, %v9946
        %v10043 = vpack.c.b16 %v9947, %v9947
        %v10044 = vpack.c.b16 %v9948, %v9948
        %v10045 = vpack.c.b16 %v9949, %v9949
        %v10046 = vpack.c.b16 %v9950, %v9950
        %v10047 = vpack.c.b16 %v9951, %v9951
        %v10048 = vpack.c.b16 %v9952, %v9952
        %v10049 = vpack.c.b16 %v9953, %v9953
        %v10050 = vpack.c.b16 %v9954, %v9954
        %v10051 = vpack.c.b16 %v9955, %v9955
        %v10052 = vpack.c.b16 %v9956, %v9956
        %v10053 = vpack.c.b16 %v9957, %v9957
        %v10054 = vpack.c.b16 %v9958, %v9958
        %v10055 = vpack.c.b16 %v9959, %v9959
        %v10056 = vpack.c.b16 %v9960, %v9960
        %v10057 = vpack.c.b16 %v9961, %v9961
        %v10058 = vpack.c.b16 %v9962, %v9962
        %v10059 = vpack.c.b16 %v9963, %v9963
        %v10060 = vpack.c.b16 %v9964, %v9964
        %v10061 = vpack.c.b16 %v9965, %v9965
        %v10062 = vpack.c.b16 %v9966, %v9966
        %v10063 = vpack.c.b16 %v9967, %v9967
        %v10064 = vpack.c.b16 %v9968, %v9968
        %v10065 = vpack.c.b16 %v9969, %v9969
        %v10066 = vpack.c.b16 %v9970, %v9970
        %v10067 = vpack.c.b16 %v9971, %v9971
        %v10068 = vpack.c.b16 %v9972, %v9972
        %v10069 = vpack.c.b16 %v9973, %v9973
        %v10070 = vpack.c.b16 %v9974, %v9974
        %v10071 = vpack.c.b16 %v9975, %v9975
        %v10072 = vpack.c.b16 %v9976, %v9976
        %v10073 = vpack.c.b16 %v9977, %v9977
        %v10074 = vpack.c.b16 %v9978, %v9978
        %v10075 = vpack.c.b16 %v9979, %v9979
        %v10076 = vpack.c.b16 %v9980, %v9980
        %v10077 = vpack.c.b16 %v9981, %v9981
        %v10078 = vpack.c.b16 %v9982, %v9982
        %v10079 = vpack.c.b16 %v9983, %v9983
        %v10080 = vpack.c.b16 %v9984, %v9984
        %v10081 = vpack.c.b16 %v9985, %v9985
        %v10082 = vpack.c.b16 %v9986, %v9986
        %v10083 = vpack.c.b16 %v9987, %v9987
        %v10084 = vpack.c.b16 %v9988, %v9988
        %v10085 = vpack.c.b16 %v9989, %v9989
        %v10086 = vpack.c.b16 %v9990, %v9990
        %v10087 = vpack.c.b16 %v9991, %v9991
        %v10088 = vpack.c.b16 %v9992, %v9992
        %v10089 = vpack.c.b16 %v9993, %v9993
        %v10090 = vpack.c.b16 %v9994, %v9994
        %v10091 = vpack.c.b16 %v9995, %v9995
        %v10092 = vpack.c.b16 %v9996, %v9996
        %v10093 = vpack.c.b16 %v9997, %v9997
        %v10094 = vpack.c.b16 %v9998, %v9998
        %v10095 = vpack.c.b16 %v9999, %v9999
        %v10096 = vpack.c.b16 %v10000, %v10000
        %v10097 = vpack.c.b16 %v10001, %v10001
        %v10098 = vpack.c.b16 %v10002, %v10002
        %v10099 = vpack.c.b16 %v10003, %v10003
        %v10100 = vpack.c.b16 %v10004, %v10004
        %v10101 = vpack.c.b16 %v10005, %v10005
        %v10102 = vpack.c.b16 %v10006, %v10006
        %v10103 = vpack.c.b16 %v10007, %v10007
        %v10104 = vpack.c.b16 %v10008, %v10008
        %v10105 = vpack.c.b16 %v10009, %v10009
        %v10106 = vpack.c.b16 %v10010, %v10010
        %v10107 = vpack.c.b16 %v10011, %v10011
        %v10108 = vpack.c.b16 %v10012, %v10012
        %v10109 = vpack.c.b16 %v10013, %v10013
        %v10110 = vpack.c.b16 %v10014, %v10014
        %v10111 = vpack.c.b16 %v10015, %v10015
        %v10112 = vpack.c.b16 %v10016, %v10016
        %v10113 = vpack.c.b16 %v10017, %v10017
        %v10114 = vpack.c.b16 %v10018, %v10018
        %v10115 = vpack.c.b16 %v10019, %v10019
        %v10116 = vpack.c.b16 %v10020, %v10020
        %vm10213 = vcmask 125952
        %10214 = vst.msk [vmem:[%s252] sm:$0xf] %vm10213, %v10021
        %10215 = vst.msk [vmem:[%s252 + $0x4] sm:$0xf] %vm10213, %v10022
        %10216 = vst.msk [vmem:[%s252 + $0x8] sm:$0xf] %vm10213, %v10023
        %10217 = vst.msk [vmem:[%s252 + $0xc] sm:$0xf] %vm10213, %v10024
        %10218 = vst.msk [vmem:[%s252 + $0x10] sm:$0xf] %vm10213, %v10025
        %10219 = vst.msk [vmem:[%s252 + $0x14] sm:$0xf] %vm10213, %v10026
        %10220 = vst.msk [vmem:[%s252 + $0x18] sm:$0xf] %vm10213, %v10027
        %10221 = vst.msk [vmem:[%s252 + $0x1c] sm:$0xf] %vm10213, %v10028
        %10222 = vst.msk [vmem:[%s252 + $0x20] sm:$0xf] %vm10213, %v10029
        %10223 = vst.msk [vmem:[%s252 + $0x24] sm:$0xf] %vm10213, %v10030
        %10224 = vst.msk [vmem:[%s252 + $0x28] sm:$0xf] %vm10213, %v10031
        %10225 = vst.msk [vmem:[%s252 + $0x2c] sm:$0xf] %vm10213, %v10032
        %10226 = vst.msk [vmem:[%s252 + $0x30] sm:$0xf] %vm10213, %v10033
        %10227 = vst.msk [vmem:[%s252 + $0x34] sm:$0xf] %vm10213, %v10034
        %10228 = vst.msk [vmem:[%s252 + $0x38] sm:$0xf] %vm10213, %v10035
        %10229 = vst.msk [vmem:[%s252 + $0x3c] sm:$0xf] %vm10213, %v10036
        %10230 = vst.msk [vmem:[%s252 + $0x40] sm:$0xf] %vm10213, %v10037
        %10231 = vst.msk [vmem:[%s252 + $0x44] sm:$0xf] %vm10213, %v10038
        %10232 = vst.msk [vmem:[%s252 + $0x48] sm:$0xf] %vm10213, %v10039
        %10233 = vst.msk [vmem:[%s252 + $0x4c] sm:$0xf] %vm10213, %v10040
        %10234 = vst.msk [vmem:[%s252 + $0x50] sm:$0xf] %vm10213, %v10041
        %10235 = vst.msk [vmem:[%s252 + $0x54] sm:$0xf] %vm10213, %v10042
        %10236 = vst.msk [vmem:[%s252 + $0x58] sm:$0xf] %vm10213, %v10043
        %10237 = vst.msk [vmem:[%s252 + $0x5c] sm:$0xf] %vm10213, %v10044
        %10238 = vst.msk [vmem:[%s252 + $0x60] sm:$0xf] %vm10213, %v10045
        %10239 = vst.msk [vmem:[%s252 + $0x64] sm:$0xf] %vm10213, %v10046
        %10240 = vst.msk [vmem:[%s252 + $0x68] sm:$0xf] %vm10213, %v10047
        %10241 = vst.msk [vmem:[%s252 + $0x6c] sm:$0xf] %vm10213, %v10048
        %10242 = vst.msk [vmem:[%s252 + $0x70] sm:$0xf] %vm10213, %v10049
        %10243 = vst.msk [vmem:[%s252 + $0x74] sm:$0xf] %vm10213, %v10050
        %10244 = vst.msk [vmem:[%s252 + $0x78] sm:$0xf] %vm10213, %v10051
        %10245 = vst.msk [vmem:[%s252 + $0x7c] sm:$0xf] %vm10213, %v10052
        %10246 = vst.msk [vmem:[%s252 + $0x80] sm:$0xf] %vm10213, %v10053
        %10247 = vst.msk [vmem:[%s252 + $0x84] sm:$0xf] %vm10213, %v10054
        %10248 = vst.msk [vmem:[%s252 + $0x88] sm:$0xf] %vm10213, %v10055
        %10249 = vst.msk [vmem:[%s252 + $0x8c] sm:$0xf] %vm10213, %v10056
        %10250 = vst.msk [vmem:[%s252 + $0x90] sm:$0xf] %vm10213, %v10057
        %10251 = vst.msk [vmem:[%s252 + $0x94] sm:$0xf] %vm10213, %v10058
        %10252 = vst.msk [vmem:[%s252 + $0x98] sm:$0xf] %vm10213, %v10059
        %10253 = vst.msk [vmem:[%s252 + $0x9c] sm:$0xf] %vm10213, %v10060
        %10254 = vst.msk [vmem:[%s252 + $0xa0] sm:$0xf] %vm10213, %v10061
        %10255 = vst.msk [vmem:[%s252 + $0xa4] sm:$0xf] %vm10213, %v10062
        %10256 = vst.msk [vmem:[%s252 + $0xa8] sm:$0xf] %vm10213, %v10063
        %10257 = vst.msk [vmem:[%s252 + $0xac] sm:$0xf] %vm10213, %v10064
        %10258 = vst.msk [vmem:[%s252 + $0xb0] sm:$0xf] %vm10213, %v10065
        %10259 = vst.msk [vmem:[%s252 + $0xb4] sm:$0xf] %vm10213, %v10066
        %10260 = vst.msk [vmem:[%s252 + $0xb8] sm:$0xf] %vm10213, %v10067
        %10261 = vst.msk [vmem:[%s252 + $0xbc] sm:$0xf] %vm10213, %v10068
        %10262 = vst.msk [vmem:[%s252 + $0xc0] sm:$0xf] %vm10213, %v10069
        %10263 = vst.msk [vmem:[%s252 + $0xc4] sm:$0xf] %vm10213, %v10070
        %10264 = vst.msk [vmem:[%s252 + $0xc8] sm:$0xf] %vm10213, %v10071
        %10265 = vst.msk [vmem:[%s252 + $0xcc] sm:$0xf] %vm10213, %v10072
        %10266 = vst.msk [vmem:[%s252 + $0xd0] sm:$0xf] %vm10213, %v10073
        %10267 = vst.msk [vmem:[%s252 + $0xd4] sm:$0xf] %vm10213, %v10074
        %10268 = vst.msk [vmem:[%s252 + $0xd8] sm:$0xf] %vm10213, %v10075
        %10269 = vst.msk [vmem:[%s252 + $0xdc] sm:$0xf] %vm10213, %v10076
        %10270 = vst.msk [vmem:[%s252 + $0xe0] sm:$0xf] %vm10213, %v10077
        %10271 = vst.msk [vmem:[%s252 + $0xe4] sm:$0xf] %vm10213, %v10078
        %10272 = vst.msk [vmem:[%s252 + $0xe8] sm:$0xf] %vm10213, %v10079
        %10273 = vst.msk [vmem:[%s252 + $0xec] sm:$0xf] %vm10213, %v10080
        %10274 = vst.msk [vmem:[%s252 + $0xf0] sm:$0xf] %vm10213, %v10081
        %10275 = vst.msk [vmem:[%s252 + $0xf4] sm:$0xf] %vm10213, %v10082
        %10276 = vst.msk [vmem:[%s252 + $0xf8] sm:$0xf] %vm10213, %v10083
        %10277 = vst.msk [vmem:[%s252 + $0xfc] sm:$0xf] %vm10213, %v10084
        %10278 = vst.msk [vmem:[%s252 + $0x100] sm:$0xf] %vm10213, %v10085
        %10279 = vst.msk [vmem:[%s252 + $0x104] sm:$0xf] %vm10213, %v10086
        %10280 = vst.msk [vmem:[%s252 + $0x108] sm:$0xf] %vm10213, %v10087
        %10281 = vst.msk [vmem:[%s252 + $0x10c] sm:$0xf] %vm10213, %v10088
        %10282 = vst.msk [vmem:[%s252 + $0x110] sm:$0xf] %vm10213, %v10089
        %10283 = vst.msk [vmem:[%s252 + $0x114] sm:$0xf] %vm10213, %v10090
        %10284 = vst.msk [vmem:[%s252 + $0x118] sm:$0xf] %vm10213, %v10091
        %10285 = vst.msk [vmem:[%s252 + $0x11c] sm:$0xf] %vm10213, %v10092
        %10286 = vst.msk [vmem:[%s252 + $0x120] sm:$0xf] %vm10213, %v10093
        %10287 = vst.msk [vmem:[%s252 + $0x124] sm:$0xf] %vm10213, %v10094
        %10288 = vst.msk [vmem:[%s252 + $0x128] sm:$0xf] %vm10213, %v10095
        %10289 = vst.msk [vmem:[%s252 + $0x12c] sm:$0xf] %vm10213, %v10096
        %10290 = vst.msk [vmem:[%s252 + $0x130] sm:$0xf] %vm10213, %v10097
        %10291 = vst.msk [vmem:[%s252 + $0x134] sm:$0xf] %vm10213, %v10098
        %10292 = vst.msk [vmem:[%s252 + $0x138] sm:$0xf] %vm10213, %v10099
        %10293 = vst.msk [vmem:[%s252 + $0x13c] sm:$0xf] %vm10213, %v10100
        %10294 = vst.msk [vmem:[%s252 + $0x140] sm:$0xf] %vm10213, %v10101
        %10295 = vst.msk [vmem:[%s252 + $0x144] sm:$0xf] %vm10213, %v10102
        %10296 = vst.msk [vmem:[%s252 + $0x148] sm:$0xf] %vm10213, %v10103
        %10297 = vst.msk [vmem:[%s252 + $0x14c] sm:$0xf] %vm10213, %v10104
        %10298 = vst.msk [vmem:[%s252 + $0x150] sm:$0xf] %vm10213, %v10105
        %10299 = vst.msk [vmem:[%s252 + $0x154] sm:$0xf] %vm10213, %v10106
        %10300 = vst.msk [vmem:[%s252 + $0x158] sm:$0xf] %vm10213, %v10107
        %10301 = vst.msk [vmem:[%s252 + $0x15c] sm:$0xf] %vm10213, %v10108
        %10302 = vst.msk [vmem:[%s252 + $0x160] sm:$0xf] %vm10213, %v10109
        %10303 = vst.msk [vmem:[%s252 + $0x164] sm:$0xf] %vm10213, %v10110
        %10304 = vst.msk [vmem:[%s252 + $0x168] sm:$0xf] %vm10213, %v10111
        %10305 = vst.msk [vmem:[%s252 + $0x16c] sm:$0xf] %vm10213, %v10112
        %10306 = vst.msk [vmem:[%s252 + $0x170] sm:$0xf] %vm10213, %v10113
        %10307 = vst.msk [vmem:[%s252 + $0x174] sm:$0xf] %vm10213, %v10114
        %10308 = vst.msk [vmem:[%s252 + $0x178] sm:$0xf] %vm10213, %v10115
        %10309 = vst.msk [vmem:[%s252 + $0x17c] sm:$0xf] %vm10213, %v10116
        %s10310 = sand.u32 %s123, 1
        %s10311 = scalar_lea.sflag [#allocation4], %s10310
        %s10312 = sand.u32 %s123, 1
        %s10313 = smul.addr %s10312, 384
        %s10314 = scalar_lea.vmem [#allocation8], %s10313
        // Predicated region
        $region45: #{attention_forward.4} parent=31 // pred_check
          %p10315 = pneg %p133
        $region46: #{attention_forward.4} parent=31 // pred_check_branch
          %10317 = sbr.rel (%p10315) target = $region48
        $region47: #{attention_forward.4} parent=31 // pred_region
          %s10318 = smul.u32 48, %s26
          %s10320 = ssub.s32 6144, 6144
          %10321 = vsyncadd %s10311, %s10320
          %s10322 = smul.addr %s10318, 2
          %s10323 = smul.addr %s25, 96
          %s10324 = sadd.s32 %s10322, %s10323
          %s10325 = smul.addr %s10324, 64
          %s10326 = scalar_lea.hbm %s3, %s10325
          %s10327 = sshll.u32 %s10314, 4
          %s10328 = int_to_ptr.vmem [resolvable:$true] %s10327
          %10333 = dma.vmem_to_hbm [thread:$0]  %s10328, 6144, %s10326, %s10311, 64, 64, 4
        $region48: #{attention_forward.4} parent=31 // pred_fallthru
          _
      $region32: #{attention_forward.4} parent=5 // pred_fallthru
        _
      %p10334 = scmp.le.s32.totalorder 2, %s16
      // Predicated region
      $region49: #{attention_forward.4} parent=5 // pred_check
        %p10335 = pneg %p10334
      $region50: #{attention_forward.4} parent=5 // pred_check_branch
        %10337 = sbr.rel (%p10335) target = $region52
      $region51: #{attention_forward.4} parent=5 // pred_region
        %s10338 = ssub.s32 %s16, 2
        // Predicated region
        $region53: #{attention_forward.4} parent=51 // pred_check
          %p10339 = pneg %p139
        $region54: #{attention_forward.4} parent=51 // pred_check_branch
          %10341 = sbr.rel (%p10339) target = $region56
        $region55: #{attention_forward.4} parent=51 // pred_region
          %s10342 = sand.u32 %s124, 1
          %s10343 = scalar_lea.sflag [#allocation4], %s10342
          %s10344 = sand.u32 %s124, 1
          %s10345 = smul.addr %s10344, 384
          %s10346 = scalar_lea.vmem [#allocation8], %s10345
          %10347 = dma.done %s10343, 6144
        $region56: #{attention_forward.4} parent=51 // pred_fallthru
          _
      $region52: #{attention_forward.4} parent=5 // pred_fallthru
        _
    $region6: #{attention_forward.4} parent=1 // loop_footer
      %s20 = sadd.s32 1, %s16
    $region7: #{attention_forward.4} parent=1 // loop_footer_branch
      %15 = sbr.rel target = $region3
    $region8: #{attention_forward.4} parent=1 // loop_exit
      _
    %10348 = vsyncpa [#allocation3], 1
    %s10349 = scalar_lea.sflag [#allocation3], 1
    %10350 = vsyncpa %s10349, 1
    %10351 = vsyncpa [#allocation6], 1
    %10352 = vsyncpa [#allocation4], 1
    %s10353 = scalar_lea.sflag [#allocation4], 1
    %10354 = vsyncpa %s10353, 1

</llo_original>
